<compile_context>
chip_gen: v6e
topology: v6e:2x2x1
jax: 0.10.0
libtpu: 0.0.40
codegen_flags: <defaults>
</compile_context>

<pallas_src>
import jax
import jax.numpy as jnp
from jax.experimental import pallas as pl
from jax.experimental.pallas import tpu as pltpu

H1 = 512
H2 = 1024
A_PAD = 128        # lane-dense padded action dimension
TB_MAX = 256       # preferred batch tile (MXU-matched on v6e/v7x)
NEG_BIG = -1e30    # effective -inf for padded logit columns (avoids inf math)


def policy_kernel(x_ref, w1_ref, b1_ref, w2_ref, b2_ref, w3_ref, b3_ref,
                  out_ref):
    # fc1 + relu  (bf16 MXU inputs, f32 accumulation)
    h1 = jnp.dot(x_ref[...], w1_ref[...], preferred_element_type=jnp.float32)
    h1 = jnp.maximum(h1 + b1_ref[...], 0.0)

    # fc2 + relu
    h2 = jnp.dot(h1.astype(jnp.bfloat16), w2_ref[...],
                 preferred_element_type=jnp.float32)
    h2 = jnp.maximum(h2 + b2_ref[...], 0.0)

    # fc3 (lane-padded to 128 columns) + softmax over the feature axis.
    # Padded columns carry a ~-inf bias so exp() == 0 there and the softmax
    # denominator only sums the real action_dim columns.
    logits = jnp.dot(h2.astype(jnp.bfloat16), w3_ref[...],
                     preferred_element_type=jnp.float32)
    logits = logits + b3_ref[...]
    m = jnp.max(logits, axis=-1, keepdims=True)
    e = jnp.exp(logits - m)
    denom = jnp.sum(e, axis=-1, keepdims=True)
    # TODO(synk): PyTorch computes this softmax in float64 (dtype=torch.double);
    # TPU has no native f64, so it is computed/stored in float32 here.
    out_ref[...] = e / denom   # exact divide: rows sum to 1 (feeds sampling)


def _choose_tb(batch, tb_max=TB_MAX):
    """Pick the batch tile: prefer tb_max, but keep >= 2 grid steps (v7x
    megacore split) when the batch allows; never drop below 128."""
    tb = tb_max
    while tb > 128 and pl.cdiv(batch, tb) < 2:
        tb //= 2
    return tb


def policy_net_forward(x, kernel_params, action_dim, tb_max=TB_MAX,
                       single_buffer_weights=True):
    """x: [B, state_dim] f32. kernel_params from prepare_kernel_params."""
    w1, b1, w2, b2, w3p, b3p = kernel_params
    B, state_dim = x.shape

    tb = _choose_tb(B, tb_max)
    n_tiles = pl.cdiv(B, tb)
    b_pad = n_tiles * tb

    # Halve the input-activation HBM stream; kernel consumes bf16 directly.
    x = x.astype(jnp.bfloat16)
    if b_pad != B:
        x = jnp.pad(x, ((0, b_pad - B), (0, 0)))

    def weight_spec(shape):
        # Constant block index across the grid: single buffer (no wasted
        # double-buffer VMEM / pipeline bookkeeping).
        if single_buffer_weights:
            return pl.BlockSpec(shape, lambda i: (0, 0),
                                pipeline_mode=pl.Buffered(1))
        return pl.BlockSpec(shape, lambda i: (0, 0))

    # Scale scoped VMEM with the tile; 32 MiB leaves headroom on v7x (64 MiB/TC)
    # and is above the v5e 16 MiB scoped default needed at TB>=256.
    vmem_limit = (32 << 20) if tb >= 256 else (16 << 20)

    out_padded = pl.pallas_call(
        policy_kernel,
        grid=(n_tiles,),
        in_specs=[
            pl.BlockSpec((tb, state_dim), lambda i: (i, 0)),
            weight_spec(w1.shape), weight_spec(b1.shape),
            weight_spec(w2.shape), weight_spec(b2.shape),
            weight_spec(w3p.shape), weight_spec(b3p.shape),
        ],
        out_specs=pl.BlockSpec((tb, A_PAD), lambda i: (i, 0)),
        out_shape=jax.ShapeDtypeStruct((b_pad, A_PAD), jnp.float32),
        compiler_params=pltpu.CompilerParams(
            dimension_semantics=("parallel",),
            vmem_limit_bytes=vmem_limit,
        ),
    )(x, w1, b1, w2, b2, w3p, b3p)

    return out_padded[:B, :action_dim]


def init_params(key, state_dim, action_dim):
    """Deterministic init mimicking PyTorch Linear default (U[-1/sqrt(fan_in), +]).

    Returns f32 weights in [in, out] layout and biases as [1, out]."""
    def linear(key, fan_in, fan_out):
        kw, kb = jax.random.split(key)
        bound = 1.0 / jnp.sqrt(jnp.float32(fan_in))
        w = jax.random.uniform(kw, (fan_in, fan_out), jnp.float32, -bound, bound)
        b = jax.random.uniform(kb, (1, fan_out), jnp.float32, -bound, bound)
        return w, b

    k1, k2, k3 = jax.random.split(key, 3)
    w1, b1 = linear(k1, state_dim, H1)
    w2, b2 = linear(k2, H1, H2)
    w3, b3 = linear(k3, H2, action_dim)
    return (w1, b1, w2, b2, w3, b3)


def prepare_kernel_params(params, action_dim):
    """Cast weights to bf16 and lane-pad the final layer to A_PAD columns."""
    w1, b1, w2, b2, w3, b3 = params
    w3p = jnp.zeros((H2, A_PAD), jnp.bfloat16).at[:, :action_dim].set(
        w3.astype(jnp.bfloat16))
    b3p = jnp.full((1, A_PAD), NEG_BIG, jnp.float32).at[:, :action_dim].set(b3)
    return (w1.astype(jnp.bfloat16), b1,
            w2.astype(jnp.bfloat16), b2,
            w3p, b3p)


def reference_forward(x, kernel_params, action_dim):
    """Pure-JAX reference using the same bf16-quantized weights."""
    w1, b1, w2, b2, w3p, b3p = kernel_params
    h1 = jnp.maximum(
        jnp.dot(x.astype(jnp.bfloat16), w1,
                preferred_element_type=jnp.float32) + b1, 0.0)
    h2 = jnp.maximum(
        jnp.dot(h1.astype(jnp.bfloat16), w2,
                preferred_element_type=jnp.float32) + b2, 0.0)
    logits = jnp.dot(h2.astype(jnp.bfloat16), w3p,
                     preferred_element_type=jnp.float32) + b3p
    logits = logits[:, :action_dim]
    return jax.nn.softmax(logits, axis=1)


if __name__ == "__main__":
    state_dim = 32
    action_dim = 8
    batch = 512   # two TB=256 tiles -> exercises the batch grid + megacore path

    key = jax.random.PRNGKey(0)
    k_params, k_x = jax.random.split(key)

    params = init_params(k_params, state_dim, action_dim)
    kparams = prepare_kernel_params(params, action_dim)
    x = jax.random.normal(k_x, (batch, state_dim), jnp.float32)

    try:
        out = jax.block_until_ready(
            policy_net_forward(x, kparams, action_dim))
    except Exception:
        # Compat fallback for jax builds where BlockSpec.pipeline_mode is not
        # honored by pallas_call: use default double-buffered weight specs.
        out = jax.block_until_ready(
            policy_net_forward(x, kparams, action_dim,
                               single_buffer_weights=False))

    ref = reference_forward(x, kparams, action_dim)

    assert out.shape == (batch, action_dim)
    row_sums = jnp.sum(out, axis=1)
    assert bool(jnp.all(jnp.abs(row_sums - 1.0) < 1e-3))
    assert bool(jnp.all(jnp.abs(out - ref) < 2e-2))

    print("KERNEL_OK")
</pallas_src>

<mosaic_0001>
module attributes {stable_mosaic.version = 11 : i64} {
  func.func @policy_kernel(%arg0: i32, %arg1: memref<256x32xbf16, #tpu.memory_space<vmem>>, %arg2: memref<32x512xbf16, #tpu.memory_space<vmem>>, %arg3: memref<1x512xf32, #tpu.memory_space<vmem>>, %arg4: memref<512x1024xbf16, #tpu.memory_space<vmem>>, %arg5: memref<1x1024xf32, #tpu.memory_space<vmem>>, %arg6: memref<1024x128xbf16, #tpu.memory_space<vmem>>, %arg7: memref<1x128xf32, #tpu.memory_space<vmem>>, %arg8: memref<256x128xf32, #tpu.memory_space<vmem>>) attributes {dimension_semantics = [#tpu.dimension_semantics<parallel>], iteration_bounds = array<i64: 2>, scalar_prefetch = 0 : i64, scratch_operands = 0 : i64, tpu.core_type = #tpu.core_type<tc>, window_params = [{transform_indices = @transform_0, window_bounds = array<i64: 256, 32>}, {pipeline_mode = #tpu.pipeline_mode<synchronous>, transform_indices = @transform_1, window_bounds = array<i64: 32, 512>}, {pipeline_mode = #tpu.pipeline_mode<synchronous>, transform_indices = @transform_2, window_bounds = array<i64: 1, 512>}, {pipeline_mode = #tpu.pipeline_mode<synchronous>, transform_indices = @transform_3, window_bounds = array<i64: 512, 1024>}, {pipeline_mode = #tpu.pipeline_mode<synchronous>, transform_indices = @transform_4, window_bounds = array<i64: 1, 1024>}, {pipeline_mode = #tpu.pipeline_mode<synchronous>, transform_indices = @transform_5, window_bounds = array<i64: 1024, 128>}, {pipeline_mode = #tpu.pipeline_mode<synchronous>, transform_indices = @transform_6, window_bounds = array<i64: 1, 128>}, {transform_indices = @transform_7, window_bounds = array<i64: 256, 128>}]} {
    %c0 = arith.constant 0 : index
    %c0_0 = arith.constant 0 : index
    %0 = vector.load %arg1[%c0, %c0_0] : memref<256x32xbf16, #tpu.memory_space<vmem>>, vector<256x32xbf16>
    %c0_1 = arith.constant 0 : index
    %c0_2 = arith.constant 0 : index
    %1 = vector.load %arg2[%c0_1, %c0_2] : memref<32x512xbf16, #tpu.memory_space<vmem>>, vector<32x512xbf16>
    %cst = arith.constant dense<0.000000e+00> : vector<256x512xf32>
    %2 = tpu.matmul %0, %1, %cst {dimension_numbers = #tpu.dot_dimension_numbers<[1], [0], [0], [1], [0, 0, 1, 1], [], []>} : vector<256x32xbf16>, vector<32x512xbf16>, vector<256x512xf32> -> vector<256x512xf32>
    %c0_3 = arith.constant 0 : index
    %c0_4 = arith.constant 0 : index
    %3 = vector.load %arg3[%c0_3, %c0_4] : memref<1x512xf32, #tpu.memory_space<vmem>>, vector<1x512xf32>
    %4 = vector.broadcast %3 : vector<1x512xf32> to vector<256x512xf32>
    %5 = arith.addf %2, %4 : vector<256x512xf32>
    %cst_5 = arith.constant 0.000000e+00 : f32
    %6 = vector.broadcast %cst_5 : f32 to vector<256x512xf32>
    %7 = arith.maximumf %5, %6 : vector<256x512xf32>
    %8 = arith.truncf %7 : vector<256x512xf32> to vector<256x512xbf16>
    %c0_6 = arith.constant 0 : index
    %c0_7 = arith.constant 0 : index
    %9 = vector.load %arg4[%c0_6, %c0_7] : memref<512x1024xbf16, #tpu.memory_space<vmem>>, vector<512x1024xbf16>
    %cst_8 = arith.constant dense<0.000000e+00> : vector<256x1024xf32>
    %10 = tpu.matmul %8, %9, %cst_8 {dimension_numbers = #tpu.dot_dimension_numbers<[1], [0], [0], [1], [0, 0, 1, 1], [], []>} : vector<256x512xbf16>, vector<512x1024xbf16>, vector<256x1024xf32> -> vector<256x1024xf32>
    %c0_9 = arith.constant 0 : index
    %c0_10 = arith.constant 0 : index
    %11 = vector.load %arg5[%c0_9, %c0_10] : memref<1x1024xf32, #tpu.memory_space<vmem>>, vector<1x1024xf32>
    %12 = vector.broadcast %11 : vector<1x1024xf32> to vector<256x1024xf32>
    %13 = arith.addf %10, %12 : vector<256x1024xf32>
    %cst_11 = arith.constant 0.000000e+00 : f32
    %14 = vector.broadcast %cst_11 : f32 to vector<256x1024xf32>
    %15 = arith.maximumf %13, %14 : vector<256x1024xf32>
    %16 = arith.truncf %15 : vector<256x1024xf32> to vector<256x1024xbf16>
    %c0_12 = arith.constant 0 : index
    %c0_13 = arith.constant 0 : index
    %17 = vector.load %arg6[%c0_12, %c0_13] : memref<1024x128xbf16, #tpu.memory_space<vmem>>, vector<1024x128xbf16>
    %cst_14 = arith.constant dense<0.000000e+00> : vector<256x128xf32>
    %18 = tpu.matmul %16, %17, %cst_14 {dimension_numbers = #tpu.dot_dimension_numbers<[1], [0], [0], [1], [0, 0, 1, 1], [], []>} : vector<256x1024xbf16>, vector<1024x128xbf16>, vector<256x128xf32> -> vector<256x128xf32>
    %c0_15 = arith.constant 0 : index
    %c0_16 = arith.constant 0 : index
    %19 = vector.load %arg7[%c0_15, %c0_16] : memref<1x128xf32, #tpu.memory_space<vmem>>, vector<1x128xf32>
    %20 = vector.broadcast %19 : vector<1x128xf32> to vector<256x128xf32>
    %21 = arith.addf %18, %20 : vector<256x128xf32>
    %cst_17 = arith.constant dense<0xFF800000> : vector<256xf32>
    %22 = vector.multi_reduction <maximumf>, %21, %cst_17 [1] : vector<256x128xf32> to vector<256xf32>
    %23 = vector.shape_cast %22 : vector<256xf32> to vector<256x1xf32>
    %24 = vector.broadcast %23 : vector<256x1xf32> to vector<256x128xf32>
    %25 = arith.subf %21, %24 : vector<256x128xf32>
    %26 = math.exp %25 : vector<256x128xf32>
    %cst_18 = arith.constant dense<0.000000e+00> : vector<256xf32>
    %27 = vector.multi_reduction <add>, %26, %cst_18 [1] : vector<256x128xf32> to vector<256xf32>
    %28 = vector.shape_cast %27 : vector<256xf32> to vector<256x1xf32>
    %29 = vector.broadcast %28 : vector<256x1xf32> to vector<256x128xf32>
    %30 = arith.divf %26, %29 : vector<256x128xf32>
    %c0_19 = arith.constant 0 : index
    %c0_20 = arith.constant 0 : index
    %31 = vector.load %arg8[%c0_19, %c0_20] : memref<256x128xf32, #tpu.memory_space<vmem>>, vector<256x128xf32>
    tpu.vector_store %arg8[%c0_19, %c0_20], %30 {strides = array<i32>} : memref<256x128xf32, #tpu.memory_space<vmem>>, vector<256x128xf32>,
    return
  }
  func.func @transform_0(%arg0: i32) -> (i32, i32) {
    %c0_i32 = arith.constant 0 : i32
    %c0_i32_0 = arith.constant 0 : i32
    return %arg0, %c0_i32 : i32, i32
  }
  func.func @transform_1(%arg0: i32) -> (i32, i32) {
    %c0_i32 = arith.constant 0 : i32
    %c0_i32_0 = arith.constant 0 : i32
    %c0_i32_1 = arith.constant 0 : i32
    return %c0_i32, %c0_i32_0 : i32, i32
  }
  func.func @transform_2(%arg0: i32) -> (i32, i32) {
    %c0_i32 = arith.constant 0 : i32
    %c0_i32_0 = arith.constant 0 : i32
    %c0_i32_1 = arith.constant 0 : i32
    return %c0_i32, %c0_i32_0 : i32, i32
  }
  func.func @transform_3(%arg0: i32) -> (i32, i32) {
    %c0_i32 = arith.constant 0 : i32
    %c0_i32_0 = arith.constant 0 : i32
    %c0_i32_1 = arith.constant 0 : i32
    return %c0_i32, %c0_i32_0 : i32, i32
  }
  func.func @transform_4(%arg0: i32) -> (i32, i32) {
    %c0_i32 = arith.constant 0 : i32
    %c0_i32_0 = arith.constant 0 : i32
    %c0_i32_1 = arith.constant 0 : i32
    return %c0_i32, %c0_i32_0 : i32, i32
  }
  func.func @transform_5(%arg0: i32) -> (i32, i32) {
    %c0_i32 = arith.constant 0 : i32
    %c0_i32_0 = arith.constant 0 : i32
    %c0_i32_1 = arith.constant 0 : i32
    return %c0_i32, %c0_i32_0 : i32, i32
  }
  func.func @transform_6(%arg0: i32) -> (i32, i32) {
    %c0_i32 = arith.constant 0 : i32
    %c0_i32_0 = arith.constant 0 : i32
    %c0_i32_1 = arith.constant 0 : i32
    return %c0_i32, %c0_i32_0 : i32, i32
  }
  func.func @transform_7(%arg0: i32) -> (i32, i32) {
    %c0_i32 = arith.constant 0 : i32
    %c0_i32_0 = arith.constant 0 : i32
    return %arg0, %c0_i32 : i32, i32
  }
}

module attributes {stable_mosaic.version = 11 : i64} {
  func.func @policy_kernel(%arg0: i32, %arg1: memref<256x32xbf16, #tpu.memory_space<vmem>>, %arg2: memref<32x512xbf16, #tpu.memory_space<vmem>>, %arg3: memref<1x512xf32, #tpu.memory_space<vmem>>, %arg4: memref<512x1024xbf16, #tpu.memory_space<vmem>>, %arg5: memref<1x1024xf32, #tpu.memory_space<vmem>>, %arg6: memref<1024x128xbf16, #tpu.memory_space<vmem>>, %arg7: memref<1x128xf32, #tpu.memory_space<vmem>>, %arg8: memref<256x128xf32, #tpu.memory_space<vmem>>) attributes {dimension_semantics = [#tpu.dimension_semantics<parallel>], iteration_bounds = array<i64: 2>, scalar_prefetch = 0 : i64, scratch_operands = 0 : i64, tpu.core_type = #tpu.core_type<tc>, window_params = [{transform_indices = @transform_0, window_bounds = array<i64: 256, 32>}, {pipeline_mode = #tpu.pipeline_mode<synchronous>, transform_indices = @transform_1, window_bounds = array<i64: 32, 512>}, {pipeline_mode = #tpu.pipeline_mode<synchronous>, transform_indices = @transform_2, window_bounds = array<i64: 1, 512>}, {pipeline_mode = #tpu.pipeline_mode<synchronous>, transform_indices = @transform_3, window_bounds = array<i64: 512, 1024>}, {pipeline_mode = #tpu.pipeline_mode<synchronous>, transform_indices = @transform_4, window_bounds = array<i64: 1, 1024>}, {pipeline_mode = #tpu.pipeline_mode<synchronous>, transform_indices = @transform_5, window_bounds = array<i64: 1024, 128>}, {pipeline_mode = #tpu.pipeline_mode<synchronous>, transform_indices = @transform_6, window_bounds = array<i64: 1, 128>}, {transform_indices = @transform_7, window_bounds = array<i64: 256, 128>}]} {
    %c0 = arith.constant 0 : index
    %c0_0 = arith.constant 0 : index
    %0 = vector.load %arg1[%c0, %c0_0] : memref<256x32xbf16, #tpu.memory_space<vmem>>, vector<256x32xbf16>
    %c0_1 = arith.constant 0 : index
    %c0_2 = arith.constant 0 : index
    %1 = vector.load %arg2[%c0_1, %c0_2] : memref<32x512xbf16, #tpu.memory_space<vmem>>, vector<32x512xbf16>
    %cst = arith.constant dense<0.000000e+00> : vector<256x512xf32>
    %2 = tpu.matmul %0, %1, %cst {dimension_numbers = #tpu.dot_dimension_numbers<[1], [0], [0], [1], [0, 0, 1, 1], [], []>} : vector<256x32xbf16>, vector<32x512xbf16>, vector<256x512xf32> -> vector<256x512xf32>
    %c0_3 = arith.constant 0 : index
    %c0_4 = arith.constant 0 : index
    %3 = vector.load %arg3[%c0_3, %c0_4] : memref<1x512xf32, #tpu.memory_space<vmem>>, vector<1x512xf32>
    %4 = vector.broadcast %3 : vector<1x512xf32> to vector<256x512xf32>
    %5 = arith.addf %2, %4 : vector<256x512xf32>
    %cst_5 = arith.constant 0.000000e+00 : f32
    %6 = vector.broadcast %cst_5 : f32 to vector<256x512xf32>
    %7 = arith.maximumf %5, %6 : vector<256x512xf32>
    %8 = arith.truncf %7 : vector<256x512xf32> to vector<256x512xbf16>
    %c0_6 = arith.constant 0 : index
    %c0_7 = arith.constant 0 : index
    %9 = vector.load %arg4[%c0_6, %c0_7] : memref<512x1024xbf16, #tpu.memory_space<vmem>>, vector<512x1024xbf16>
    %cst_8 = arith.constant dense<0.000000e+00> : vector<256x1024xf32>
    %10 = tpu.matmul %8, %9, %cst_8 {dimension_numbers = #tpu.dot_dimension_numbers<[1], [0], [0], [1], [0, 0, 1, 1], [], []>} : vector<256x512xbf16>, vector<512x1024xbf16>, vector<256x1024xf32> -> vector<256x1024xf32>
    %c0_9 = arith.constant 0 : index
    %c0_10 = arith.constant 0 : index
    %11 = vector.load %arg5[%c0_9, %c0_10] : memref<1x1024xf32, #tpu.memory_space<vmem>>, vector<1x1024xf32>
    %12 = vector.broadcast %11 : vector<1x1024xf32> to vector<256x1024xf32>
    %13 = arith.addf %10, %12 : vector<256x1024xf32>
    %cst_11 = arith.constant 0.000000e+00 : f32
    %14 = vector.broadcast %cst_11 : f32 to vector<256x1024xf32>
    %15 = arith.maximumf %13, %14 : vector<256x1024xf32>
    %16 = arith.truncf %15 : vector<256x1024xf32> to vector<256x1024xbf16>
    %c0_12 = arith.constant 0 : index
    %c0_13 = arith.constant 0 : index
    %17 = vector.load %arg6[%c0_12, %c0_13] : memref<1024x128xbf16, #tpu.memory_space<vmem>>, vector<1024x128xbf16>
    %cst_14 = arith.constant dense<0.000000e+00> : vector<256x128xf32>
    %18 = tpu.matmul %16, %17, %cst_14 {dimension_numbers = #tpu.dot_dimension_numbers<[1], [0], [0], [1], [0, 0, 1, 1], [], []>} : vector<256x1024xbf16>, vector<1024x128xbf16>, vector<256x128xf32> -> vector<256x128xf32>
    %c0_15 = arith.constant 0 : index
    %c0_16 = arith.constant 0 : index
    %19 = vector.load %arg7[%c0_15, %c0_16] : memref<1x128xf32, #tpu.memory_space<vmem>>, vector<1x128xf32>
    %20 = vector.broadcast %19 : vector<1x128xf32> to vector<256x128xf32>
    %21 = arith.addf %18, %20 : vector<256x128xf32>
    %cst_17 = arith.constant dense<0xFF800000> : vector<256xf32>
    %22 = vector.multi_reduction <maximumf>, %21, %cst_17 [1] : vector<256x128xf32> to vector<256xf32>
    %23 = vector.shape_cast %22 : vector<256xf32> to vector<256x1xf32>
    %24 = vector.broadcast %23 : vector<256x1xf32> to vector<256x128xf32>
    %25 = arith.subf %21, %24 : vector<256x128xf32>
    %26 = math.exp %25 : vector<256x128xf32>
    %cst_18 = arith.constant dense<0.000000e+00> : vector<256xf32>
    %27 = vector.multi_reduction <add>, %26, %cst_18 [1] : vector<256x128xf32> to vector<256xf32>
    %28 = vector.shape_cast %27 : vector<256xf32> to vector<256x1xf32>
    %29 = vector.broadcast %28 : vector<256x1xf32> to vector<256x128xf32>
    %30 = arith.divf %26, %29 : vector<256x128xf32>
    %c0_19 = arith.constant 0 : index
    %c0_20 = arith.constant 0 : index
    %31 = vector.load %arg8[%c0_19, %c0_20] : memref<256x128xf32, #tpu.memory_space<vmem>>, vector<256x128xf32>
    tpu.vector_store %arg8[%c0_19, %c0_20], %30 {strides = array<i32>} : memref<256x128xf32, #tpu.memory_space<vmem>>, vector<256x128xf32>,
    return
  }
  func.func @transform_0(%arg0: i32) -> (i32, i32) {
    %c0_i32 = arith.constant 0 : i32
    %c0_i32_0 = arith.constant 0 : i32
    return %arg0, %c0_i32 : i32, i32
  }
  func.func @transform_1(%arg0: i32) -> (i32, i32) {
    %c0_i32 = arith.constant 0 : i32
    %c0_i32_0 = arith.constant 0 : i32
    %c0_i32_1 = arith.constant 0 : i32
    return %c0_i32, %c0_i32_0 : i32, i32
  }
  func.func @transform_2(%arg0: i32) -> (i32, i32) {
    %c0_i32 = arith.constant 0 : i32
    %c0_i32_0 = arith.constant 0 : i32
    %c0_i32_1 = arith.constant 0 : i32
    return %c0_i32, %c0_i32_0 : i32, i32
  }
  func.func @transform_3(%arg0: i32) -> (i32, i32) {
    %c0_i32 = arith.constant 0 : i32
    %c0_i32_0 = arith.constant 0 : i32
    %c0_i32_1 = arith.constant 0 : i32
    return %c0_i32, %c0_i32_0 : i32, i32
  }
  func.func @transform_4(%arg0: i32) -> (i32, i32) {
    %c0_i32 = arith.constant 0 : i32
    %c0_i32_0 = arith.constant 0 : i32
    %c0_i32_1 = arith.constant 0 : i32
    return %c0_i32, %c0_i32_0 : i32, i32
  }
  func.func @transform_5(%arg0: i32) -> (i32, i32) {
    %c0_i32 = arith.constant 0 : i32
    %c0_i32_0 = arith.constant 0 : i32
    %c0_i32_1 = arith.constant 0 : i32
    return %c0_i32, %c0_i32_0 : i32, i32
  }
  func.func @transform_6(%arg0: i32) -> (i32, i32) {
    %c0_i32 = arith.constant 0 : i32
    %c0_i32_0 = arith.constant 0 : i32
    %c0_i32_1 = arith.constant 0 : i32
    return %c0_i32, %c0_i32_0 : i32, i32
  }
  func.func @transform_7(%arg0: i32) -> (i32, i32) {
    %c0_i32 = arith.constant 0 : i32
    %c0_i32_0 = arith.constant 0 : i32
    return %arg0, %c0_i32 : i32, i32
  }
}

</mosaic_0001>

<llo_original>
// kernel: tpu_custom_call.1
$region0: #{tpu_custom_call.1}
  #allocation0 [shape = 'u32[]', space=smem, size = 0x4, offset = 0x4, fixed_abs, tag = 'smem constant byte address 0x4 - core index']
  #allocation1 [shape = 'u32[144,128]{1,0:T(1,128)}', space=vmem, size = 0x12000, scoped, tag = 'internal scratch']
  %s0 = inlined_call_operand.vmem [shape: bf16[512,32], index: 0, kind: input, shape index: {}]
  %s1 = inlined_call_operand.vmem [shape: bf16[32,512], index: 1, kind: input, shape index: {}]
  %s2 = inlined_call_operand.vmem [shape: f32[1,512], index: 2, kind: input, shape index: {}]
  %s3 = inlined_call_operand.hbm [shape: bf16[512,1024], index: 3, kind: input, shape index: {}]
  %s4 = inlined_call_operand.vmem [shape: f32[1,1024], index: 4, kind: input, shape index: {}]
  %s5 = inlined_call_operand.hbm [shape: bf16[1024,128], index: 5, kind: input, shape index: {}]
  %s6 = inlined_call_operand.vmem [shape: f32[1,128], index: 6, kind: input, shape index: {}]
  %s7 = inlined_call_operand.hbm [shape: f32[512,128], index: 7, kind: output, shape index: {}]
  %s8 = sld [smem:[#allocation0]]
  $region69: #{tpu_custom_call.1} parent=0
    _
  %s10 = ssub.s32 1, %s8
  %s11 = scalar_select 0, %s10, %s8
  $region1: #{tpu_custom_call.1} parent=0
    #allocation2 [shape = 'u8[1048576]{0}', space=vmem, size = 0x100000, scoped, tag = 'input window, operand 3, single buffered']
    #allocation3 [shape = 's32[2]{0}', space=sflag, size = 0x8, scoped, tag = 'scoped memory for tpu_custom_call.1']
    #allocation4 [shape = 's32[2]{0}', space=sflag, size = 0x8, scoped, tag = 'scoped memory for tpu_custom_call.1']
    #allocation5 [shape = 'u8[262144]{0}', space=vmem, size = 0x40000, scoped, tag = 'input window, operand 5, single buffered']
    #allocation6 [shape = 's32[1]{0}', space=sflag, size = 0x4, scoped, tag = 'scoped memory for tpu_custom_call.1']
    #allocation7 [shape = 'u8[262144]{0}', space=vmem, size = 0x40000, scoped, tag = 'output window, operand 0']
    %12 = vsyncpa [#allocation3], 0
    %13 = vsyncpa [#allocation6], 0
    %14 = vsyncpa [#allocation4], 0
    %s15 = scalar_lea.sflag [#allocation4], 1
    %16 = vsyncpa %s15, 0
    loop: start=0, step=1, limit=4
    $region2: #{tpu_custom_call.1} parent=1 // loop_pre_header
      _
    $region3: #{tpu_custom_call.1} parent=1 // loop_header
      %s18 = sphi 0, %s22
      %p19 = scmp.ge.s32.totalorder %s18, 4
      %s28 = sphi 0, %s30
      %s31 = sphi 0, %s28
      %s32 = sphi 0, %s31
      %s48 = sphi 0, %s32
      %s52 = sphi 0, %s52
      %s54 = sphi 0, %s52
      %s55 = sphi 0, %s54
      %s69 = sphi 0, %s55
      %s73 = sphi 0, %s73
      %s75 = sphi 0, %s73
      %s76 = sphi 0, %s75
      %s90 = sphi 0, %s76
      %s94 = sphi 0, %s94
      %s96 = sphi 0, %s94
      %s97 = sphi 0, %s96
      %s111 = sphi 0, %s97
      %s115 = sphi 0, %s115
      %s117 = sphi 0, %s115
      %s118 = sphi 0, %s117
      %s132 = sphi 0, %s118
      %s136 = sphi 0, %s136
      %s138 = sphi 0, %s136
      %s139 = sphi 0, %s138
      %s153 = sphi 0, %s139
      %s157 = sphi 0, %s157
      %s159 = sphi 0, %s157
      %s160 = sphi 0, %s159
      %s174 = sphi 0, %s160
      %s180 = sphi 0, %s182
      %s183 = sphi 0, %s180
      %s184 = sphi 0, %s183
      %s200 = sphi 0, %s184
    $region4: #{tpu_custom_call.1} parent=1 // loop_header_branch
      %21 = sbr.rel (%p19) target = $region8
    $region5: #{tpu_custom_call.1} parent=1 // loop_body
      %s23 = ssub.s32 %s18, 1
      %s24 = ssub.s32 %s18, 2
      %s25 = sadd.s32 %s18, 1
      %s26 = ssub.s32 %s18, %s25
      %p27 = scmp.eq.s32.totalorder %s26, 0
      %s29 = sadd.s32 %s28, 1
      %s30 = scalar_select %p27, %s28, %s29
      %p33 = pneg %p27
      %p34 = scmp.eq.s32.totalorder %s18, 1
      %p35 = por %p33, %p34
      %p36 = scmp.ne.s32.totalorder %s28, %s31
      %p37 = scmp.eq.s32.totalorder %s18, 0
      %p38 = por %p36, %p37
      %p39 = scmp.ne.s32.totalorder %s28, %s31
      %p40 = scmp.eq.s32.totalorder %s23, 1
      %p41 = por %p39, %p40
      %p42 = scmp.ne.s32.totalorder %s31, %s32
      %p43 = scmp.eq.s32.totalorder %s23, 0
      %p44 = por %p42, %p43
      %p45 = scmp.ne.s32.totalorder %s31, %s32
      %p46 = scmp.eq.s32.totalorder %s24, 1
      %p47 = por %p45, %p46
      %p49 = scmp.ne.s32.totalorder %s32, %s48
      %p50 = scmp.eq.s32.totalorder %s24, 0
      %p51 = por %p49, %p50
      %s53 = sadd.s32 %s52, 1
      %p56 = scmp.eq.s32.totalorder %s18, 1
      %p57 = scmp.ne.s32.totalorder %s52, %s54
      %p58 = scmp.eq.s32.totalorder %s18, 0
      %p59 = por %p57, %p58
      %p60 = scmp.ne.s32.totalorder %s52, %s54
      %p61 = scmp.eq.s32.totalorder %s23, 1
      %p62 = por %p60, %p61
      %p63 = scmp.ne.s32.totalorder %s54, %s55
      %p64 = scmp.eq.s32.totalorder %s23, 0
      %p65 = por %p63, %p64
      %p66 = scmp.ne.s32.totalorder %s54, %s55
      %p67 = scmp.eq.s32.totalorder %s24, 1
      %p68 = por %p66, %p67
      %p70 = scmp.ne.s32.totalorder %s55, %s69
      %p71 = scmp.eq.s32.totalorder %s24, 0
      %p72 = por %p70, %p71
      %s74 = sadd.s32 %s73, 1
      %p77 = scmp.eq.s32.totalorder %s18, 1
      %p78 = scmp.ne.s32.totalorder %s73, %s75
      %p79 = scmp.eq.s32.totalorder %s18, 0
      %p80 = por %p78, %p79
      %p81 = scmp.ne.s32.totalorder %s73, %s75
      %p82 = scmp.eq.s32.totalorder %s23, 1
      %p83 = por %p81, %p82
      %p84 = scmp.ne.s32.totalorder %s75, %s76
      %p85 = scmp.eq.s32.totalorder %s23, 0
      %p86 = por %p84, %p85
      %p87 = scmp.ne.s32.totalorder %s75, %s76
      %p88 = scmp.eq.s32.totalorder %s24, 1
      %p89 = por %p87, %p88
      %p91 = scmp.ne.s32.totalorder %s76, %s90
      %p92 = scmp.eq.s32.totalorder %s24, 0
      %p93 = por %p91, %p92
      %s95 = sadd.s32 %s94, 1
      %p98 = scmp.eq.s32.totalorder %s18, 1
      %p99 = scmp.ne.s32.totalorder %s94, %s96
      %p100 = scmp.eq.s32.totalorder %s18, 0
      %p101 = por %p99, %p100
      %p102 = scmp.ne.s32.totalorder %s94, %s96
      %p103 = scmp.eq.s32.totalorder %s23, 1
      %p104 = por %p102, %p103
      %p105 = scmp.ne.s32.totalorder %s96, %s97
      %p106 = scmp.eq.s32.totalorder %s23, 0
      %p107 = por %p105, %p106
      %p108 = scmp.ne.s32.totalorder %s96, %s97
      %p109 = scmp.eq.s32.totalorder %s24, 1
      %p110 = por %p108, %p109
      %p112 = scmp.ne.s32.totalorder %s97, %s111
      %p113 = scmp.eq.s32.totalorder %s24, 0
      %p114 = por %p112, %p113
      %s116 = sadd.s32 %s115, 1
      %p119 = scmp.eq.s32.totalorder %s18, 1
      %p120 = scmp.ne.s32.totalorder %s115, %s117
      %p121 = scmp.eq.s32.totalorder %s18, 0
      %p122 = por %p120, %p121
      %p123 = scmp.ne.s32.totalorder %s115, %s117
      %p124 = scmp.eq.s32.totalorder %s23, 1
      %p125 = por %p123, %p124
      %p126 = scmp.ne.s32.totalorder %s117, %s118
      %p127 = scmp.eq.s32.totalorder %s23, 0
      %p128 = por %p126, %p127
      %p129 = scmp.ne.s32.totalorder %s117, %s118
      %p130 = scmp.eq.s32.totalorder %s24, 1
      %p131 = por %p129, %p130
      %p133 = scmp.ne.s32.totalorder %s118, %s132
      %p134 = scmp.eq.s32.totalorder %s24, 0
      %p135 = por %p133, %p134
      %s137 = sadd.s32 %s136, 1
      %p140 = scmp.eq.s32.totalorder %s18, 1
      %p141 = scmp.ne.s32.totalorder %s136, %s138
      %p142 = scmp.eq.s32.totalorder %s18, 0
      %p143 = por %p141, %p142
      %p144 = scmp.ne.s32.totalorder %s136, %s138
      %p145 = scmp.eq.s32.totalorder %s23, 1
      %p146 = por %p144, %p145
      %p147 = scmp.ne.s32.totalorder %s138, %s139
      %p148 = scmp.eq.s32.totalorder %s23, 0
      %p149 = por %p147, %p148
      %p150 = scmp.ne.s32.totalorder %s138, %s139
      %p151 = scmp.eq.s32.totalorder %s24, 1
      %p152 = por %p150, %p151
      %p154 = scmp.ne.s32.totalorder %s139, %s153
      %p155 = scmp.eq.s32.totalorder %s24, 0
      %p156 = por %p154, %p155
      %s158 = sadd.s32 %s157, 1
      %p161 = scmp.eq.s32.totalorder %s18, 1
      %p162 = scmp.ne.s32.totalorder %s157, %s159
      %p163 = scmp.eq.s32.totalorder %s18, 0
      %p164 = por %p162, %p163
      %p165 = scmp.ne.s32.totalorder %s157, %s159
      %p166 = scmp.eq.s32.totalorder %s23, 1
      %p167 = por %p165, %p166
      %p168 = scmp.ne.s32.totalorder %s159, %s160
      %p169 = scmp.eq.s32.totalorder %s23, 0
      %p170 = por %p168, %p169
      %p171 = scmp.ne.s32.totalorder %s159, %s160
      %p172 = scmp.eq.s32.totalorder %s24, 1
      %p173 = por %p171, %p172
      %p175 = scmp.ne.s32.totalorder %s160, %s174
      %p176 = scmp.eq.s32.totalorder %s24, 0
      %p177 = por %p175, %p176
      %s178 = ssub.s32 %s18, %s25
      %p179 = scmp.eq.s32.totalorder %s178, 0
      %s181 = sadd.s32 %s180, 1
      %s182 = scalar_select %p179, %s180, %s181
      %p185 = pneg %p179
      %p186 = scmp.eq.s32.totalorder %s18, 1
      %p187 = por %p185, %p186
      %p188 = scmp.ne.s32.totalorder %s180, %s183
      %p189 = scmp.eq.s32.totalorder %s18, 0
      %p190 = por %p188, %p189
      %p191 = scmp.ne.s32.totalorder %s180, %s183
      %p192 = scmp.eq.s32.totalorder %s23, 1
      %p193 = por %p191, %p192
      %p194 = scmp.ne.s32.totalorder %s183, %s184
      %p195 = scmp.eq.s32.totalorder %s23, 0
      %p196 = por %p194, %p195
      %p197 = scmp.ne.s32.totalorder %s183, %s184
      %p198 = scmp.eq.s32.totalorder %s24, 1
      %p199 = por %p197, %p198
      %p201 = scmp.ne.s32.totalorder %s184, %s200
      %p202 = scmp.eq.s32.totalorder %s24, 0
      %p203 = por %p201, %p202
      %p204 = scmp.le.s32.totalorder 1, %s18
      %p205 = scmp.lt.s32.totalorder %s18, 3
      %p206 = pnand %p204, %p205
      %p207 = pneg %p206
      // Predicated region
      $region9: #{tpu_custom_call.1} parent=5 // pred_check
        _
      $region10: #{tpu_custom_call.1} parent=5 // pred_check_branch
        %209 = sbr.rel (%p206) target = $region12
      $region11: #{tpu_custom_call.1} parent=5 // pred_region
        %s210 = ssub.s32 %s18, 1
        // Predicated region
        $region13: #{tpu_custom_call.1} parent=11 // pred_check
          %p211 = pneg %p65
        $region14: #{tpu_custom_call.1} parent=11 // pred_check_branch
          %213 = sbr.rel (%p211) target = $region16
        $region15: #{tpu_custom_call.1} parent=11 // pred_region
          _
        $region16: #{tpu_custom_call.1} parent=11 // pred_fallthru
          _
        // Predicated region
        $region17: #{tpu_custom_call.1} parent=11 // pred_check
          %p214 = pneg %p86
        $region18: #{tpu_custom_call.1} parent=11 // pred_check_branch
          %216 = sbr.rel (%p214) target = $region20
        $region19: #{tpu_custom_call.1} parent=11 // pred_region
          _
        $region20: #{tpu_custom_call.1} parent=11 // pred_fallthru
          _
        // Predicated region
        $region21: #{tpu_custom_call.1} parent=11 // pred_check
          %p217 = pneg %p107
        $region22: #{tpu_custom_call.1} parent=11 // pred_check_branch
          %219 = sbr.rel (%p217) target = $region24
        $region23: #{tpu_custom_call.1} parent=11 // pred_region
          %s221 = ssub.s32 32768, 32768
          %222 = vsyncadd [#allocation3], %s221
          %s223 = sshll.u32 [#allocation2], 4
          %s224 = int_to_ptr.vmem [resolvable:$true] %s223
          %229 = dma.hbm_to_vmem [thread:$0]  %s3, 32768, %s224, [#allocation3], 512, 512, 32
        $region24: #{tpu_custom_call.1} parent=11 // pred_fallthru
          _
        // Predicated region
        $region25: #{tpu_custom_call.1} parent=11 // pred_check
          %p230 = pneg %p128
        $region26: #{tpu_custom_call.1} parent=11 // pred_check_branch
          %232 = sbr.rel (%p230) target = $region28
        $region27: #{tpu_custom_call.1} parent=11 // pred_region
          _
        $region28: #{tpu_custom_call.1} parent=11 // pred_fallthru
          _
        // Predicated region
        $region29: #{tpu_custom_call.1} parent=11 // pred_check
          %p233 = pneg %p149
        $region30: #{tpu_custom_call.1} parent=11 // pred_check_branch
          %235 = sbr.rel (%p233) target = $region32
        $region31: #{tpu_custom_call.1} parent=11 // pred_region
          %s237 = ssub.s32 8192, 8192
          %238 = vsyncadd [#allocation6], %s237
          %s239 = sshll.u32 [#allocation5], 4
          %s240 = int_to_ptr.vmem [resolvable:$true] %s239
          %245 = dma.hbm_to_vmem [thread:$0]  %s5, 8192, %s240, [#allocation6], 64, 64, 4
        $region32: #{tpu_custom_call.1} parent=11 // pred_fallthru
          _
        // Predicated region
        $region33: #{tpu_custom_call.1} parent=11 // pred_check
          %p246 = pneg %p170
        $region34: #{tpu_custom_call.1} parent=11 // pred_check_branch
          %248 = sbr.rel (%p246) target = $region36
        $region35: #{tpu_custom_call.1} parent=11 // pred_region
          _
        $region36: #{tpu_custom_call.1} parent=11 // pred_fallthru
          _
      $region12: #{tpu_custom_call.1} parent=5 // pred_fallthru
        _
      %p249 = scmp.lt.s32.totalorder %s18, 2
      // Predicated region
      $region37: #{tpu_custom_call.1} parent=5 // pred_check
        %p250 = pneg %p249
      $region38: #{tpu_custom_call.1} parent=5 // pred_check_branch
        %252 = sbr.rel (%p250) target = $region40
      $region39: #{tpu_custom_call.1} parent=5 // pred_region
        // Predicated region
        $region41: #{tpu_custom_call.1} parent=39 // pred_check
          %p253 = pneg %p38
        $region42: #{tpu_custom_call.1} parent=39 // pred_check_branch
          %255 = sbr.rel (%p253) target = $region44
        $region43: #{tpu_custom_call.1} parent=39 // pred_region
          %s256 = smul.u32 32, %s18
          %p257 = scmp.lt.s32.totalorder %s256, 63
          %s258 = scalar_select %p257, %s256, 63
          %s259 = smul.addr %s258, 4
          %s260 = scalar_lea.vmem %s0, %s259
          %s261 = smul.u32 32, %s18
        $region44: #{tpu_custom_call.1} parent=39 // pred_fallthru
          _
      $region40: #{tpu_custom_call.1} parent=5 // pred_fallthru
        _
      %p262 = scmp.le.s32.totalorder 1, %s18
      %p263 = scmp.lt.s32.totalorder %s18, 3
      %p264 = pnand %p262, %p263
      %p265 = pneg %p264
      // Predicated region
      $region45: #{tpu_custom_call.1} parent=5 // pred_check
        _
      $region46: #{tpu_custom_call.1} parent=5 // pred_check_branch
        %267 = sbr.rel (%p264) target = $region48
      $region47: #{tpu_custom_call.1} parent=5 // pred_region
        %s268 = ssub.s32 %s18, 1
        // Predicated region
        $region49: #{tpu_custom_call.1} parent=47 // pred_check
          %p269 = pneg %p107
        $region50: #{tpu_custom_call.1} parent=47 // pred_check_branch
          %271 = sbr.rel (%p269) target = $region52
        $region51: #{tpu_custom_call.1} parent=47 // pred_region
          %272 = dma.done [#allocation3], 32768
        $region52: #{tpu_custom_call.1} parent=47 // pred_fallthru
          _
        // Predicated region
        $region53: #{tpu_custom_call.1} parent=47 // pred_check
          %p273 = pneg %p149
        $region54: #{tpu_custom_call.1} parent=47 // pred_check_branch
          %275 = sbr.rel (%p273) target = $region56
        $region55: #{tpu_custom_call.1} parent=47 // pred_region
          %276 = dma.done [#allocation6], 8192
        $region56: #{tpu_custom_call.1} parent=47 // pred_fallthru
          _
        %s277 = smul.u32 32, %s23
        %p278 = scmp.lt.s32.totalorder %s277, 63
        %s279 = scalar_select %p278, %s277, 63
        %s280 = smul.addr %s279, 4
        %s281 = scalar_lea.vmem %s0, %s280
        %p282 = pneg %p44
        %p283 = pneg %p41
        %p284 = pneg %p65
        %p285 = pneg %p62
        %p286 = pneg %p86
        %p287 = pneg %p83
        %p288 = pneg %p107
        %p289 = pneg %p104
        %p290 = pneg %p128
        %p291 = pneg %p125
        %p292 = pneg %p149
        %p293 = pneg %p146
        %p294 = pneg %p170
        %p295 = pneg %p167
        %p296 = pneg %p196
        %p297 = pneg %p193
        %s298 = sand.u32 %s183, 1
        %s299 = scalar_lea.sflag [#allocation4], %s298
        %s300 = sand.u32 %s183, 1
        %s301 = smul.addr %s300, 256
        %s302 = scalar_lea.vmem [#allocation7], %s301
        %s303 = smul.u32 32, %s23
        %p304 = scmp.lt.s32.totalorder %s303, 63
        %s305 = scalar_select %p304, %s303, 63
        %s306 = smul.addr %s305, 4
        %s307 = scalar_lea.vmem %s0, %s306
        %s308 = smul.u32 32, %s23
        %s309 = smul.u32 32, %s23
        %v311 = vld [vmem:[%s307] sm:$0xf]
        %v312 = vld [vmem:[%s307 + $0x4] sm:$0xf]
        %v313 = vld [vmem:[%s307 + $0x8] sm:$0xf]
        %v314 = vld [vmem:[%s307 + $0xc] sm:$0xf]
        %v315 = vld [vmem:[%s307 + $0x10] sm:$0xf]
        %v316 = vld [vmem:[%s307 + $0x14] sm:$0xf]
        %v317 = vld [vmem:[%s307 + $0x18] sm:$0xf]
        %v318 = vld [vmem:[%s307 + $0x1c] sm:$0xf]
        %v319 = vld [vmem:[%s307 + $0x20] sm:$0xf]
        %v320 = vld [vmem:[%s307 + $0x24] sm:$0xf]
        %v321 = vld [vmem:[%s307 + $0x28] sm:$0xf]
        %v322 = vld [vmem:[%s307 + $0x2c] sm:$0xf]
        %v323 = vld [vmem:[%s307 + $0x30] sm:$0xf]
        %v324 = vld [vmem:[%s307 + $0x34] sm:$0xf]
        %v325 = vld [vmem:[%s307 + $0x38] sm:$0xf]
        %v326 = vld [vmem:[%s307 + $0x3c] sm:$0xf]
        %v327 = vld [vmem:[%s307 + $0x40] sm:$0xf]
        %v328 = vld [vmem:[%s307 + $0x44] sm:$0xf]
        %v329 = vld [vmem:[%s307 + $0x48] sm:$0xf]
        %v330 = vld [vmem:[%s307 + $0x4c] sm:$0xf]
        %v331 = vld [vmem:[%s307 + $0x50] sm:$0xf]
        %v332 = vld [vmem:[%s307 + $0x54] sm:$0xf]
        %v333 = vld [vmem:[%s307 + $0x58] sm:$0xf]
        %v334 = vld [vmem:[%s307 + $0x5c] sm:$0xf]
        %v335 = vld [vmem:[%s307 + $0x60] sm:$0xf]
        %v336 = vld [vmem:[%s307 + $0x64] sm:$0xf]
        %v337 = vld [vmem:[%s307 + $0x68] sm:$0xf]
        %v338 = vld [vmem:[%s307 + $0x6c] sm:$0xf]
        %v339 = vld [vmem:[%s307 + $0x70] sm:$0xf]
        %v340 = vld [vmem:[%s307 + $0x74] sm:$0xf]
        %v341 = vld [vmem:[%s307 + $0x78] sm:$0xf]
        %v342 = vld [vmem:[%s307 + $0x7c] sm:$0xf]
        %v343 = vld [vmem:[%s1] sm:$0xff]
        %v344 = vld [vmem:[%s1 + $0x8] sm:$0xff]
        %v345 = vld [vmem:[%s1 + $0x10] sm:$0xff]
        %v346 = vld [vmem:[%s1 + $0x18] sm:$0xff]
        %v347 = vld [vmem:[%s1 + $0x20] sm:$0xff]
        %v348 = vld [vmem:[%s1 + $0x28] sm:$0xff]
        %v349 = vld [vmem:[%s1 + $0x30] sm:$0xff]
        %v350 = vld [vmem:[%s1 + $0x38] sm:$0xff]
        %v351 = vld [vmem:[%s2] sm:$0xf]
        %v353 = vlaneseq
        %v354 = vshrl.u32 %v353, 7
        %v355 = vsub.s32 0, %v354
        %v356 = vrot.slane %v351, %v355
        %v357 = vlaneseq
        %v358 = vshrl.u32 %v357, 7
        %v359 = vsub.s32 1, %v358
        %v360 = vrot.slane %v351, %v359
        %v361 = vlaneseq
        %v362 = vshrl.u32 %v361, 7
        %v363 = vsub.s32 2, %v362
        %v364 = vrot.slane %v351, %v363
        %v365 = vlaneseq
        %v366 = vshrl.u32 %v365, 7
        %v367 = vsub.s32 3, %v366
        %v368 = vrot.slane %v351, %v367
        %v405 = vunpack.c.l.b16 %v311
        %v406 = vunpack.c.l.b16 %v312
        %v407 = vunpack.c.l.b16 %v313
        %v408 = vunpack.c.l.b16 %v314
        %v409 = vunpack.c.l.b16 %v315
        %v410 = vunpack.c.l.b16 %v316
        %v411 = vunpack.c.l.b16 %v317
        %v412 = vunpack.c.l.b16 %v318
        %v413 = vunpack.c.l.b16 %v319
        %v414 = vunpack.c.l.b16 %v320
        %v415 = vunpack.c.l.b16 %v321
        %v416 = vunpack.c.l.b16 %v322
        %v417 = vunpack.c.l.b16 %v323
        %v418 = vunpack.c.l.b16 %v324
        %v419 = vunpack.c.l.b16 %v325
        %v420 = vunpack.c.l.b16 %v326
        %v421 = vunpack.c.l.b16 %v327
        %v422 = vunpack.c.l.b16 %v328
        %v423 = vunpack.c.l.b16 %v329
        %v424 = vunpack.c.l.b16 %v330
        %v425 = vunpack.c.l.b16 %v331
        %v426 = vunpack.c.l.b16 %v332
        %v427 = vunpack.c.l.b16 %v333
        %v428 = vunpack.c.l.b16 %v334
        %v429 = vunpack.c.l.b16 %v335
        %v430 = vunpack.c.l.b16 %v336
        %v431 = vunpack.c.l.b16 %v337
        %v432 = vunpack.c.l.b16 %v338
        %v433 = vunpack.c.l.b16 %v339
        %v434 = vunpack.c.l.b16 %v340
        %v435 = vunpack.c.l.b16 %v341
        %v436 = vunpack.c.l.b16 %v342
        %v437 = vpack.c.b16 %v406, %v405
        %v438 = vpack.c.b16 %v408, %v407
        %v439 = vpack.c.b16 %v410, %v409
        %v440 = vpack.c.b16 %v412, %v411
        %v441 = vpack.c.b16 %v414, %v413
        %v442 = vpack.c.b16 %v416, %v415
        %v443 = vpack.c.b16 %v418, %v417
        %v444 = vpack.c.b16 %v420, %v419
        %v445 = vpack.c.b16 %v422, %v421
        %v446 = vpack.c.b16 %v424, %v423
        %v447 = vpack.c.b16 %v426, %v425
        %v448 = vpack.c.b16 %v428, %v427
        %v449 = vpack.c.b16 %v430, %v429
        %v450 = vpack.c.b16 %v432, %v431
        %v451 = vpack.c.b16 %v434, %v433
        %v452 = vpack.c.b16 %v436, %v435
        %v461 = vunpack.c.l.b16 %v343
        %v462 = vunpack.c.h.b16 %v343
        %v463 = vunpack.c.l.b16 %v344
        %v464 = vunpack.c.h.b16 %v344
        %v465 = vunpack.c.l.b16 %v345
        %v466 = vunpack.c.h.b16 %v345
        %v467 = vunpack.c.l.b16 %v346
        %v468 = vunpack.c.h.b16 %v346
        %v469 = vunpack.c.l.b16 %v347
        %v470 = vunpack.c.h.b16 %v347
        %v471 = vunpack.c.l.b16 %v348
        %v472 = vunpack.c.h.b16 %v348
        %v473 = vunpack.c.l.b16 %v349
        %v474 = vunpack.c.h.b16 %v349
        %v475 = vunpack.c.l.b16 %v350
        %v476 = vunpack.c.h.b16 %v350
        %v477 = vpack.c.b16 %v465, %v461
        %v478 = vpack.c.b16 %v466, %v462
        %v479 = vpack.c.b16 %v467, %v463
        %v480 = vpack.c.b16 %v468, %v464
        %v481 = vpack.c.b16 %v473, %v469
        %v482 = vpack.c.b16 %v474, %v470
        %v483 = vpack.c.b16 %v475, %v471
        %v484 = vpack.c.b16 %v476, %v472
        %vm493 = vcmask 261120
        %v495 = vsel %vm493, %v437, 0
        %v498 = vsel %vm493, %v438, 0
        %v501 = vsel %vm493, %v439, 0
        %v504 = vsel %vm493, %v440, 0
        %v507 = vsel %vm493, %v441, 0
        %v510 = vsel %vm493, %v442, 0
        %v513 = vsel %vm493, %v443, 0
        %v516 = vsel %vm493, %v444, 0
        %v519 = vsel %vm493, %v445, 0
        %v522 = vsel %vm493, %v446, 0
        %v525 = vsel %vm493, %v447, 0
        %v528 = vsel %vm493, %v448, 0
        %v531 = vsel %vm493, %v449, 0
        %v534 = vsel %vm493, %v450, 0
        %v537 = vsel %vm493, %v451, 0
        %v540 = vsel %vm493, %v452, 0
        %542 = vmatprep.subr.bf16.mxu0 0
        %543 = vmatpush1.bf16.msra.mxu0 0
        %544 = vmatprep.subr.bf16.mxu0 0
        %545 = vmatpush1.bf16.msra.mxu0 0
        %546 = vmatprep.subr.bf16.mxu0 0
        %547 = vmatpush1.bf16.msra.mxu0 0
        %548 = vmatprep.subr.bf16.mxu0 0
        %549 = vmatpush1.bf16.msra.mxu0 0
        %550 = vmatprep.subr.bf16.mxu0 0
        %551 = vmatpush1.bf16.msra.mxu0 0
        %552 = vmatprep.subr.bf16.mxu0 0
        %553 = vmatpush1.bf16.msra.mxu0 0
        %554 = vmatprep.subr.bf16.mxu0 %v482
        %555 = vmatpush1.bf16.msra.mxu0 %v481
        %556 = vmatprep.subr.bf16.mxu0 %v478
        %557 = vmatpush1.bf16.msra.mxu0 %v477
        %558 = vmatprep.subr.bf16.mxu0 0
        %559 = vmatpush2.bf16.msra.mxu0 0
        %560 = vmatprep.subr.bf16.mxu0 0
        %561 = vmatpush2.bf16.msra.mxu0 0
        %562 = vmatprep.subr.bf16.mxu0 0
        %563 = vmatpush2.bf16.msra.mxu0 0
        %564 = vmatprep.subr.bf16.mxu0 0
        %565 = vmatpush2.bf16.msra.mxu0 0
        %566 = vmatprep.subr.bf16.mxu0 0
        %567 = vmatpush2.bf16.msra.mxu0 0
        %568 = vmatprep.subr.bf16.mxu0 0
        %569 = vmatpush2.bf16.msra.mxu0 0
        %570 = vmatprep.subr.bf16.mxu0 0
        %571 = vmatpush2.bf16.msra.mxu0 0
        %572 = vmatprep.subr.bf16.mxu0 0
        %573 = vmatpush2.bf16.msra.mxu0 0
        %574 = vmatprep.mubr.bf16.mxu0 0
        %575 = vmatmul.mubr.bf16.gmra.mxu0 %v495
        %v576 = vpop.f32.mrf.mxu0
        %v577 = vadd.f32 %v356, %v576
        %v578 = vpop.f32.mrf.mxu0
        %v579 = vadd.f32 %v360, %v578
        %v580 = vpop.f32.mrf.mxu0
        %v581 = vadd.f32 %v356, %v580
        %v582 = vpop.f32.mrf.mxu0
        %v583 = vadd.f32 %v360, %v582
        %584 = vmatprep.mubr.bf16.mxu0 0
        %585 = vmatmul.mubr.bf16.gmra.mxu0 %v498
        %v586 = vpop.f32.mrf.mxu0
        %v587 = vadd.f32 %v356, %v586
        %v588 = vpop.f32.mrf.mxu0
        %v589 = vadd.f32 %v360, %v588
        %v590 = vpop.f32.mrf.mxu0
        %v591 = vadd.f32 %v356, %v590
        %v592 = vpop.f32.mrf.mxu0
        %v593 = vadd.f32 %v360, %v592
        %594 = vmatprep.mubr.bf16.mxu0 0
        %595 = vmatmul.mubr.bf16.gmra.mxu0 %v501
        %v596 = vpop.f32.mrf.mxu0
        %v597 = vadd.f32 %v356, %v596
        %v598 = vpop.f32.mrf.mxu0
        %v599 = vadd.f32 %v360, %v598
        %v600 = vpop.f32.mrf.mxu0
        %v601 = vadd.f32 %v356, %v600
        %v602 = vpop.f32.mrf.mxu0
        %v603 = vadd.f32 %v360, %v602
        %604 = vmatprep.mubr.bf16.mxu0 0
        %605 = vmatmul.mubr.bf16.gmra.mxu0 %v504
        %v606 = vpop.f32.mrf.mxu0
        %v607 = vadd.f32 %v356, %v606
        %v608 = vpop.f32.mrf.mxu0
        %v609 = vadd.f32 %v360, %v608
        %v610 = vpop.f32.mrf.mxu0
        %v611 = vadd.f32 %v356, %v610
        %v612 = vpop.f32.mrf.mxu0
        %v613 = vadd.f32 %v360, %v612
        %614 = vmatprep.mubr.bf16.mxu0 0
        %615 = vmatmul.mubr.bf16.gmra.mxu0 %v507
        %v616 = vpop.f32.mrf.mxu0
        %v617 = vadd.f32 %v356, %v616
        %v618 = vpop.f32.mrf.mxu0
        %v619 = vadd.f32 %v360, %v618
        %v620 = vpop.f32.mrf.mxu0
        %v621 = vadd.f32 %v356, %v620
        %v622 = vpop.f32.mrf.mxu0
        %v623 = vadd.f32 %v360, %v622
        %624 = vmatprep.mubr.bf16.mxu0 0
        %625 = vmatmul.mubr.bf16.gmra.mxu0 %v510
        %v626 = vpop.f32.mrf.mxu0
        %v627 = vadd.f32 %v356, %v626
        %v628 = vpop.f32.mrf.mxu0
        %v629 = vadd.f32 %v360, %v628
        %v630 = vpop.f32.mrf.mxu0
        %v631 = vadd.f32 %v356, %v630
        %v632 = vpop.f32.mrf.mxu0
        %v633 = vadd.f32 %v360, %v632
        %634 = vmatprep.mubr.bf16.mxu0 0
        %635 = vmatmul.mubr.bf16.gmra.mxu0 %v513
        %v636 = vpop.f32.mrf.mxu0
        %v637 = vadd.f32 %v356, %v636
        %v638 = vpop.f32.mrf.mxu0
        %v639 = vadd.f32 %v360, %v638
        %v640 = vpop.f32.mrf.mxu0
        %v641 = vadd.f32 %v356, %v640
        %v642 = vpop.f32.mrf.mxu0
        %v643 = vadd.f32 %v360, %v642
        %644 = vmatprep.mubr.bf16.mxu0 0
        %645 = vmatmul.mubr.bf16.gmra.mxu0 %v516
        %v646 = vpop.f32.mrf.mxu0
        %v647 = vadd.f32 %v356, %v646
        %v648 = vpop.f32.mrf.mxu0
        %v649 = vadd.f32 %v360, %v648
        %v650 = vpop.f32.mrf.mxu0
        %v651 = vadd.f32 %v356, %v650
        %v652 = vpop.f32.mrf.mxu0
        %v653 = vadd.f32 %v360, %v652
        %654 = vmatprep.mubr.bf16.mxu0 0
        %655 = vmatmul.mubr.bf16.gmra.mxu0 %v519
        %v656 = vpop.f32.mrf.mxu0
        %v657 = vadd.f32 %v356, %v656
        %v658 = vpop.f32.mrf.mxu0
        %v659 = vadd.f32 %v360, %v658
        %v660 = vpop.f32.mrf.mxu0
        %v661 = vadd.f32 %v356, %v660
        %v662 = vpop.f32.mrf.mxu0
        %v663 = vadd.f32 %v360, %v662
        %664 = vmatprep.mubr.bf16.mxu0 0
        %665 = vmatmul.mubr.bf16.gmra.mxu0 %v522
        %v666 = vpop.f32.mrf.mxu0
        %v667 = vadd.f32 %v356, %v666
        %v668 = vpop.f32.mrf.mxu0
        %v669 = vadd.f32 %v360, %v668
        %v670 = vpop.f32.mrf.mxu0
        %v671 = vadd.f32 %v356, %v670
        %v672 = vpop.f32.mrf.mxu0
        %v673 = vadd.f32 %v360, %v672
        %674 = vmatprep.mubr.bf16.mxu0 0
        %675 = vmatmul.mubr.bf16.gmra.mxu0 %v525
        %v676 = vpop.f32.mrf.mxu0
        %v677 = vadd.f32 %v356, %v676
        %v678 = vpop.f32.mrf.mxu0
        %v679 = vadd.f32 %v360, %v678
        %v680 = vpop.f32.mrf.mxu0
        %v681 = vadd.f32 %v356, %v680
        %v682 = vpop.f32.mrf.mxu0
        %v683 = vadd.f32 %v360, %v682
        %684 = vmatprep.mubr.bf16.mxu0 0
        %685 = vmatmul.mubr.bf16.gmra.mxu0 %v528
        %v686 = vpop.f32.mrf.mxu0
        %v687 = vadd.f32 %v356, %v686
        %v688 = vpop.f32.mrf.mxu0
        %v689 = vadd.f32 %v360, %v688
        %v690 = vpop.f32.mrf.mxu0
        %v691 = vadd.f32 %v356, %v690
        %v692 = vpop.f32.mrf.mxu0
        %v693 = vadd.f32 %v360, %v692
        %694 = vmatprep.mubr.bf16.mxu0 0
        %695 = vmatmul.mubr.bf16.gmra.mxu0 %v531
        %v696 = vpop.f32.mrf.mxu0
        %v697 = vadd.f32 %v356, %v696
        %v698 = vpop.f32.mrf.mxu0
        %v699 = vadd.f32 %v360, %v698
        %v700 = vpop.f32.mrf.mxu0
        %v701 = vadd.f32 %v356, %v700
        %v702 = vpop.f32.mrf.mxu0
        %v703 = vadd.f32 %v360, %v702
        %704 = vmatprep.mubr.bf16.mxu0 0
        %705 = vmatmul.mubr.bf16.gmra.mxu0 %v534
        %v706 = vpop.f32.mrf.mxu0
        %v707 = vadd.f32 %v356, %v706
        %v708 = vpop.f32.mrf.mxu0
        %v709 = vadd.f32 %v360, %v708
        %v710 = vpop.f32.mrf.mxu0
        %v711 = vadd.f32 %v356, %v710
        %v712 = vpop.f32.mrf.mxu0
        %v713 = vadd.f32 %v360, %v712
        %714 = vmatprep.mubr.bf16.mxu0 0
        %715 = vmatmul.mubr.bf16.gmra.mxu0 %v537
        %v716 = vpop.f32.mrf.mxu0
        %v717 = vadd.f32 %v356, %v716
        %v718 = vpop.f32.mrf.mxu0
        %v719 = vadd.f32 %v360, %v718
        %v720 = vpop.f32.mrf.mxu0
        %v721 = vadd.f32 %v356, %v720
        %v722 = vpop.f32.mrf.mxu0
        %v723 = vadd.f32 %v360, %v722
        %724 = vmatprep.mubr.bf16.mxu0 0
        %725 = vmatmul.mubr.bf16.gmra.mxu0 %v540
        %v726 = vpop.f32.mrf.mxu0
        %v727 = vadd.f32 %v356, %v726
        %v728 = vpop.f32.mrf.mxu0
        %v729 = vadd.f32 %v360, %v728
        %v730 = vpop.f32.mrf.mxu0
        %v731 = vadd.f32 %v356, %v730
        %v732 = vpop.f32.mrf.mxu0
        %v733 = vadd.f32 %v360, %v732
        %734 = vdwg.mxu0
        %735 = vmatprep.subr.bf16.mxu0 0
        %736 = vmatpush1.bf16.msra.mxu0 0
        %737 = vmatprep.subr.bf16.mxu0 0
        %738 = vmatpush1.bf16.msra.mxu0 0
        %739 = vmatprep.subr.bf16.mxu0 0
        %740 = vmatpush1.bf16.msra.mxu0 0
        %741 = vmatprep.subr.bf16.mxu0 0
        %742 = vmatpush1.bf16.msra.mxu0 0
        %743 = vmatprep.subr.bf16.mxu0 0
        %744 = vmatpush1.bf16.msra.mxu0 0
        %745 = vmatprep.subr.bf16.mxu0 0
        %746 = vmatpush1.bf16.msra.mxu0 0
        %747 = vmatprep.subr.bf16.mxu0 %v484
        %748 = vmatpush1.bf16.msra.mxu0 %v483
        %749 = vmatprep.subr.bf16.mxu0 %v480
        %750 = vmatpush1.bf16.msra.mxu0 %v479
        %751 = vmatprep.subr.bf16.mxu0 0
        %752 = vmatpush2.bf16.msra.mxu0 0
        %753 = vmatprep.subr.bf16.mxu0 0
        %754 = vmatpush2.bf16.msra.mxu0 0
        %755 = vmatprep.subr.bf16.mxu0 0
        %756 = vmatpush2.bf16.msra.mxu0 0
        %757 = vmatprep.subr.bf16.mxu0 0
        %758 = vmatpush2.bf16.msra.mxu0 0
        %759 = vmatprep.subr.bf16.mxu0 0
        %760 = vmatpush2.bf16.msra.mxu0 0
        %761 = vmatprep.subr.bf16.mxu0 0
        %762 = vmatpush2.bf16.msra.mxu0 0
        %763 = vmatprep.subr.bf16.mxu0 0
        %764 = vmatpush2.bf16.msra.mxu0 0
        %765 = vmatprep.subr.bf16.mxu0 0
        %766 = vmatpush2.bf16.msra.mxu0 0
        %767 = vmatprep.mubr.bf16.mxu0 0
        %768 = vmatmul.mubr.bf16.gmra.mxu0 %v495
        %v769 = vpop.f32.mrf.mxu0
        %v770 = vadd.f32 %v364, %v769
        %v771 = vpop.f32.mrf.mxu0
        %v772 = vadd.f32 %v368, %v771
        %v773 = vpop.f32.mrf.mxu0
        %v774 = vadd.f32 %v364, %v773
        %v775 = vpop.f32.mrf.mxu0
        %v776 = vadd.f32 %v368, %v775
        %777 = vmatprep.mubr.bf16.mxu0 0
        %778 = vmatmul.mubr.bf16.gmra.mxu0 %v498
        %v779 = vpop.f32.mrf.mxu0
        %v780 = vadd.f32 %v364, %v779
        %v781 = vpop.f32.mrf.mxu0
        %v782 = vadd.f32 %v368, %v781
        %v783 = vpop.f32.mrf.mxu0
        %v784 = vadd.f32 %v364, %v783
        %v785 = vpop.f32.mrf.mxu0
        %v786 = vadd.f32 %v368, %v785
        %787 = vmatprep.mubr.bf16.mxu0 0
        %788 = vmatmul.mubr.bf16.gmra.mxu0 %v501
        %v789 = vpop.f32.mrf.mxu0
        %v790 = vadd.f32 %v364, %v789
        %v791 = vpop.f32.mrf.mxu0
        %v792 = vadd.f32 %v368, %v791
        %v793 = vpop.f32.mrf.mxu0
        %v794 = vadd.f32 %v364, %v793
        %v795 = vpop.f32.mrf.mxu0
        %v796 = vadd.f32 %v368, %v795
        %797 = vmatprep.mubr.bf16.mxu0 0
        %798 = vmatmul.mubr.bf16.gmra.mxu0 %v504
        %v799 = vpop.f32.mrf.mxu0
        %v800 = vadd.f32 %v364, %v799
        %v801 = vpop.f32.mrf.mxu0
        %v802 = vadd.f32 %v368, %v801
        %v803 = vpop.f32.mrf.mxu0
        %v804 = vadd.f32 %v364, %v803
        %v805 = vpop.f32.mrf.mxu0
        %v806 = vadd.f32 %v368, %v805
        %807 = vmatprep.mubr.bf16.mxu0 0
        %808 = vmatmul.mubr.bf16.gmra.mxu0 %v507
        %v809 = vpop.f32.mrf.mxu0
        %v810 = vadd.f32 %v364, %v809
        %v811 = vpop.f32.mrf.mxu0
        %v812 = vadd.f32 %v368, %v811
        %v813 = vpop.f32.mrf.mxu0
        %v814 = vadd.f32 %v364, %v813
        %v815 = vpop.f32.mrf.mxu0
        %v816 = vadd.f32 %v368, %v815
        %817 = vmatprep.mubr.bf16.mxu0 0
        %818 = vmatmul.mubr.bf16.gmra.mxu0 %v510
        %v819 = vpop.f32.mrf.mxu0
        %v820 = vadd.f32 %v364, %v819
        %v821 = vpop.f32.mrf.mxu0
        %v822 = vadd.f32 %v368, %v821
        %v823 = vpop.f32.mrf.mxu0
        %v824 = vadd.f32 %v364, %v823
        %v825 = vpop.f32.mrf.mxu0
        %v826 = vadd.f32 %v368, %v825
        %827 = vmatprep.mubr.bf16.mxu0 0
        %828 = vmatmul.mubr.bf16.gmra.mxu0 %v513
        %v829 = vpop.f32.mrf.mxu0
        %v830 = vadd.f32 %v364, %v829
        %v831 = vpop.f32.mrf.mxu0
        %v832 = vadd.f32 %v368, %v831
        %v833 = vpop.f32.mrf.mxu0
        %v834 = vadd.f32 %v364, %v833
        %v835 = vpop.f32.mrf.mxu0
        %v836 = vadd.f32 %v368, %v835
        %837 = vmatprep.mubr.bf16.mxu0 0
        %838 = vmatmul.mubr.bf16.gmra.mxu0 %v516
        %v839 = vpop.f32.mrf.mxu0
        %v840 = vadd.f32 %v364, %v839
        %v841 = vpop.f32.mrf.mxu0
        %v842 = vadd.f32 %v368, %v841
        %v843 = vpop.f32.mrf.mxu0
        %v844 = vadd.f32 %v364, %v843
        %v845 = vpop.f32.mrf.mxu0
        %v846 = vadd.f32 %v368, %v845
        %847 = vmatprep.mubr.bf16.mxu0 0
        %848 = vmatmul.mubr.bf16.gmra.mxu0 %v519
        %v849 = vpop.f32.mrf.mxu0
        %v850 = vadd.f32 %v364, %v849
        %v851 = vpop.f32.mrf.mxu0
        %v852 = vadd.f32 %v368, %v851
        %v853 = vpop.f32.mrf.mxu0
        %v854 = vadd.f32 %v364, %v853
        %v855 = vpop.f32.mrf.mxu0
        %v856 = vadd.f32 %v368, %v855
        %857 = vmatprep.mubr.bf16.mxu0 0
        %858 = vmatmul.mubr.bf16.gmra.mxu0 %v522
        %v859 = vpop.f32.mrf.mxu0
        %v860 = vadd.f32 %v364, %v859
        %v861 = vpop.f32.mrf.mxu0
        %v862 = vadd.f32 %v368, %v861
        %v863 = vpop.f32.mrf.mxu0
        %v864 = vadd.f32 %v364, %v863
        %v865 = vpop.f32.mrf.mxu0
        %v866 = vadd.f32 %v368, %v865
        %867 = vmatprep.mubr.bf16.mxu0 0
        %868 = vmatmul.mubr.bf16.gmra.mxu0 %v525
        %v869 = vpop.f32.mrf.mxu0
        %v870 = vadd.f32 %v364, %v869
        %v871 = vpop.f32.mrf.mxu0
        %v872 = vadd.f32 %v368, %v871
        %v873 = vpop.f32.mrf.mxu0
        %v874 = vadd.f32 %v364, %v873
        %v875 = vpop.f32.mrf.mxu0
        %v876 = vadd.f32 %v368, %v875
        %877 = vmatprep.mubr.bf16.mxu0 0
        %878 = vmatmul.mubr.bf16.gmra.mxu0 %v528
        %v879 = vpop.f32.mrf.mxu0
        %v880 = vadd.f32 %v364, %v879
        %v881 = vpop.f32.mrf.mxu0
        %v882 = vadd.f32 %v368, %v881
        %v883 = vpop.f32.mrf.mxu0
        %v884 = vadd.f32 %v364, %v883
        %v885 = vpop.f32.mrf.mxu0
        %v886 = vadd.f32 %v368, %v885
        %887 = vmatprep.mubr.bf16.mxu0 0
        %888 = vmatmul.mubr.bf16.gmra.mxu0 %v531
        %v889 = vpop.f32.mrf.mxu0
        %v890 = vadd.f32 %v364, %v889
        %v891 = vpop.f32.mrf.mxu0
        %v892 = vadd.f32 %v368, %v891
        %v893 = vpop.f32.mrf.mxu0
        %v894 = vadd.f32 %v364, %v893
        %v895 = vpop.f32.mrf.mxu0
        %v896 = vadd.f32 %v368, %v895
        %897 = vmatprep.mubr.bf16.mxu0 0
        %898 = vmatmul.mubr.bf16.gmra.mxu0 %v534
        %v899 = vpop.f32.mrf.mxu0
        %v900 = vadd.f32 %v364, %v899
        %v901 = vpop.f32.mrf.mxu0
        %v902 = vadd.f32 %v368, %v901
        %v903 = vpop.f32.mrf.mxu0
        %v904 = vadd.f32 %v364, %v903
        %v905 = vpop.f32.mrf.mxu0
        %v906 = vadd.f32 %v368, %v905
        %907 = vmatprep.mubr.bf16.mxu0 0
        %908 = vmatmul.mubr.bf16.gmra.mxu0 %v537
        %v909 = vpop.f32.mrf.mxu0
        %v910 = vadd.f32 %v364, %v909
        %v911 = vpop.f32.mrf.mxu0
        %v912 = vadd.f32 %v368, %v911
        %v913 = vpop.f32.mrf.mxu0
        %v914 = vadd.f32 %v364, %v913
        %v915 = vpop.f32.mrf.mxu0
        %v916 = vadd.f32 %v368, %v915
        %917 = vmatprep.mubr.bf16.mxu0 0
        %918 = vmatmul.mubr.bf16.gmra.mxu0 %v540
        %v919 = vpop.f32.mrf.mxu0
        %v920 = vadd.f32 %v364, %v919
        %v921 = vpop.f32.mrf.mxu0
        %v922 = vadd.f32 %v368, %v921
        %v923 = vpop.f32.mrf.mxu0
        %v924 = vadd.f32 %v364, %v923
        %v925 = vpop.f32.mrf.mxu0
        %v926 = vadd.f32 %v368, %v925
        %927 = vdwg.mxu0
        %v928 = vmax.f32 %v577, 0.0
        %v929 = vmax.f32 %v579, 0.0
        %v930 = vmax.f32 %v770, 0.0
        %v931 = vmax.f32 %v772, 0.0
        %v932 = vmax.f32 %v581, 0.0
        %v933 = vmax.f32 %v583, 0.0
        %v934 = vmax.f32 %v774, 0.0
        %v935 = vmax.f32 %v776, 0.0
        %v936 = vmax.f32 %v587, 0.0
        %v937 = vmax.f32 %v589, 0.0
        %v938 = vmax.f32 %v780, 0.0
        %v939 = vmax.f32 %v782, 0.0
        %v940 = vmax.f32 %v591, 0.0
        %v941 = vmax.f32 %v593, 0.0
        %v942 = vmax.f32 %v784, 0.0
        %v943 = vmax.f32 %v786, 0.0
        %v944 = vmax.f32 %v597, 0.0
        %v945 = vmax.f32 %v599, 0.0
        %v946 = vmax.f32 %v790, 0.0
        %v947 = vmax.f32 %v792, 0.0
        %v948 = vmax.f32 %v601, 0.0
        %v949 = vmax.f32 %v603, 0.0
        %v950 = vmax.f32 %v794, 0.0
        %v951 = vmax.f32 %v796, 0.0
        %v952 = vmax.f32 %v607, 0.0
        %v953 = vmax.f32 %v609, 0.0
        %v954 = vmax.f32 %v800, 0.0
        %v955 = vmax.f32 %v802, 0.0
        %v956 = vmax.f32 %v611, 0.0
        %v957 = vmax.f32 %v613, 0.0
        %v958 = vmax.f32 %v804, 0.0
        %v959 = vmax.f32 %v806, 0.0
        %v960 = vmax.f32 %v617, 0.0
        %v961 = vmax.f32 %v619, 0.0
        %v962 = vmax.f32 %v810, 0.0
        %v963 = vmax.f32 %v812, 0.0
        %v964 = vmax.f32 %v621, 0.0
        %v965 = vmax.f32 %v623, 0.0
        %v966 = vmax.f32 %v814, 0.0
        %v967 = vmax.f32 %v816, 0.0
        %v968 = vmax.f32 %v627, 0.0
        %v969 = vmax.f32 %v629, 0.0
        %v970 = vmax.f32 %v820, 0.0
        %v971 = vmax.f32 %v822, 0.0
        %v972 = vmax.f32 %v631, 0.0
        %v973 = vmax.f32 %v633, 0.0
        %v974 = vmax.f32 %v824, 0.0
        %v975 = vmax.f32 %v826, 0.0
        %v976 = vmax.f32 %v637, 0.0
        %v977 = vmax.f32 %v639, 0.0
        %v978 = vmax.f32 %v830, 0.0
        %v979 = vmax.f32 %v832, 0.0
        %v980 = vmax.f32 %v641, 0.0
        %v981 = vmax.f32 %v643, 0.0
        %v982 = vmax.f32 %v834, 0.0
        %v983 = vmax.f32 %v836, 0.0
        %v984 = vmax.f32 %v647, 0.0
        %v985 = vmax.f32 %v649, 0.0
        %v986 = vmax.f32 %v840, 0.0
        %v987 = vmax.f32 %v842, 0.0
        %v988 = vmax.f32 %v651, 0.0
        %v989 = vmax.f32 %v653, 0.0
        %v990 = vmax.f32 %v844, 0.0
        %v991 = vmax.f32 %v846, 0.0
        %v992 = vmax.f32 %v657, 0.0
        %v993 = vmax.f32 %v659, 0.0
        %v994 = vmax.f32 %v850, 0.0
        %v995 = vmax.f32 %v852, 0.0
        %v996 = vmax.f32 %v661, 0.0
        %v997 = vmax.f32 %v663, 0.0
        %v998 = vmax.f32 %v854, 0.0
        %v999 = vmax.f32 %v856, 0.0
        %v1000 = vmax.f32 %v667, 0.0
        %v1001 = vmax.f32 %v669, 0.0
        %v1002 = vmax.f32 %v860, 0.0
        %v1003 = vmax.f32 %v862, 0.0
        %v1004 = vmax.f32 %v671, 0.0
        %v1005 = vmax.f32 %v673, 0.0
        %v1006 = vmax.f32 %v864, 0.0
        %v1007 = vmax.f32 %v866, 0.0
        %v1008 = vmax.f32 %v677, 0.0
        %v1009 = vmax.f32 %v679, 0.0
        %v1010 = vmax.f32 %v870, 0.0
        %v1011 = vmax.f32 %v872, 0.0
        %v1012 = vmax.f32 %v681, 0.0
        %v1013 = vmax.f32 %v683, 0.0
        %v1014 = vmax.f32 %v874, 0.0
        %v1015 = vmax.f32 %v876, 0.0
        %v1016 = vmax.f32 %v687, 0.0
        %v1017 = vmax.f32 %v689, 0.0
        %v1018 = vmax.f32 %v880, 0.0
        %v1019 = vmax.f32 %v882, 0.0
        %v1020 = vmax.f32 %v691, 0.0
        %v1021 = vmax.f32 %v693, 0.0
        %v1022 = vmax.f32 %v884, 0.0
        %v1023 = vmax.f32 %v886, 0.0
        %v1024 = vmax.f32 %v697, 0.0
        %v1025 = vmax.f32 %v699, 0.0
        %v1026 = vmax.f32 %v890, 0.0
        %v1027 = vmax.f32 %v892, 0.0
        %v1028 = vmax.f32 %v701, 0.0
        %v1029 = vmax.f32 %v703, 0.0
        %v1030 = vmax.f32 %v894, 0.0
        %v1031 = vmax.f32 %v896, 0.0
        %v1032 = vmax.f32 %v707, 0.0
        %v1033 = vmax.f32 %v709, 0.0
        %v1034 = vmax.f32 %v900, 0.0
        %v1035 = vmax.f32 %v902, 0.0
        %v1036 = vmax.f32 %v711, 0.0
        %v1037 = vmax.f32 %v713, 0.0
        %v1038 = vmax.f32 %v904, 0.0
        %v1039 = vmax.f32 %v906, 0.0
        %v1040 = vmax.f32 %v717, 0.0
        %v1041 = vmax.f32 %v719, 0.0
        %v1042 = vmax.f32 %v910, 0.0
        %v1043 = vmax.f32 %v912, 0.0
        %v1044 = vmax.f32 %v721, 0.0
        %v1045 = vmax.f32 %v723, 0.0
        %v1046 = vmax.f32 %v914, 0.0
        %v1047 = vmax.f32 %v916, 0.0
        %v1048 = vmax.f32 %v727, 0.0
        %v1049 = vmax.f32 %v729, 0.0
        %v1050 = vmax.f32 %v920, 0.0
        %v1051 = vmax.f32 %v922, 0.0
        %v1052 = vmax.f32 %v731, 0.0
        %v1053 = vmax.f32 %v733, 0.0
        %v1054 = vmax.f32 %v924, 0.0
        %v1055 = vmax.f32 %v926, 0.0
        %v1056 = vpack.c.bf16 %v932, %v928
        %v1057 = vpack.c.bf16 %v933, %v929
        %v1058 = vpack.c.bf16 %v934, %v930
        %v1059 = vpack.c.bf16 %v935, %v931
        %v1060 = vpack.c.bf16 %v940, %v936
        %v1061 = vpack.c.bf16 %v941, %v937
        %v1062 = vpack.c.bf16 %v942, %v938
        %v1063 = vpack.c.bf16 %v943, %v939
        %v1064 = vpack.c.bf16 %v948, %v944
        %v1065 = vpack.c.bf16 %v949, %v945
        %v1066 = vpack.c.bf16 %v950, %v946
        %v1067 = vpack.c.bf16 %v951, %v947
        %v1068 = vpack.c.bf16 %v956, %v952
        %v1069 = vpack.c.bf16 %v957, %v953
        %v1070 = vpack.c.bf16 %v958, %v954
        %v1071 = vpack.c.bf16 %v959, %v955
        %v1072 = vpack.c.bf16 %v964, %v960
        %v1073 = vpack.c.bf16 %v965, %v961
        %v1074 = vpack.c.bf16 %v966, %v962
        %v1075 = vpack.c.bf16 %v967, %v963
        %v1076 = vpack.c.bf16 %v972, %v968
        %v1077 = vpack.c.bf16 %v973, %v969
        %v1078 = vpack.c.bf16 %v974, %v970
        %v1079 = vpack.c.bf16 %v975, %v971
        %v1080 = vpack.c.bf16 %v980, %v976
        %v1081 = vpack.c.bf16 %v981, %v977
        %v1082 = vpack.c.bf16 %v982, %v978
        %v1083 = vpack.c.bf16 %v983, %v979
        %v1084 = vpack.c.bf16 %v988, %v984
        %v1085 = vpack.c.bf16 %v989, %v985
        %v1086 = vpack.c.bf16 %v990, %v986
        %v1087 = vpack.c.bf16 %v991, %v987
        %v1088 = vpack.c.bf16 %v996, %v992
        %v1089 = vpack.c.bf16 %v997, %v993
        %v1090 = vpack.c.bf16 %v998, %v994
        %v1091 = vpack.c.bf16 %v999, %v995
        %v1092 = vpack.c.bf16 %v1004, %v1000
        %v1093 = vpack.c.bf16 %v1005, %v1001
        %v1094 = vpack.c.bf16 %v1006, %v1002
        %v1095 = vpack.c.bf16 %v1007, %v1003
        %v1096 = vpack.c.bf16 %v1012, %v1008
        %v1097 = vpack.c.bf16 %v1013, %v1009
        %v1098 = vpack.c.bf16 %v1014, %v1010
        %v1099 = vpack.c.bf16 %v1015, %v1011
        %v1100 = vpack.c.bf16 %v1020, %v1016
        %v1101 = vpack.c.bf16 %v1021, %v1017
        %v1102 = vpack.c.bf16 %v1022, %v1018
        %v1103 = vpack.c.bf16 %v1023, %v1019
        %v1104 = vpack.c.bf16 %v1028, %v1024
        %v1105 = vpack.c.bf16 %v1029, %v1025
        %v1106 = vpack.c.bf16 %v1030, %v1026
        %v1107 = vpack.c.bf16 %v1031, %v1027
        %v1108 = vpack.c.bf16 %v1036, %v1032
        %v1109 = vpack.c.bf16 %v1037, %v1033
        %v1110 = vpack.c.bf16 %v1038, %v1034
        %v1111 = vpack.c.bf16 %v1039, %v1035
        %v1112 = vpack.c.bf16 %v1044, %v1040
        %v1113 = vpack.c.bf16 %v1045, %v1041
        %v1114 = vpack.c.bf16 %v1046, %v1042
        %v1115 = vpack.c.bf16 %v1047, %v1043
        %v1116 = vpack.c.bf16 %v1052, %v1048
        %v1117 = vpack.c.bf16 %v1053, %v1049
        %v1118 = vpack.c.bf16 %v1054, %v1050
        %v1119 = vpack.c.bf16 %v1055, %v1051
        %v1120 = vld [vmem:[#allocation2] sm:$0xff]
        %v1121 = vld [vmem:[#allocation2 + $0x8] sm:$0xff]
        %v1122 = vld [vmem:[#allocation2 + $0x10] sm:$0xff]
        %v1123 = vld [vmem:[#allocation2 + $0x18] sm:$0xff]
        %v1124 = vld [vmem:[#allocation2 + $0x20] sm:$0xff]
        %v1125 = vld [vmem:[#allocation2 + $0x28] sm:$0xff]
        %v1126 = vld [vmem:[#allocation2 + $0x30] sm:$0xff]
        %v1127 = vld [vmem:[#allocation2 + $0x38] sm:$0xff]
        %v1128 = vld [vmem:[#allocation2 + $0x40] sm:$0xff]
        %v1129 = vld [vmem:[#allocation2 + $0x48] sm:$0xff]
        %v1130 = vld [vmem:[#allocation2 + $0x50] sm:$0xff]
        %v1131 = vld [vmem:[#allocation2 + $0x58] sm:$0xff]
        %v1132 = vld [vmem:[#allocation2 + $0x60] sm:$0xff]
        %v1133 = vld [vmem:[#allocation2 + $0x68] sm:$0xff]
        %v1134 = vld [vmem:[#allocation2 + $0x70] sm:$0xff]
        %v1135 = vld [vmem:[#allocation2 + $0x78] sm:$0xff]
        %v1136 = vld [vmem:[#allocation2 + $0x80] sm:$0xff]
        %v1137 = vld [vmem:[#allocation2 + $0x88] sm:$0xff]
        %v1138 = vld [vmem:[#allocation2 + $0x90] sm:$0xff]
        %v1139 = vld [vmem:[#allocation2 + $0x98] sm:$0xff]
        %v1140 = vld [vmem:[#allocation2 + $0xa0] sm:$0xff]
        %v1141 = vld [vmem:[#allocation2 + $0xa8] sm:$0xff]
        %v1142 = vld [vmem:[#allocation2 + $0xb0] sm:$0xff]
        %v1143 = vld [vmem:[#allocation2 + $0xb8] sm:$0xff]
        %v1144 = vld [vmem:[#allocation2 + $0xc0] sm:$0xff]
        %v1145 = vld [vmem:[#allocation2 + $0xc8] sm:$0xff]
        %v1146 = vld [vmem:[#allocation2 + $0xd0] sm:$0xff]
        %v1147 = vld [vmem:[#allocation2 + $0xd8] sm:$0xff]
        %v1148 = vld [vmem:[#allocation2 + $0xe0] sm:$0xff]
        %v1149 = vld [vmem:[#allocation2 + $0xe8] sm:$0xff]
        %v1150 = vld [vmem:[#allocation2 + $0xf0] sm:$0xff]
        %v1151 = vld [vmem:[#allocation2 + $0xf8] sm:$0xff]
        %v1152 = vld [vmem:[#allocation2 + $0x100] sm:$0xff]
        %v1153 = vld [vmem:[#allocation2 + $0x108] sm:$0xff]
        %v1154 = vld [vmem:[#allocation2 + $0x110] sm:$0xff]
        %v1155 = vld [vmem:[#allocation2 + $0x118] sm:$0xff]
        %v1156 = vld [vmem:[#allocation2 + $0x120] sm:$0xff]
        %v1157 = vld [vmem:[#allocation2 + $0x128] sm:$0xff]
        %v1158 = vld [vmem:[#allocation2 + $0x130] sm:$0xff]
        %v1159 = vld [vmem:[#allocation2 + $0x138] sm:$0xff]
        %v1160 = vld [vmem:[#allocation2 + $0x140] sm:$0xff]
        %v1161 = vld [vmem:[#allocation2 + $0x148] sm:$0xff]
        %v1162 = vld [vmem:[#allocation2 + $0x150] sm:$0xff]
        %v1163 = vld [vmem:[#allocation2 + $0x158] sm:$0xff]
        %v1164 = vld [vmem:[#allocation2 + $0x160] sm:$0xff]
        %v1165 = vld [vmem:[#allocation2 + $0x168] sm:$0xff]
        %v1166 = vld [vmem:[#allocation2 + $0x170] sm:$0xff]
        %v1167 = vld [vmem:[#allocation2 + $0x178] sm:$0xff]
        %v1168 = vld [vmem:[#allocation2 + $0x180] sm:$0xff]
        %v1169 = vld [vmem:[#allocation2 + $0x188] sm:$0xff]
        %v1170 = vld [vmem:[#allocation2 + $0x190] sm:$0xff]
        %v1171 = vld [vmem:[#allocation2 + $0x198] sm:$0xff]
        %v1172 = vld [vmem:[#allocation2 + $0x1a0] sm:$0xff]
        %v1173 = vld [vmem:[#allocation2 + $0x1a8] sm:$0xff]
        %v1174 = vld [vmem:[#allocation2 + $0x1b0] sm:$0xff]
        %v1175 = vld [vmem:[#allocation2 + $0x1b8] sm:$0xff]
        %v1176 = vld [vmem:[#allocation2 + $0x1c0] sm:$0xff]
        %v1177 = vld [vmem:[#allocation2 + $0x1c8] sm:$0xff]
        %v1178 = vld [vmem:[#allocation2 + $0x1d0] sm:$0xff]
        %v1179 = vld [vmem:[#allocation2 + $0x1d8] sm:$0xff]
        %v1180 = vld [vmem:[#allocation2 + $0x1e0] sm:$0xff]
        %v1181 = vld [vmem:[#allocation2 + $0x1e8] sm:$0xff]
        %v1182 = vld [vmem:[#allocation2 + $0x1f0] sm:$0xff]
        %v1183 = vld [vmem:[#allocation2 + $0x1f8] sm:$0xff]
        %v1184 = vld [vmem:[#allocation2 + $0x200] sm:$0xff]
        %v1185 = vld [vmem:[#allocation2 + $0x208] sm:$0xff]
        %v1186 = vld [vmem:[#allocation2 + $0x210] sm:$0xff]
        %v1187 = vld [vmem:[#allocation2 + $0x218] sm:$0xff]
        %v1188 = vld [vmem:[#allocation2 + $0x220] sm:$0xff]
        %v1189 = vld [vmem:[#allocation2 + $0x228] sm:$0xff]
        %v1190 = vld [vmem:[#allocation2 + $0x230] sm:$0xff]
        %v1191 = vld [vmem:[#allocation2 + $0x238] sm:$0xff]
        %v1192 = vld [vmem:[#allocation2 + $0x240] sm:$0xff]
        %v1193 = vld [vmem:[#allocation2 + $0x248] sm:$0xff]
        %v1194 = vld [vmem:[#allocation2 + $0x250] sm:$0xff]
        %v1195 = vld [vmem:[#allocation2 + $0x258] sm:$0xff]
        %v1196 = vld [vmem:[#allocation2 + $0x260] sm:$0xff]
        %v1197 = vld [vmem:[#allocation2 + $0x268] sm:$0xff]
        %v1198 = vld [vmem:[#allocation2 + $0x270] sm:$0xff]
        %v1199 = vld [vmem:[#allocation2 + $0x278] sm:$0xff]
        %v1200 = vld [vmem:[#allocation2 + $0x280] sm:$0xff]
        %v1201 = vld [vmem:[#allocation2 + $0x288] sm:$0xff]
        %v1202 = vld [vmem:[#allocation2 + $0x290] sm:$0xff]
        %v1203 = vld [vmem:[#allocation2 + $0x298] sm:$0xff]
        %v1204 = vld [vmem:[#allocation2 + $0x2a0] sm:$0xff]
        %v1205 = vld [vmem:[#allocation2 + $0x2a8] sm:$0xff]
        %v1206 = vld [vmem:[#allocation2 + $0x2b0] sm:$0xff]
        %v1207 = vld [vmem:[#allocation2 + $0x2b8] sm:$0xff]
        %v1208 = vld [vmem:[#allocation2 + $0x2c0] sm:$0xff]
        %v1209 = vld [vmem:[#allocation2 + $0x2c8] sm:$0xff]
        %v1210 = vld [vmem:[#allocation2 + $0x2d0] sm:$0xff]
        %v1211 = vld [vmem:[#allocation2 + $0x2d8] sm:$0xff]
        %v1212 = vld [vmem:[#allocation2 + $0x2e0] sm:$0xff]
        %v1213 = vld [vmem:[#allocation2 + $0x2e8] sm:$0xff]
        %v1214 = vld [vmem:[#allocation2 + $0x2f0] sm:$0xff]
        %v1215 = vld [vmem:[#allocation2 + $0x2f8] sm:$0xff]
        %v1216 = vld [vmem:[#allocation2 + $0x300] sm:$0xff]
        %v1217 = vld [vmem:[#allocation2 + $0x308] sm:$0xff]
        %v1218 = vld [vmem:[#allocation2 + $0x310] sm:$0xff]
        %v1219 = vld [vmem:[#allocation2 + $0x318] sm:$0xff]
        %v1220 = vld [vmem:[#allocation2 + $0x320] sm:$0xff]
        %v1221 = vld [vmem:[#allocation2 + $0x328] sm:$0xff]
        %v1222 = vld [vmem:[#allocation2 + $0x330] sm:$0xff]
        %v1223 = vld [vmem:[#allocation2 + $0x338] sm:$0xff]
        %v1224 = vld [vmem:[#allocation2 + $0x340] sm:$0xff]
        %v1225 = vld [vmem:[#allocation2 + $0x348] sm:$0xff]
        %v1226 = vld [vmem:[#allocation2 + $0x350] sm:$0xff]
        %v1227 = vld [vmem:[#allocation2 + $0x358] sm:$0xff]
        %v1228 = vld [vmem:[#allocation2 + $0x360] sm:$0xff]
        %v1229 = vld [vmem:[#allocation2 + $0x368] sm:$0xff]
        %v1230 = vld [vmem:[#allocation2 + $0x370] sm:$0xff]
        %v1231 = vld [vmem:[#allocation2 + $0x378] sm:$0xff]
        %v1232 = vld [vmem:[#allocation2 + $0x380] sm:$0xff]
        %v1233 = vld [vmem:[#allocation2 + $0x388] sm:$0xff]
        %v1234 = vld [vmem:[#allocation2 + $0x390] sm:$0xff]
        %v1235 = vld [vmem:[#allocation2 + $0x398] sm:$0xff]
        %v1236 = vld [vmem:[#allocation2 + $0x3a0] sm:$0xff]
        %v1237 = vld [vmem:[#allocation2 + $0x3a8] sm:$0xff]
        %v1238 = vld [vmem:[#allocation2 + $0x3b0] sm:$0xff]
        %v1239 = vld [vmem:[#allocation2 + $0x3b8] sm:$0xff]
        %v1240 = vld [vmem:[#allocation2 + $0x3c0] sm:$0xff]
        %v1241 = vld [vmem:[#allocation2 + $0x3c8] sm:$0xff]
        %v1242 = vld [vmem:[#allocation2 + $0x3d0] sm:$0xff]
        %v1243 = vld [vmem:[#allocation2 + $0x3d8] sm:$0xff]
        %v1244 = vld [vmem:[#allocation2 + $0x3e0] sm:$0xff]
        %v1245 = vld [vmem:[#allocation2 + $0x3e8] sm:$0xff]
        %v1246 = vld [vmem:[#allocation2 + $0x3f0] sm:$0xff]
        %v1247 = vld [vmem:[#allocation2 + $0x3f8] sm:$0xff]
        %v1248 = vld [vmem:[#allocation2 + $0x400] sm:$0xff]
        %v1249 = vld [vmem:[#allocation2 + $0x408] sm:$0xff]
        %v1250 = vld [vmem:[#allocation2 + $0x410] sm:$0xff]
        %v1251 = vld [vmem:[#allocation2 + $0x418] sm:$0xff]
        %v1252 = vld [vmem:[#allocation2 + $0x420] sm:$0xff]
        %v1253 = vld [vmem:[#allocation2 + $0x428] sm:$0xff]
        %v1254 = vld [vmem:[#allocation2 + $0x430] sm:$0xff]
        %v1255 = vld [vmem:[#allocation2 + $0x438] sm:$0xff]
        %v1256 = vld [vmem:[#allocation2 + $0x440] sm:$0xff]
        %v1257 = vld [vmem:[#allocation2 + $0x448] sm:$0xff]
        %v1258 = vld [vmem:[#allocation2 + $0x450] sm:$0xff]
        %v1259 = vld [vmem:[#allocation2 + $0x458] sm:$0xff]
        %v1260 = vld [vmem:[#allocation2 + $0x460] sm:$0xff]
        %v1261 = vld [vmem:[#allocation2 + $0x468] sm:$0xff]
        %v1262 = vld [vmem:[#allocation2 + $0x470] sm:$0xff]
        %v1263 = vld [vmem:[#allocation2 + $0x478] sm:$0xff]
        %v1264 = vld [vmem:[#allocation2 + $0x480] sm:$0xff]
        %v1265 = vld [vmem:[#allocation2 + $0x488] sm:$0xff]
        %v1266 = vld [vmem:[#allocation2 + $0x490] sm:$0xff]
        %v1267 = vld [vmem:[#allocation2 + $0x498] sm:$0xff]
        %v1268 = vld [vmem:[#allocation2 + $0x4a0] sm:$0xff]
        %v1269 = vld [vmem:[#allocation2 + $0x4a8] sm:$0xff]
        %v1270 = vld [vmem:[#allocation2 + $0x4b0] sm:$0xff]
        %v1271 = vld [vmem:[#allocation2 + $0x4b8] sm:$0xff]
        %v1272 = vld [vmem:[#allocation2 + $0x4c0] sm:$0xff]
        %v1273 = vld [vmem:[#allocation2 + $0x4c8] sm:$0xff]
        %v1274 = vld [vmem:[#allocation2 + $0x4d0] sm:$0xff]
        %v1275 = vld [vmem:[#allocation2 + $0x4d8] sm:$0xff]
        %v1276 = vld [vmem:[#allocation2 + $0x4e0] sm:$0xff]
        %v1277 = vld [vmem:[#allocation2 + $0x4e8] sm:$0xff]
        %v1278 = vld [vmem:[#allocation2 + $0x4f0] sm:$0xff]
        %v1279 = vld [vmem:[#allocation2 + $0x4f8] sm:$0xff]
        %v1280 = vld [vmem:[#allocation2 + $0x500] sm:$0xff]
        %v1281 = vld [vmem:[#allocation2 + $0x508] sm:$0xff]
        %v1282 = vld [vmem:[#allocation2 + $0x510] sm:$0xff]
        %v1283 = vld [vmem:[#allocation2 + $0x518] sm:$0xff]
        %v1284 = vld [vmem:[#allocation2 + $0x520] sm:$0xff]
        %v1285 = vld [vmem:[#allocation2 + $0x528] sm:$0xff]
        %v1286 = vld [vmem:[#allocation2 + $0x530] sm:$0xff]
        %v1287 = vld [vmem:[#allocation2 + $0x538] sm:$0xff]
        %v1288 = vld [vmem:[#allocation2 + $0x540] sm:$0xff]
        %v1289 = vld [vmem:[#allocation2 + $0x548] sm:$0xff]
        %v1290 = vld [vmem:[#allocation2 + $0x550] sm:$0xff]
        %v1291 = vld [vmem:[#allocation2 + $0x558] sm:$0xff]
        %v1292 = vld [vmem:[#allocation2 + $0x560] sm:$0xff]
        %v1293 = vld [vmem:[#allocation2 + $0x568] sm:$0xff]
        %v1294 = vld [vmem:[#allocation2 + $0x570] sm:$0xff]
        %v1295 = vld [vmem:[#allocation2 + $0x578] sm:$0xff]
        %v1296 = vld [vmem:[#allocation2 + $0x580] sm:$0xff]
        %v1297 = vld [vmem:[#allocation2 + $0x588] sm:$0xff]
        %v1298 = vld [vmem:[#allocation2 + $0x590] sm:$0xff]
        %v1299 = vld [vmem:[#allocation2 + $0x598] sm:$0xff]
        %v1300 = vld [vmem:[#allocation2 + $0x5a0] sm:$0xff]
        %v1301 = vld [vmem:[#allocation2 + $0x5a8] sm:$0xff]
        %v1302 = vld [vmem:[#allocation2 + $0x5b0] sm:$0xff]
        %v1303 = vld [vmem:[#allocation2 + $0x5b8] sm:$0xff]
        %v1304 = vld [vmem:[#allocation2 + $0x5c0] sm:$0xff]
        %v1305 = vld [vmem:[#allocation2 + $0x5c8] sm:$0xff]
        %v1306 = vld [vmem:[#allocation2 + $0x5d0] sm:$0xff]
        %v1307 = vld [vmem:[#allocation2 + $0x5d8] sm:$0xff]
        %v1308 = vld [vmem:[#allocation2 + $0x5e0] sm:$0xff]
        %v1309 = vld [vmem:[#allocation2 + $0x5e8] sm:$0xff]
        %v1310 = vld [vmem:[#allocation2 + $0x5f0] sm:$0xff]
        %v1311 = vld [vmem:[#allocation2 + $0x5f8] sm:$0xff]
        %v1312 = vld [vmem:[#allocation2 + $0x600] sm:$0xff]
        %v1313 = vld [vmem:[#allocation2 + $0x608] sm:$0xff]
        %v1314 = vld [vmem:[#allocation2 + $0x610] sm:$0xff]
        %v1315 = vld [vmem:[#allocation2 + $0x618] sm:$0xff]
        %v1316 = vld [vmem:[#allocation2 + $0x620] sm:$0xff]
        %v1317 = vld [vmem:[#allocation2 + $0x628] sm:$0xff]
        %v1318 = vld [vmem:[#allocation2 + $0x630] sm:$0xff]
        %v1319 = vld [vmem:[#allocation2 + $0x638] sm:$0xff]
        %v1320 = vld [vmem:[#allocation2 + $0x640] sm:$0xff]
        %v1321 = vld [vmem:[#allocation2 + $0x648] sm:$0xff]
        %v1322 = vld [vmem:[#allocation2 + $0x650] sm:$0xff]
        %v1323 = vld [vmem:[#allocation2 + $0x658] sm:$0xff]
        %v1324 = vld [vmem:[#allocation2 + $0x660] sm:$0xff]
        %v1325 = vld [vmem:[#allocation2 + $0x668] sm:$0xff]
        %v1326 = vld [vmem:[#allocation2 + $0x670] sm:$0xff]
        %v1327 = vld [vmem:[#allocation2 + $0x678] sm:$0xff]
        %v1328 = vld [vmem:[#allocation2 + $0x680] sm:$0xff]
        %v1329 = vld [vmem:[#allocation2 + $0x688] sm:$0xff]
        %v1330 = vld [vmem:[#allocation2 + $0x690] sm:$0xff]
        %v1331 = vld [vmem:[#allocation2 + $0x698] sm:$0xff]
        %v1332 = vld [vmem:[#allocation2 + $0x6a0] sm:$0xff]
        %v1333 = vld [vmem:[#allocation2 + $0x6a8] sm:$0xff]
        %v1334 = vld [vmem:[#allocation2 + $0x6b0] sm:$0xff]
        %v1335 = vld [vmem:[#allocation2 + $0x6b8] sm:$0xff]
        %v1336 = vld [vmem:[#allocation2 + $0x6c0] sm:$0xff]
        %v1337 = vld [vmem:[#allocation2 + $0x6c8] sm:$0xff]
        %v1338 = vld [vmem:[#allocation2 + $0x6d0] sm:$0xff]
        %v1339 = vld [vmem:[#allocation2 + $0x6d8] sm:$0xff]
        %v1340 = vld [vmem:[#allocation2 + $0x6e0] sm:$0xff]
        %v1341 = vld [vmem:[#allocation2 + $0x6e8] sm:$0xff]
        %v1342 = vld [vmem:[#allocation2 + $0x6f0] sm:$0xff]
        %v1343 = vld [vmem:[#allocation2 + $0x6f8] sm:$0xff]
        %v1344 = vld [vmem:[#allocation2 + $0x700] sm:$0xff]
        %v1345 = vld [vmem:[#allocation2 + $0x708] sm:$0xff]
        %v1346 = vld [vmem:[#allocation2 + $0x710] sm:$0xff]
        %v1347 = vld [vmem:[#allocation2 + $0x718] sm:$0xff]
        %v1348 = vld [vmem:[#allocation2 + $0x720] sm:$0xff]
        %v1349 = vld [vmem:[#allocation2 + $0x728] sm:$0xff]
        %v1350 = vld [vmem:[#allocation2 + $0x730] sm:$0xff]
        %v1351 = vld [vmem:[#allocation2 + $0x738] sm:$0xff]
        %v1352 = vld [vmem:[#allocation2 + $0x740] sm:$0xff]
        %v1353 = vld [vmem:[#allocation2 + $0x748] sm:$0xff]
        %v1354 = vld [vmem:[#allocation2 + $0x750] sm:$0xff]
        %v1355 = vld [vmem:[#allocation2 + $0x758] sm:$0xff]
        %v1356 = vld [vmem:[#allocation2 + $0x760] sm:$0xff]
        %v1357 = vld [vmem:[#allocation2 + $0x768] sm:$0xff]
        %v1358 = vld [vmem:[#allocation2 + $0x770] sm:$0xff]
        %v1359 = vld [vmem:[#allocation2 + $0x778] sm:$0xff]
        %v1360 = vld [vmem:[#allocation2 + $0x780] sm:$0xff]
        %v1361 = vld [vmem:[#allocation2 + $0x788] sm:$0xff]
        %v1362 = vld [vmem:[#allocation2 + $0x790] sm:$0xff]
        %v1363 = vld [vmem:[#allocation2 + $0x798] sm:$0xff]
        %v1364 = vld [vmem:[#allocation2 + $0x7a0] sm:$0xff]
        %v1365 = vld [vmem:[#allocation2 + $0x7a8] sm:$0xff]
        %v1366 = vld [vmem:[#allocation2 + $0x7b0] sm:$0xff]
        %v1367 = vld [vmem:[#allocation2 + $0x7b8] sm:$0xff]
        %v1368 = vld [vmem:[#allocation2 + $0x7c0] sm:$0xff]
        %v1369 = vld [vmem:[#allocation2 + $0x7c8] sm:$0xff]
        %v1370 = vld [vmem:[#allocation2 + $0x7d0] sm:$0xff]
        %v1371 = vld [vmem:[#allocation2 + $0x7d8] sm:$0xff]
        %v1372 = vld [vmem:[#allocation2 + $0x7e0] sm:$0xff]
        %v1373 = vld [vmem:[#allocation2 + $0x7e8] sm:$0xff]
        %v1374 = vld [vmem:[#allocation2 + $0x7f0] sm:$0xff]
        %v1375 = vld [vmem:[#allocation2 + $0x7f8] sm:$0xff]
        %v1376 = vld [vmem:[%s4] sm:$0xff]
        %v1378 = vlaneseq
        %v1379 = vshrl.u32 %v1378, 7
        %v1380 = vsub.s32 0, %v1379
        %v1381 = vrot.slane %v1376, %v1380
        %v1382 = vlaneseq
        %v1383 = vshrl.u32 %v1382, 7
        %v1384 = vsub.s32 1, %v1383
        %v1385 = vrot.slane %v1376, %v1384
        %v1386 = vlaneseq
        %v1387 = vshrl.u32 %v1386, 7
        %v1388 = vsub.s32 2, %v1387
        %v1389 = vrot.slane %v1376, %v1388
        %v1390 = vlaneseq
        %v1391 = vshrl.u32 %v1390, 7
        %v1392 = vsub.s32 3, %v1391
        %v1393 = vrot.slane %v1376, %v1392
        %v1394 = vlaneseq
        %v1395 = vshrl.u32 %v1394, 7
        %v1396 = vsub.s32 4, %v1395
        %v1397 = vrot.slane %v1376, %v1396
        %v1398 = vlaneseq
        %v1399 = vshrl.u32 %v1398, 7
        %v1400 = vsub.s32 5, %v1399
        %v1401 = vrot.slane %v1376, %v1400
        %v1402 = vlaneseq
        %v1403 = vshrl.u32 %v1402, 7
        %v1404 = vsub.s32 6, %v1403
        %v1405 = vrot.slane %v1376, %v1404
        %v1406 = vlaneseq
        %v1407 = vshrl.u32 %v1406, 7
        %v1408 = vsub.s32 7, %v1407
        %v1409 = vrot.slane %v1376, %v1408
        %v1674 = vunpack.c.l.b16 %v1120
        %v1675 = vunpack.c.h.b16 %v1120
        %v1676 = vunpack.c.l.b16 %v1121
        %v1677 = vunpack.c.h.b16 %v1121
        %v1678 = vunpack.c.l.b16 %v1122
        %v1679 = vunpack.c.h.b16 %v1122
        %v1680 = vunpack.c.l.b16 %v1123
        %v1681 = vunpack.c.h.b16 %v1123
        %v1682 = vunpack.c.l.b16 %v1124
        %v1683 = vunpack.c.h.b16 %v1124
        %v1684 = vunpack.c.l.b16 %v1125
        %v1685 = vunpack.c.h.b16 %v1125
        %v1686 = vunpack.c.l.b16 %v1126
        %v1687 = vunpack.c.h.b16 %v1126
        %v1688 = vunpack.c.l.b16 %v1127
        %v1689 = vunpack.c.h.b16 %v1127
        %v1690 = vunpack.c.l.b16 %v1128
        %v1691 = vunpack.c.h.b16 %v1128
        %v1692 = vunpack.c.l.b16 %v1129
        %v1693 = vunpack.c.h.b16 %v1129
        %v1694 = vunpack.c.l.b16 %v1130
        %v1695 = vunpack.c.h.b16 %v1130
        %v1696 = vunpack.c.l.b16 %v1131
        %v1697 = vunpack.c.h.b16 %v1131
        %v1698 = vunpack.c.l.b16 %v1132
        %v1699 = vunpack.c.h.b16 %v1132
        %v1700 = vunpack.c.l.b16 %v1133
        %v1701 = vunpack.c.h.b16 %v1133
        %v1702 = vunpack.c.l.b16 %v1134
        %v1703 = vunpack.c.h.b16 %v1134
        %v1704 = vunpack.c.l.b16 %v1135
        %v1705 = vunpack.c.h.b16 %v1135
        %v1706 = vunpack.c.l.b16 %v1136
        %v1707 = vunpack.c.h.b16 %v1136
        %v1708 = vunpack.c.l.b16 %v1137
        %v1709 = vunpack.c.h.b16 %v1137
        %v1710 = vunpack.c.l.b16 %v1138
        %v1711 = vunpack.c.h.b16 %v1138
        %v1712 = vunpack.c.l.b16 %v1139
        %v1713 = vunpack.c.h.b16 %v1139
        %v1714 = vunpack.c.l.b16 %v1140
        %v1715 = vunpack.c.h.b16 %v1140
        %v1716 = vunpack.c.l.b16 %v1141
        %v1717 = vunpack.c.h.b16 %v1141
        %v1718 = vunpack.c.l.b16 %v1142
        %v1719 = vunpack.c.h.b16 %v1142
        %v1720 = vunpack.c.l.b16 %v1143
        %v1721 = vunpack.c.h.b16 %v1143
        %v1722 = vunpack.c.l.b16 %v1144
        %v1723 = vunpack.c.h.b16 %v1144
        %v1724 = vunpack.c.l.b16 %v1145
        %v1725 = vunpack.c.h.b16 %v1145
        %v1726 = vunpack.c.l.b16 %v1146
        %v1727 = vunpack.c.h.b16 %v1146
        %v1728 = vunpack.c.l.b16 %v1147
        %v1729 = vunpack.c.h.b16 %v1147
        %v1730 = vunpack.c.l.b16 %v1148
        %v1731 = vunpack.c.h.b16 %v1148
        %v1732 = vunpack.c.l.b16 %v1149
        %v1733 = vunpack.c.h.b16 %v1149
        %v1734 = vunpack.c.l.b16 %v1150
        %v1735 = vunpack.c.h.b16 %v1150
        %v1736 = vunpack.c.l.b16 %v1151
        %v1737 = vunpack.c.h.b16 %v1151
        %v1738 = vunpack.c.l.b16 %v1152
        %v1739 = vunpack.c.h.b16 %v1152
        %v1740 = vunpack.c.l.b16 %v1153
        %v1741 = vunpack.c.h.b16 %v1153
        %v1742 = vunpack.c.l.b16 %v1154
        %v1743 = vunpack.c.h.b16 %v1154
        %v1744 = vunpack.c.l.b16 %v1155
        %v1745 = vunpack.c.h.b16 %v1155
        %v1746 = vunpack.c.l.b16 %v1156
        %v1747 = vunpack.c.h.b16 %v1156
        %v1748 = vunpack.c.l.b16 %v1157
        %v1749 = vunpack.c.h.b16 %v1157
        %v1750 = vunpack.c.l.b16 %v1158
        %v1751 = vunpack.c.h.b16 %v1158
        %v1752 = vunpack.c.l.b16 %v1159
        %v1753 = vunpack.c.h.b16 %v1159
        %v1754 = vunpack.c.l.b16 %v1160
        %v1755 = vunpack.c.h.b16 %v1160
        %v1756 = vunpack.c.l.b16 %v1161
        %v1757 = vunpack.c.h.b16 %v1161
        %v1758 = vunpack.c.l.b16 %v1162
        %v1759 = vunpack.c.h.b16 %v1162
        %v1760 = vunpack.c.l.b16 %v1163
        %v1761 = vunpack.c.h.b16 %v1163
        %v1762 = vunpack.c.l.b16 %v1164
        %v1763 = vunpack.c.h.b16 %v1164
        %v1764 = vunpack.c.l.b16 %v1165
        %v1765 = vunpack.c.h.b16 %v1165
        %v1766 = vunpack.c.l.b16 %v1166
        %v1767 = vunpack.c.h.b16 %v1166
        %v1768 = vunpack.c.l.b16 %v1167
        %v1769 = vunpack.c.h.b16 %v1167
        %v1770 = vunpack.c.l.b16 %v1168
        %v1771 = vunpack.c.h.b16 %v1168
        %v1772 = vunpack.c.l.b16 %v1169
        %v1773 = vunpack.c.h.b16 %v1169
        %v1774 = vunpack.c.l.b16 %v1170
        %v1775 = vunpack.c.h.b16 %v1170
        %v1776 = vunpack.c.l.b16 %v1171
        %v1777 = vunpack.c.h.b16 %v1171
        %v1778 = vunpack.c.l.b16 %v1172
        %v1779 = vunpack.c.h.b16 %v1172
        %v1780 = vunpack.c.l.b16 %v1173
        %v1781 = vunpack.c.h.b16 %v1173
        %v1782 = vunpack.c.l.b16 %v1174
        %v1783 = vunpack.c.h.b16 %v1174
        %v1784 = vunpack.c.l.b16 %v1175
        %v1785 = vunpack.c.h.b16 %v1175
        %v1786 = vunpack.c.l.b16 %v1176
        %v1787 = vunpack.c.h.b16 %v1176
        %v1788 = vunpack.c.l.b16 %v1177
        %v1789 = vunpack.c.h.b16 %v1177
        %v1790 = vunpack.c.l.b16 %v1178
        %v1791 = vunpack.c.h.b16 %v1178
        %v1792 = vunpack.c.l.b16 %v1179
        %v1793 = vunpack.c.h.b16 %v1179
        %v1794 = vunpack.c.l.b16 %v1180
        %v1795 = vunpack.c.h.b16 %v1180
        %v1796 = vunpack.c.l.b16 %v1181
        %v1797 = vunpack.c.h.b16 %v1181
        %v1798 = vunpack.c.l.b16 %v1182
        %v1799 = vunpack.c.h.b16 %v1182
        %v1800 = vunpack.c.l.b16 %v1183
        %v1801 = vunpack.c.h.b16 %v1183
        %v1802 = vunpack.c.l.b16 %v1184
        %v1803 = vunpack.c.h.b16 %v1184
        %v1804 = vunpack.c.l.b16 %v1185
        %v1805 = vunpack.c.h.b16 %v1185
        %v1806 = vunpack.c.l.b16 %v1186
        %v1807 = vunpack.c.h.b16 %v1186
        %v1808 = vunpack.c.l.b16 %v1187
        %v1809 = vunpack.c.h.b16 %v1187
        %v1810 = vunpack.c.l.b16 %v1188
        %v1811 = vunpack.c.h.b16 %v1188
        %v1812 = vunpack.c.l.b16 %v1189
        %v1813 = vunpack.c.h.b16 %v1189
        %v1814 = vunpack.c.l.b16 %v1190
        %v1815 = vunpack.c.h.b16 %v1190
        %v1816 = vunpack.c.l.b16 %v1191
        %v1817 = vunpack.c.h.b16 %v1191
        %v1818 = vunpack.c.l.b16 %v1192
        %v1819 = vunpack.c.h.b16 %v1192
        %v1820 = vunpack.c.l.b16 %v1193
        %v1821 = vunpack.c.h.b16 %v1193
        %v1822 = vunpack.c.l.b16 %v1194
        %v1823 = vunpack.c.h.b16 %v1194
        %v1824 = vunpack.c.l.b16 %v1195
        %v1825 = vunpack.c.h.b16 %v1195
        %v1826 = vunpack.c.l.b16 %v1196
        %v1827 = vunpack.c.h.b16 %v1196
        %v1828 = vunpack.c.l.b16 %v1197
        %v1829 = vunpack.c.h.b16 %v1197
        %v1830 = vunpack.c.l.b16 %v1198
        %v1831 = vunpack.c.h.b16 %v1198
        %v1832 = vunpack.c.l.b16 %v1199
        %v1833 = vunpack.c.h.b16 %v1199
        %v1834 = vunpack.c.l.b16 %v1200
        %v1835 = vunpack.c.h.b16 %v1200
        %v1836 = vunpack.c.l.b16 %v1201
        %v1837 = vunpack.c.h.b16 %v1201
        %v1838 = vunpack.c.l.b16 %v1202
        %v1839 = vunpack.c.h.b16 %v1202
        %v1840 = vunpack.c.l.b16 %v1203
        %v1841 = vunpack.c.h.b16 %v1203
        %v1842 = vunpack.c.l.b16 %v1204
        %v1843 = vunpack.c.h.b16 %v1204
        %v1844 = vunpack.c.l.b16 %v1205
        %v1845 = vunpack.c.h.b16 %v1205
        %v1846 = vunpack.c.l.b16 %v1206
        %v1847 = vunpack.c.h.b16 %v1206
        %v1848 = vunpack.c.l.b16 %v1207
        %v1849 = vunpack.c.h.b16 %v1207
        %v1850 = vunpack.c.l.b16 %v1208
        %v1851 = vunpack.c.h.b16 %v1208
        %v1852 = vunpack.c.l.b16 %v1209
        %v1853 = vunpack.c.h.b16 %v1209
        %v1854 = vunpack.c.l.b16 %v1210
        %v1855 = vunpack.c.h.b16 %v1210
        %v1856 = vunpack.c.l.b16 %v1211
        %v1857 = vunpack.c.h.b16 %v1211
        %v1858 = vunpack.c.l.b16 %v1212
        %v1859 = vunpack.c.h.b16 %v1212
        %v1860 = vunpack.c.l.b16 %v1213
        %v1861 = vunpack.c.h.b16 %v1213
        %v1862 = vunpack.c.l.b16 %v1214
        %v1863 = vunpack.c.h.b16 %v1214
        %v1864 = vunpack.c.l.b16 %v1215
        %v1865 = vunpack.c.h.b16 %v1215
        %v1866 = vunpack.c.l.b16 %v1216
        %v1867 = vunpack.c.h.b16 %v1216
        %v1868 = vunpack.c.l.b16 %v1217
        %v1869 = vunpack.c.h.b16 %v1217
        %v1870 = vunpack.c.l.b16 %v1218
        %v1871 = vunpack.c.h.b16 %v1218
        %v1872 = vunpack.c.l.b16 %v1219
        %v1873 = vunpack.c.h.b16 %v1219
        %v1874 = vunpack.c.l.b16 %v1220
        %v1875 = vunpack.c.h.b16 %v1220
        %v1876 = vunpack.c.l.b16 %v1221
        %v1877 = vunpack.c.h.b16 %v1221
        %v1878 = vunpack.c.l.b16 %v1222
        %v1879 = vunpack.c.h.b16 %v1222
        %v1880 = vunpack.c.l.b16 %v1223
        %v1881 = vunpack.c.h.b16 %v1223
        %v1882 = vunpack.c.l.b16 %v1224
        %v1883 = vunpack.c.h.b16 %v1224
        %v1884 = vunpack.c.l.b16 %v1225
        %v1885 = vunpack.c.h.b16 %v1225
        %v1886 = vunpack.c.l.b16 %v1226
        %v1887 = vunpack.c.h.b16 %v1226
        %v1888 = vunpack.c.l.b16 %v1227
        %v1889 = vunpack.c.h.b16 %v1227
        %v1890 = vunpack.c.l.b16 %v1228
        %v1891 = vunpack.c.h.b16 %v1228
        %v1892 = vunpack.c.l.b16 %v1229
        %v1893 = vunpack.c.h.b16 %v1229
        %v1894 = vunpack.c.l.b16 %v1230
        %v1895 = vunpack.c.h.b16 %v1230
        %v1896 = vunpack.c.l.b16 %v1231
        %v1897 = vunpack.c.h.b16 %v1231
        %v1898 = vunpack.c.l.b16 %v1232
        %v1899 = vunpack.c.h.b16 %v1232
        %v1900 = vunpack.c.l.b16 %v1233
        %v1901 = vunpack.c.h.b16 %v1233
        %v1902 = vunpack.c.l.b16 %v1234
        %v1903 = vunpack.c.h.b16 %v1234
        %v1904 = vunpack.c.l.b16 %v1235
        %v1905 = vunpack.c.h.b16 %v1235
        %v1906 = vunpack.c.l.b16 %v1236
        %v1907 = vunpack.c.h.b16 %v1236
        %v1908 = vunpack.c.l.b16 %v1237
        %v1909 = vunpack.c.h.b16 %v1237
        %v1910 = vunpack.c.l.b16 %v1238
        %v1911 = vunpack.c.h.b16 %v1238
        %v1912 = vunpack.c.l.b16 %v1239
        %v1913 = vunpack.c.h.b16 %v1239
        %v1914 = vunpack.c.l.b16 %v1240
        %v1915 = vunpack.c.h.b16 %v1240
        %v1916 = vunpack.c.l.b16 %v1241
        %v1917 = vunpack.c.h.b16 %v1241
        %v1918 = vunpack.c.l.b16 %v1242
        %v1919 = vunpack.c.h.b16 %v1242
        %v1920 = vunpack.c.l.b16 %v1243
        %v1921 = vunpack.c.h.b16 %v1243
        %v1922 = vunpack.c.l.b16 %v1244
        %v1923 = vunpack.c.h.b16 %v1244
        %v1924 = vunpack.c.l.b16 %v1245
        %v1925 = vunpack.c.h.b16 %v1245
        %v1926 = vunpack.c.l.b16 %v1246
        %v1927 = vunpack.c.h.b16 %v1246
        %v1928 = vunpack.c.l.b16 %v1247
        %v1929 = vunpack.c.h.b16 %v1247
        %v1930 = vunpack.c.l.b16 %v1248
        %v1931 = vunpack.c.h.b16 %v1248
        %v1932 = vunpack.c.l.b16 %v1249
        %v1933 = vunpack.c.h.b16 %v1249
        %v1934 = vunpack.c.l.b16 %v1250
        %v1935 = vunpack.c.h.b16 %v1250
        %v1936 = vunpack.c.l.b16 %v1251
        %v1937 = vunpack.c.h.b16 %v1251
        %v1938 = vunpack.c.l.b16 %v1252
        %v1939 = vunpack.c.h.b16 %v1252
        %v1940 = vunpack.c.l.b16 %v1253
        %v1941 = vunpack.c.h.b16 %v1253
        %v1942 = vunpack.c.l.b16 %v1254
        %v1943 = vunpack.c.h.b16 %v1254
        %v1944 = vunpack.c.l.b16 %v1255
        %v1945 = vunpack.c.h.b16 %v1255
        %v1946 = vunpack.c.l.b16 %v1256
        %v1947 = vunpack.c.h.b16 %v1256
        %v1948 = vunpack.c.l.b16 %v1257
        %v1949 = vunpack.c.h.b16 %v1257
        %v1950 = vunpack.c.l.b16 %v1258
        %v1951 = vunpack.c.h.b16 %v1258
        %v1952 = vunpack.c.l.b16 %v1259
        %v1953 = vunpack.c.h.b16 %v1259
        %v1954 = vunpack.c.l.b16 %v1260
        %v1955 = vunpack.c.h.b16 %v1260
        %v1956 = vunpack.c.l.b16 %v1261
        %v1957 = vunpack.c.h.b16 %v1261
        %v1958 = vunpack.c.l.b16 %v1262
        %v1959 = vunpack.c.h.b16 %v1262
        %v1960 = vunpack.c.l.b16 %v1263
        %v1961 = vunpack.c.h.b16 %v1263
        %v1962 = vunpack.c.l.b16 %v1264
        %v1963 = vunpack.c.h.b16 %v1264
        %v1964 = vunpack.c.l.b16 %v1265
        %v1965 = vunpack.c.h.b16 %v1265
        %v1966 = vunpack.c.l.b16 %v1266
        %v1967 = vunpack.c.h.b16 %v1266
        %v1968 = vunpack.c.l.b16 %v1267
        %v1969 = vunpack.c.h.b16 %v1267
        %v1970 = vunpack.c.l.b16 %v1268
        %v1971 = vunpack.c.h.b16 %v1268
        %v1972 = vunpack.c.l.b16 %v1269
        %v1973 = vunpack.c.h.b16 %v1269
        %v1974 = vunpack.c.l.b16 %v1270
        %v1975 = vunpack.c.h.b16 %v1270
        %v1976 = vunpack.c.l.b16 %v1271
        %v1977 = vunpack.c.h.b16 %v1271
        %v1978 = vunpack.c.l.b16 %v1272
        %v1979 = vunpack.c.h.b16 %v1272
        %v1980 = vunpack.c.l.b16 %v1273
        %v1981 = vunpack.c.h.b16 %v1273
        %v1982 = vunpack.c.l.b16 %v1274
        %v1983 = vunpack.c.h.b16 %v1274
        %v1984 = vunpack.c.l.b16 %v1275
        %v1985 = vunpack.c.h.b16 %v1275
        %v1986 = vunpack.c.l.b16 %v1276
        %v1987 = vunpack.c.h.b16 %v1276
        %v1988 = vunpack.c.l.b16 %v1277
        %v1989 = vunpack.c.h.b16 %v1277
        %v1990 = vunpack.c.l.b16 %v1278
        %v1991 = vunpack.c.h.b16 %v1278
        %v1992 = vunpack.c.l.b16 %v1279
        %v1993 = vunpack.c.h.b16 %v1279
        %v1994 = vunpack.c.l.b16 %v1280
        %v1995 = vunpack.c.h.b16 %v1280
        %v1996 = vunpack.c.l.b16 %v1281
        %v1997 = vunpack.c.h.b16 %v1281
        %v1998 = vunpack.c.l.b16 %v1282
        %v1999 = vunpack.c.h.b16 %v1282
        %v2000 = vunpack.c.l.b16 %v1283
        %v2001 = vunpack.c.h.b16 %v1283
        %v2002 = vunpack.c.l.b16 %v1284
        %v2003 = vunpack.c.h.b16 %v1284
        %v2004 = vunpack.c.l.b16 %v1285
        %v2005 = vunpack.c.h.b16 %v1285
        %v2006 = vunpack.c.l.b16 %v1286
        %v2007 = vunpack.c.h.b16 %v1286
        %v2008 = vunpack.c.l.b16 %v1287
        %v2009 = vunpack.c.h.b16 %v1287
        %v2010 = vunpack.c.l.b16 %v1288
        %v2011 = vunpack.c.h.b16 %v1288
        %v2012 = vunpack.c.l.b16 %v1289
        %v2013 = vunpack.c.h.b16 %v1289
        %v2014 = vunpack.c.l.b16 %v1290
        %v2015 = vunpack.c.h.b16 %v1290
        %v2016 = vunpack.c.l.b16 %v1291
        %v2017 = vunpack.c.h.b16 %v1291
        %v2018 = vunpack.c.l.b16 %v1292
        %v2019 = vunpack.c.h.b16 %v1292
        %v2020 = vunpack.c.l.b16 %v1293
        %v2021 = vunpack.c.h.b16 %v1293
        %v2022 = vunpack.c.l.b16 %v1294
        %v2023 = vunpack.c.h.b16 %v1294
        %v2024 = vunpack.c.l.b16 %v1295
        %v2025 = vunpack.c.h.b16 %v1295
        %v2026 = vunpack.c.l.b16 %v1296
        %v2027 = vunpack.c.h.b16 %v1296
        %v2028 = vunpack.c.l.b16 %v1297
        %v2029 = vunpack.c.h.b16 %v1297
        %v2030 = vunpack.c.l.b16 %v1298
        %v2031 = vunpack.c.h.b16 %v1298
        %v2032 = vunpack.c.l.b16 %v1299
        %v2033 = vunpack.c.h.b16 %v1299
        %v2034 = vunpack.c.l.b16 %v1300
        %v2035 = vunpack.c.h.b16 %v1300
        %v2036 = vunpack.c.l.b16 %v1301
        %v2037 = vunpack.c.h.b16 %v1301
        %v2038 = vunpack.c.l.b16 %v1302
        %v2039 = vunpack.c.h.b16 %v1302
        %v2040 = vunpack.c.l.b16 %v1303
        %v2041 = vunpack.c.h.b16 %v1303
        %v2042 = vunpack.c.l.b16 %v1304
        %v2043 = vunpack.c.h.b16 %v1304
        %v2044 = vunpack.c.l.b16 %v1305
        %v2045 = vunpack.c.h.b16 %v1305
        %v2046 = vunpack.c.l.b16 %v1306
        %v2047 = vunpack.c.h.b16 %v1306
        %v2048 = vunpack.c.l.b16 %v1307
        %v2049 = vunpack.c.h.b16 %v1307
        %v2050 = vunpack.c.l.b16 %v1308
        %v2051 = vunpack.c.h.b16 %v1308
        %v2052 = vunpack.c.l.b16 %v1309
        %v2053 = vunpack.c.h.b16 %v1309
        %v2054 = vunpack.c.l.b16 %v1310
        %v2055 = vunpack.c.h.b16 %v1310
        %v2056 = vunpack.c.l.b16 %v1311
        %v2057 = vunpack.c.h.b16 %v1311
        %v2058 = vunpack.c.l.b16 %v1312
        %v2059 = vunpack.c.h.b16 %v1312
        %v2060 = vunpack.c.l.b16 %v1313
        %v2061 = vunpack.c.h.b16 %v1313
        %v2062 = vunpack.c.l.b16 %v1314
        %v2063 = vunpack.c.h.b16 %v1314
        %v2064 = vunpack.c.l.b16 %v1315
        %v2065 = vunpack.c.h.b16 %v1315
        %v2066 = vunpack.c.l.b16 %v1316
        %v2067 = vunpack.c.h.b16 %v1316
        %v2068 = vunpack.c.l.b16 %v1317
        %v2069 = vunpack.c.h.b16 %v1317
        %v2070 = vunpack.c.l.b16 %v1318
        %v2071 = vunpack.c.h.b16 %v1318
        %v2072 = vunpack.c.l.b16 %v1319
        %v2073 = vunpack.c.h.b16 %v1319
        %v2074 = vunpack.c.l.b16 %v1320
        %v2075 = vunpack.c.h.b16 %v1320
        %v2076 = vunpack.c.l.b16 %v1321
        %v2077 = vunpack.c.h.b16 %v1321
        %v2078 = vunpack.c.l.b16 %v1322
        %v2079 = vunpack.c.h.b16 %v1322
        %v2080 = vunpack.c.l.b16 %v1323
        %v2081 = vunpack.c.h.b16 %v1323
        %v2082 = vunpack.c.l.b16 %v1324
        %v2083 = vunpack.c.h.b16 %v1324
        %v2084 = vunpack.c.l.b16 %v1325
        %v2085 = vunpack.c.h.b16 %v1325
        %v2086 = vunpack.c.l.b16 %v1326
        %v2087 = vunpack.c.h.b16 %v1326
        %v2088 = vunpack.c.l.b16 %v1327
        %v2089 = vunpack.c.h.b16 %v1327
        %v2090 = vunpack.c.l.b16 %v1328
        %v2091 = vunpack.c.h.b16 %v1328
        %v2092 = vunpack.c.l.b16 %v1329
        %v2093 = vunpack.c.h.b16 %v1329
        %v2094 = vunpack.c.l.b16 %v1330
        %v2095 = vunpack.c.h.b16 %v1330
        %v2096 = vunpack.c.l.b16 %v1331
        %v2097 = vunpack.c.h.b16 %v1331
        %v2098 = vunpack.c.l.b16 %v1332
        %v2099 = vunpack.c.h.b16 %v1332
        %v2100 = vunpack.c.l.b16 %v1333
        %v2101 = vunpack.c.h.b16 %v1333
        %v2102 = vunpack.c.l.b16 %v1334
        %v2103 = vunpack.c.h.b16 %v1334
        %v2104 = vunpack.c.l.b16 %v1335
        %v2105 = vunpack.c.h.b16 %v1335
        %v2106 = vunpack.c.l.b16 %v1336
        %v2107 = vunpack.c.h.b16 %v1336
        %v2108 = vunpack.c.l.b16 %v1337
        %v2109 = vunpack.c.h.b16 %v1337
        %v2110 = vunpack.c.l.b16 %v1338
        %v2111 = vunpack.c.h.b16 %v1338
        %v2112 = vunpack.c.l.b16 %v1339
        %v2113 = vunpack.c.h.b16 %v1339
        %v2114 = vunpack.c.l.b16 %v1340
        %v2115 = vunpack.c.h.b16 %v1340
        %v2116 = vunpack.c.l.b16 %v1341
        %v2117 = vunpack.c.h.b16 %v1341
        %v2118 = vunpack.c.l.b16 %v1342
        %v2119 = vunpack.c.h.b16 %v1342
        %v2120 = vunpack.c.l.b16 %v1343
        %v2121 = vunpack.c.h.b16 %v1343
        %v2122 = vunpack.c.l.b16 %v1344
        %v2123 = vunpack.c.h.b16 %v1344
        %v2124 = vunpack.c.l.b16 %v1345
        %v2125 = vunpack.c.h.b16 %v1345
        %v2126 = vunpack.c.l.b16 %v1346
        %v2127 = vunpack.c.h.b16 %v1346
        %v2128 = vunpack.c.l.b16 %v1347
        %v2129 = vunpack.c.h.b16 %v1347
        %v2130 = vunpack.c.l.b16 %v1348
        %v2131 = vunpack.c.h.b16 %v1348
        %v2132 = vunpack.c.l.b16 %v1349
        %v2133 = vunpack.c.h.b16 %v1349
        %v2134 = vunpack.c.l.b16 %v1350
        %v2135 = vunpack.c.h.b16 %v1350
        %v2136 = vunpack.c.l.b16 %v1351
        %v2137 = vunpack.c.h.b16 %v1351
        %v2138 = vunpack.c.l.b16 %v1352
        %v2139 = vunpack.c.h.b16 %v1352
        %v2140 = vunpack.c.l.b16 %v1353
        %v2141 = vunpack.c.h.b16 %v1353
        %v2142 = vunpack.c.l.b16 %v1354
        %v2143 = vunpack.c.h.b16 %v1354
        %v2144 = vunpack.c.l.b16 %v1355
        %v2145 = vunpack.c.h.b16 %v1355
        %v2146 = vunpack.c.l.b16 %v1356
        %v2147 = vunpack.c.h.b16 %v1356
        %v2148 = vunpack.c.l.b16 %v1357
        %v2149 = vunpack.c.h.b16 %v1357
        %v2150 = vunpack.c.l.b16 %v1358
        %v2151 = vunpack.c.h.b16 %v1358
        %v2152 = vunpack.c.l.b16 %v1359
        %v2153 = vunpack.c.h.b16 %v1359
        %v2154 = vunpack.c.l.b16 %v1360
        %v2155 = vunpack.c.h.b16 %v1360
        %v2156 = vunpack.c.l.b16 %v1361
        %v2157 = vunpack.c.h.b16 %v1361
        %v2158 = vunpack.c.l.b16 %v1362
        %v2159 = vunpack.c.h.b16 %v1362
        %v2160 = vunpack.c.l.b16 %v1363
        %v2161 = vunpack.c.h.b16 %v1363
        %v2162 = vunpack.c.l.b16 %v1364
        %v2163 = vunpack.c.h.b16 %v1364
        %v2164 = vunpack.c.l.b16 %v1365
        %v2165 = vunpack.c.h.b16 %v1365
        %v2166 = vunpack.c.l.b16 %v1366
        %v2167 = vunpack.c.h.b16 %v1366
        %v2168 = vunpack.c.l.b16 %v1367
        %v2169 = vunpack.c.h.b16 %v1367
        %v2170 = vunpack.c.l.b16 %v1368
        %v2171 = vunpack.c.h.b16 %v1368
        %v2172 = vunpack.c.l.b16 %v1369
        %v2173 = vunpack.c.h.b16 %v1369
        %v2174 = vunpack.c.l.b16 %v1370
        %v2175 = vunpack.c.h.b16 %v1370
        %v2176 = vunpack.c.l.b16 %v1371
        %v2177 = vunpack.c.h.b16 %v1371
        %v2178 = vunpack.c.l.b16 %v1372
        %v2179 = vunpack.c.h.b16 %v1372
        %v2180 = vunpack.c.l.b16 %v1373
        %v2181 = vunpack.c.h.b16 %v1373
        %v2182 = vunpack.c.l.b16 %v1374
        %v2183 = vunpack.c.h.b16 %v1374
        %v2184 = vunpack.c.l.b16 %v1375
        %v2185 = vunpack.c.h.b16 %v1375
        %v2186 = vpack.c.b16 %v1682, %v1674
        %v2187 = vpack.c.b16 %v1683, %v1675
        %v2188 = vpack.c.b16 %v1684, %v1676
        %v2189 = vpack.c.b16 %v1685, %v1677
        %v2190 = vpack.c.b16 %v1686, %v1678
        %v2191 = vpack.c.b16 %v1687, %v1679
        %v2192 = vpack.c.b16 %v1688, %v1680
        %v2193 = vpack.c.b16 %v1689, %v1681
        %v2194 = vpack.c.b16 %v1698, %v1690
        %v2195 = vpack.c.b16 %v1699, %v1691
        %v2196 = vpack.c.b16 %v1700, %v1692
        %v2197 = vpack.c.b16 %v1701, %v1693
        %v2198 = vpack.c.b16 %v1702, %v1694
        %v2199 = vpack.c.b16 %v1703, %v1695
        %v2200 = vpack.c.b16 %v1704, %v1696
        %v2201 = vpack.c.b16 %v1705, %v1697
        %v2202 = vpack.c.b16 %v1714, %v1706
        %v2203 = vpack.c.b16 %v1715, %v1707
        %v2204 = vpack.c.b16 %v1716, %v1708
        %v2205 = vpack.c.b16 %v1717, %v1709
        %v2206 = vpack.c.b16 %v1718, %v1710
        %v2207 = vpack.c.b16 %v1719, %v1711
        %v2208 = vpack.c.b16 %v1720, %v1712
        %v2209 = vpack.c.b16 %v1721, %v1713
        %v2210 = vpack.c.b16 %v1730, %v1722
        %v2211 = vpack.c.b16 %v1731, %v1723
        %v2212 = vpack.c.b16 %v1732, %v1724
        %v2213 = vpack.c.b16 %v1733, %v1725
        %v2214 = vpack.c.b16 %v1734, %v1726
        %v2215 = vpack.c.b16 %v1735, %v1727
        %v2216 = vpack.c.b16 %v1736, %v1728
        %v2217 = vpack.c.b16 %v1737, %v1729
        %v2218 = vpack.c.b16 %v1746, %v1738
        %v2219 = vpack.c.b16 %v1747, %v1739
        %v2220 = vpack.c.b16 %v1748, %v1740
        %v2221 = vpack.c.b16 %v1749, %v1741
        %v2222 = vpack.c.b16 %v1750, %v1742
        %v2223 = vpack.c.b16 %v1751, %v1743
        %v2224 = vpack.c.b16 %v1752, %v1744
        %v2225 = vpack.c.b16 %v1753, %v1745
        %v2226 = vpack.c.b16 %v1762, %v1754
        %v2227 = vpack.c.b16 %v1763, %v1755
        %v2228 = vpack.c.b16 %v1764, %v1756
        %v2229 = vpack.c.b16 %v1765, %v1757
        %v2230 = vpack.c.b16 %v1766, %v1758
        %v2231 = vpack.c.b16 %v1767, %v1759
        %v2232 = vpack.c.b16 %v1768, %v1760
        %v2233 = vpack.c.b16 %v1769, %v1761
        %v2234 = vpack.c.b16 %v1778, %v1770
        %v2235 = vpack.c.b16 %v1779, %v1771
        %v2236 = vpack.c.b16 %v1780, %v1772
        %v2237 = vpack.c.b16 %v1781, %v1773
        %v2238 = vpack.c.b16 %v1782, %v1774
        %v2239 = vpack.c.b16 %v1783, %v1775
        %v2240 = vpack.c.b16 %v1784, %v1776
        %v2241 = vpack.c.b16 %v1785, %v1777
        %v2242 = vpack.c.b16 %v1794, %v1786
        %v2243 = vpack.c.b16 %v1795, %v1787
        %v2244 = vpack.c.b16 %v1796, %v1788
        %v2245 = vpack.c.b16 %v1797, %v1789
        %v2246 = vpack.c.b16 %v1798, %v1790
        %v2247 = vpack.c.b16 %v1799, %v1791
        %v2248 = vpack.c.b16 %v1800, %v1792
        %v2249 = vpack.c.b16 %v1801, %v1793
        %v2250 = vpack.c.b16 %v1810, %v1802
        %v2251 = vpack.c.b16 %v1811, %v1803
        %v2252 = vpack.c.b16 %v1812, %v1804
        %v2253 = vpack.c.b16 %v1813, %v1805
        %v2254 = vpack.c.b16 %v1814, %v1806
        %v2255 = vpack.c.b16 %v1815, %v1807
        %v2256 = vpack.c.b16 %v1816, %v1808
        %v2257 = vpack.c.b16 %v1817, %v1809
        %v2258 = vpack.c.b16 %v1826, %v1818
        %v2259 = vpack.c.b16 %v1827, %v1819
        %v2260 = vpack.c.b16 %v1828, %v1820
        %v2261 = vpack.c.b16 %v1829, %v1821
        %v2262 = vpack.c.b16 %v1830, %v1822
        %v2263 = vpack.c.b16 %v1831, %v1823
        %v2264 = vpack.c.b16 %v1832, %v1824
        %v2265 = vpack.c.b16 %v1833, %v1825
        %v2266 = vpack.c.b16 %v1842, %v1834
        %v2267 = vpack.c.b16 %v1843, %v1835
        %v2268 = vpack.c.b16 %v1844, %v1836
        %v2269 = vpack.c.b16 %v1845, %v1837
        %v2270 = vpack.c.b16 %v1846, %v1838
        %v2271 = vpack.c.b16 %v1847, %v1839
        %v2272 = vpack.c.b16 %v1848, %v1840
        %v2273 = vpack.c.b16 %v1849, %v1841
        %v2274 = vpack.c.b16 %v1858, %v1850
        %v2275 = vpack.c.b16 %v1859, %v1851
        %v2276 = vpack.c.b16 %v1860, %v1852
        %v2277 = vpack.c.b16 %v1861, %v1853
        %v2278 = vpack.c.b16 %v1862, %v1854
        %v2279 = vpack.c.b16 %v1863, %v1855
        %v2280 = vpack.c.b16 %v1864, %v1856
        %v2281 = vpack.c.b16 %v1865, %v1857
        %v2282 = vpack.c.b16 %v1874, %v1866
        %v2283 = vpack.c.b16 %v1875, %v1867
        %v2284 = vpack.c.b16 %v1876, %v1868
        %v2285 = vpack.c.b16 %v1877, %v1869
        %v2286 = vpack.c.b16 %v1878, %v1870
        %v2287 = vpack.c.b16 %v1879, %v1871
        %v2288 = vpack.c.b16 %v1880, %v1872
        %v2289 = vpack.c.b16 %v1881, %v1873
        %v2290 = vpack.c.b16 %v1890, %v1882
        %v2291 = vpack.c.b16 %v1891, %v1883
        %v2292 = vpack.c.b16 %v1892, %v1884
        %v2293 = vpack.c.b16 %v1893, %v1885
        %v2294 = vpack.c.b16 %v1894, %v1886
        %v2295 = vpack.c.b16 %v1895, %v1887
        %v2296 = vpack.c.b16 %v1896, %v1888
        %v2297 = vpack.c.b16 %v1897, %v1889
        %v2298 = vpack.c.b16 %v1906, %v1898
        %v2299 = vpack.c.b16 %v1907, %v1899
        %v2300 = vpack.c.b16 %v1908, %v1900
        %v2301 = vpack.c.b16 %v1909, %v1901
        %v2302 = vpack.c.b16 %v1910, %v1902
        %v2303 = vpack.c.b16 %v1911, %v1903
        %v2304 = vpack.c.b16 %v1912, %v1904
        %v2305 = vpack.c.b16 %v1913, %v1905
        %v2306 = vpack.c.b16 %v1922, %v1914
        %v2307 = vpack.c.b16 %v1923, %v1915
        %v2308 = vpack.c.b16 %v1924, %v1916
        %v2309 = vpack.c.b16 %v1925, %v1917
        %v2310 = vpack.c.b16 %v1926, %v1918
        %v2311 = vpack.c.b16 %v1927, %v1919
        %v2312 = vpack.c.b16 %v1928, %v1920
        %v2313 = vpack.c.b16 %v1929, %v1921
        %v2314 = vpack.c.b16 %v1938, %v1930
        %v2315 = vpack.c.b16 %v1939, %v1931
        %v2316 = vpack.c.b16 %v1940, %v1932
        %v2317 = vpack.c.b16 %v1941, %v1933
        %v2318 = vpack.c.b16 %v1942, %v1934
        %v2319 = vpack.c.b16 %v1943, %v1935
        %v2320 = vpack.c.b16 %v1944, %v1936
        %v2321 = vpack.c.b16 %v1945, %v1937
        %v2322 = vpack.c.b16 %v1954, %v1946
        %v2323 = vpack.c.b16 %v1955, %v1947
        %v2324 = vpack.c.b16 %v1956, %v1948
        %v2325 = vpack.c.b16 %v1957, %v1949
        %v2326 = vpack.c.b16 %v1958, %v1950
        %v2327 = vpack.c.b16 %v1959, %v1951
        %v2328 = vpack.c.b16 %v1960, %v1952
        %v2329 = vpack.c.b16 %v1961, %v1953
        %v2330 = vpack.c.b16 %v1970, %v1962
        %v2331 = vpack.c.b16 %v1971, %v1963
        %v2332 = vpack.c.b16 %v1972, %v1964
        %v2333 = vpack.c.b16 %v1973, %v1965
        %v2334 = vpack.c.b16 %v1974, %v1966
        %v2335 = vpack.c.b16 %v1975, %v1967
        %v2336 = vpack.c.b16 %v1976, %v1968
        %v2337 = vpack.c.b16 %v1977, %v1969
        %v2338 = vpack.c.b16 %v1986, %v1978
        %v2339 = vpack.c.b16 %v1987, %v1979
        %v2340 = vpack.c.b16 %v1988, %v1980
        %v2341 = vpack.c.b16 %v1989, %v1981
        %v2342 = vpack.c.b16 %v1990, %v1982
        %v2343 = vpack.c.b16 %v1991, %v1983
        %v2344 = vpack.c.b16 %v1992, %v1984
        %v2345 = vpack.c.b16 %v1993, %v1985
        %v2346 = vpack.c.b16 %v2002, %v1994
        %v2347 = vpack.c.b16 %v2003, %v1995
        %v2348 = vpack.c.b16 %v2004, %v1996
        %v2349 = vpack.c.b16 %v2005, %v1997
        %v2350 = vpack.c.b16 %v2006, %v1998
        %v2351 = vpack.c.b16 %v2007, %v1999
        %v2352 = vpack.c.b16 %v2008, %v2000
        %v2353 = vpack.c.b16 %v2009, %v2001
        %v2354 = vpack.c.b16 %v2018, %v2010
        %v2355 = vpack.c.b16 %v2019, %v2011
        %v2356 = vpack.c.b16 %v2020, %v2012
        %v2357 = vpack.c.b16 %v2021, %v2013
        %v2358 = vpack.c.b16 %v2022, %v2014
        %v2359 = vpack.c.b16 %v2023, %v2015
        %v2360 = vpack.c.b16 %v2024, %v2016
        %v2361 = vpack.c.b16 %v2025, %v2017
        %v2362 = vpack.c.b16 %v2034, %v2026
        %v2363 = vpack.c.b16 %v2035, %v2027
        %v2364 = vpack.c.b16 %v2036, %v2028
        %v2365 = vpack.c.b16 %v2037, %v2029
        %v2366 = vpack.c.b16 %v2038, %v2030
        %v2367 = vpack.c.b16 %v2039, %v2031
        %v2368 = vpack.c.b16 %v2040, %v2032
        %v2369 = vpack.c.b16 %v2041, %v2033
        %v2370 = vpack.c.b16 %v2050, %v2042
        %v2371 = vpack.c.b16 %v2051, %v2043
        %v2372 = vpack.c.b16 %v2052, %v2044
        %v2373 = vpack.c.b16 %v2053, %v2045
        %v2374 = vpack.c.b16 %v2054, %v2046
        %v2375 = vpack.c.b16 %v2055, %v2047
        %v2376 = vpack.c.b16 %v2056, %v2048
        %v2377 = vpack.c.b16 %v2057, %v2049
        %v2378 = vpack.c.b16 %v2066, %v2058
        %v2379 = vpack.c.b16 %v2067, %v2059
        %v2380 = vpack.c.b16 %v2068, %v2060
        %v2381 = vpack.c.b16 %v2069, %v2061
        %v2382 = vpack.c.b16 %v2070, %v2062
        %v2383 = vpack.c.b16 %v2071, %v2063
        %v2384 = vpack.c.b16 %v2072, %v2064
        %v2385 = vpack.c.b16 %v2073, %v2065
        %v2386 = vpack.c.b16 %v2082, %v2074
        %v2387 = vpack.c.b16 %v2083, %v2075
        %v2388 = vpack.c.b16 %v2084, %v2076
        %v2389 = vpack.c.b16 %v2085, %v2077
        %v2390 = vpack.c.b16 %v2086, %v2078
        %v2391 = vpack.c.b16 %v2087, %v2079
        %v2392 = vpack.c.b16 %v2088, %v2080
        %v2393 = vpack.c.b16 %v2089, %v2081
        %v2394 = vpack.c.b16 %v2098, %v2090
        %v2395 = vpack.c.b16 %v2099, %v2091
        %v2396 = vpack.c.b16 %v2100, %v2092
        %v2397 = vpack.c.b16 %v2101, %v2093
        %v2398 = vpack.c.b16 %v2102, %v2094
        %v2399 = vpack.c.b16 %v2103, %v2095
        %v2400 = vpack.c.b16 %v2104, %v2096
        %v2401 = vpack.c.b16 %v2105, %v2097
        %v2402 = vpack.c.b16 %v2114, %v2106
        %v2403 = vpack.c.b16 %v2115, %v2107
        %v2404 = vpack.c.b16 %v2116, %v2108
        %v2405 = vpack.c.b16 %v2117, %v2109
        %v2406 = vpack.c.b16 %v2118, %v2110
        %v2407 = vpack.c.b16 %v2119, %v2111
        %v2408 = vpack.c.b16 %v2120, %v2112
        %v2409 = vpack.c.b16 %v2121, %v2113
        %v2410 = vpack.c.b16 %v2130, %v2122
        %v2411 = vpack.c.b16 %v2131, %v2123
        %v2412 = vpack.c.b16 %v2132, %v2124
        %v2413 = vpack.c.b16 %v2133, %v2125
        %v2414 = vpack.c.b16 %v2134, %v2126
        %v2415 = vpack.c.b16 %v2135, %v2127
        %v2416 = vpack.c.b16 %v2136, %v2128
        %v2417 = vpack.c.b16 %v2137, %v2129
        %v2418 = vpack.c.b16 %v2146, %v2138
        %v2419 = vpack.c.b16 %v2147, %v2139
        %v2420 = vpack.c.b16 %v2148, %v2140
        %v2421 = vpack.c.b16 %v2149, %v2141
        %v2422 = vpack.c.b16 %v2150, %v2142
        %v2423 = vpack.c.b16 %v2151, %v2143
        %v2424 = vpack.c.b16 %v2152, %v2144
        %v2425 = vpack.c.b16 %v2153, %v2145
        %v2426 = vpack.c.b16 %v2162, %v2154
        %v2427 = vpack.c.b16 %v2163, %v2155
        %v2428 = vpack.c.b16 %v2164, %v2156
        %v2429 = vpack.c.b16 %v2165, %v2157
        %v2430 = vpack.c.b16 %v2166, %v2158
        %v2431 = vpack.c.b16 %v2167, %v2159
        %v2432 = vpack.c.b16 %v2168, %v2160
        %v2433 = vpack.c.b16 %v2169, %v2161
        %v2434 = vpack.c.b16 %v2178, %v2170
        %v2435 = vpack.c.b16 %v2179, %v2171
        %v2436 = vpack.c.b16 %v2180, %v2172
        %v2437 = vpack.c.b16 %v2181, %v2173
        %v2438 = vpack.c.b16 %v2182, %v2174
        %v2439 = vpack.c.b16 %v2183, %v2175
        %v2440 = vpack.c.b16 %v2184, %v2176
        %v2441 = vpack.c.b16 %v2185, %v2177
        %2698 = vmatprep.subr.bf16.mxu0 %v2243
        %2699 = vmatpush1.bf16.msra.mxu0 %v2242
        %2700 = vmatprep.subr.bf16.mxu0 %v2235
        %2701 = vmatpush1.bf16.msra.mxu0 %v2234
        %2702 = vmatprep.subr.bf16.mxu0 %v2227
        %2703 = vmatpush1.bf16.msra.mxu0 %v2226
        %2704 = vmatprep.subr.bf16.mxu0 %v2219
        %2705 = vmatpush1.bf16.msra.mxu0 %v2218
        %2706 = vmatprep.subr.bf16.mxu0 %v2211
        %2707 = vmatpush1.bf16.msra.mxu0 %v2210
        %2708 = vmatprep.subr.bf16.mxu0 %v2203
        %2709 = vmatpush1.bf16.msra.mxu0 %v2202
        %2710 = vmatprep.subr.bf16.mxu0 %v2195
        %2711 = vmatpush1.bf16.msra.mxu0 %v2194
        %2712 = vmatprep.subr.bf16.mxu0 %v2187
        %2713 = vmatpush1.bf16.msra.mxu0 %v2186
        %2714 = vmatprep.subr.bf16.mxu0 %v2307
        %2715 = vmatpush2.bf16.msra.mxu0 %v2306
        %2716 = vmatprep.subr.bf16.mxu0 %v2299
        %2717 = vmatpush2.bf16.msra.mxu0 %v2298
        %2718 = vmatprep.subr.bf16.mxu0 %v2291
        %2719 = vmatpush2.bf16.msra.mxu0 %v2290
        %2720 = vmatprep.subr.bf16.mxu0 %v2283
        %2721 = vmatpush2.bf16.msra.mxu0 %v2282
        %2722 = vmatprep.subr.bf16.mxu0 %v2275
        %2723 = vmatpush2.bf16.msra.mxu0 %v2274
        %2724 = vmatprep.subr.bf16.mxu0 %v2267
        %2725 = vmatpush2.bf16.msra.mxu0 %v2266
        %2726 = vmatprep.subr.bf16.mxu0 %v2259
        %2727 = vmatpush2.bf16.msra.mxu0 %v2258
        %2728 = vmatprep.subr.bf16.mxu0 %v2251
        %2729 = vmatpush2.bf16.msra.mxu0 %v2250
        %2730 = vmatprep.mubr.bf16.mxu0 %v1057
        %2731 = vmatmul.mubr.bf16.gmra.mxu0 %v1056
        %v2732 = vpop.f32.mrf.mxu0
        %v2733 = vadd.f32 %v1381, %v2732
        %v2734 = vpop.f32.mrf.mxu0
        %v2735 = vadd.f32 %v1385, %v2734
        %v2736 = vpop.f32.mrf.mxu0
        %v2737 = vadd.f32 %v1381, %v2736
        %v2738 = vpop.f32.mrf.mxu0
        %v2739 = vadd.f32 %v1385, %v2738
        %2740 = vmatprep.mubr.bf16.mxu0 %v1061
        %2741 = vmatmul.mubr.bf16.gmra.mxu0 %v1060
        %v2742 = vpop.f32.mrf.mxu0
        %v2743 = vadd.f32 %v1381, %v2742
        %v2744 = vpop.f32.mrf.mxu0
        %v2745 = vadd.f32 %v1385, %v2744
        %v2746 = vpop.f32.mrf.mxu0
        %v2747 = vadd.f32 %v1381, %v2746
        %v2748 = vpop.f32.mrf.mxu0
        %v2749 = vadd.f32 %v1385, %v2748
        %2750 = vmatprep.mubr.bf16.mxu0 %v1065
        %2751 = vmatmul.mubr.bf16.gmra.mxu0 %v1064
        %v2752 = vpop.f32.mrf.mxu0
        %v2753 = vadd.f32 %v1381, %v2752
        %v2754 = vpop.f32.mrf.mxu0
        %v2755 = vadd.f32 %v1385, %v2754
        %v2756 = vpop.f32.mrf.mxu0
        %v2757 = vadd.f32 %v1381, %v2756
        %v2758 = vpop.f32.mrf.mxu0
        %v2759 = vadd.f32 %v1385, %v2758
        %2760 = vmatprep.mubr.bf16.mxu0 %v1069
        %2761 = vmatmul.mubr.bf16.gmra.mxu0 %v1068
        %v2762 = vpop.f32.mrf.mxu0
        %v2763 = vadd.f32 %v1381, %v2762
        %v2764 = vpop.f32.mrf.mxu0
        %v2765 = vadd.f32 %v1385, %v2764
        %v2766 = vpop.f32.mrf.mxu0
        %v2767 = vadd.f32 %v1381, %v2766
        %v2768 = vpop.f32.mrf.mxu0
        %v2769 = vadd.f32 %v1385, %v2768
        %2770 = vmatprep.mubr.bf16.mxu0 %v1073
        %2771 = vmatmul.mubr.bf16.gmra.mxu0 %v1072
        %v2772 = vpop.f32.mrf.mxu0
        %v2773 = vadd.f32 %v1381, %v2772
        %v2774 = vpop.f32.mrf.mxu0
        %v2775 = vadd.f32 %v1385, %v2774
        %v2776 = vpop.f32.mrf.mxu0
        %v2777 = vadd.f32 %v1381, %v2776
        %v2778 = vpop.f32.mrf.mxu0
        %v2779 = vadd.f32 %v1385, %v2778
        %2780 = vmatprep.mubr.bf16.mxu0 %v1077
        %2781 = vmatmul.mubr.bf16.gmra.mxu0 %v1076
        %v2782 = vpop.f32.mrf.mxu0
        %v2783 = vadd.f32 %v1381, %v2782
        %v2784 = vpop.f32.mrf.mxu0
        %v2785 = vadd.f32 %v1385, %v2784
        %v2786 = vpop.f32.mrf.mxu0
        %v2787 = vadd.f32 %v1381, %v2786
        %v2788 = vpop.f32.mrf.mxu0
        %v2789 = vadd.f32 %v1385, %v2788
        %2790 = vmatprep.mubr.bf16.mxu0 %v1081
        %2791 = vmatmul.mubr.bf16.gmra.mxu0 %v1080
        %v2792 = vpop.f32.mrf.mxu0
        %v2793 = vadd.f32 %v1381, %v2792
        %v2794 = vpop.f32.mrf.mxu0
        %v2795 = vadd.f32 %v1385, %v2794
        %v2796 = vpop.f32.mrf.mxu0
        %v2797 = vadd.f32 %v1381, %v2796
        %v2798 = vpop.f32.mrf.mxu0
        %v2799 = vadd.f32 %v1385, %v2798
        %2800 = vmatprep.mubr.bf16.mxu0 %v1085
        %2801 = vmatmul.mubr.bf16.gmra.mxu0 %v1084
        %v2802 = vpop.f32.mrf.mxu0
        %v2803 = vadd.f32 %v1381, %v2802
        %v2804 = vpop.f32.mrf.mxu0
        %v2805 = vadd.f32 %v1385, %v2804
        %v2806 = vpop.f32.mrf.mxu0
        %v2807 = vadd.f32 %v1381, %v2806
        %v2808 = vpop.f32.mrf.mxu0
        %v2809 = vadd.f32 %v1385, %v2808
        %2810 = vmatprep.mubr.bf16.mxu0 %v1089
        %2811 = vmatmul.mubr.bf16.gmra.mxu0 %v1088
        %v2812 = vpop.f32.mrf.mxu0
        %v2813 = vadd.f32 %v1381, %v2812
        %v2814 = vpop.f32.mrf.mxu0
        %v2815 = vadd.f32 %v1385, %v2814
        %v2816 = vpop.f32.mrf.mxu0
        %v2817 = vadd.f32 %v1381, %v2816
        %v2818 = vpop.f32.mrf.mxu0
        %v2819 = vadd.f32 %v1385, %v2818
        %2820 = vmatprep.mubr.bf16.mxu0 %v1093
        %2821 = vmatmul.mubr.bf16.gmra.mxu0 %v1092
        %v2822 = vpop.f32.mrf.mxu0
        %v2823 = vadd.f32 %v1381, %v2822
        %v2824 = vpop.f32.mrf.mxu0
        %v2825 = vadd.f32 %v1385, %v2824
        %v2826 = vpop.f32.mrf.mxu0
        %v2827 = vadd.f32 %v1381, %v2826
        %v2828 = vpop.f32.mrf.mxu0
        %v2829 = vadd.f32 %v1385, %v2828
        %2830 = vmatprep.mubr.bf16.mxu0 %v1097
        %2831 = vmatmul.mubr.bf16.gmra.mxu0 %v1096
        %v2832 = vpop.f32.mrf.mxu0
        %v2833 = vadd.f32 %v1381, %v2832
        %v2834 = vpop.f32.mrf.mxu0
        %v2835 = vadd.f32 %v1385, %v2834
        %v2836 = vpop.f32.mrf.mxu0
        %v2837 = vadd.f32 %v1381, %v2836
        %v2838 = vpop.f32.mrf.mxu0
        %v2839 = vadd.f32 %v1385, %v2838
        %2840 = vmatprep.mubr.bf16.mxu0 %v1101
        %2841 = vmatmul.mubr.bf16.gmra.mxu0 %v1100
        %v2842 = vpop.f32.mrf.mxu0
        %v2843 = vadd.f32 %v1381, %v2842
        %v2844 = vpop.f32.mrf.mxu0
        %v2845 = vadd.f32 %v1385, %v2844
        %v2846 = vpop.f32.mrf.mxu0
        %v2847 = vadd.f32 %v1381, %v2846
        %v2848 = vpop.f32.mrf.mxu0
        %v2849 = vadd.f32 %v1385, %v2848
        %2850 = vmatprep.mubr.bf16.mxu0 %v1105
        %2851 = vmatmul.mubr.bf16.gmra.mxu0 %v1104
        %v2852 = vpop.f32.mrf.mxu0
        %v2853 = vadd.f32 %v1381, %v2852
        %v2854 = vpop.f32.mrf.mxu0
        %v2855 = vadd.f32 %v1385, %v2854
        %v2856 = vpop.f32.mrf.mxu0
        %v2857 = vadd.f32 %v1381, %v2856
        %v2858 = vpop.f32.mrf.mxu0
        %v2859 = vadd.f32 %v1385, %v2858
        %2860 = vmatprep.mubr.bf16.mxu0 %v1109
        %2861 = vmatmul.mubr.bf16.gmra.mxu0 %v1108
        %v2862 = vpop.f32.mrf.mxu0
        %v2863 = vadd.f32 %v1381, %v2862
        %v2864 = vpop.f32.mrf.mxu0
        %v2865 = vadd.f32 %v1385, %v2864
        %v2866 = vpop.f32.mrf.mxu0
        %v2867 = vadd.f32 %v1381, %v2866
        %v2868 = vpop.f32.mrf.mxu0
        %v2869 = vadd.f32 %v1385, %v2868
        %2870 = vmatprep.mubr.bf16.mxu0 %v1113
        %2871 = vmatmul.mubr.bf16.gmra.mxu0 %v1112
        %v2872 = vpop.f32.mrf.mxu0
        %v2873 = vadd.f32 %v1381, %v2872
        %v2874 = vpop.f32.mrf.mxu0
        %v2875 = vadd.f32 %v1385, %v2874
        %v2876 = vpop.f32.mrf.mxu0
        %v2877 = vadd.f32 %v1381, %v2876
        %v2878 = vpop.f32.mrf.mxu0
        %v2879 = vadd.f32 %v1385, %v2878
        %2880 = vmatprep.mubr.bf16.mxu0 %v1117
        %2881 = vmatmul.mubr.bf16.gmra.mxu0 %v1116
        %v2882 = vpop.f32.mrf.mxu0
        %v2883 = vadd.f32 %v1381, %v2882
        %v2884 = vpop.f32.mrf.mxu0
        %v2885 = vadd.f32 %v1385, %v2884
        %v2886 = vpop.f32.mrf.mxu0
        %v2887 = vadd.f32 %v1381, %v2886
        %v2888 = vpop.f32.mrf.mxu0
        %v2889 = vadd.f32 %v1385, %v2888
        %2890 = vdwg.mxu0
        %2891 = vmatprep.subr.bf16.mxu0 %v2371
        %2892 = vmatpush1.bf16.msra.mxu0 %v2370
        %2893 = vmatprep.subr.bf16.mxu0 %v2363
        %2894 = vmatpush1.bf16.msra.mxu0 %v2362
        %2895 = vmatprep.subr.bf16.mxu0 %v2355
        %2896 = vmatpush1.bf16.msra.mxu0 %v2354
        %2897 = vmatprep.subr.bf16.mxu0 %v2347
        %2898 = vmatpush1.bf16.msra.mxu0 %v2346
        %2899 = vmatprep.subr.bf16.mxu0 %v2339
        %2900 = vmatpush1.bf16.msra.mxu0 %v2338
        %2901 = vmatprep.subr.bf16.mxu0 %v2331
        %2902 = vmatpush1.bf16.msra.mxu0 %v2330
        %2903 = vmatprep.subr.bf16.mxu0 %v2323
        %2904 = vmatpush1.bf16.msra.mxu0 %v2322
        %2905 = vmatprep.subr.bf16.mxu0 %v2315
        %2906 = vmatpush1.bf16.msra.mxu0 %v2314
        %2907 = vmatprep.subr.bf16.mxu0 %v2435
        %2908 = vmatpush2.bf16.msra.mxu0 %v2434
        %2909 = vmatprep.subr.bf16.mxu0 %v2427
        %2910 = vmatpush2.bf16.msra.mxu0 %v2426
        %2911 = vmatprep.subr.bf16.mxu0 %v2419
        %2912 = vmatpush2.bf16.msra.mxu0 %v2418
        %2913 = vmatprep.subr.bf16.mxu0 %v2411
        %2914 = vmatpush2.bf16.msra.mxu0 %v2410
        %2915 = vmatprep.subr.bf16.mxu0 %v2403
        %2916 = vmatpush2.bf16.msra.mxu0 %v2402
        %2917 = vmatprep.subr.bf16.mxu0 %v2395
        %2918 = vmatpush2.bf16.msra.mxu0 %v2394
        %2919 = vmatprep.subr.bf16.mxu0 %v2387
        %2920 = vmatpush2.bf16.msra.mxu0 %v2386
        %2921 = vmatprep.subr.bf16.mxu0 %v2379
        %2922 = vmatpush2.bf16.msra.mxu0 %v2378
        %2923 = vmatprep.mubr.bf16.mxu0 %v1059
        %2924 = vmatmul.mubr.bf16.gmra.mxu0 %v1058
        %v2925 = vpop.f32.mrf.mxu0
        %v2926 = vadd.f32 %v2733, %v2925
        %v2927 = vpop.f32.mrf.mxu0
        %v2928 = vadd.f32 %v2735, %v2927
        %v2929 = vpop.f32.mrf.mxu0
        %v2930 = vadd.f32 %v2737, %v2929
        %v2931 = vpop.f32.mrf.mxu0
        %v2932 = vadd.f32 %v2739, %v2931
        %2933 = vmatprep.mubr.bf16.mxu0 %v1063
        %2934 = vmatmul.mubr.bf16.gmra.mxu0 %v1062
        %v2935 = vpop.f32.mrf.mxu0
        %v2936 = vadd.f32 %v2743, %v2935
        %v2937 = vpop.f32.mrf.mxu0
        %v2938 = vadd.f32 %v2745, %v2937
        %v2939 = vpop.f32.mrf.mxu0
        %v2940 = vadd.f32 %v2747, %v2939
        %v2941 = vpop.f32.mrf.mxu0
        %v2942 = vadd.f32 %v2749, %v2941
        %2943 = vmatprep.mubr.bf16.mxu0 %v1067
        %2944 = vmatmul.mubr.bf16.gmra.mxu0 %v1066
        %v2945 = vpop.f32.mrf.mxu0
        %v2946 = vadd.f32 %v2753, %v2945
        %v2947 = vpop.f32.mrf.mxu0
        %v2948 = vadd.f32 %v2755, %v2947
        %v2949 = vpop.f32.mrf.mxu0
        %v2950 = vadd.f32 %v2757, %v2949
        %v2951 = vpop.f32.mrf.mxu0
        %v2952 = vadd.f32 %v2759, %v2951
        %2953 = vmatprep.mubr.bf16.mxu0 %v1071
        %2954 = vmatmul.mubr.bf16.gmra.mxu0 %v1070
        %v2955 = vpop.f32.mrf.mxu0
        %v2956 = vadd.f32 %v2763, %v2955
        %v2957 = vpop.f32.mrf.mxu0
        %v2958 = vadd.f32 %v2765, %v2957
        %v2959 = vpop.f32.mrf.mxu0
        %v2960 = vadd.f32 %v2767, %v2959
        %v2961 = vpop.f32.mrf.mxu0
        %v2962 = vadd.f32 %v2769, %v2961
        %2963 = vmatprep.mubr.bf16.mxu0 %v1075
        %2964 = vmatmul.mubr.bf16.gmra.mxu0 %v1074
        %v2965 = vpop.f32.mrf.mxu0
        %v2966 = vadd.f32 %v2773, %v2965
        %v2967 = vpop.f32.mrf.mxu0
        %v2968 = vadd.f32 %v2775, %v2967
        %v2969 = vpop.f32.mrf.mxu0
        %v2970 = vadd.f32 %v2777, %v2969
        %v2971 = vpop.f32.mrf.mxu0
        %v2972 = vadd.f32 %v2779, %v2971
        %2973 = vmatprep.mubr.bf16.mxu0 %v1079
        %2974 = vmatmul.mubr.bf16.gmra.mxu0 %v1078
        %v2975 = vpop.f32.mrf.mxu0
        %v2976 = vadd.f32 %v2783, %v2975
        %v2977 = vpop.f32.mrf.mxu0
        %v2978 = vadd.f32 %v2785, %v2977
        %v2979 = vpop.f32.mrf.mxu0
        %v2980 = vadd.f32 %v2787, %v2979
        %v2981 = vpop.f32.mrf.mxu0
        %v2982 = vadd.f32 %v2789, %v2981
        %2983 = vmatprep.mubr.bf16.mxu0 %v1083
        %2984 = vmatmul.mubr.bf16.gmra.mxu0 %v1082
        %v2985 = vpop.f32.mrf.mxu0
        %v2986 = vadd.f32 %v2793, %v2985
        %v2987 = vpop.f32.mrf.mxu0
        %v2988 = vadd.f32 %v2795, %v2987
        %v2989 = vpop.f32.mrf.mxu0
        %v2990 = vadd.f32 %v2797, %v2989
        %v2991 = vpop.f32.mrf.mxu0
        %v2992 = vadd.f32 %v2799, %v2991
        %2993 = vmatprep.mubr.bf16.mxu0 %v1087
        %2994 = vmatmul.mubr.bf16.gmra.mxu0 %v1086
        %v2995 = vpop.f32.mrf.mxu0
        %v2996 = vadd.f32 %v2803, %v2995
        %v2997 = vpop.f32.mrf.mxu0
        %v2998 = vadd.f32 %v2805, %v2997
        %v2999 = vpop.f32.mrf.mxu0
        %v3000 = vadd.f32 %v2807, %v2999
        %v3001 = vpop.f32.mrf.mxu0
        %v3002 = vadd.f32 %v2809, %v3001
        %3003 = vmatprep.mubr.bf16.mxu0 %v1091
        %3004 = vmatmul.mubr.bf16.gmra.mxu0 %v1090
        %v3005 = vpop.f32.mrf.mxu0
        %v3006 = vadd.f32 %v2813, %v3005
        %v3007 = vpop.f32.mrf.mxu0
        %v3008 = vadd.f32 %v2815, %v3007
        %v3009 = vpop.f32.mrf.mxu0
        %v3010 = vadd.f32 %v2817, %v3009
        %v3011 = vpop.f32.mrf.mxu0
        %v3012 = vadd.f32 %v2819, %v3011
        %3013 = vmatprep.mubr.bf16.mxu0 %v1095
        %3014 = vmatmul.mubr.bf16.gmra.mxu0 %v1094
        %v3015 = vpop.f32.mrf.mxu0
        %v3016 = vadd.f32 %v2823, %v3015
        %v3017 = vpop.f32.mrf.mxu0
        %v3018 = vadd.f32 %v2825, %v3017
        %v3019 = vpop.f32.mrf.mxu0
        %v3020 = vadd.f32 %v2827, %v3019
        %v3021 = vpop.f32.mrf.mxu0
        %v3022 = vadd.f32 %v2829, %v3021
        %3023 = vmatprep.mubr.bf16.mxu0 %v1099
        %3024 = vmatmul.mubr.bf16.gmra.mxu0 %v1098
        %v3025 = vpop.f32.mrf.mxu0
        %v3026 = vadd.f32 %v2833, %v3025
        %v3027 = vpop.f32.mrf.mxu0
        %v3028 = vadd.f32 %v2835, %v3027
        %v3029 = vpop.f32.mrf.mxu0
        %v3030 = vadd.f32 %v2837, %v3029
        %v3031 = vpop.f32.mrf.mxu0
        %v3032 = vadd.f32 %v2839, %v3031
        %3033 = vmatprep.mubr.bf16.mxu0 %v1103
        %3034 = vmatmul.mubr.bf16.gmra.mxu0 %v1102
        %v3035 = vpop.f32.mrf.mxu0
        %v3036 = vadd.f32 %v2843, %v3035
        %v3037 = vpop.f32.mrf.mxu0
        %v3038 = vadd.f32 %v2845, %v3037
        %v3039 = vpop.f32.mrf.mxu0
        %v3040 = vadd.f32 %v2847, %v3039
        %v3041 = vpop.f32.mrf.mxu0
        %v3042 = vadd.f32 %v2849, %v3041
        %3043 = vmatprep.mubr.bf16.mxu0 %v1107
        %3044 = vmatmul.mubr.bf16.gmra.mxu0 %v1106
        %v3045 = vpop.f32.mrf.mxu0
        %v3046 = vadd.f32 %v2853, %v3045
        %v3047 = vpop.f32.mrf.mxu0
        %v3048 = vadd.f32 %v2855, %v3047
        %v3049 = vpop.f32.mrf.mxu0
        %v3050 = vadd.f32 %v2857, %v3049
        %v3051 = vpop.f32.mrf.mxu0
        %v3052 = vadd.f32 %v2859, %v3051
        %3053 = vmatprep.mubr.bf16.mxu0 %v1111
        %3054 = vmatmul.mubr.bf16.gmra.mxu0 %v1110
        %v3055 = vpop.f32.mrf.mxu0
        %v3056 = vadd.f32 %v2863, %v3055
        %v3057 = vpop.f32.mrf.mxu0
        %v3058 = vadd.f32 %v2865, %v3057
        %v3059 = vpop.f32.mrf.mxu0
        %v3060 = vadd.f32 %v2867, %v3059
        %v3061 = vpop.f32.mrf.mxu0
        %v3062 = vadd.f32 %v2869, %v3061
        %3063 = vmatprep.mubr.bf16.mxu0 %v1115
        %3064 = vmatmul.mubr.bf16.gmra.mxu0 %v1114
        %v3065 = vpop.f32.mrf.mxu0
        %v3066 = vadd.f32 %v2873, %v3065
        %v3067 = vpop.f32.mrf.mxu0
        %v3068 = vadd.f32 %v2875, %v3067
        %v3069 = vpop.f32.mrf.mxu0
        %v3070 = vadd.f32 %v2877, %v3069
        %v3071 = vpop.f32.mrf.mxu0
        %v3072 = vadd.f32 %v2879, %v3071
        %3073 = vmatprep.mubr.bf16.mxu0 %v1119
        %3074 = vmatmul.mubr.bf16.gmra.mxu0 %v1118
        %v3075 = vpop.f32.mrf.mxu0
        %v3076 = vadd.f32 %v2883, %v3075
        %v3077 = vpop.f32.mrf.mxu0
        %v3078 = vadd.f32 %v2885, %v3077
        %v3079 = vpop.f32.mrf.mxu0
        %v3080 = vadd.f32 %v2887, %v3079
        %v3081 = vpop.f32.mrf.mxu0
        %v3082 = vadd.f32 %v2889, %v3081
        %3083 = vdwg.mxu0
        %3084 = vmatprep.subr.bf16.mxu0 %v2245
        %3085 = vmatpush1.bf16.msra.mxu0 %v2244
        %3086 = vmatprep.subr.bf16.mxu0 %v2237
        %3087 = vmatpush1.bf16.msra.mxu0 %v2236
        %3088 = vmatprep.subr.bf16.mxu0 %v2229
        %3089 = vmatpush1.bf16.msra.mxu0 %v2228
        %3090 = vmatprep.subr.bf16.mxu0 %v2221
        %3091 = vmatpush1.bf16.msra.mxu0 %v2220
        %3092 = vmatprep.subr.bf16.mxu0 %v2213
        %3093 = vmatpush1.bf16.msra.mxu0 %v2212
        %3094 = vmatprep.subr.bf16.mxu0 %v2205
        %3095 = vmatpush1.bf16.msra.mxu0 %v2204
        %3096 = vmatprep.subr.bf16.mxu0 %v2197
        %3097 = vmatpush1.bf16.msra.mxu0 %v2196
        %3098 = vmatprep.subr.bf16.mxu0 %v2189
        %3099 = vmatpush1.bf16.msra.mxu0 %v2188
        %3100 = vmatprep.subr.bf16.mxu0 %v2309
        %3101 = vmatpush2.bf16.msra.mxu0 %v2308
        %3102 = vmatprep.subr.bf16.mxu0 %v2301
        %3103 = vmatpush2.bf16.msra.mxu0 %v2300
        %3104 = vmatprep.subr.bf16.mxu0 %v2293
        %3105 = vmatpush2.bf16.msra.mxu0 %v2292
        %3106 = vmatprep.subr.bf16.mxu0 %v2285
        %3107 = vmatpush2.bf16.msra.mxu0 %v2284
        %3108 = vmatprep.subr.bf16.mxu0 %v2277
        %3109 = vmatpush2.bf16.msra.mxu0 %v2276
        %3110 = vmatprep.subr.bf16.mxu0 %v2269
        %3111 = vmatpush2.bf16.msra.mxu0 %v2268
        %3112 = vmatprep.subr.bf16.mxu0 %v2261
        %3113 = vmatpush2.bf16.msra.mxu0 %v2260
        %3114 = vmatprep.subr.bf16.mxu0 %v2253
        %3115 = vmatpush2.bf16.msra.mxu0 %v2252
        %3116 = vmatprep.mubr.bf16.mxu0 %v1057
        %3117 = vmatmul.mubr.bf16.gmra.mxu0 %v1056
        %v3118 = vpop.f32.mrf.mxu0
        %v3119 = vadd.f32 %v1389, %v3118
        %v3120 = vpop.f32.mrf.mxu0
        %v3121 = vadd.f32 %v1393, %v3120
        %v3122 = vpop.f32.mrf.mxu0
        %v3123 = vadd.f32 %v1389, %v3122
        %v3124 = vpop.f32.mrf.mxu0
        %v3125 = vadd.f32 %v1393, %v3124
        %3126 = vmatprep.mubr.bf16.mxu0 %v1061
        %3127 = vmatmul.mubr.bf16.gmra.mxu0 %v1060
        %v3128 = vpop.f32.mrf.mxu0
        %v3129 = vadd.f32 %v1389, %v3128
        %v3130 = vpop.f32.mrf.mxu0
        %v3131 = vadd.f32 %v1393, %v3130
        %v3132 = vpop.f32.mrf.mxu0
        %v3133 = vadd.f32 %v1389, %v3132
        %v3134 = vpop.f32.mrf.mxu0
        %v3135 = vadd.f32 %v1393, %v3134
        %3136 = vmatprep.mubr.bf16.mxu0 %v1065
        %3137 = vmatmul.mubr.bf16.gmra.mxu0 %v1064
        %v3138 = vpop.f32.mrf.mxu0
        %v3139 = vadd.f32 %v1389, %v3138
        %v3140 = vpop.f32.mrf.mxu0
        %v3141 = vadd.f32 %v1393, %v3140
        %v3142 = vpop.f32.mrf.mxu0
        %v3143 = vadd.f32 %v1389, %v3142
        %v3144 = vpop.f32.mrf.mxu0
        %v3145 = vadd.f32 %v1393, %v3144
        %3146 = vmatprep.mubr.bf16.mxu0 %v1069
        %3147 = vmatmul.mubr.bf16.gmra.mxu0 %v1068
        %v3148 = vpop.f32.mrf.mxu0
        %v3149 = vadd.f32 %v1389, %v3148
        %v3150 = vpop.f32.mrf.mxu0
        %v3151 = vadd.f32 %v1393, %v3150
        %v3152 = vpop.f32.mrf.mxu0
        %v3153 = vadd.f32 %v1389, %v3152
        %v3154 = vpop.f32.mrf.mxu0
        %v3155 = vadd.f32 %v1393, %v3154
        %3156 = vmatprep.mubr.bf16.mxu0 %v1073
        %3157 = vmatmul.mubr.bf16.gmra.mxu0 %v1072
        %v3158 = vpop.f32.mrf.mxu0
        %v3159 = vadd.f32 %v1389, %v3158
        %v3160 = vpop.f32.mrf.mxu0
        %v3161 = vadd.f32 %v1393, %v3160
        %v3162 = vpop.f32.mrf.mxu0
        %v3163 = vadd.f32 %v1389, %v3162
        %v3164 = vpop.f32.mrf.mxu0
        %v3165 = vadd.f32 %v1393, %v3164
        %3166 = vmatprep.mubr.bf16.mxu0 %v1077
        %3167 = vmatmul.mubr.bf16.gmra.mxu0 %v1076
        %v3168 = vpop.f32.mrf.mxu0
        %v3169 = vadd.f32 %v1389, %v3168
        %v3170 = vpop.f32.mrf.mxu0
        %v3171 = vadd.f32 %v1393, %v3170
        %v3172 = vpop.f32.mrf.mxu0
        %v3173 = vadd.f32 %v1389, %v3172
        %v3174 = vpop.f32.mrf.mxu0
        %v3175 = vadd.f32 %v1393, %v3174
        %3176 = vmatprep.mubr.bf16.mxu0 %v1081
        %3177 = vmatmul.mubr.bf16.gmra.mxu0 %v1080
        %v3178 = vpop.f32.mrf.mxu0
        %v3179 = vadd.f32 %v1389, %v3178
        %v3180 = vpop.f32.mrf.mxu0
        %v3181 = vadd.f32 %v1393, %v3180
        %v3182 = vpop.f32.mrf.mxu0
        %v3183 = vadd.f32 %v1389, %v3182
        %v3184 = vpop.f32.mrf.mxu0
        %v3185 = vadd.f32 %v1393, %v3184
        %3186 = vmatprep.mubr.bf16.mxu0 %v1085
        %3187 = vmatmul.mubr.bf16.gmra.mxu0 %v1084
        %v3188 = vpop.f32.mrf.mxu0
        %v3189 = vadd.f32 %v1389, %v3188
        %v3190 = vpop.f32.mrf.mxu0
        %v3191 = vadd.f32 %v1393, %v3190
        %v3192 = vpop.f32.mrf.mxu0
        %v3193 = vadd.f32 %v1389, %v3192
        %v3194 = vpop.f32.mrf.mxu0
        %v3195 = vadd.f32 %v1393, %v3194
        %3196 = vmatprep.mubr.bf16.mxu0 %v1089
        %3197 = vmatmul.mubr.bf16.gmra.mxu0 %v1088
        %v3198 = vpop.f32.mrf.mxu0
        %v3199 = vadd.f32 %v1389, %v3198
        %v3200 = vpop.f32.mrf.mxu0
        %v3201 = vadd.f32 %v1393, %v3200
        %v3202 = vpop.f32.mrf.mxu0
        %v3203 = vadd.f32 %v1389, %v3202
        %v3204 = vpop.f32.mrf.mxu0
        %v3205 = vadd.f32 %v1393, %v3204
        %3206 = vmatprep.mubr.bf16.mxu0 %v1093
        %3207 = vmatmul.mubr.bf16.gmra.mxu0 %v1092
        %v3208 = vpop.f32.mrf.mxu0
        %v3209 = vadd.f32 %v1389, %v3208
        %v3210 = vpop.f32.mrf.mxu0
        %v3211 = vadd.f32 %v1393, %v3210
        %v3212 = vpop.f32.mrf.mxu0
        %v3213 = vadd.f32 %v1389, %v3212
        %v3214 = vpop.f32.mrf.mxu0
        %v3215 = vadd.f32 %v1393, %v3214
        %3216 = vmatprep.mubr.bf16.mxu0 %v1097
        %3217 = vmatmul.mubr.bf16.gmra.mxu0 %v1096
        %v3218 = vpop.f32.mrf.mxu0
        %v3219 = vadd.f32 %v1389, %v3218
        %v3220 = vpop.f32.mrf.mxu0
        %v3221 = vadd.f32 %v1393, %v3220
        %v3222 = vpop.f32.mrf.mxu0
        %v3223 = vadd.f32 %v1389, %v3222
        %v3224 = vpop.f32.mrf.mxu0
        %v3225 = vadd.f32 %v1393, %v3224
        %3226 = vmatprep.mubr.bf16.mxu0 %v1101
        %3227 = vmatmul.mubr.bf16.gmra.mxu0 %v1100
        %v3228 = vpop.f32.mrf.mxu0
        %v3229 = vadd.f32 %v1389, %v3228
        %v3230 = vpop.f32.mrf.mxu0
        %v3231 = vadd.f32 %v1393, %v3230
        %v3232 = vpop.f32.mrf.mxu0
        %v3233 = vadd.f32 %v1389, %v3232
        %v3234 = vpop.f32.mrf.mxu0
        %v3235 = vadd.f32 %v1393, %v3234
        %3236 = vmatprep.mubr.bf16.mxu0 %v1105
        %3237 = vmatmul.mubr.bf16.gmra.mxu0 %v1104
        %v3238 = vpop.f32.mrf.mxu0
        %v3239 = vadd.f32 %v1389, %v3238
        %v3240 = vpop.f32.mrf.mxu0
        %v3241 = vadd.f32 %v1393, %v3240
        %v3242 = vpop.f32.mrf.mxu0
        %v3243 = vadd.f32 %v1389, %v3242
        %v3244 = vpop.f32.mrf.mxu0
        %v3245 = vadd.f32 %v1393, %v3244
        %3246 = vmatprep.mubr.bf16.mxu0 %v1109
        %3247 = vmatmul.mubr.bf16.gmra.mxu0 %v1108
        %v3248 = vpop.f32.mrf.mxu0
        %v3249 = vadd.f32 %v1389, %v3248
        %v3250 = vpop.f32.mrf.mxu0
        %v3251 = vadd.f32 %v1393, %v3250
        %v3252 = vpop.f32.mrf.mxu0
        %v3253 = vadd.f32 %v1389, %v3252
        %v3254 = vpop.f32.mrf.mxu0
        %v3255 = vadd.f32 %v1393, %v3254
        %3256 = vmatprep.mubr.bf16.mxu0 %v1113
        %3257 = vmatmul.mubr.bf16.gmra.mxu0 %v1112
        %v3258 = vpop.f32.mrf.mxu0
        %v3259 = vadd.f32 %v1389, %v3258
        %v3260 = vpop.f32.mrf.mxu0
        %v3261 = vadd.f32 %v1393, %v3260
        %v3262 = vpop.f32.mrf.mxu0
        %v3263 = vadd.f32 %v1389, %v3262
        %v3264 = vpop.f32.mrf.mxu0
        %v3265 = vadd.f32 %v1393, %v3264
        %3266 = vmatprep.mubr.bf16.mxu0 %v1117
        %3267 = vmatmul.mubr.bf16.gmra.mxu0 %v1116
        %v3268 = vpop.f32.mrf.mxu0
        %v3269 = vadd.f32 %v1389, %v3268
        %v3270 = vpop.f32.mrf.mxu0
        %v3271 = vadd.f32 %v1393, %v3270
        %v3272 = vpop.f32.mrf.mxu0
        %v3273 = vadd.f32 %v1389, %v3272
        %v3274 = vpop.f32.mrf.mxu0
        %v3275 = vadd.f32 %v1393, %v3274
        %3276 = vdwg.mxu0
        %3277 = vmatprep.subr.bf16.mxu0 %v2373
        %3278 = vmatpush1.bf16.msra.mxu0 %v2372
        %3279 = vmatprep.subr.bf16.mxu0 %v2365
        %3280 = vmatpush1.bf16.msra.mxu0 %v2364
        %3281 = vmatprep.subr.bf16.mxu0 %v2357
        %3282 = vmatpush1.bf16.msra.mxu0 %v2356
        %3283 = vmatprep.subr.bf16.mxu0 %v2349
        %3284 = vmatpush1.bf16.msra.mxu0 %v2348
        %3285 = vmatprep.subr.bf16.mxu0 %v2341
        %3286 = vmatpush1.bf16.msra.mxu0 %v2340
        %3287 = vmatprep.subr.bf16.mxu0 %v2333
        %3288 = vmatpush1.bf16.msra.mxu0 %v2332
        %3289 = vmatprep.subr.bf16.mxu0 %v2325
        %3290 = vmatpush1.bf16.msra.mxu0 %v2324
        %3291 = vmatprep.subr.bf16.mxu0 %v2317
        %3292 = vmatpush1.bf16.msra.mxu0 %v2316
        %3293 = vmatprep.subr.bf16.mxu0 %v2437
        %3294 = vmatpush2.bf16.msra.mxu0 %v2436
        %3295 = vmatprep.subr.bf16.mxu0 %v2429
        %3296 = vmatpush2.bf16.msra.mxu0 %v2428
        %3297 = vmatprep.subr.bf16.mxu0 %v2421
        %3298 = vmatpush2.bf16.msra.mxu0 %v2420
        %3299 = vmatprep.subr.bf16.mxu0 %v2413
        %3300 = vmatpush2.bf16.msra.mxu0 %v2412
        %3301 = vmatprep.subr.bf16.mxu0 %v2405
        %3302 = vmatpush2.bf16.msra.mxu0 %v2404
        %3303 = vmatprep.subr.bf16.mxu0 %v2397
        %3304 = vmatpush2.bf16.msra.mxu0 %v2396
        %3305 = vmatprep.subr.bf16.mxu0 %v2389
        %3306 = vmatpush2.bf16.msra.mxu0 %v2388
        %3307 = vmatprep.subr.bf16.mxu0 %v2381
        %3308 = vmatpush2.bf16.msra.mxu0 %v2380
        %3309 = vmatprep.mubr.bf16.mxu0 %v1059
        %3310 = vmatmul.mubr.bf16.gmra.mxu0 %v1058
        %v3311 = vpop.f32.mrf.mxu0
        %v3312 = vadd.f32 %v3119, %v3311
        %v3313 = vpop.f32.mrf.mxu0
        %v3314 = vadd.f32 %v3121, %v3313
        %v3315 = vpop.f32.mrf.mxu0
        %v3316 = vadd.f32 %v3123, %v3315
        %v3317 = vpop.f32.mrf.mxu0
        %v3318 = vadd.f32 %v3125, %v3317
        %3319 = vmatprep.mubr.bf16.mxu0 %v1063
        %3320 = vmatmul.mubr.bf16.gmra.mxu0 %v1062
        %v3321 = vpop.f32.mrf.mxu0
        %v3322 = vadd.f32 %v3129, %v3321
        %v3323 = vpop.f32.mrf.mxu0
        %v3324 = vadd.f32 %v3131, %v3323
        %v3325 = vpop.f32.mrf.mxu0
        %v3326 = vadd.f32 %v3133, %v3325
        %v3327 = vpop.f32.mrf.mxu0
        %v3328 = vadd.f32 %v3135, %v3327
        %3329 = vmatprep.mubr.bf16.mxu0 %v1067
        %3330 = vmatmul.mubr.bf16.gmra.mxu0 %v1066
        %v3331 = vpop.f32.mrf.mxu0
        %v3332 = vadd.f32 %v3139, %v3331
        %v3333 = vpop.f32.mrf.mxu0
        %v3334 = vadd.f32 %v3141, %v3333
        %v3335 = vpop.f32.mrf.mxu0
        %v3336 = vadd.f32 %v3143, %v3335
        %v3337 = vpop.f32.mrf.mxu0
        %v3338 = vadd.f32 %v3145, %v3337
        %3339 = vmatprep.mubr.bf16.mxu0 %v1071
        %3340 = vmatmul.mubr.bf16.gmra.mxu0 %v1070
        %v3341 = vpop.f32.mrf.mxu0
        %v3342 = vadd.f32 %v3149, %v3341
        %v3343 = vpop.f32.mrf.mxu0
        %v3344 = vadd.f32 %v3151, %v3343
        %v3345 = vpop.f32.mrf.mxu0
        %v3346 = vadd.f32 %v3153, %v3345
        %v3347 = vpop.f32.mrf.mxu0
        %v3348 = vadd.f32 %v3155, %v3347
        %3349 = vmatprep.mubr.bf16.mxu0 %v1075
        %3350 = vmatmul.mubr.bf16.gmra.mxu0 %v1074
        %v3351 = vpop.f32.mrf.mxu0
        %v3352 = vadd.f32 %v3159, %v3351
        %v3353 = vpop.f32.mrf.mxu0
        %v3354 = vadd.f32 %v3161, %v3353
        %v3355 = vpop.f32.mrf.mxu0
        %v3356 = vadd.f32 %v3163, %v3355
        %v3357 = vpop.f32.mrf.mxu0
        %v3358 = vadd.f32 %v3165, %v3357
        %3359 = vmatprep.mubr.bf16.mxu0 %v1079
        %3360 = vmatmul.mubr.bf16.gmra.mxu0 %v1078
        %v3361 = vpop.f32.mrf.mxu0
        %v3362 = vadd.f32 %v3169, %v3361
        %v3363 = vpop.f32.mrf.mxu0
        %v3364 = vadd.f32 %v3171, %v3363
        %v3365 = vpop.f32.mrf.mxu0
        %v3366 = vadd.f32 %v3173, %v3365
        %v3367 = vpop.f32.mrf.mxu0
        %v3368 = vadd.f32 %v3175, %v3367
        %3369 = vmatprep.mubr.bf16.mxu0 %v1083
        %3370 = vmatmul.mubr.bf16.gmra.mxu0 %v1082
        %v3371 = vpop.f32.mrf.mxu0
        %v3372 = vadd.f32 %v3179, %v3371
        %v3373 = vpop.f32.mrf.mxu0
        %v3374 = vadd.f32 %v3181, %v3373
        %v3375 = vpop.f32.mrf.mxu0
        %v3376 = vadd.f32 %v3183, %v3375
        %v3377 = vpop.f32.mrf.mxu0
        %v3378 = vadd.f32 %v3185, %v3377
        %3379 = vmatprep.mubr.bf16.mxu0 %v1087
        %3380 = vmatmul.mubr.bf16.gmra.mxu0 %v1086
        %v3381 = vpop.f32.mrf.mxu0
        %v3382 = vadd.f32 %v3189, %v3381
        %v3383 = vpop.f32.mrf.mxu0
        %v3384 = vadd.f32 %v3191, %v3383
        %v3385 = vpop.f32.mrf.mxu0
        %v3386 = vadd.f32 %v3193, %v3385
        %v3387 = vpop.f32.mrf.mxu0
        %v3388 = vadd.f32 %v3195, %v3387
        %3389 = vmatprep.mubr.bf16.mxu0 %v1091
        %3390 = vmatmul.mubr.bf16.gmra.mxu0 %v1090
        %v3391 = vpop.f32.mrf.mxu0
        %v3392 = vadd.f32 %v3199, %v3391
        %v3393 = vpop.f32.mrf.mxu0
        %v3394 = vadd.f32 %v3201, %v3393
        %v3395 = vpop.f32.mrf.mxu0
        %v3396 = vadd.f32 %v3203, %v3395
        %v3397 = vpop.f32.mrf.mxu0
        %v3398 = vadd.f32 %v3205, %v3397
        %3399 = vmatprep.mubr.bf16.mxu0 %v1095
        %3400 = vmatmul.mubr.bf16.gmra.mxu0 %v1094
        %v3401 = vpop.f32.mrf.mxu0
        %v3402 = vadd.f32 %v3209, %v3401
        %v3403 = vpop.f32.mrf.mxu0
        %v3404 = vadd.f32 %v3211, %v3403
        %v3405 = vpop.f32.mrf.mxu0
        %v3406 = vadd.f32 %v3213, %v3405
        %v3407 = vpop.f32.mrf.mxu0
        %v3408 = vadd.f32 %v3215, %v3407
        %3409 = vmatprep.mubr.bf16.mxu0 %v1099
        %3410 = vmatmul.mubr.bf16.gmra.mxu0 %v1098
        %v3411 = vpop.f32.mrf.mxu0
        %v3412 = vadd.f32 %v3219, %v3411
        %v3413 = vpop.f32.mrf.mxu0
        %v3414 = vadd.f32 %v3221, %v3413
        %v3415 = vpop.f32.mrf.mxu0
        %v3416 = vadd.f32 %v3223, %v3415
        %v3417 = vpop.f32.mrf.mxu0
        %v3418 = vadd.f32 %v3225, %v3417
        %3419 = vmatprep.mubr.bf16.mxu0 %v1103
        %3420 = vmatmul.mubr.bf16.gmra.mxu0 %v1102
        %v3421 = vpop.f32.mrf.mxu0
        %v3422 = vadd.f32 %v3229, %v3421
        %v3423 = vpop.f32.mrf.mxu0
        %v3424 = vadd.f32 %v3231, %v3423
        %v3425 = vpop.f32.mrf.mxu0
        %v3426 = vadd.f32 %v3233, %v3425
        %v3427 = vpop.f32.mrf.mxu0
        %v3428 = vadd.f32 %v3235, %v3427
        %3429 = vmatprep.mubr.bf16.mxu0 %v1107
        %3430 = vmatmul.mubr.bf16.gmra.mxu0 %v1106
        %v3431 = vpop.f32.mrf.mxu0
        %v3432 = vadd.f32 %v3239, %v3431
        %v3433 = vpop.f32.mrf.mxu0
        %v3434 = vadd.f32 %v3241, %v3433
        %v3435 = vpop.f32.mrf.mxu0
        %v3436 = vadd.f32 %v3243, %v3435
        %v3437 = vpop.f32.mrf.mxu0
        %v3438 = vadd.f32 %v3245, %v3437
        %3439 = vmatprep.mubr.bf16.mxu0 %v1111
        %3440 = vmatmul.mubr.bf16.gmra.mxu0 %v1110
        %v3441 = vpop.f32.mrf.mxu0
        %v3442 = vadd.f32 %v3249, %v3441
        %v3443 = vpop.f32.mrf.mxu0
        %v3444 = vadd.f32 %v3251, %v3443
        %v3445 = vpop.f32.mrf.mxu0
        %v3446 = vadd.f32 %v3253, %v3445
        %v3447 = vpop.f32.mrf.mxu0
        %v3448 = vadd.f32 %v3255, %v3447
        %3449 = vmatprep.mubr.bf16.mxu0 %v1115
        %3450 = vmatmul.mubr.bf16.gmra.mxu0 %v1114
        %v3451 = vpop.f32.mrf.mxu0
        %v3452 = vadd.f32 %v3259, %v3451
        %v3453 = vpop.f32.mrf.mxu0
        %v3454 = vadd.f32 %v3261, %v3453
        %v3455 = vpop.f32.mrf.mxu0
        %v3456 = vadd.f32 %v3263, %v3455
        %v3457 = vpop.f32.mrf.mxu0
        %v3458 = vadd.f32 %v3265, %v3457
        %3459 = vmatprep.mubr.bf16.mxu0 %v1119
        %3460 = vmatmul.mubr.bf16.gmra.mxu0 %v1118
        %v3461 = vpop.f32.mrf.mxu0
        %v3462 = vadd.f32 %v3269, %v3461
        %v3463 = vpop.f32.mrf.mxu0
        %v3464 = vadd.f32 %v3271, %v3463
        %v3465 = vpop.f32.mrf.mxu0
        %v3466 = vadd.f32 %v3273, %v3465
        %v3467 = vpop.f32.mrf.mxu0
        %v3468 = vadd.f32 %v3275, %v3467
        %3469 = vdwg.mxu0
        %3470 = vmatprep.subr.bf16.mxu0 %v2247
        %3471 = vmatpush1.bf16.msra.mxu0 %v2246
        %3472 = vmatprep.subr.bf16.mxu0 %v2239
        %3473 = vmatpush1.bf16.msra.mxu0 %v2238
        %3474 = vmatprep.subr.bf16.mxu0 %v2231
        %3475 = vmatpush1.bf16.msra.mxu0 %v2230
        %3476 = vmatprep.subr.bf16.mxu0 %v2223
        %3477 = vmatpush1.bf16.msra.mxu0 %v2222
        %3478 = vmatprep.subr.bf16.mxu0 %v2215
        %3479 = vmatpush1.bf16.msra.mxu0 %v2214
        %3480 = vmatprep.subr.bf16.mxu0 %v2207
        %3481 = vmatpush1.bf16.msra.mxu0 %v2206
        %3482 = vmatprep.subr.bf16.mxu0 %v2199
        %3483 = vmatpush1.bf16.msra.mxu0 %v2198
        %3484 = vmatprep.subr.bf16.mxu0 %v2191
        %3485 = vmatpush1.bf16.msra.mxu0 %v2190
        %3486 = vmatprep.subr.bf16.mxu0 %v2311
        %3487 = vmatpush2.bf16.msra.mxu0 %v2310
        %3488 = vmatprep.subr.bf16.mxu0 %v2303
        %3489 = vmatpush2.bf16.msra.mxu0 %v2302
        %3490 = vmatprep.subr.bf16.mxu0 %v2295
        %3491 = vmatpush2.bf16.msra.mxu0 %v2294
        %3492 = vmatprep.subr.bf16.mxu0 %v2287
        %3493 = vmatpush2.bf16.msra.mxu0 %v2286
        %3494 = vmatprep.subr.bf16.mxu0 %v2279
        %3495 = vmatpush2.bf16.msra.mxu0 %v2278
        %3496 = vmatprep.subr.bf16.mxu0 %v2271
        %3497 = vmatpush2.bf16.msra.mxu0 %v2270
        %3498 = vmatprep.subr.bf16.mxu0 %v2263
        %3499 = vmatpush2.bf16.msra.mxu0 %v2262
        %3500 = vmatprep.subr.bf16.mxu0 %v2255
        %3501 = vmatpush2.bf16.msra.mxu0 %v2254
        %3502 = vmatprep.mubr.bf16.mxu0 %v1057
        %3503 = vmatmul.mubr.bf16.gmra.mxu0 %v1056
        %v3504 = vpop.f32.mrf.mxu0
        %v3505 = vadd.f32 %v1397, %v3504
        %v3506 = vpop.f32.mrf.mxu0
        %v3507 = vadd.f32 %v1401, %v3506
        %v3508 = vpop.f32.mrf.mxu0
        %v3509 = vadd.f32 %v1397, %v3508
        %v3510 = vpop.f32.mrf.mxu0
        %v3511 = vadd.f32 %v1401, %v3510
        %3512 = vmatprep.mubr.bf16.mxu0 %v1061
        %3513 = vmatmul.mubr.bf16.gmra.mxu0 %v1060
        %v3514 = vpop.f32.mrf.mxu0
        %v3515 = vadd.f32 %v1397, %v3514
        %v3516 = vpop.f32.mrf.mxu0
        %v3517 = vadd.f32 %v1401, %v3516
        %v3518 = vpop.f32.mrf.mxu0
        %v3519 = vadd.f32 %v1397, %v3518
        %v3520 = vpop.f32.mrf.mxu0
        %v3521 = vadd.f32 %v1401, %v3520
        %3522 = vmatprep.mubr.bf16.mxu0 %v1065
        %3523 = vmatmul.mubr.bf16.gmra.mxu0 %v1064
        %v3524 = vpop.f32.mrf.mxu0
        %v3525 = vadd.f32 %v1397, %v3524
        %v3526 = vpop.f32.mrf.mxu0
        %v3527 = vadd.f32 %v1401, %v3526
        %v3528 = vpop.f32.mrf.mxu0
        %v3529 = vadd.f32 %v1397, %v3528
        %v3530 = vpop.f32.mrf.mxu0
        %v3531 = vadd.f32 %v1401, %v3530
        %3532 = vmatprep.mubr.bf16.mxu0 %v1069
        %3533 = vmatmul.mubr.bf16.gmra.mxu0 %v1068
        %v3534 = vpop.f32.mrf.mxu0
        %v3535 = vadd.f32 %v1397, %v3534
        %v3536 = vpop.f32.mrf.mxu0
        %v3537 = vadd.f32 %v1401, %v3536
        %v3538 = vpop.f32.mrf.mxu0
        %v3539 = vadd.f32 %v1397, %v3538
        %v3540 = vpop.f32.mrf.mxu0
        %v3541 = vadd.f32 %v1401, %v3540
        %3542 = vmatprep.mubr.bf16.mxu0 %v1073
        %3543 = vmatmul.mubr.bf16.gmra.mxu0 %v1072
        %v3544 = vpop.f32.mrf.mxu0
        %v3545 = vadd.f32 %v1397, %v3544
        %v3546 = vpop.f32.mrf.mxu0
        %v3547 = vadd.f32 %v1401, %v3546
        %v3548 = vpop.f32.mrf.mxu0
        %v3549 = vadd.f32 %v1397, %v3548
        %v3550 = vpop.f32.mrf.mxu0
        %v3551 = vadd.f32 %v1401, %v3550
        %3552 = vmatprep.mubr.bf16.mxu0 %v1077
        %3553 = vmatmul.mubr.bf16.gmra.mxu0 %v1076
        %v3554 = vpop.f32.mrf.mxu0
        %v3555 = vadd.f32 %v1397, %v3554
        %v3556 = vpop.f32.mrf.mxu0
        %v3557 = vadd.f32 %v1401, %v3556
        %v3558 = vpop.f32.mrf.mxu0
        %v3559 = vadd.f32 %v1397, %v3558
        %v3560 = vpop.f32.mrf.mxu0
        %v3561 = vadd.f32 %v1401, %v3560
        %3562 = vmatprep.mubr.bf16.mxu0 %v1081
        %3563 = vmatmul.mubr.bf16.gmra.mxu0 %v1080
        %v3564 = vpop.f32.mrf.mxu0
        %v3565 = vadd.f32 %v1397, %v3564
        %v3566 = vpop.f32.mrf.mxu0
        %v3567 = vadd.f32 %v1401, %v3566
        %v3568 = vpop.f32.mrf.mxu0
        %v3569 = vadd.f32 %v1397, %v3568
        %v3570 = vpop.f32.mrf.mxu0
        %v3571 = vadd.f32 %v1401, %v3570
        %3572 = vmatprep.mubr.bf16.mxu0 %v1085
        %3573 = vmatmul.mubr.bf16.gmra.mxu0 %v1084
        %v3574 = vpop.f32.mrf.mxu0
        %v3575 = vadd.f32 %v1397, %v3574
        %v3576 = vpop.f32.mrf.mxu0
        %v3577 = vadd.f32 %v1401, %v3576
        %v3578 = vpop.f32.mrf.mxu0
        %v3579 = vadd.f32 %v1397, %v3578
        %v3580 = vpop.f32.mrf.mxu0
        %v3581 = vadd.f32 %v1401, %v3580
        %3582 = vmatprep.mubr.bf16.mxu0 %v1089
        %3583 = vmatmul.mubr.bf16.gmra.mxu0 %v1088
        %v3584 = vpop.f32.mrf.mxu0
        %v3585 = vadd.f32 %v1397, %v3584
        %v3586 = vpop.f32.mrf.mxu0
        %v3587 = vadd.f32 %v1401, %v3586
        %v3588 = vpop.f32.mrf.mxu0
        %v3589 = vadd.f32 %v1397, %v3588
        %v3590 = vpop.f32.mrf.mxu0
        %v3591 = vadd.f32 %v1401, %v3590
        %3592 = vmatprep.mubr.bf16.mxu0 %v1093
        %3593 = vmatmul.mubr.bf16.gmra.mxu0 %v1092
        %v3594 = vpop.f32.mrf.mxu0
        %v3595 = vadd.f32 %v1397, %v3594
        %v3596 = vpop.f32.mrf.mxu0
        %v3597 = vadd.f32 %v1401, %v3596
        %v3598 = vpop.f32.mrf.mxu0
        %v3599 = vadd.f32 %v1397, %v3598
        %v3600 = vpop.f32.mrf.mxu0
        %v3601 = vadd.f32 %v1401, %v3600
        %3602 = vmatprep.mubr.bf16.mxu0 %v1097
        %3603 = vmatmul.mubr.bf16.gmra.mxu0 %v1096
        %v3604 = vpop.f32.mrf.mxu0
        %v3605 = vadd.f32 %v1397, %v3604
        %v3606 = vpop.f32.mrf.mxu0
        %v3607 = vadd.f32 %v1401, %v3606
        %v3608 = vpop.f32.mrf.mxu0
        %v3609 = vadd.f32 %v1397, %v3608
        %v3610 = vpop.f32.mrf.mxu0
        %v3611 = vadd.f32 %v1401, %v3610
        %3612 = vmatprep.mubr.bf16.mxu0 %v1101
        %3613 = vmatmul.mubr.bf16.gmra.mxu0 %v1100
        %v3614 = vpop.f32.mrf.mxu0
        %v3615 = vadd.f32 %v1397, %v3614
        %v3616 = vpop.f32.mrf.mxu0
        %v3617 = vadd.f32 %v1401, %v3616
        %v3618 = vpop.f32.mrf.mxu0
        %v3619 = vadd.f32 %v1397, %v3618
        %v3620 = vpop.f32.mrf.mxu0
        %v3621 = vadd.f32 %v1401, %v3620
        %3622 = vmatprep.mubr.bf16.mxu0 %v1105
        %3623 = vmatmul.mubr.bf16.gmra.mxu0 %v1104
        %v3624 = vpop.f32.mrf.mxu0
        %v3625 = vadd.f32 %v1397, %v3624
        %v3626 = vpop.f32.mrf.mxu0
        %v3627 = vadd.f32 %v1401, %v3626
        %v3628 = vpop.f32.mrf.mxu0
        %v3629 = vadd.f32 %v1397, %v3628
        %v3630 = vpop.f32.mrf.mxu0
        %v3631 = vadd.f32 %v1401, %v3630
        %3632 = vmatprep.mubr.bf16.mxu0 %v1109
        %3633 = vmatmul.mubr.bf16.gmra.mxu0 %v1108
        %v3634 = vpop.f32.mrf.mxu0
        %v3635 = vadd.f32 %v1397, %v3634
        %v3636 = vpop.f32.mrf.mxu0
        %v3637 = vadd.f32 %v1401, %v3636
        %v3638 = vpop.f32.mrf.mxu0
        %v3639 = vadd.f32 %v1397, %v3638
        %v3640 = vpop.f32.mrf.mxu0
        %v3641 = vadd.f32 %v1401, %v3640
        %3642 = vmatprep.mubr.bf16.mxu0 %v1113
        %3643 = vmatmul.mubr.bf16.gmra.mxu0 %v1112
        %v3644 = vpop.f32.mrf.mxu0
        %v3645 = vadd.f32 %v1397, %v3644
        %v3646 = vpop.f32.mrf.mxu0
        %v3647 = vadd.f32 %v1401, %v3646
        %v3648 = vpop.f32.mrf.mxu0
        %v3649 = vadd.f32 %v1397, %v3648
        %v3650 = vpop.f32.mrf.mxu0
        %v3651 = vadd.f32 %v1401, %v3650
        %3652 = vmatprep.mubr.bf16.mxu0 %v1117
        %3653 = vmatmul.mubr.bf16.gmra.mxu0 %v1116
        %v3654 = vpop.f32.mrf.mxu0
        %v3655 = vadd.f32 %v1397, %v3654
        %v3656 = vpop.f32.mrf.mxu0
        %v3657 = vadd.f32 %v1401, %v3656
        %v3658 = vpop.f32.mrf.mxu0
        %v3659 = vadd.f32 %v1397, %v3658
        %v3660 = vpop.f32.mrf.mxu0
        %v3661 = vadd.f32 %v1401, %v3660
        %3662 = vdwg.mxu0
        %3663 = vmatprep.subr.bf16.mxu0 %v2375
        %3664 = vmatpush1.bf16.msra.mxu0 %v2374
        %3665 = vmatprep.subr.bf16.mxu0 %v2367
        %3666 = vmatpush1.bf16.msra.mxu0 %v2366
        %3667 = vmatprep.subr.bf16.mxu0 %v2359
        %3668 = vmatpush1.bf16.msra.mxu0 %v2358
        %3669 = vmatprep.subr.bf16.mxu0 %v2351
        %3670 = vmatpush1.bf16.msra.mxu0 %v2350
        %3671 = vmatprep.subr.bf16.mxu0 %v2343
        %3672 = vmatpush1.bf16.msra.mxu0 %v2342
        %3673 = vmatprep.subr.bf16.mxu0 %v2335
        %3674 = vmatpush1.bf16.msra.mxu0 %v2334
        %3675 = vmatprep.subr.bf16.mxu0 %v2327
        %3676 = vmatpush1.bf16.msra.mxu0 %v2326
        %3677 = vmatprep.subr.bf16.mxu0 %v2319
        %3678 = vmatpush1.bf16.msra.mxu0 %v2318
        %3679 = vmatprep.subr.bf16.mxu0 %v2439
        %3680 = vmatpush2.bf16.msra.mxu0 %v2438
        %3681 = vmatprep.subr.bf16.mxu0 %v2431
        %3682 = vmatpush2.bf16.msra.mxu0 %v2430
        %3683 = vmatprep.subr.bf16.mxu0 %v2423
        %3684 = vmatpush2.bf16.msra.mxu0 %v2422
        %3685 = vmatprep.subr.bf16.mxu0 %v2415
        %3686 = vmatpush2.bf16.msra.mxu0 %v2414
        %3687 = vmatprep.subr.bf16.mxu0 %v2407
        %3688 = vmatpush2.bf16.msra.mxu0 %v2406
        %3689 = vmatprep.subr.bf16.mxu0 %v2399
        %3690 = vmatpush2.bf16.msra.mxu0 %v2398
        %3691 = vmatprep.subr.bf16.mxu0 %v2391
        %3692 = vmatpush2.bf16.msra.mxu0 %v2390
        %3693 = vmatprep.subr.bf16.mxu0 %v2383
        %3694 = vmatpush2.bf16.msra.mxu0 %v2382
        %3695 = vmatprep.mubr.bf16.mxu0 %v1059
        %3696 = vmatmul.mubr.bf16.gmra.mxu0 %v1058
        %v3697 = vpop.f32.mrf.mxu0
        %v3698 = vadd.f32 %v3505, %v3697
        %v3699 = vpop.f32.mrf.mxu0
        %v3700 = vadd.f32 %v3507, %v3699
        %v3701 = vpop.f32.mrf.mxu0
        %v3702 = vadd.f32 %v3509, %v3701
        %v3703 = vpop.f32.mrf.mxu0
        %v3704 = vadd.f32 %v3511, %v3703
        %3705 = vmatprep.mubr.bf16.mxu0 %v1063
        %3706 = vmatmul.mubr.bf16.gmra.mxu0 %v1062
        %v3707 = vpop.f32.mrf.mxu0
        %v3708 = vadd.f32 %v3515, %v3707
        %v3709 = vpop.f32.mrf.mxu0
        %v3710 = vadd.f32 %v3517, %v3709
        %v3711 = vpop.f32.mrf.mxu0
        %v3712 = vadd.f32 %v3519, %v3711
        %v3713 = vpop.f32.mrf.mxu0
        %v3714 = vadd.f32 %v3521, %v3713
        %3715 = vmatprep.mubr.bf16.mxu0 %v1067
        %3716 = vmatmul.mubr.bf16.gmra.mxu0 %v1066
        %v3717 = vpop.f32.mrf.mxu0
        %v3718 = vadd.f32 %v3525, %v3717
        %v3719 = vpop.f32.mrf.mxu0
        %v3720 = vadd.f32 %v3527, %v3719
        %v3721 = vpop.f32.mrf.mxu0
        %v3722 = vadd.f32 %v3529, %v3721
        %v3723 = vpop.f32.mrf.mxu0
        %v3724 = vadd.f32 %v3531, %v3723
        %3725 = vmatprep.mubr.bf16.mxu0 %v1071
        %3726 = vmatmul.mubr.bf16.gmra.mxu0 %v1070
        %v3727 = vpop.f32.mrf.mxu0
        %v3728 = vadd.f32 %v3535, %v3727
        %v3729 = vpop.f32.mrf.mxu0
        %v3730 = vadd.f32 %v3537, %v3729
        %v3731 = vpop.f32.mrf.mxu0
        %v3732 = vadd.f32 %v3539, %v3731
        %v3733 = vpop.f32.mrf.mxu0
        %v3734 = vadd.f32 %v3541, %v3733
        %3735 = vmatprep.mubr.bf16.mxu0 %v1075
        %3736 = vmatmul.mubr.bf16.gmra.mxu0 %v1074
        %v3737 = vpop.f32.mrf.mxu0
        %v3738 = vadd.f32 %v3545, %v3737
        %v3739 = vpop.f32.mrf.mxu0
        %v3740 = vadd.f32 %v3547, %v3739
        %v3741 = vpop.f32.mrf.mxu0
        %v3742 = vadd.f32 %v3549, %v3741
        %v3743 = vpop.f32.mrf.mxu0
        %v3744 = vadd.f32 %v3551, %v3743
        %3745 = vmatprep.mubr.bf16.mxu0 %v1079
        %3746 = vmatmul.mubr.bf16.gmra.mxu0 %v1078
        %v3747 = vpop.f32.mrf.mxu0
        %v3748 = vadd.f32 %v3555, %v3747
        %v3749 = vpop.f32.mrf.mxu0
        %v3750 = vadd.f32 %v3557, %v3749
        %v3751 = vpop.f32.mrf.mxu0
        %v3752 = vadd.f32 %v3559, %v3751
        %v3753 = vpop.f32.mrf.mxu0
        %v3754 = vadd.f32 %v3561, %v3753
        %3755 = vmatprep.mubr.bf16.mxu0 %v1083
        %3756 = vmatmul.mubr.bf16.gmra.mxu0 %v1082
        %v3757 = vpop.f32.mrf.mxu0
        %v3758 = vadd.f32 %v3565, %v3757
        %v3759 = vpop.f32.mrf.mxu0
        %v3760 = vadd.f32 %v3567, %v3759
        %v3761 = vpop.f32.mrf.mxu0
        %v3762 = vadd.f32 %v3569, %v3761
        %v3763 = vpop.f32.mrf.mxu0
        %v3764 = vadd.f32 %v3571, %v3763
        %3765 = vmatprep.mubr.bf16.mxu0 %v1087
        %3766 = vmatmul.mubr.bf16.gmra.mxu0 %v1086
        %v3767 = vpop.f32.mrf.mxu0
        %v3768 = vadd.f32 %v3575, %v3767
        %v3769 = vpop.f32.mrf.mxu0
        %v3770 = vadd.f32 %v3577, %v3769
        %v3771 = vpop.f32.mrf.mxu0
        %v3772 = vadd.f32 %v3579, %v3771
        %v3773 = vpop.f32.mrf.mxu0
        %v3774 = vadd.f32 %v3581, %v3773
        %3775 = vmatprep.mubr.bf16.mxu0 %v1091
        %3776 = vmatmul.mubr.bf16.gmra.mxu0 %v1090
        %v3777 = vpop.f32.mrf.mxu0
        %v3778 = vadd.f32 %v3585, %v3777
        %v3779 = vpop.f32.mrf.mxu0
        %v3780 = vadd.f32 %v3587, %v3779
        %v3781 = vpop.f32.mrf.mxu0
        %v3782 = vadd.f32 %v3589, %v3781
        %v3783 = vpop.f32.mrf.mxu0
        %v3784 = vadd.f32 %v3591, %v3783
        %3785 = vmatprep.mubr.bf16.mxu0 %v1095
        %3786 = vmatmul.mubr.bf16.gmra.mxu0 %v1094
        %v3787 = vpop.f32.mrf.mxu0
        %v3788 = vadd.f32 %v3595, %v3787
        %v3789 = vpop.f32.mrf.mxu0
        %v3790 = vadd.f32 %v3597, %v3789
        %v3791 = vpop.f32.mrf.mxu0
        %v3792 = vadd.f32 %v3599, %v3791
        %v3793 = vpop.f32.mrf.mxu0
        %v3794 = vadd.f32 %v3601, %v3793
        %3795 = vmatprep.mubr.bf16.mxu0 %v1099
        %3796 = vmatmul.mubr.bf16.gmra.mxu0 %v1098
        %v3797 = vpop.f32.mrf.mxu0
        %v3798 = vadd.f32 %v3605, %v3797
        %v3799 = vpop.f32.mrf.mxu0
        %v3800 = vadd.f32 %v3607, %v3799
        %v3801 = vpop.f32.mrf.mxu0
        %v3802 = vadd.f32 %v3609, %v3801
        %v3803 = vpop.f32.mrf.mxu0
        %v3804 = vadd.f32 %v3611, %v3803
        %3805 = vmatprep.mubr.bf16.mxu0 %v1103
        %3806 = vmatmul.mubr.bf16.gmra.mxu0 %v1102
        %v3807 = vpop.f32.mrf.mxu0
        %v3808 = vadd.f32 %v3615, %v3807
        %v3809 = vpop.f32.mrf.mxu0
        %v3810 = vadd.f32 %v3617, %v3809
        %v3811 = vpop.f32.mrf.mxu0
        %v3812 = vadd.f32 %v3619, %v3811
        %v3813 = vpop.f32.mrf.mxu0
        %v3814 = vadd.f32 %v3621, %v3813
        %3815 = vmatprep.mubr.bf16.mxu0 %v1107
        %3816 = vmatmul.mubr.bf16.gmra.mxu0 %v1106
        %v3817 = vpop.f32.mrf.mxu0
        %v3818 = vadd.f32 %v3625, %v3817
        %v3819 = vpop.f32.mrf.mxu0
        %v3820 = vadd.f32 %v3627, %v3819
        %v3821 = vpop.f32.mrf.mxu0
        %v3822 = vadd.f32 %v3629, %v3821
        %v3823 = vpop.f32.mrf.mxu0
        %v3824 = vadd.f32 %v3631, %v3823
        %3825 = vmatprep.mubr.bf16.mxu0 %v1111
        %3826 = vmatmul.mubr.bf16.gmra.mxu0 %v1110
        %v3827 = vpop.f32.mrf.mxu0
        %v3828 = vadd.f32 %v3635, %v3827
        %v3829 = vpop.f32.mrf.mxu0
        %v3830 = vadd.f32 %v3637, %v3829
        %v3831 = vpop.f32.mrf.mxu0
        %v3832 = vadd.f32 %v3639, %v3831
        %v3833 = vpop.f32.mrf.mxu0
        %v3834 = vadd.f32 %v3641, %v3833
        %3835 = vmatprep.mubr.bf16.mxu0 %v1115
        %3836 = vmatmul.mubr.bf16.gmra.mxu0 %v1114
        %v3837 = vpop.f32.mrf.mxu0
        %v3838 = vadd.f32 %v3645, %v3837
        %v3839 = vpop.f32.mrf.mxu0
        %v3840 = vadd.f32 %v3647, %v3839
        %v3841 = vpop.f32.mrf.mxu0
        %v3842 = vadd.f32 %v3649, %v3841
        %v3843 = vpop.f32.mrf.mxu0
        %v3844 = vadd.f32 %v3651, %v3843
        %3845 = vmatprep.mubr.bf16.mxu0 %v1119
        %3846 = vmatmul.mubr.bf16.gmra.mxu0 %v1118
        %v3847 = vpop.f32.mrf.mxu0
        %v3848 = vadd.f32 %v3655, %v3847
        %v3849 = vpop.f32.mrf.mxu0
        %v3850 = vadd.f32 %v3657, %v3849
        %v3851 = vpop.f32.mrf.mxu0
        %v3852 = vadd.f32 %v3659, %v3851
        %v3853 = vpop.f32.mrf.mxu0
        %v3854 = vadd.f32 %v3661, %v3853
        %3855 = vdwg.mxu0
        %3856 = vmatprep.subr.bf16.mxu0 %v2249
        %3857 = vmatpush1.bf16.msra.mxu0 %v2248
        %3858 = vmatprep.subr.bf16.mxu0 %v2241
        %3859 = vmatpush1.bf16.msra.mxu0 %v2240
        %3860 = vmatprep.subr.bf16.mxu0 %v2233
        %3861 = vmatpush1.bf16.msra.mxu0 %v2232
        %3862 = vmatprep.subr.bf16.mxu0 %v2225
        %3863 = vmatpush1.bf16.msra.mxu0 %v2224
        %3864 = vmatprep.subr.bf16.mxu0 %v2217
        %3865 = vmatpush1.bf16.msra.mxu0 %v2216
        %3866 = vmatprep.subr.bf16.mxu0 %v2209
        %3867 = vmatpush1.bf16.msra.mxu0 %v2208
        %3868 = vmatprep.subr.bf16.mxu0 %v2201
        %3869 = vmatpush1.bf16.msra.mxu0 %v2200
        %3870 = vmatprep.subr.bf16.mxu0 %v2193
        %3871 = vmatpush1.bf16.msra.mxu0 %v2192
        %3872 = vmatprep.subr.bf16.mxu0 %v2313
        %3873 = vmatpush2.bf16.msra.mxu0 %v2312
        %3874 = vmatprep.subr.bf16.mxu0 %v2305
        %3875 = vmatpush2.bf16.msra.mxu0 %v2304
        %3876 = vmatprep.subr.bf16.mxu0 %v2297
        %3877 = vmatpush2.bf16.msra.mxu0 %v2296
        %3878 = vmatprep.subr.bf16.mxu0 %v2289
        %3879 = vmatpush2.bf16.msra.mxu0 %v2288
        %3880 = vmatprep.subr.bf16.mxu0 %v2281
        %3881 = vmatpush2.bf16.msra.mxu0 %v2280
        %3882 = vmatprep.subr.bf16.mxu0 %v2273
        %3883 = vmatpush2.bf16.msra.mxu0 %v2272
        %3884 = vmatprep.subr.bf16.mxu0 %v2265
        %3885 = vmatpush2.bf16.msra.mxu0 %v2264
        %3886 = vmatprep.subr.bf16.mxu0 %v2257
        %3887 = vmatpush2.bf16.msra.mxu0 %v2256
        %3888 = vmatprep.mubr.bf16.mxu0 %v1057
        %3889 = vmatmul.mubr.bf16.gmra.mxu0 %v1056
        %v3890 = vpop.f32.mrf.mxu0
        %v3891 = vadd.f32 %v1405, %v3890
        %v3892 = vpop.f32.mrf.mxu0
        %v3893 = vadd.f32 %v1409, %v3892
        %v3894 = vpop.f32.mrf.mxu0
        %v3895 = vadd.f32 %v1405, %v3894
        %v3896 = vpop.f32.mrf.mxu0
        %v3897 = vadd.f32 %v1409, %v3896
        %3898 = vmatprep.mubr.bf16.mxu0 %v1061
        %3899 = vmatmul.mubr.bf16.gmra.mxu0 %v1060
        %v3900 = vpop.f32.mrf.mxu0
        %v3901 = vadd.f32 %v1405, %v3900
        %v3902 = vpop.f32.mrf.mxu0
        %v3903 = vadd.f32 %v1409, %v3902
        %v3904 = vpop.f32.mrf.mxu0
        %v3905 = vadd.f32 %v1405, %v3904
        %v3906 = vpop.f32.mrf.mxu0
        %v3907 = vadd.f32 %v1409, %v3906
        %3908 = vmatprep.mubr.bf16.mxu0 %v1065
        %3909 = vmatmul.mubr.bf16.gmra.mxu0 %v1064
        %v3910 = vpop.f32.mrf.mxu0
        %v3911 = vadd.f32 %v1405, %v3910
        %v3912 = vpop.f32.mrf.mxu0
        %v3913 = vadd.f32 %v1409, %v3912
        %v3914 = vpop.f32.mrf.mxu0
        %v3915 = vadd.f32 %v1405, %v3914
        %v3916 = vpop.f32.mrf.mxu0
        %v3917 = vadd.f32 %v1409, %v3916
        %3918 = vmatprep.mubr.bf16.mxu0 %v1069
        %3919 = vmatmul.mubr.bf16.gmra.mxu0 %v1068
        %v3920 = vpop.f32.mrf.mxu0
        %v3921 = vadd.f32 %v1405, %v3920
        %v3922 = vpop.f32.mrf.mxu0
        %v3923 = vadd.f32 %v1409, %v3922
        %v3924 = vpop.f32.mrf.mxu0
        %v3925 = vadd.f32 %v1405, %v3924
        %v3926 = vpop.f32.mrf.mxu0
        %v3927 = vadd.f32 %v1409, %v3926
        %3928 = vmatprep.mubr.bf16.mxu0 %v1073
        %3929 = vmatmul.mubr.bf16.gmra.mxu0 %v1072
        %v3930 = vpop.f32.mrf.mxu0
        %v3931 = vadd.f32 %v1405, %v3930
        %v3932 = vpop.f32.mrf.mxu0
        %v3933 = vadd.f32 %v1409, %v3932
        %v3934 = vpop.f32.mrf.mxu0
        %v3935 = vadd.f32 %v1405, %v3934
        %v3936 = vpop.f32.mrf.mxu0
        %v3937 = vadd.f32 %v1409, %v3936
        %3938 = vmatprep.mubr.bf16.mxu0 %v1077
        %3939 = vmatmul.mubr.bf16.gmra.mxu0 %v1076
        %v3940 = vpop.f32.mrf.mxu0
        %v3941 = vadd.f32 %v1405, %v3940
        %v3942 = vpop.f32.mrf.mxu0
        %v3943 = vadd.f32 %v1409, %v3942
        %v3944 = vpop.f32.mrf.mxu0
        %v3945 = vadd.f32 %v1405, %v3944
        %v3946 = vpop.f32.mrf.mxu0
        %v3947 = vadd.f32 %v1409, %v3946
        %3948 = vmatprep.mubr.bf16.mxu0 %v1081
        %3949 = vmatmul.mubr.bf16.gmra.mxu0 %v1080
        %v3950 = vpop.f32.mrf.mxu0
        %v3951 = vadd.f32 %v1405, %v3950
        %v3952 = vpop.f32.mrf.mxu0
        %v3953 = vadd.f32 %v1409, %v3952
        %v3954 = vpop.f32.mrf.mxu0
        %v3955 = vadd.f32 %v1405, %v3954
        %v3956 = vpop.f32.mrf.mxu0
        %v3957 = vadd.f32 %v1409, %v3956
        %3958 = vmatprep.mubr.bf16.mxu0 %v1085
        %3959 = vmatmul.mubr.bf16.gmra.mxu0 %v1084
        %v3960 = vpop.f32.mrf.mxu0
        %v3961 = vadd.f32 %v1405, %v3960
        %v3962 = vpop.f32.mrf.mxu0
        %v3963 = vadd.f32 %v1409, %v3962
        %v3964 = vpop.f32.mrf.mxu0
        %v3965 = vadd.f32 %v1405, %v3964
        %v3966 = vpop.f32.mrf.mxu0
        %v3967 = vadd.f32 %v1409, %v3966
        %3968 = vmatprep.mubr.bf16.mxu0 %v1089
        %3969 = vmatmul.mubr.bf16.gmra.mxu0 %v1088
        %v3970 = vpop.f32.mrf.mxu0
        %v3971 = vadd.f32 %v1405, %v3970
        %v3972 = vpop.f32.mrf.mxu0
        %v3973 = vadd.f32 %v1409, %v3972
        %v3974 = vpop.f32.mrf.mxu0
        %v3975 = vadd.f32 %v1405, %v3974
        %v3976 = vpop.f32.mrf.mxu0
        %v3977 = vadd.f32 %v1409, %v3976
        %3978 = vmatprep.mubr.bf16.mxu0 %v1093
        %3979 = vmatmul.mubr.bf16.gmra.mxu0 %v1092
        %v3980 = vpop.f32.mrf.mxu0
        %v3981 = vadd.f32 %v1405, %v3980
        %v3982 = vpop.f32.mrf.mxu0
        %v3983 = vadd.f32 %v1409, %v3982
        %v3984 = vpop.f32.mrf.mxu0
        %v3985 = vadd.f32 %v1405, %v3984
        %v3986 = vpop.f32.mrf.mxu0
        %v3987 = vadd.f32 %v1409, %v3986
        %3988 = vmatprep.mubr.bf16.mxu0 %v1097
        %3989 = vmatmul.mubr.bf16.gmra.mxu0 %v1096
        %v3990 = vpop.f32.mrf.mxu0
        %v3991 = vadd.f32 %v1405, %v3990
        %v3992 = vpop.f32.mrf.mxu0
        %v3993 = vadd.f32 %v1409, %v3992
        %v3994 = vpop.f32.mrf.mxu0
        %v3995 = vadd.f32 %v1405, %v3994
        %v3996 = vpop.f32.mrf.mxu0
        %v3997 = vadd.f32 %v1409, %v3996
        %3998 = vmatprep.mubr.bf16.mxu0 %v1101
        %3999 = vmatmul.mubr.bf16.gmra.mxu0 %v1100
        %v4000 = vpop.f32.mrf.mxu0
        %v4001 = vadd.f32 %v1405, %v4000
        %v4002 = vpop.f32.mrf.mxu0
        %v4003 = vadd.f32 %v1409, %v4002
        %v4004 = vpop.f32.mrf.mxu0
        %v4005 = vadd.f32 %v1405, %v4004
        %v4006 = vpop.f32.mrf.mxu0
        %v4007 = vadd.f32 %v1409, %v4006
        %4008 = vmatprep.mubr.bf16.mxu0 %v1105
        %4009 = vmatmul.mubr.bf16.gmra.mxu0 %v1104
        %v4010 = vpop.f32.mrf.mxu0
        %v4011 = vadd.f32 %v1405, %v4010
        %v4012 = vpop.f32.mrf.mxu0
        %v4013 = vadd.f32 %v1409, %v4012
        %v4014 = vpop.f32.mrf.mxu0
        %v4015 = vadd.f32 %v1405, %v4014
        %v4016 = vpop.f32.mrf.mxu0
        %v4017 = vadd.f32 %v1409, %v4016
        %4018 = vmatprep.mubr.bf16.mxu0 %v1109
        %4019 = vmatmul.mubr.bf16.gmra.mxu0 %v1108
        %v4020 = vpop.f32.mrf.mxu0
        %v4021 = vadd.f32 %v1405, %v4020
        %v4022 = vpop.f32.mrf.mxu0
        %v4023 = vadd.f32 %v1409, %v4022
        %v4024 = vpop.f32.mrf.mxu0
        %v4025 = vadd.f32 %v1405, %v4024
        %v4026 = vpop.f32.mrf.mxu0
        %v4027 = vadd.f32 %v1409, %v4026
        %4028 = vmatprep.mubr.bf16.mxu0 %v1113
        %4029 = vmatmul.mubr.bf16.gmra.mxu0 %v1112
        %v4030 = vpop.f32.mrf.mxu0
        %v4031 = vadd.f32 %v1405, %v4030
        %v4032 = vpop.f32.mrf.mxu0
        %v4033 = vadd.f32 %v1409, %v4032
        %v4034 = vpop.f32.mrf.mxu0
        %v4035 = vadd.f32 %v1405, %v4034
        %v4036 = vpop.f32.mrf.mxu0
        %v4037 = vadd.f32 %v1409, %v4036
        %4038 = vmatprep.mubr.bf16.mxu0 %v1117
        %4039 = vmatmul.mubr.bf16.gmra.mxu0 %v1116
        %v4040 = vpop.f32.mrf.mxu0
        %v4041 = vadd.f32 %v1405, %v4040
        %v4042 = vpop.f32.mrf.mxu0
        %v4043 = vadd.f32 %v1409, %v4042
        %v4044 = vpop.f32.mrf.mxu0
        %v4045 = vadd.f32 %v1405, %v4044
        %v4046 = vpop.f32.mrf.mxu0
        %v4047 = vadd.f32 %v1409, %v4046
        %4048 = vdwg.mxu0
        %4049 = vmatprep.subr.bf16.mxu0 %v2377
        %4050 = vmatpush1.bf16.msra.mxu0 %v2376
        %4051 = vmatprep.subr.bf16.mxu0 %v2369
        %4052 = vmatpush1.bf16.msra.mxu0 %v2368
        %4053 = vmatprep.subr.bf16.mxu0 %v2361
        %4054 = vmatpush1.bf16.msra.mxu0 %v2360
        %4055 = vmatprep.subr.bf16.mxu0 %v2353
        %4056 = vmatpush1.bf16.msra.mxu0 %v2352
        %4057 = vmatprep.subr.bf16.mxu0 %v2345
        %4058 = vmatpush1.bf16.msra.mxu0 %v2344
        %4059 = vmatprep.subr.bf16.mxu0 %v2337
        %4060 = vmatpush1.bf16.msra.mxu0 %v2336
        %4061 = vmatprep.subr.bf16.mxu0 %v2329
        %4062 = vmatpush1.bf16.msra.mxu0 %v2328
        %4063 = vmatprep.subr.bf16.mxu0 %v2321
        %4064 = vmatpush1.bf16.msra.mxu0 %v2320
        %4065 = vmatprep.subr.bf16.mxu0 %v2441
        %4066 = vmatpush2.bf16.msra.mxu0 %v2440
        %4067 = vmatprep.subr.bf16.mxu0 %v2433
        %4068 = vmatpush2.bf16.msra.mxu0 %v2432
        %4069 = vmatprep.subr.bf16.mxu0 %v2425
        %4070 = vmatpush2.bf16.msra.mxu0 %v2424
        %4071 = vmatprep.subr.bf16.mxu0 %v2417
        %4072 = vmatpush2.bf16.msra.mxu0 %v2416
        %4073 = vmatprep.subr.bf16.mxu0 %v2409
        %4074 = vmatpush2.bf16.msra.mxu0 %v2408
        %4075 = vmatprep.subr.bf16.mxu0 %v2401
        %4076 = vmatpush2.bf16.msra.mxu0 %v2400
        %4077 = vmatprep.subr.bf16.mxu0 %v2393
        %4078 = vmatpush2.bf16.msra.mxu0 %v2392
        %4079 = vmatprep.subr.bf16.mxu0 %v2385
        %4080 = vmatpush2.bf16.msra.mxu0 %v2384
        %4081 = vmatprep.mubr.bf16.mxu0 %v1059
        %4082 = vmatmul.mubr.bf16.gmra.mxu0 %v1058
        %v4083 = vpop.f32.mrf.mxu0
        %v4084 = vadd.f32 %v3891, %v4083
        %v4085 = vpop.f32.mrf.mxu0
        %v4086 = vadd.f32 %v3893, %v4085
        %v4087 = vpop.f32.mrf.mxu0
        %v4088 = vadd.f32 %v3895, %v4087
        %v4089 = vpop.f32.mrf.mxu0
        %v4090 = vadd.f32 %v3897, %v4089
        %4091 = vmatprep.mubr.bf16.mxu0 %v1063
        %4092 = vmatmul.mubr.bf16.gmra.mxu0 %v1062
        %v4093 = vpop.f32.mrf.mxu0
        %v4094 = vadd.f32 %v3901, %v4093
        %v4095 = vpop.f32.mrf.mxu0
        %v4096 = vadd.f32 %v3903, %v4095
        %v4097 = vpop.f32.mrf.mxu0
        %v4098 = vadd.f32 %v3905, %v4097
        %v4099 = vpop.f32.mrf.mxu0
        %v4100 = vadd.f32 %v3907, %v4099
        %4101 = vmatprep.mubr.bf16.mxu0 %v1067
        %4102 = vmatmul.mubr.bf16.gmra.mxu0 %v1066
        %v4103 = vpop.f32.mrf.mxu0
        %v4104 = vadd.f32 %v3911, %v4103
        %v4105 = vpop.f32.mrf.mxu0
        %v4106 = vadd.f32 %v3913, %v4105
        %v4107 = vpop.f32.mrf.mxu0
        %v4108 = vadd.f32 %v3915, %v4107
        %v4109 = vpop.f32.mrf.mxu0
        %v4110 = vadd.f32 %v3917, %v4109
        %4111 = vmatprep.mubr.bf16.mxu0 %v1071
        %4112 = vmatmul.mubr.bf16.gmra.mxu0 %v1070
        %v4113 = vpop.f32.mrf.mxu0
        %v4114 = vadd.f32 %v3921, %v4113
        %v4115 = vpop.f32.mrf.mxu0
        %v4116 = vadd.f32 %v3923, %v4115
        %v4117 = vpop.f32.mrf.mxu0
        %v4118 = vadd.f32 %v3925, %v4117
        %v4119 = vpop.f32.mrf.mxu0
        %v4120 = vadd.f32 %v3927, %v4119
        %4121 = vmatprep.mubr.bf16.mxu0 %v1075
        %4122 = vmatmul.mubr.bf16.gmra.mxu0 %v1074
        %v4123 = vpop.f32.mrf.mxu0
        %v4124 = vadd.f32 %v3931, %v4123
        %v4125 = vpop.f32.mrf.mxu0
        %v4126 = vadd.f32 %v3933, %v4125
        %v4127 = vpop.f32.mrf.mxu0
        %v4128 = vadd.f32 %v3935, %v4127
        %v4129 = vpop.f32.mrf.mxu0
        %v4130 = vadd.f32 %v3937, %v4129
        %4131 = vmatprep.mubr.bf16.mxu0 %v1079
        %4132 = vmatmul.mubr.bf16.gmra.mxu0 %v1078
        %v4133 = vpop.f32.mrf.mxu0
        %v4134 = vadd.f32 %v3941, %v4133
        %v4135 = vpop.f32.mrf.mxu0
        %v4136 = vadd.f32 %v3943, %v4135
        %v4137 = vpop.f32.mrf.mxu0
        %v4138 = vadd.f32 %v3945, %v4137
        %v4139 = vpop.f32.mrf.mxu0
        %v4140 = vadd.f32 %v3947, %v4139
        %4141 = vmatprep.mubr.bf16.mxu0 %v1083
        %4142 = vmatmul.mubr.bf16.gmra.mxu0 %v1082
        %v4143 = vpop.f32.mrf.mxu0
        %v4144 = vadd.f32 %v3951, %v4143
        %v4145 = vpop.f32.mrf.mxu0
        %v4146 = vadd.f32 %v3953, %v4145
        %v4147 = vpop.f32.mrf.mxu0
        %v4148 = vadd.f32 %v3955, %v4147
        %v4149 = vpop.f32.mrf.mxu0
        %v4150 = vadd.f32 %v3957, %v4149
        %4151 = vmatprep.mubr.bf16.mxu0 %v1087
        %4152 = vmatmul.mubr.bf16.gmra.mxu0 %v1086
        %v4153 = vpop.f32.mrf.mxu0
        %v4154 = vadd.f32 %v3961, %v4153
        %v4155 = vpop.f32.mrf.mxu0
        %v4156 = vadd.f32 %v3963, %v4155
        %v4157 = vpop.f32.mrf.mxu0
        %v4158 = vadd.f32 %v3965, %v4157
        %v4159 = vpop.f32.mrf.mxu0
        %v4160 = vadd.f32 %v3967, %v4159
        %4161 = vmatprep.mubr.bf16.mxu0 %v1091
        %4162 = vmatmul.mubr.bf16.gmra.mxu0 %v1090
        %v4163 = vpop.f32.mrf.mxu0
        %v4164 = vadd.f32 %v3971, %v4163
        %v4165 = vpop.f32.mrf.mxu0
        %v4166 = vadd.f32 %v3973, %v4165
        %v4167 = vpop.f32.mrf.mxu0
        %v4168 = vadd.f32 %v3975, %v4167
        %v4169 = vpop.f32.mrf.mxu0
        %v4170 = vadd.f32 %v3977, %v4169
        %4171 = vmatprep.mubr.bf16.mxu0 %v1095
        %4172 = vmatmul.mubr.bf16.gmra.mxu0 %v1094
        %v4173 = vpop.f32.mrf.mxu0
        %v4174 = vadd.f32 %v3981, %v4173
        %v4175 = vpop.f32.mrf.mxu0
        %v4176 = vadd.f32 %v3983, %v4175
        %v4177 = vpop.f32.mrf.mxu0
        %v4178 = vadd.f32 %v3985, %v4177
        %v4179 = vpop.f32.mrf.mxu0
        %v4180 = vadd.f32 %v3987, %v4179
        %4181 = vmatprep.mubr.bf16.mxu0 %v1099
        %4182 = vmatmul.mubr.bf16.gmra.mxu0 %v1098
        %v4183 = vpop.f32.mrf.mxu0
        %v4184 = vadd.f32 %v3991, %v4183
        %v4185 = vpop.f32.mrf.mxu0
        %v4186 = vadd.f32 %v3993, %v4185
        %v4187 = vpop.f32.mrf.mxu0
        %v4188 = vadd.f32 %v3995, %v4187
        %v4189 = vpop.f32.mrf.mxu0
        %v4190 = vadd.f32 %v3997, %v4189
        %4191 = vmatprep.mubr.bf16.mxu0 %v1103
        %4192 = vmatmul.mubr.bf16.gmra.mxu0 %v1102
        %v4193 = vpop.f32.mrf.mxu0
        %v4194 = vadd.f32 %v4001, %v4193
        %v4195 = vpop.f32.mrf.mxu0
        %v4196 = vadd.f32 %v4003, %v4195
        %v4197 = vpop.f32.mrf.mxu0
        %v4198 = vadd.f32 %v4005, %v4197
        %v4199 = vpop.f32.mrf.mxu0
        %v4200 = vadd.f32 %v4007, %v4199
        %4201 = vmatprep.mubr.bf16.mxu0 %v1107
        %4202 = vmatmul.mubr.bf16.gmra.mxu0 %v1106
        %v4203 = vpop.f32.mrf.mxu0
        %v4204 = vadd.f32 %v4011, %v4203
        %v4205 = vpop.f32.mrf.mxu0
        %v4206 = vadd.f32 %v4013, %v4205
        %v4207 = vpop.f32.mrf.mxu0
        %v4208 = vadd.f32 %v4015, %v4207
        %v4209 = vpop.f32.mrf.mxu0
        %v4210 = vadd.f32 %v4017, %v4209
        %4211 = vmatprep.mubr.bf16.mxu0 %v1111
        %4212 = vmatmul.mubr.bf16.gmra.mxu0 %v1110
        %v4213 = vpop.f32.mrf.mxu0
        %v4214 = vadd.f32 %v4021, %v4213
        %v4215 = vpop.f32.mrf.mxu0
        %v4216 = vadd.f32 %v4023, %v4215
        %v4217 = vpop.f32.mrf.mxu0
        %v4218 = vadd.f32 %v4025, %v4217
        %v4219 = vpop.f32.mrf.mxu0
        %v4220 = vadd.f32 %v4027, %v4219
        %4221 = vmatprep.mubr.bf16.mxu0 %v1115
        %4222 = vmatmul.mubr.bf16.gmra.mxu0 %v1114
        %v4223 = vpop.f32.mrf.mxu0
        %v4224 = vadd.f32 %v4031, %v4223
        %v4225 = vpop.f32.mrf.mxu0
        %v4226 = vadd.f32 %v4033, %v4225
        %v4227 = vpop.f32.mrf.mxu0
        %v4228 = vadd.f32 %v4035, %v4227
        %v4229 = vpop.f32.mrf.mxu0
        %v4230 = vadd.f32 %v4037, %v4229
        %4231 = vmatprep.mubr.bf16.mxu0 %v1119
        %4232 = vmatmul.mubr.bf16.gmra.mxu0 %v1118
        %v4233 = vpop.f32.mrf.mxu0
        %v4234 = vadd.f32 %v4041, %v4233
        %v4235 = vpop.f32.mrf.mxu0
        %v4236 = vadd.f32 %v4043, %v4235
        %v4237 = vpop.f32.mrf.mxu0
        %v4238 = vadd.f32 %v4045, %v4237
        %v4239 = vpop.f32.mrf.mxu0
        %v4240 = vadd.f32 %v4047, %v4239
        %4241 = vdwg.mxu0
        %v4242 = vmax.f32 %v2926, 0.0
        %v4243 = vmax.f32 %v2928, 0.0
        %v4244 = vmax.f32 %v3312, 0.0
        %v4245 = vmax.f32 %v3314, 0.0
        %v4246 = vmax.f32 %v3698, 0.0
        %v4247 = vmax.f32 %v3700, 0.0
        %v4248 = vmax.f32 %v4084, 0.0
        %v4249 = vmax.f32 %v4086, 0.0
        %v4250 = vmax.f32 %v2930, 0.0
        %v4251 = vmax.f32 %v2932, 0.0
        %v4252 = vmax.f32 %v3316, 0.0
        %v4253 = vmax.f32 %v3318, 0.0
        %v4254 = vmax.f32 %v3702, 0.0
        %v4255 = vmax.f32 %v3704, 0.0
        %v4256 = vmax.f32 %v4088, 0.0
        %v4257 = vmax.f32 %v4090, 0.0
        %v4258 = vmax.f32 %v2936, 0.0
        %v4259 = vmax.f32 %v2938, 0.0
        %v4260 = vmax.f32 %v3322, 0.0
        %v4261 = vmax.f32 %v3324, 0.0
        %v4262 = vmax.f32 %v3708, 0.0
        %v4263 = vmax.f32 %v3710, 0.0
        %v4264 = vmax.f32 %v4094, 0.0
        %v4265 = vmax.f32 %v4096, 0.0
        %v4266 = vmax.f32 %v2940, 0.0
        %v4267 = vmax.f32 %v2942, 0.0
        %v4268 = vmax.f32 %v3326, 0.0
        %v4269 = vmax.f32 %v3328, 0.0
        %v4270 = vmax.f32 %v3712, 0.0
        %v4271 = vmax.f32 %v3714, 0.0
        %v4272 = vmax.f32 %v4098, 0.0
        %v4273 = vmax.f32 %v4100, 0.0
        %v4274 = vmax.f32 %v2946, 0.0
        %v4275 = vmax.f32 %v2948, 0.0
        %v4276 = vmax.f32 %v3332, 0.0
        %v4277 = vmax.f32 %v3334, 0.0
        %v4278 = vmax.f32 %v3718, 0.0
        %v4279 = vmax.f32 %v3720, 0.0
        %v4280 = vmax.f32 %v4104, 0.0
        %v4281 = vmax.f32 %v4106, 0.0
        %v4282 = vmax.f32 %v2950, 0.0
        %v4283 = vmax.f32 %v2952, 0.0
        %v4284 = vmax.f32 %v3336, 0.0
        %v4285 = vmax.f32 %v3338, 0.0
        %v4286 = vmax.f32 %v3722, 0.0
        %v4287 = vmax.f32 %v3724, 0.0
        %v4288 = vmax.f32 %v4108, 0.0
        %v4289 = vmax.f32 %v4110, 0.0
        %v4290 = vmax.f32 %v2956, 0.0
        %v4291 = vmax.f32 %v2958, 0.0
        %v4292 = vmax.f32 %v3342, 0.0
        %v4293 = vmax.f32 %v3344, 0.0
        %v4294 = vmax.f32 %v3728, 0.0
        %v4295 = vmax.f32 %v3730, 0.0
        %v4296 = vmax.f32 %v4114, 0.0
        %v4297 = vmax.f32 %v4116, 0.0
        %v4298 = vmax.f32 %v2960, 0.0
        %v4299 = vmax.f32 %v2962, 0.0
        %v4300 = vmax.f32 %v3346, 0.0
        %v4301 = vmax.f32 %v3348, 0.0
        %v4302 = vmax.f32 %v3732, 0.0
        %v4303 = vmax.f32 %v3734, 0.0
        %v4304 = vmax.f32 %v4118, 0.0
        %v4305 = vmax.f32 %v4120, 0.0
        %v4306 = vmax.f32 %v2966, 0.0
        %v4307 = vmax.f32 %v2968, 0.0
        %v4308 = vmax.f32 %v3352, 0.0
        %v4309 = vmax.f32 %v3354, 0.0
        %v4310 = vmax.f32 %v3738, 0.0
        %v4311 = vmax.f32 %v3740, 0.0
        %v4312 = vmax.f32 %v4124, 0.0
        %v4313 = vmax.f32 %v4126, 0.0
        %v4314 = vmax.f32 %v2970, 0.0
        %v4315 = vmax.f32 %v2972, 0.0
        %v4316 = vmax.f32 %v3356, 0.0
        %v4317 = vmax.f32 %v3358, 0.0
        %v4318 = vmax.f32 %v3742, 0.0
        %v4319 = vmax.f32 %v3744, 0.0
        %v4320 = vmax.f32 %v4128, 0.0
        %v4321 = vmax.f32 %v4130, 0.0
        %v4322 = vmax.f32 %v2976, 0.0
        %v4323 = vmax.f32 %v2978, 0.0
        %v4324 = vmax.f32 %v3362, 0.0
        %v4325 = vmax.f32 %v3364, 0.0
        %v4326 = vmax.f32 %v3748, 0.0
        %v4327 = vmax.f32 %v3750, 0.0
        %v4328 = vmax.f32 %v4134, 0.0
        %v4329 = vmax.f32 %v4136, 0.0
        %v4330 = vmax.f32 %v2980, 0.0
        %v4331 = vmax.f32 %v2982, 0.0
        %v4332 = vmax.f32 %v3366, 0.0
        %v4333 = vmax.f32 %v3368, 0.0
        %v4334 = vmax.f32 %v3752, 0.0
        %v4335 = vmax.f32 %v3754, 0.0
        %v4336 = vmax.f32 %v4138, 0.0
        %v4337 = vmax.f32 %v4140, 0.0
        %v4338 = vmax.f32 %v2986, 0.0
        %v4339 = vmax.f32 %v2988, 0.0
        %v4340 = vmax.f32 %v3372, 0.0
        %v4341 = vmax.f32 %v3374, 0.0
        %v4342 = vmax.f32 %v3758, 0.0
        %v4343 = vmax.f32 %v3760, 0.0
        %v4344 = vmax.f32 %v4144, 0.0
        %v4345 = vmax.f32 %v4146, 0.0
        %v4346 = vmax.f32 %v2990, 0.0
        %v4347 = vmax.f32 %v2992, 0.0
        %v4348 = vmax.f32 %v3376, 0.0
        %v4349 = vmax.f32 %v3378, 0.0
        %v4350 = vmax.f32 %v3762, 0.0
        %v4351 = vmax.f32 %v3764, 0.0
        %v4352 = vmax.f32 %v4148, 0.0
        %v4353 = vmax.f32 %v4150, 0.0
        %v4354 = vmax.f32 %v2996, 0.0
        %v4355 = vmax.f32 %v2998, 0.0
        %v4356 = vmax.f32 %v3382, 0.0
        %v4357 = vmax.f32 %v3384, 0.0
        %v4358 = vmax.f32 %v3768, 0.0
        %v4359 = vmax.f32 %v3770, 0.0
        %v4360 = vmax.f32 %v4154, 0.0
        %v4361 = vmax.f32 %v4156, 0.0
        %v4362 = vmax.f32 %v3000, 0.0
        %v4363 = vmax.f32 %v3002, 0.0
        %v4364 = vmax.f32 %v3386, 0.0
        %v4365 = vmax.f32 %v3388, 0.0
        %v4366 = vmax.f32 %v3772, 0.0
        %v4367 = vmax.f32 %v3774, 0.0
        %v4368 = vmax.f32 %v4158, 0.0
        %v4369 = vmax.f32 %v4160, 0.0
        %v4370 = vmax.f32 %v3006, 0.0
        %v4371 = vmax.f32 %v3008, 0.0
        %v4372 = vmax.f32 %v3392, 0.0
        %v4373 = vmax.f32 %v3394, 0.0
        %v4374 = vmax.f32 %v3778, 0.0
        %v4375 = vmax.f32 %v3780, 0.0
        %v4376 = vmax.f32 %v4164, 0.0
        %v4377 = vmax.f32 %v4166, 0.0
        %v4378 = vmax.f32 %v3010, 0.0
        %v4379 = vmax.f32 %v3012, 0.0
        %v4380 = vmax.f32 %v3396, 0.0
        %v4381 = vmax.f32 %v3398, 0.0
        %v4382 = vmax.f32 %v3782, 0.0
        %v4383 = vmax.f32 %v3784, 0.0
        %v4384 = vmax.f32 %v4168, 0.0
        %v4385 = vmax.f32 %v4170, 0.0
        %v4386 = vmax.f32 %v3016, 0.0
        %v4387 = vmax.f32 %v3018, 0.0
        %v4388 = vmax.f32 %v3402, 0.0
        %v4389 = vmax.f32 %v3404, 0.0
        %v4390 = vmax.f32 %v3788, 0.0
        %v4391 = vmax.f32 %v3790, 0.0
        %v4392 = vmax.f32 %v4174, 0.0
        %v4393 = vmax.f32 %v4176, 0.0
        %v4394 = vmax.f32 %v3020, 0.0
        %v4395 = vmax.f32 %v3022, 0.0
        %v4396 = vmax.f32 %v3406, 0.0
        %v4397 = vmax.f32 %v3408, 0.0
        %v4398 = vmax.f32 %v3792, 0.0
        %v4399 = vmax.f32 %v3794, 0.0
        %v4400 = vmax.f32 %v4178, 0.0
        %v4401 = vmax.f32 %v4180, 0.0
        %v4402 = vmax.f32 %v3026, 0.0
        %v4403 = vmax.f32 %v3028, 0.0
        %v4404 = vmax.f32 %v3412, 0.0
        %v4405 = vmax.f32 %v3414, 0.0
        %v4406 = vmax.f32 %v3798, 0.0
        %v4407 = vmax.f32 %v3800, 0.0
        %v4408 = vmax.f32 %v4184, 0.0
        %v4409 = vmax.f32 %v4186, 0.0
        %v4410 = vmax.f32 %v3030, 0.0
        %v4411 = vmax.f32 %v3032, 0.0
        %v4412 = vmax.f32 %v3416, 0.0
        %v4413 = vmax.f32 %v3418, 0.0
        %v4414 = vmax.f32 %v3802, 0.0
        %v4415 = vmax.f32 %v3804, 0.0
        %v4416 = vmax.f32 %v4188, 0.0
        %v4417 = vmax.f32 %v4190, 0.0
        %v4418 = vmax.f32 %v3036, 0.0
        %v4419 = vmax.f32 %v3038, 0.0
        %v4420 = vmax.f32 %v3422, 0.0
        %v4421 = vmax.f32 %v3424, 0.0
        %v4422 = vmax.f32 %v3808, 0.0
        %v4423 = vmax.f32 %v3810, 0.0
        %v4424 = vmax.f32 %v4194, 0.0
        %v4425 = vmax.f32 %v4196, 0.0
        %v4426 = vmax.f32 %v3040, 0.0
        %v4427 = vmax.f32 %v3042, 0.0
        %v4428 = vmax.f32 %v3426, 0.0
        %v4429 = vmax.f32 %v3428, 0.0
        %v4430 = vmax.f32 %v3812, 0.0
        %v4431 = vmax.f32 %v3814, 0.0
        %v4432 = vmax.f32 %v4198, 0.0
        %v4433 = vmax.f32 %v4200, 0.0
        %v4434 = vmax.f32 %v3046, 0.0
        %v4435 = vmax.f32 %v3048, 0.0
        %v4436 = vmax.f32 %v3432, 0.0
        %v4437 = vmax.f32 %v3434, 0.0
        %v4438 = vmax.f32 %v3818, 0.0
        %v4439 = vmax.f32 %v3820, 0.0
        %v4440 = vmax.f32 %v4204, 0.0
        %v4441 = vmax.f32 %v4206, 0.0
        %v4442 = vmax.f32 %v3050, 0.0
        %v4443 = vmax.f32 %v3052, 0.0
        %v4444 = vmax.f32 %v3436, 0.0
        %v4445 = vmax.f32 %v3438, 0.0
        %v4446 = vmax.f32 %v3822, 0.0
        %v4447 = vmax.f32 %v3824, 0.0
        %v4448 = vmax.f32 %v4208, 0.0
        %v4449 = vmax.f32 %v4210, 0.0
        %v4450 = vmax.f32 %v3056, 0.0
        %v4451 = vmax.f32 %v3058, 0.0
        %v4452 = vmax.f32 %v3442, 0.0
        %v4453 = vmax.f32 %v3444, 0.0
        %v4454 = vmax.f32 %v3828, 0.0
        %v4455 = vmax.f32 %v3830, 0.0
        %v4456 = vmax.f32 %v4214, 0.0
        %v4457 = vmax.f32 %v4216, 0.0
        %v4458 = vmax.f32 %v3060, 0.0
        %v4459 = vmax.f32 %v3062, 0.0
        %v4460 = vmax.f32 %v3446, 0.0
        %v4461 = vmax.f32 %v3448, 0.0
        %v4462 = vmax.f32 %v3832, 0.0
        %v4463 = vmax.f32 %v3834, 0.0
        %v4464 = vmax.f32 %v4218, 0.0
        %v4465 = vmax.f32 %v4220, 0.0
        %v4466 = vmax.f32 %v3066, 0.0
        %v4467 = vmax.f32 %v3068, 0.0
        %v4468 = vmax.f32 %v3452, 0.0
        %v4469 = vmax.f32 %v3454, 0.0
        %v4470 = vmax.f32 %v3838, 0.0
        %v4471 = vmax.f32 %v3840, 0.0
        %v4472 = vmax.f32 %v4224, 0.0
        %v4473 = vmax.f32 %v4226, 0.0
        %v4474 = vmax.f32 %v3070, 0.0
        %v4475 = vmax.f32 %v3072, 0.0
        %v4476 = vmax.f32 %v3456, 0.0
        %v4477 = vmax.f32 %v3458, 0.0
        %v4478 = vmax.f32 %v3842, 0.0
        %v4479 = vmax.f32 %v3844, 0.0
        %v4480 = vmax.f32 %v4228, 0.0
        %v4481 = vmax.f32 %v4230, 0.0
        %v4482 = vmax.f32 %v3076, 0.0
        %v4483 = vmax.f32 %v3078, 0.0
        %v4484 = vmax.f32 %v3462, 0.0
        %v4485 = vmax.f32 %v3464, 0.0
        %v4486 = vmax.f32 %v3848, 0.0
        %v4487 = vmax.f32 %v3850, 0.0
        %v4488 = vmax.f32 %v4234, 0.0
        %v4489 = vmax.f32 %v4236, 0.0
        %v4490 = vmax.f32 %v3080, 0.0
        %v4491 = vmax.f32 %v3082, 0.0
        %v4492 = vmax.f32 %v3466, 0.0
        %v4493 = vmax.f32 %v3468, 0.0
        %v4494 = vmax.f32 %v3852, 0.0
        %v4495 = vmax.f32 %v3854, 0.0
        %v4496 = vmax.f32 %v4238, 0.0
        %v4497 = vmax.f32 %v4240, 0.0
        %v4498 = vpack.c.bf16 %v4250, %v4242
        %v4499 = vpack.c.bf16 %v4251, %v4243
        %v4500 = vpack.c.bf16 %v4252, %v4244
        %v4501 = vpack.c.bf16 %v4253, %v4245
        %v4502 = vpack.c.bf16 %v4254, %v4246
        %v4503 = vpack.c.bf16 %v4255, %v4247
        %v4504 = vpack.c.bf16 %v4256, %v4248
        %v4505 = vpack.c.bf16 %v4257, %v4249
        %v4506 = vpack.c.bf16 %v4266, %v4258
        %v4507 = vpack.c.bf16 %v4267, %v4259
        %v4508 = vpack.c.bf16 %v4268, %v4260
        %v4509 = vpack.c.bf16 %v4269, %v4261
        %v4510 = vpack.c.bf16 %v4270, %v4262
        %v4511 = vpack.c.bf16 %v4271, %v4263
        %v4512 = vpack.c.bf16 %v4272, %v4264
        %v4513 = vpack.c.bf16 %v4273, %v4265
        %v4514 = vpack.c.bf16 %v4282, %v4274
        %v4515 = vpack.c.bf16 %v4283, %v4275
        %v4516 = vpack.c.bf16 %v4284, %v4276
        %v4517 = vpack.c.bf16 %v4285, %v4277
        %v4518 = vpack.c.bf16 %v4286, %v4278
        %v4519 = vpack.c.bf16 %v4287, %v4279
        %v4520 = vpack.c.bf16 %v4288, %v4280
        %v4521 = vpack.c.bf16 %v4289, %v4281
        %v4522 = vpack.c.bf16 %v4298, %v4290
        %v4523 = vpack.c.bf16 %v4299, %v4291
        %v4524 = vpack.c.bf16 %v4300, %v4292
        %v4525 = vpack.c.bf16 %v4301, %v4293
        %v4526 = vpack.c.bf16 %v4302, %v4294
        %v4527 = vpack.c.bf16 %v4303, %v4295
        %v4528 = vpack.c.bf16 %v4304, %v4296
        %v4529 = vpack.c.bf16 %v4305, %v4297
        %v4530 = vpack.c.bf16 %v4314, %v4306
        %v4531 = vpack.c.bf16 %v4315, %v4307
        %v4532 = vpack.c.bf16 %v4316, %v4308
        %v4533 = vpack.c.bf16 %v4317, %v4309
        %v4534 = vpack.c.bf16 %v4318, %v4310
        %v4535 = vpack.c.bf16 %v4319, %v4311
        %v4536 = vpack.c.bf16 %v4320, %v4312
        %v4537 = vpack.c.bf16 %v4321, %v4313
        %v4538 = vpack.c.bf16 %v4330, %v4322
        %v4539 = vpack.c.bf16 %v4331, %v4323
        %v4540 = vpack.c.bf16 %v4332, %v4324
        %v4541 = vpack.c.bf16 %v4333, %v4325
        %v4542 = vpack.c.bf16 %v4334, %v4326
        %v4543 = vpack.c.bf16 %v4335, %v4327
        %v4544 = vpack.c.bf16 %v4336, %v4328
        %v4545 = vpack.c.bf16 %v4337, %v4329
        %v4546 = vpack.c.bf16 %v4346, %v4338
        %v4547 = vpack.c.bf16 %v4347, %v4339
        %v4548 = vpack.c.bf16 %v4348, %v4340
        %v4549 = vpack.c.bf16 %v4349, %v4341
        %v4550 = vpack.c.bf16 %v4350, %v4342
        %v4551 = vpack.c.bf16 %v4351, %v4343
        %v4552 = vpack.c.bf16 %v4352, %v4344
        %v4553 = vpack.c.bf16 %v4353, %v4345
        %v4554 = vpack.c.bf16 %v4362, %v4354
        %v4555 = vpack.c.bf16 %v4363, %v4355
        %v4556 = vpack.c.bf16 %v4364, %v4356
        %v4557 = vpack.c.bf16 %v4365, %v4357
        %v4558 = vpack.c.bf16 %v4366, %v4358
        %v4559 = vpack.c.bf16 %v4367, %v4359
        %v4560 = vpack.c.bf16 %v4368, %v4360
        %v4561 = vpack.c.bf16 %v4369, %v4361
        %v4562 = vpack.c.bf16 %v4378, %v4370
        %v4563 = vpack.c.bf16 %v4379, %v4371
        %v4564 = vpack.c.bf16 %v4380, %v4372
        %v4565 = vpack.c.bf16 %v4381, %v4373
        %v4566 = vpack.c.bf16 %v4382, %v4374
        %v4567 = vpack.c.bf16 %v4383, %v4375
        %v4568 = vpack.c.bf16 %v4384, %v4376
        %v4569 = vpack.c.bf16 %v4385, %v4377
        %v4570 = vpack.c.bf16 %v4394, %v4386
        %v4571 = vpack.c.bf16 %v4395, %v4387
        %v4572 = vpack.c.bf16 %v4396, %v4388
        %v4573 = vpack.c.bf16 %v4397, %v4389
        %v4574 = vpack.c.bf16 %v4398, %v4390
        %v4575 = vpack.c.bf16 %v4399, %v4391
        %v4576 = vpack.c.bf16 %v4400, %v4392
        %v4577 = vpack.c.bf16 %v4401, %v4393
        %v4578 = vpack.c.bf16 %v4410, %v4402
        %v4579 = vpack.c.bf16 %v4411, %v4403
        %v4580 = vpack.c.bf16 %v4412, %v4404
        %v4581 = vpack.c.bf16 %v4413, %v4405
        %v4582 = vpack.c.bf16 %v4414, %v4406
        %v4583 = vpack.c.bf16 %v4415, %v4407
        %v4584 = vpack.c.bf16 %v4416, %v4408
        %v4585 = vpack.c.bf16 %v4417, %v4409
        %v4586 = vpack.c.bf16 %v4426, %v4418
        %v4587 = vpack.c.bf16 %v4427, %v4419
        %v4588 = vpack.c.bf16 %v4428, %v4420
        %v4589 = vpack.c.bf16 %v4429, %v4421
        %v4590 = vpack.c.bf16 %v4430, %v4422
        %v4591 = vpack.c.bf16 %v4431, %v4423
        %v4592 = vpack.c.bf16 %v4432, %v4424
        %v4593 = vpack.c.bf16 %v4433, %v4425
        %v4594 = vpack.c.bf16 %v4442, %v4434
        %v4595 = vpack.c.bf16 %v4443, %v4435
        %v4596 = vpack.c.bf16 %v4444, %v4436
        %v4597 = vpack.c.bf16 %v4445, %v4437
        %v4598 = vpack.c.bf16 %v4446, %v4438
        %v4599 = vpack.c.bf16 %v4447, %v4439
        %v4600 = vpack.c.bf16 %v4448, %v4440
        %v4601 = vpack.c.bf16 %v4449, %v4441
        %v4602 = vpack.c.bf16 %v4458, %v4450
        %v4603 = vpack.c.bf16 %v4459, %v4451
        %v4604 = vpack.c.bf16 %v4460, %v4452
        %v4605 = vpack.c.bf16 %v4461, %v4453
        %v4606 = vpack.c.bf16 %v4462, %v4454
        %v4607 = vpack.c.bf16 %v4463, %v4455
        %v4608 = vpack.c.bf16 %v4464, %v4456
        %v4609 = vpack.c.bf16 %v4465, %v4457
        %v4610 = vpack.c.bf16 %v4474, %v4466
        %v4611 = vpack.c.bf16 %v4475, %v4467
        %v4612 = vpack.c.bf16 %v4476, %v4468
        %v4613 = vpack.c.bf16 %v4477, %v4469
        %v4614 = vpack.c.bf16 %v4478, %v4470
        %v4615 = vpack.c.bf16 %v4479, %v4471
        %v4616 = vpack.c.bf16 %v4480, %v4472
        %v4617 = vpack.c.bf16 %v4481, %v4473
        %v4618 = vpack.c.bf16 %v4490, %v4482
        %v4619 = vpack.c.bf16 %v4491, %v4483
        %v4620 = vpack.c.bf16 %v4492, %v4484
        %v4621 = vpack.c.bf16 %v4493, %v4485
        %v4622 = vpack.c.bf16 %v4494, %v4486
        %v4623 = vpack.c.bf16 %v4495, %v4487
        %v4624 = vpack.c.bf16 %v4496, %v4488
        %v4625 = vpack.c.bf16 %v4497, %v4489
        %v4626 = vld [vmem:[#allocation5] sm:$0xf]
        %v4627 = vld [vmem:[#allocation5 + $0x4] sm:$0xf]
        %v4628 = vld [vmem:[#allocation5 + $0x8] sm:$0xf]
        %v4629 = vld [vmem:[#allocation5 + $0xc] sm:$0xf]
        %v4630 = vld [vmem:[#allocation5 + $0x10] sm:$0xf]
        %v4631 = vld [vmem:[#allocation5 + $0x14] sm:$0xf]
        %v4632 = vld [vmem:[#allocation5 + $0x18] sm:$0xf]
        %v4633 = vld [vmem:[#allocation5 + $0x1c] sm:$0xf]
        %v4634 = vld [vmem:[#allocation5 + $0x20] sm:$0xf]
        %v4635 = vld [vmem:[#allocation5 + $0x24] sm:$0xf]
        %v4636 = vld [vmem:[#allocation5 + $0x28] sm:$0xf]
        %v4637 = vld [vmem:[#allocation5 + $0x2c] sm:$0xf]
        %v4638 = vld [vmem:[#allocation5 + $0x30] sm:$0xf]
        %v4639 = vld [vmem:[#allocation5 + $0x34] sm:$0xf]
        %v4640 = vld [vmem:[#allocation5 + $0x38] sm:$0xf]
        %v4641 = vld [vmem:[#allocation5 + $0x3c] sm:$0xf]
        %v4642 = vld [vmem:[#allocation5 + $0x40] sm:$0xf]
        %v4643 = vld [vmem:[#allocation5 + $0x44] sm:$0xf]
        %v4644 = vld [vmem:[#allocation5 + $0x48] sm:$0xf]
        %v4645 = vld [vmem:[#allocation5 + $0x4c] sm:$0xf]
        %v4646 = vld [vmem:[#allocation5 + $0x50] sm:$0xf]
        %v4647 = vld [vmem:[#allocation5 + $0x54] sm:$0xf]
        %v4648 = vld [vmem:[#allocation5 + $0x58] sm:$0xf]
        %v4649 = vld [vmem:[#allocation5 + $0x5c] sm:$0xf]
        %v4650 = vld [vmem:[#allocation5 + $0x60] sm:$0xf]
        %v4651 = vld [vmem:[#allocation5 + $0x64] sm:$0xf]
        %v4652 = vld [vmem:[#allocation5 + $0x68] sm:$0xf]
        %v4653 = vld [vmem:[#allocation5 + $0x6c] sm:$0xf]
        %v4654 = vld [vmem:[#allocation5 + $0x70] sm:$0xf]
        %v4655 = vld [vmem:[#allocation5 + $0x74] sm:$0xf]
        %v4656 = vld [vmem:[#allocation5 + $0x78] sm:$0xf]
        %v4657 = vld [vmem:[#allocation5 + $0x7c] sm:$0xf]
        %v4658 = vld [vmem:[#allocation5 + $0x80] sm:$0xf]
        %v4659 = vld [vmem:[#allocation5 + $0x84] sm:$0xf]
        %v4660 = vld [vmem:[#allocation5 + $0x88] sm:$0xf]
        %v4661 = vld [vmem:[#allocation5 + $0x8c] sm:$0xf]
        %v4662 = vld [vmem:[#allocation5 + $0x90] sm:$0xf]
        %v4663 = vld [vmem:[#allocation5 + $0x94] sm:$0xf]
        %v4664 = vld [vmem:[#allocation5 + $0x98] sm:$0xf]
        %v4665 = vld [vmem:[#allocation5 + $0x9c] sm:$0xf]
        %v4666 = vld [vmem:[#allocation5 + $0xa0] sm:$0xf]
        %v4667 = vld [vmem:[#allocation5 + $0xa4] sm:$0xf]
        %v4668 = vld [vmem:[#allocation5 + $0xa8] sm:$0xf]
        %v4669 = vld [vmem:[#allocation5 + $0xac] sm:$0xf]
        %v4670 = vld [vmem:[#allocation5 + $0xb0] sm:$0xf]
        %v4671 = vld [vmem:[#allocation5 + $0xb4] sm:$0xf]
        %v4672 = vld [vmem:[#allocation5 + $0xb8] sm:$0xf]
        %v4673 = vld [vmem:[#allocation5 + $0xbc] sm:$0xf]
        %v4674 = vld [vmem:[#allocation5 + $0xc0] sm:$0xf]
        %v4675 = vld [vmem:[#allocation5 + $0xc4] sm:$0xf]
        %v4676 = vld [vmem:[#allocation5 + $0xc8] sm:$0xf]
        %v4677 = vld [vmem:[#allocation5 + $0xcc] sm:$0xf]
        %v4678 = vld [vmem:[#allocation5 + $0xd0] sm:$0xf]
        %v4679 = vld [vmem:[#allocation5 + $0xd4] sm:$0xf]
        %v4680 = vld [vmem:[#allocation5 + $0xd8] sm:$0xf]
        %v4681 = vld [vmem:[#allocation5 + $0xdc] sm:$0xf]
        %v4682 = vld [vmem:[#allocation5 + $0xe0] sm:$0xf]
        %v4683 = vld [vmem:[#allocation5 + $0xe4] sm:$0xf]
        %v4684 = vld [vmem:[#allocation5 + $0xe8] sm:$0xf]
        %v4685 = vld [vmem:[#allocation5 + $0xec] sm:$0xf]
        %v4686 = vld [vmem:[#allocation5 + $0xf0] sm:$0xf]
        %v4687 = vld [vmem:[#allocation5 + $0xf4] sm:$0xf]
        %v4688 = vld [vmem:[#allocation5 + $0xf8] sm:$0xf]
        %v4689 = vld [vmem:[#allocation5 + $0xfc] sm:$0xf]
        %v4690 = vld [vmem:[#allocation5 + $0x100] sm:$0xf]
        %v4691 = vld [vmem:[#allocation5 + $0x104] sm:$0xf]
        %v4692 = vld [vmem:[#allocation5 + $0x108] sm:$0xf]
        %v4693 = vld [vmem:[#allocation5 + $0x10c] sm:$0xf]
        %v4694 = vld [vmem:[#allocation5 + $0x110] sm:$0xf]
        %v4695 = vld [vmem:[#allocation5 + $0x114] sm:$0xf]
        %v4696 = vld [vmem:[#allocation5 + $0x118] sm:$0xf]
        %v4697 = vld [vmem:[#allocation5 + $0x11c] sm:$0xf]
        %v4698 = vld [vmem:[#allocation5 + $0x120] sm:$0xf]
        %v4699 = vld [vmem:[#allocation5 + $0x124] sm:$0xf]
        %v4700 = vld [vmem:[#allocation5 + $0x128] sm:$0xf]
        %v4701 = vld [vmem:[#allocation5 + $0x12c] sm:$0xf]
        %v4702 = vld [vmem:[#allocation5 + $0x130] sm:$0xf]
        %v4703 = vld [vmem:[#allocation5 + $0x134] sm:$0xf]
        %v4704 = vld [vmem:[#allocation5 + $0x138] sm:$0xf]
        %v4705 = vld [vmem:[#allocation5 + $0x13c] sm:$0xf]
        %v4706 = vld [vmem:[#allocation5 + $0x140] sm:$0xf]
        %v4707 = vld [vmem:[#allocation5 + $0x144] sm:$0xf]
        %v4708 = vld [vmem:[#allocation5 + $0x148] sm:$0xf]
        %v4709 = vld [vmem:[#allocation5 + $0x14c] sm:$0xf]
        %v4710 = vld [vmem:[#allocation5 + $0x150] sm:$0xf]
        %v4711 = vld [vmem:[#allocation5 + $0x154] sm:$0xf]
        %v4712 = vld [vmem:[#allocation5 + $0x158] sm:$0xf]
        %v4713 = vld [vmem:[#allocation5 + $0x15c] sm:$0xf]
        %v4714 = vld [vmem:[#allocation5 + $0x160] sm:$0xf]
        %v4715 = vld [vmem:[#allocation5 + $0x164] sm:$0xf]
        %v4716 = vld [vmem:[#allocation5 + $0x168] sm:$0xf]
        %v4717 = vld [vmem:[#allocation5 + $0x16c] sm:$0xf]
        %v4718 = vld [vmem:[#allocation5 + $0x170] sm:$0xf]
        %v4719 = vld [vmem:[#allocation5 + $0x174] sm:$0xf]
        %v4720 = vld [vmem:[#allocation5 + $0x178] sm:$0xf]
        %v4721 = vld [vmem:[#allocation5 + $0x17c] sm:$0xf]
        %v4722 = vld [vmem:[#allocation5 + $0x180] sm:$0xf]
        %v4723 = vld [vmem:[#allocation5 + $0x184] sm:$0xf]
        %v4724 = vld [vmem:[#allocation5 + $0x188] sm:$0xf]
        %v4725 = vld [vmem:[#allocation5 + $0x18c] sm:$0xf]
        %v4726 = vld [vmem:[#allocation5 + $0x190] sm:$0xf]
        %v4727 = vld [vmem:[#allocation5 + $0x194] sm:$0xf]
        %v4728 = vld [vmem:[#allocation5 + $0x198] sm:$0xf]
        %v4729 = vld [vmem:[#allocation5 + $0x19c] sm:$0xf]
        %v4730 = vld [vmem:[#allocation5 + $0x1a0] sm:$0xf]
        %v4731 = vld [vmem:[#allocation5 + $0x1a4] sm:$0xf]
        %v4732 = vld [vmem:[#allocation5 + $0x1a8] sm:$0xf]
        %v4733 = vld [vmem:[#allocation5 + $0x1ac] sm:$0xf]
        %v4734 = vld [vmem:[#allocation5 + $0x1b0] sm:$0xf]
        %v4735 = vld [vmem:[#allocation5 + $0x1b4] sm:$0xf]
        %v4736 = vld [vmem:[#allocation5 + $0x1b8] sm:$0xf]
        %v4737 = vld [vmem:[#allocation5 + $0x1bc] sm:$0xf]
        %v4738 = vld [vmem:[#allocation5 + $0x1c0] sm:$0xf]
        %v4739 = vld [vmem:[#allocation5 + $0x1c4] sm:$0xf]
        %v4740 = vld [vmem:[#allocation5 + $0x1c8] sm:$0xf]
        %v4741 = vld [vmem:[#allocation5 + $0x1cc] sm:$0xf]
        %v4742 = vld [vmem:[#allocation5 + $0x1d0] sm:$0xf]
        %v4743 = vld [vmem:[#allocation5 + $0x1d4] sm:$0xf]
        %v4744 = vld [vmem:[#allocation5 + $0x1d8] sm:$0xf]
        %v4745 = vld [vmem:[#allocation5 + $0x1dc] sm:$0xf]
        %v4746 = vld [vmem:[#allocation5 + $0x1e0] sm:$0xf]
        %v4747 = vld [vmem:[#allocation5 + $0x1e4] sm:$0xf]
        %v4748 = vld [vmem:[#allocation5 + $0x1e8] sm:$0xf]
        %v4749 = vld [vmem:[#allocation5 + $0x1ec] sm:$0xf]
        %v4750 = vld [vmem:[#allocation5 + $0x1f0] sm:$0xf]
        %v4751 = vld [vmem:[#allocation5 + $0x1f4] sm:$0xf]
        %v4752 = vld [vmem:[#allocation5 + $0x1f8] sm:$0xf]
        %v4753 = vld [vmem:[#allocation5 + $0x1fc] sm:$0xf]
        %v4754 = vld [vmem:[%s6] sm:$0x1]
        %v4756 = vlaneseq
        %v4757 = vshrl.u32 %v4756, 7
        %v4758 = vsub.s32 0, %v4757
        %v4759 = vrot.slane %v4754, %v4758
        %v4889 = vunpack.c.l.b16 %v4626
        %v4890 = vunpack.c.l.b16 %v4627
        %v4891 = vunpack.c.l.b16 %v4628
        %v4892 = vunpack.c.l.b16 %v4629
        %v4893 = vunpack.c.l.b16 %v4630
        %v4894 = vunpack.c.l.b16 %v4631
        %v4895 = vunpack.c.l.b16 %v4632
        %v4896 = vunpack.c.l.b16 %v4633
        %v4897 = vunpack.c.l.b16 %v4634
        %v4898 = vunpack.c.l.b16 %v4635
        %v4899 = vunpack.c.l.b16 %v4636
        %v4900 = vunpack.c.l.b16 %v4637
        %v4901 = vunpack.c.l.b16 %v4638
        %v4902 = vunpack.c.l.b16 %v4639
        %v4903 = vunpack.c.l.b16 %v4640
        %v4904 = vunpack.c.l.b16 %v4641
        %v4905 = vunpack.c.l.b16 %v4642
        %v4906 = vunpack.c.l.b16 %v4643
        %v4907 = vunpack.c.l.b16 %v4644
        %v4908 = vunpack.c.l.b16 %v4645
        %v4909 = vunpack.c.l.b16 %v4646
        %v4910 = vunpack.c.l.b16 %v4647
        %v4911 = vunpack.c.l.b16 %v4648
        %v4912 = vunpack.c.l.b16 %v4649
        %v4913 = vunpack.c.l.b16 %v4650
        %v4914 = vunpack.c.l.b16 %v4651
        %v4915 = vunpack.c.l.b16 %v4652
        %v4916 = vunpack.c.l.b16 %v4653
        %v4917 = vunpack.c.l.b16 %v4654
        %v4918 = vunpack.c.l.b16 %v4655
        %v4919 = vunpack.c.l.b16 %v4656
        %v4920 = vunpack.c.l.b16 %v4657
        %v4921 = vunpack.c.l.b16 %v4658
        %v4922 = vunpack.c.l.b16 %v4659
        %v4923 = vunpack.c.l.b16 %v4660
        %v4924 = vunpack.c.l.b16 %v4661
        %v4925 = vunpack.c.l.b16 %v4662
        %v4926 = vunpack.c.l.b16 %v4663
        %v4927 = vunpack.c.l.b16 %v4664
        %v4928 = vunpack.c.l.b16 %v4665
        %v4929 = vunpack.c.l.b16 %v4666
        %v4930 = vunpack.c.l.b16 %v4667
        %v4931 = vunpack.c.l.b16 %v4668
        %v4932 = vunpack.c.l.b16 %v4669
        %v4933 = vunpack.c.l.b16 %v4670
        %v4934 = vunpack.c.l.b16 %v4671
        %v4935 = vunpack.c.l.b16 %v4672
        %v4936 = vunpack.c.l.b16 %v4673
        %v4937 = vunpack.c.l.b16 %v4674
        %v4938 = vunpack.c.l.b16 %v4675
        %v4939 = vunpack.c.l.b16 %v4676
        %v4940 = vunpack.c.l.b16 %v4677
        %v4941 = vunpack.c.l.b16 %v4678
        %v4942 = vunpack.c.l.b16 %v4679
        %v4943 = vunpack.c.l.b16 %v4680
        %v4944 = vunpack.c.l.b16 %v4681
        %v4945 = vunpack.c.l.b16 %v4682
        %v4946 = vunpack.c.l.b16 %v4683
        %v4947 = vunpack.c.l.b16 %v4684
        %v4948 = vunpack.c.l.b16 %v4685
        %v4949 = vunpack.c.l.b16 %v4686
        %v4950 = vunpack.c.l.b16 %v4687
        %v4951 = vunpack.c.l.b16 %v4688
        %v4952 = vunpack.c.l.b16 %v4689
        %v4953 = vunpack.c.l.b16 %v4690
        %v4954 = vunpack.c.l.b16 %v4691
        %v4955 = vunpack.c.l.b16 %v4692
        %v4956 = vunpack.c.l.b16 %v4693
        %v4957 = vunpack.c.l.b16 %v4694
        %v4958 = vunpack.c.l.b16 %v4695
        %v4959 = vunpack.c.l.b16 %v4696
        %v4960 = vunpack.c.l.b16 %v4697
        %v4961 = vunpack.c.l.b16 %v4698
        %v4962 = vunpack.c.l.b16 %v4699
        %v4963 = vunpack.c.l.b16 %v4700
        %v4964 = vunpack.c.l.b16 %v4701
        %v4965 = vunpack.c.l.b16 %v4702
        %v4966 = vunpack.c.l.b16 %v4703
        %v4967 = vunpack.c.l.b16 %v4704
        %v4968 = vunpack.c.l.b16 %v4705
        %v4969 = vunpack.c.l.b16 %v4706
        %v4970 = vunpack.c.l.b16 %v4707
        %v4971 = vunpack.c.l.b16 %v4708
        %v4972 = vunpack.c.l.b16 %v4709
        %v4973 = vunpack.c.l.b16 %v4710
        %v4974 = vunpack.c.l.b16 %v4711
        %v4975 = vunpack.c.l.b16 %v4712
        %v4976 = vunpack.c.l.b16 %v4713
        %v4977 = vunpack.c.l.b16 %v4714
        %v4978 = vunpack.c.l.b16 %v4715
        %v4979 = vunpack.c.l.b16 %v4716
        %v4980 = vunpack.c.l.b16 %v4717
        %v4981 = vunpack.c.l.b16 %v4718
        %v4982 = vunpack.c.l.b16 %v4719
        %v4983 = vunpack.c.l.b16 %v4720
        %v4984 = vunpack.c.l.b16 %v4721
        %v4985 = vunpack.c.l.b16 %v4722
        %v4986 = vunpack.c.l.b16 %v4723
        %v4987 = vunpack.c.l.b16 %v4724
        %v4988 = vunpack.c.l.b16 %v4725
        %v4989 = vunpack.c.l.b16 %v4726
        %v4990 = vunpack.c.l.b16 %v4727
        %v4991 = vunpack.c.l.b16 %v4728
        %v4992 = vunpack.c.l.b16 %v4729
        %v4993 = vunpack.c.l.b16 %v4730
        %v4994 = vunpack.c.l.b16 %v4731
        %v4995 = vunpack.c.l.b16 %v4732
        %v4996 = vunpack.c.l.b16 %v4733
        %v4997 = vunpack.c.l.b16 %v4734
        %v4998 = vunpack.c.l.b16 %v4735
        %v4999 = vunpack.c.l.b16 %v4736
        %v5000 = vunpack.c.l.b16 %v4737
        %v5001 = vunpack.c.l.b16 %v4738
        %v5002 = vunpack.c.l.b16 %v4739
        %v5003 = vunpack.c.l.b16 %v4740
        %v5004 = vunpack.c.l.b16 %v4741
        %v5005 = vunpack.c.l.b16 %v4742
        %v5006 = vunpack.c.l.b16 %v4743
        %v5007 = vunpack.c.l.b16 %v4744
        %v5008 = vunpack.c.l.b16 %v4745
        %v5009 = vunpack.c.l.b16 %v4746
        %v5010 = vunpack.c.l.b16 %v4747
        %v5011 = vunpack.c.l.b16 %v4748
        %v5012 = vunpack.c.l.b16 %v4749
        %v5013 = vunpack.c.l.b16 %v4750
        %v5014 = vunpack.c.l.b16 %v4751
        %v5015 = vunpack.c.l.b16 %v4752
        %v5016 = vunpack.c.l.b16 %v4753
        %v5017 = vpack.c.b16 %v4890, %v4889
        %v5018 = vpack.c.b16 %v4892, %v4891
        %v5019 = vpack.c.b16 %v4894, %v4893
        %v5020 = vpack.c.b16 %v4896, %v4895
        %v5021 = vpack.c.b16 %v4898, %v4897
        %v5022 = vpack.c.b16 %v4900, %v4899
        %v5023 = vpack.c.b16 %v4902, %v4901
        %v5024 = vpack.c.b16 %v4904, %v4903
        %v5025 = vpack.c.b16 %v4906, %v4905
        %v5026 = vpack.c.b16 %v4908, %v4907
        %v5027 = vpack.c.b16 %v4910, %v4909
        %v5028 = vpack.c.b16 %v4912, %v4911
        %v5029 = vpack.c.b16 %v4914, %v4913
        %v5030 = vpack.c.b16 %v4916, %v4915
        %v5031 = vpack.c.b16 %v4918, %v4917
        %v5032 = vpack.c.b16 %v4920, %v4919
        %v5033 = vpack.c.b16 %v4922, %v4921
        %v5034 = vpack.c.b16 %v4924, %v4923
        %v5035 = vpack.c.b16 %v4926, %v4925
        %v5036 = vpack.c.b16 %v4928, %v4927
        %v5037 = vpack.c.b16 %v4930, %v4929
        %v5038 = vpack.c.b16 %v4932, %v4931
        %v5039 = vpack.c.b16 %v4934, %v4933
        %v5040 = vpack.c.b16 %v4936, %v4935
        %v5041 = vpack.c.b16 %v4938, %v4937
        %v5042 = vpack.c.b16 %v4940, %v4939
        %v5043 = vpack.c.b16 %v4942, %v4941
        %v5044 = vpack.c.b16 %v4944, %v4943
        %v5045 = vpack.c.b16 %v4946, %v4945
        %v5046 = vpack.c.b16 %v4948, %v4947
        %v5047 = vpack.c.b16 %v4950, %v4949
        %v5048 = vpack.c.b16 %v4952, %v4951
        %v5049 = vpack.c.b16 %v4954, %v4953
        %v5050 = vpack.c.b16 %v4956, %v4955
        %v5051 = vpack.c.b16 %v4958, %v4957
        %v5052 = vpack.c.b16 %v4960, %v4959
        %v5053 = vpack.c.b16 %v4962, %v4961
        %v5054 = vpack.c.b16 %v4964, %v4963
        %v5055 = vpack.c.b16 %v4966, %v4965
        %v5056 = vpack.c.b16 %v4968, %v4967
        %v5057 = vpack.c.b16 %v4970, %v4969
        %v5058 = vpack.c.b16 %v4972, %v4971
        %v5059 = vpack.c.b16 %v4974, %v4973
        %v5060 = vpack.c.b16 %v4976, %v4975
        %v5061 = vpack.c.b16 %v4978, %v4977
        %v5062 = vpack.c.b16 %v4980, %v4979
        %v5063 = vpack.c.b16 %v4982, %v4981
        %v5064 = vpack.c.b16 %v4984, %v4983
        %v5065 = vpack.c.b16 %v4986, %v4985
        %v5066 = vpack.c.b16 %v4988, %v4987
        %v5067 = vpack.c.b16 %v4990, %v4989
        %v5068 = vpack.c.b16 %v4992, %v4991
        %v5069 = vpack.c.b16 %v4994, %v4993
        %v5070 = vpack.c.b16 %v4996, %v4995
        %v5071 = vpack.c.b16 %v4998, %v4997
        %v5072 = vpack.c.b16 %v5000, %v4999
        %v5073 = vpack.c.b16 %v5002, %v5001
        %v5074 = vpack.c.b16 %v5004, %v5003
        %v5075 = vpack.c.b16 %v5006, %v5005
        %v5076 = vpack.c.b16 %v5008, %v5007
        %v5077 = vpack.c.b16 %v5010, %v5009
        %v5078 = vpack.c.b16 %v5012, %v5011
        %v5079 = vpack.c.b16 %v5014, %v5013
        %v5080 = vpack.c.b16 %v5016, %v5015
        %5145 = vmatprep.subr.bf16.mxu0 0
        %5146 = vmatpush1.bf16.msra.mxu0 %v5024
        %5147 = vmatprep.subr.bf16.mxu0 0
        %5148 = vmatpush1.bf16.msra.mxu0 %v5023
        %5149 = vmatprep.subr.bf16.mxu0 0
        %5150 = vmatpush1.bf16.msra.mxu0 %v5022
        %5151 = vmatprep.subr.bf16.mxu0 0
        %5152 = vmatpush1.bf16.msra.mxu0 %v5021
        %5153 = vmatprep.subr.bf16.mxu0 0
        %5154 = vmatpush1.bf16.msra.mxu0 %v5020
        %5155 = vmatprep.subr.bf16.mxu0 0
        %5156 = vmatpush1.bf16.msra.mxu0 %v5019
        %5157 = vmatprep.subr.bf16.mxu0 0
        %5158 = vmatpush1.bf16.msra.mxu0 %v5018
        %5159 = vmatprep.subr.bf16.mxu0 0
        %5160 = vmatpush1.bf16.msra.mxu0 %v5017
        %5161 = vmatprep.subr.bf16.mxu0 0
        %5162 = vmatpush2.bf16.msra.mxu0 %v5032
        %5163 = vmatprep.subr.bf16.mxu0 0
        %5164 = vmatpush2.bf16.msra.mxu0 %v5031
        %5165 = vmatprep.subr.bf16.mxu0 0
        %5166 = vmatpush2.bf16.msra.mxu0 %v5030
        %5167 = vmatprep.subr.bf16.mxu0 0
        %5168 = vmatpush2.bf16.msra.mxu0 %v5029
        %5169 = vmatprep.subr.bf16.mxu0 0
        %5170 = vmatpush2.bf16.msra.mxu0 %v5028
        %5171 = vmatprep.subr.bf16.mxu0 0
        %5172 = vmatpush2.bf16.msra.mxu0 %v5027
        %5173 = vmatprep.subr.bf16.mxu0 0
        %5174 = vmatpush2.bf16.msra.mxu0 %v5026
        %5175 = vmatprep.subr.bf16.mxu0 0
        %5176 = vmatpush2.bf16.msra.mxu0 %v5025
        %5177 = vmatprep.mubr.bf16.mxu0 %v4499
        %5178 = vmatmul.mubr.bf16.gmra.mxu0 %v4498
        %v5179 = vpop.f32.mrf.mxu0
        %v5180 = vadd.f32 %v4759, %v5179
        %v5181 = vpop.f32.mrf.mxu0
        %v5182 = vpop.f32.mrf.mxu0
        %v5183 = vadd.f32 %v4759, %v5182
        %v5184 = vpop.f32.mrf.mxu0
        %5185 = vmatprep.mubr.bf16.mxu0 %v4507
        %5186 = vmatmul.mubr.bf16.gmra.mxu0 %v4506
        %v5187 = vpop.f32.mrf.mxu0
        %v5188 = vadd.f32 %v4759, %v5187
        %v5189 = vpop.f32.mrf.mxu0
        %v5190 = vpop.f32.mrf.mxu0
        %v5191 = vadd.f32 %v4759, %v5190
        %v5192 = vpop.f32.mrf.mxu0
        %5193 = vmatprep.mubr.bf16.mxu0 %v4515
        %5194 = vmatmul.mubr.bf16.gmra.mxu0 %v4514
        %v5195 = vpop.f32.mrf.mxu0
        %v5196 = vadd.f32 %v4759, %v5195
        %v5197 = vpop.f32.mrf.mxu0
        %v5198 = vpop.f32.mrf.mxu0
        %v5199 = vadd.f32 %v4759, %v5198
        %v5200 = vpop.f32.mrf.mxu0
        %5201 = vmatprep.mubr.bf16.mxu0 %v4523
        %5202 = vmatmul.mubr.bf16.gmra.mxu0 %v4522
        %v5203 = vpop.f32.mrf.mxu0
        %v5204 = vadd.f32 %v4759, %v5203
        %v5205 = vpop.f32.mrf.mxu0
        %v5206 = vpop.f32.mrf.mxu0
        %v5207 = vadd.f32 %v4759, %v5206
        %v5208 = vpop.f32.mrf.mxu0
        %5209 = vmatprep.mubr.bf16.mxu0 %v4531
        %5210 = vmatmul.mubr.bf16.gmra.mxu0 %v4530
        %v5211 = vpop.f32.mrf.mxu0
        %v5212 = vadd.f32 %v4759, %v5211
        %v5213 = vpop.f32.mrf.mxu0
        %v5214 = vpop.f32.mrf.mxu0
        %v5215 = vadd.f32 %v4759, %v5214
        %v5216 = vpop.f32.mrf.mxu0
        %5217 = vmatprep.mubr.bf16.mxu0 %v4539
        %5218 = vmatmul.mubr.bf16.gmra.mxu0 %v4538
        %v5219 = vpop.f32.mrf.mxu0
        %v5220 = vadd.f32 %v4759, %v5219
        %v5221 = vpop.f32.mrf.mxu0
        %v5222 = vpop.f32.mrf.mxu0
        %v5223 = vadd.f32 %v4759, %v5222
        %v5224 = vpop.f32.mrf.mxu0
        %5225 = vmatprep.mubr.bf16.mxu0 %v4547
        %5226 = vmatmul.mubr.bf16.gmra.mxu0 %v4546
        %v5227 = vpop.f32.mrf.mxu0
        %v5228 = vadd.f32 %v4759, %v5227
        %v5229 = vpop.f32.mrf.mxu0
        %v5230 = vpop.f32.mrf.mxu0
        %v5231 = vadd.f32 %v4759, %v5230
        %v5232 = vpop.f32.mrf.mxu0
        %5233 = vmatprep.mubr.bf16.mxu0 %v4555
        %5234 = vmatmul.mubr.bf16.gmra.mxu0 %v4554
        %v5235 = vpop.f32.mrf.mxu0
        %v5236 = vadd.f32 %v4759, %v5235
        %v5237 = vpop.f32.mrf.mxu0
        %v5238 = vpop.f32.mrf.mxu0
        %v5239 = vadd.f32 %v4759, %v5238
        %v5240 = vpop.f32.mrf.mxu0
        %5241 = vmatprep.mubr.bf16.mxu0 %v4563
        %5242 = vmatmul.mubr.bf16.gmra.mxu0 %v4562
        %v5243 = vpop.f32.mrf.mxu0
        %v5244 = vadd.f32 %v4759, %v5243
        %v5245 = vpop.f32.mrf.mxu0
        %v5246 = vpop.f32.mrf.mxu0
        %v5247 = vadd.f32 %v4759, %v5246
        %v5248 = vpop.f32.mrf.mxu0
        %5249 = vmatprep.mubr.bf16.mxu0 %v4571
        %5250 = vmatmul.mubr.bf16.gmra.mxu0 %v4570
        %v5251 = vpop.f32.mrf.mxu0
        %v5252 = vadd.f32 %v4759, %v5251
        %v5253 = vpop.f32.mrf.mxu0
        %v5254 = vpop.f32.mrf.mxu0
        %v5255 = vadd.f32 %v4759, %v5254
        %v5256 = vpop.f32.mrf.mxu0
        %5257 = vmatprep.mubr.bf16.mxu0 %v4579
        %5258 = vmatmul.mubr.bf16.gmra.mxu0 %v4578
        %v5259 = vpop.f32.mrf.mxu0
        %v5260 = vadd.f32 %v4759, %v5259
        %v5261 = vpop.f32.mrf.mxu0
        %v5262 = vpop.f32.mrf.mxu0
        %v5263 = vadd.f32 %v4759, %v5262
        %v5264 = vpop.f32.mrf.mxu0
        %5265 = vmatprep.mubr.bf16.mxu0 %v4587
        %5266 = vmatmul.mubr.bf16.gmra.mxu0 %v4586
        %v5267 = vpop.f32.mrf.mxu0
        %v5268 = vadd.f32 %v4759, %v5267
        %v5269 = vpop.f32.mrf.mxu0
        %v5270 = vpop.f32.mrf.mxu0
        %v5271 = vadd.f32 %v4759, %v5270
        %v5272 = vpop.f32.mrf.mxu0
        %5273 = vmatprep.mubr.bf16.mxu0 %v4595
        %5274 = vmatmul.mubr.bf16.gmra.mxu0 %v4594
        %v5275 = vpop.f32.mrf.mxu0
        %v5276 = vadd.f32 %v4759, %v5275
        %v5277 = vpop.f32.mrf.mxu0
        %v5278 = vpop.f32.mrf.mxu0
        %v5279 = vadd.f32 %v4759, %v5278
        %v5280 = vpop.f32.mrf.mxu0
        %5281 = vmatprep.mubr.bf16.mxu0 %v4603
        %5282 = vmatmul.mubr.bf16.gmra.mxu0 %v4602
        %v5283 = vpop.f32.mrf.mxu0
        %v5284 = vadd.f32 %v4759, %v5283
        %v5285 = vpop.f32.mrf.mxu0
        %v5286 = vpop.f32.mrf.mxu0
        %v5287 = vadd.f32 %v4759, %v5286
        %v5288 = vpop.f32.mrf.mxu0
        %5289 = vmatprep.mubr.bf16.mxu0 %v4611
        %5290 = vmatmul.mubr.bf16.gmra.mxu0 %v4610
        %v5291 = vpop.f32.mrf.mxu0
        %v5292 = vadd.f32 %v4759, %v5291
        %v5293 = vpop.f32.mrf.mxu0
        %v5294 = vpop.f32.mrf.mxu0
        %v5295 = vadd.f32 %v4759, %v5294
        %v5296 = vpop.f32.mrf.mxu0
        %5297 = vmatprep.mubr.bf16.mxu0 %v4619
        %5298 = vmatmul.mubr.bf16.gmra.mxu0 %v4618
        %v5299 = vpop.f32.mrf.mxu0
        %v5300 = vadd.f32 %v4759, %v5299
        %v5301 = vpop.f32.mrf.mxu0
        %v5302 = vpop.f32.mrf.mxu0
        %v5303 = vadd.f32 %v4759, %v5302
        %v5304 = vpop.f32.mrf.mxu0
        %5305 = vdwg.mxu0
        %5306 = vmatprep.subr.bf16.mxu0 0
        %5307 = vmatpush1.bf16.msra.mxu0 %v5040
        %5308 = vmatprep.subr.bf16.mxu0 0
        %5309 = vmatpush1.bf16.msra.mxu0 %v5039
        %5310 = vmatprep.subr.bf16.mxu0 0
        %5311 = vmatpush1.bf16.msra.mxu0 %v5038
        %5312 = vmatprep.subr.bf16.mxu0 0
        %5313 = vmatpush1.bf16.msra.mxu0 %v5037
        %5314 = vmatprep.subr.bf16.mxu0 0
        %5315 = vmatpush1.bf16.msra.mxu0 %v5036
        %5316 = vmatprep.subr.bf16.mxu0 0
        %5317 = vmatpush1.bf16.msra.mxu0 %v5035
        %5318 = vmatprep.subr.bf16.mxu0 0
        %5319 = vmatpush1.bf16.msra.mxu0 %v5034
        %5320 = vmatprep.subr.bf16.mxu0 0
        %5321 = vmatpush1.bf16.msra.mxu0 %v5033
        %5322 = vmatprep.subr.bf16.mxu0 0
        %5323 = vmatpush2.bf16.msra.mxu0 %v5048
        %5324 = vmatprep.subr.bf16.mxu0 0
        %5325 = vmatpush2.bf16.msra.mxu0 %v5047
        %5326 = vmatprep.subr.bf16.mxu0 0
        %5327 = vmatpush2.bf16.msra.mxu0 %v5046
        %5328 = vmatprep.subr.bf16.mxu0 0
        %5329 = vmatpush2.bf16.msra.mxu0 %v5045
        %5330 = vmatprep.subr.bf16.mxu0 0
        %5331 = vmatpush2.bf16.msra.mxu0 %v5044
        %5332 = vmatprep.subr.bf16.mxu0 0
        %5333 = vmatpush2.bf16.msra.mxu0 %v5043
        %5334 = vmatprep.subr.bf16.mxu0 0
        %5335 = vmatpush2.bf16.msra.mxu0 %v5042
        %5336 = vmatprep.subr.bf16.mxu0 0
        %5337 = vmatpush2.bf16.msra.mxu0 %v5041
        %5338 = vmatprep.mubr.bf16.mxu0 %v4501
        %5339 = vmatmul.mubr.bf16.gmra.mxu0 %v4500
        %v5340 = vpop.f32.mrf.mxu0
        %v5341 = vadd.f32 %v5180, %v5340
        %v5342 = vpop.f32.mrf.mxu0
        %v5343 = vpop.f32.mrf.mxu0
        %v5344 = vadd.f32 %v5183, %v5343
        %v5345 = vpop.f32.mrf.mxu0
        %5346 = vmatprep.mubr.bf16.mxu0 %v4509
        %5347 = vmatmul.mubr.bf16.gmra.mxu0 %v4508
        %v5348 = vpop.f32.mrf.mxu0
        %v5349 = vadd.f32 %v5188, %v5348
        %v5350 = vpop.f32.mrf.mxu0
        %v5351 = vpop.f32.mrf.mxu0
        %v5352 = vadd.f32 %v5191, %v5351
        %v5353 = vpop.f32.mrf.mxu0
        %5354 = vmatprep.mubr.bf16.mxu0 %v4517
        %5355 = vmatmul.mubr.bf16.gmra.mxu0 %v4516
        %v5356 = vpop.f32.mrf.mxu0
        %v5357 = vadd.f32 %v5196, %v5356
        %v5358 = vpop.f32.mrf.mxu0
        %v5359 = vpop.f32.mrf.mxu0
        %v5360 = vadd.f32 %v5199, %v5359
        %v5361 = vpop.f32.mrf.mxu0
        %5362 = vmatprep.mubr.bf16.mxu0 %v4525
        %5363 = vmatmul.mubr.bf16.gmra.mxu0 %v4524
        %v5364 = vpop.f32.mrf.mxu0
        %v5365 = vadd.f32 %v5204, %v5364
        %v5366 = vpop.f32.mrf.mxu0
        %v5367 = vpop.f32.mrf.mxu0
        %v5368 = vadd.f32 %v5207, %v5367
        %v5369 = vpop.f32.mrf.mxu0
        %5370 = vmatprep.mubr.bf16.mxu0 %v4533
        %5371 = vmatmul.mubr.bf16.gmra.mxu0 %v4532
        %v5372 = vpop.f32.mrf.mxu0
        %v5373 = vadd.f32 %v5212, %v5372
        %v5374 = vpop.f32.mrf.mxu0
        %v5375 = vpop.f32.mrf.mxu0
        %v5376 = vadd.f32 %v5215, %v5375
        %v5377 = vpop.f32.mrf.mxu0
        %5378 = vmatprep.mubr.bf16.mxu0 %v4541
        %5379 = vmatmul.mubr.bf16.gmra.mxu0 %v4540
        %v5380 = vpop.f32.mrf.mxu0
        %v5381 = vadd.f32 %v5220, %v5380
        %v5382 = vpop.f32.mrf.mxu0
        %v5383 = vpop.f32.mrf.mxu0
        %v5384 = vadd.f32 %v5223, %v5383
        %v5385 = vpop.f32.mrf.mxu0
        %5386 = vmatprep.mubr.bf16.mxu0 %v4549
        %5387 = vmatmul.mubr.bf16.gmra.mxu0 %v4548
        %v5388 = vpop.f32.mrf.mxu0
        %v5389 = vadd.f32 %v5228, %v5388
        %v5390 = vpop.f32.mrf.mxu0
        %v5391 = vpop.f32.mrf.mxu0
        %v5392 = vadd.f32 %v5231, %v5391
        %v5393 = vpop.f32.mrf.mxu0
        %5394 = vmatprep.mubr.bf16.mxu0 %v4557
        %5395 = vmatmul.mubr.bf16.gmra.mxu0 %v4556
        %v5396 = vpop.f32.mrf.mxu0
        %v5397 = vadd.f32 %v5236, %v5396
        %v5398 = vpop.f32.mrf.mxu0
        %v5399 = vpop.f32.mrf.mxu0
        %v5400 = vadd.f32 %v5239, %v5399
        %v5401 = vpop.f32.mrf.mxu0
        %5402 = vmatprep.mubr.bf16.mxu0 %v4565
        %5403 = vmatmul.mubr.bf16.gmra.mxu0 %v4564
        %v5404 = vpop.f32.mrf.mxu0
        %v5405 = vadd.f32 %v5244, %v5404
        %v5406 = vpop.f32.mrf.mxu0
        %v5407 = vpop.f32.mrf.mxu0
        %v5408 = vadd.f32 %v5247, %v5407
        %v5409 = vpop.f32.mrf.mxu0
        %5410 = vmatprep.mubr.bf16.mxu0 %v4573
        %5411 = vmatmul.mubr.bf16.gmra.mxu0 %v4572
        %v5412 = vpop.f32.mrf.mxu0
        %v5413 = vadd.f32 %v5252, %v5412
        %v5414 = vpop.f32.mrf.mxu0
        %v5415 = vpop.f32.mrf.mxu0
        %v5416 = vadd.f32 %v5255, %v5415
        %v5417 = vpop.f32.mrf.mxu0
        %5418 = vmatprep.mubr.bf16.mxu0 %v4581
        %5419 = vmatmul.mubr.bf16.gmra.mxu0 %v4580
        %v5420 = vpop.f32.mrf.mxu0
        %v5421 = vadd.f32 %v5260, %v5420
        %v5422 = vpop.f32.mrf.mxu0
        %v5423 = vpop.f32.mrf.mxu0
        %v5424 = vadd.f32 %v5263, %v5423
        %v5425 = vpop.f32.mrf.mxu0
        %5426 = vmatprep.mubr.bf16.mxu0 %v4589
        %5427 = vmatmul.mubr.bf16.gmra.mxu0 %v4588
        %v5428 = vpop.f32.mrf.mxu0
        %v5429 = vadd.f32 %v5268, %v5428
        %v5430 = vpop.f32.mrf.mxu0
        %v5431 = vpop.f32.mrf.mxu0
        %v5432 = vadd.f32 %v5271, %v5431
        %v5433 = vpop.f32.mrf.mxu0
        %5434 = vmatprep.mubr.bf16.mxu0 %v4597
        %5435 = vmatmul.mubr.bf16.gmra.mxu0 %v4596
        %v5436 = vpop.f32.mrf.mxu0
        %v5437 = vadd.f32 %v5276, %v5436
        %v5438 = vpop.f32.mrf.mxu0
        %v5439 = vpop.f32.mrf.mxu0
        %v5440 = vadd.f32 %v5279, %v5439
        %v5441 = vpop.f32.mrf.mxu0
        %5442 = vmatprep.mubr.bf16.mxu0 %v4605
        %5443 = vmatmul.mubr.bf16.gmra.mxu0 %v4604
        %v5444 = vpop.f32.mrf.mxu0
        %v5445 = vadd.f32 %v5284, %v5444
        %v5446 = vpop.f32.mrf.mxu0
        %v5447 = vpop.f32.mrf.mxu0
        %v5448 = vadd.f32 %v5287, %v5447
        %v5449 = vpop.f32.mrf.mxu0
        %5450 = vmatprep.mubr.bf16.mxu0 %v4613
        %5451 = vmatmul.mubr.bf16.gmra.mxu0 %v4612
        %v5452 = vpop.f32.mrf.mxu0
        %v5453 = vadd.f32 %v5292, %v5452
        %v5454 = vpop.f32.mrf.mxu0
        %v5455 = vpop.f32.mrf.mxu0
        %v5456 = vadd.f32 %v5295, %v5455
        %v5457 = vpop.f32.mrf.mxu0
        %5458 = vmatprep.mubr.bf16.mxu0 %v4621
        %5459 = vmatmul.mubr.bf16.gmra.mxu0 %v4620
        %v5460 = vpop.f32.mrf.mxu0
        %v5461 = vadd.f32 %v5300, %v5460
        %v5462 = vpop.f32.mrf.mxu0
        %v5463 = vpop.f32.mrf.mxu0
        %v5464 = vadd.f32 %v5303, %v5463
        %v5465 = vpop.f32.mrf.mxu0
        %5466 = vdwg.mxu0
        %5467 = vmatprep.subr.bf16.mxu0 0
        %5468 = vmatpush1.bf16.msra.mxu0 %v5056
        %5469 = vmatprep.subr.bf16.mxu0 0
        %5470 = vmatpush1.bf16.msra.mxu0 %v5055
        %5471 = vmatprep.subr.bf16.mxu0 0
        %5472 = vmatpush1.bf16.msra.mxu0 %v5054
        %5473 = vmatprep.subr.bf16.mxu0 0
        %5474 = vmatpush1.bf16.msra.mxu0 %v5053
        %5475 = vmatprep.subr.bf16.mxu0 0
        %5476 = vmatpush1.bf16.msra.mxu0 %v5052
        %5477 = vmatprep.subr.bf16.mxu0 0
        %5478 = vmatpush1.bf16.msra.mxu0 %v5051
        %5479 = vmatprep.subr.bf16.mxu0 0
        %5480 = vmatpush1.bf16.msra.mxu0 %v5050
        %5481 = vmatprep.subr.bf16.mxu0 0
        %5482 = vmatpush1.bf16.msra.mxu0 %v5049
        %5483 = vmatprep.subr.bf16.mxu0 0
        %5484 = vmatpush2.bf16.msra.mxu0 %v5064
        %5485 = vmatprep.subr.bf16.mxu0 0
        %5486 = vmatpush2.bf16.msra.mxu0 %v5063
        %5487 = vmatprep.subr.bf16.mxu0 0
        %5488 = vmatpush2.bf16.msra.mxu0 %v5062
        %5489 = vmatprep.subr.bf16.mxu0 0
        %5490 = vmatpush2.bf16.msra.mxu0 %v5061
        %5491 = vmatprep.subr.bf16.mxu0 0
        %5492 = vmatpush2.bf16.msra.mxu0 %v5060
        %5493 = vmatprep.subr.bf16.mxu0 0
        %5494 = vmatpush2.bf16.msra.mxu0 %v5059
        %5495 = vmatprep.subr.bf16.mxu0 0
        %5496 = vmatpush2.bf16.msra.mxu0 %v5058
        %5497 = vmatprep.subr.bf16.mxu0 0
        %5498 = vmatpush2.bf16.msra.mxu0 %v5057
        %5499 = vmatprep.mubr.bf16.mxu0 %v4503
        %5500 = vmatmul.mubr.bf16.gmra.mxu0 %v4502
        %v5501 = vpop.f32.mrf.mxu0
        %v5502 = vadd.f32 %v5341, %v5501
        %v5503 = vpop.f32.mrf.mxu0
        %v5504 = vpop.f32.mrf.mxu0
        %v5505 = vadd.f32 %v5344, %v5504
        %v5506 = vpop.f32.mrf.mxu0
        %5507 = vmatprep.mubr.bf16.mxu0 %v4511
        %5508 = vmatmul.mubr.bf16.gmra.mxu0 %v4510
        %v5509 = vpop.f32.mrf.mxu0
        %v5510 = vadd.f32 %v5349, %v5509
        %v5511 = vpop.f32.mrf.mxu0
        %v5512 = vpop.f32.mrf.mxu0
        %v5513 = vadd.f32 %v5352, %v5512
        %v5514 = vpop.f32.mrf.mxu0
        %5515 = vmatprep.mubr.bf16.mxu0 %v4519
        %5516 = vmatmul.mubr.bf16.gmra.mxu0 %v4518
        %v5517 = vpop.f32.mrf.mxu0
        %v5518 = vadd.f32 %v5357, %v5517
        %v5519 = vpop.f32.mrf.mxu0
        %v5520 = vpop.f32.mrf.mxu0
        %v5521 = vadd.f32 %v5360, %v5520
        %v5522 = vpop.f32.mrf.mxu0
        %5523 = vmatprep.mubr.bf16.mxu0 %v4527
        %5524 = vmatmul.mubr.bf16.gmra.mxu0 %v4526
        %v5525 = vpop.f32.mrf.mxu0
        %v5526 = vadd.f32 %v5365, %v5525
        %v5527 = vpop.f32.mrf.mxu0
        %v5528 = vpop.f32.mrf.mxu0
        %v5529 = vadd.f32 %v5368, %v5528
        %v5530 = vpop.f32.mrf.mxu0
        %5531 = vmatprep.mubr.bf16.mxu0 %v4535
        %5532 = vmatmul.mubr.bf16.gmra.mxu0 %v4534
        %v5533 = vpop.f32.mrf.mxu0
        %v5534 = vadd.f32 %v5373, %v5533
        %v5535 = vpop.f32.mrf.mxu0
        %v5536 = vpop.f32.mrf.mxu0
        %v5537 = vadd.f32 %v5376, %v5536
        %v5538 = vpop.f32.mrf.mxu0
        %5539 = vmatprep.mubr.bf16.mxu0 %v4543
        %5540 = vmatmul.mubr.bf16.gmra.mxu0 %v4542
        %v5541 = vpop.f32.mrf.mxu0
        %v5542 = vadd.f32 %v5381, %v5541
        %v5543 = vpop.f32.mrf.mxu0
        %v5544 = vpop.f32.mrf.mxu0
        %v5545 = vadd.f32 %v5384, %v5544
        %v5546 = vpop.f32.mrf.mxu0
        %5547 = vmatprep.mubr.bf16.mxu0 %v4551
        %5548 = vmatmul.mubr.bf16.gmra.mxu0 %v4550
        %v5549 = vpop.f32.mrf.mxu0
        %v5550 = vadd.f32 %v5389, %v5549
        %v5551 = vpop.f32.mrf.mxu0
        %v5552 = vpop.f32.mrf.mxu0
        %v5553 = vadd.f32 %v5392, %v5552
        %v5554 = vpop.f32.mrf.mxu0
        %5555 = vmatprep.mubr.bf16.mxu0 %v4559
        %5556 = vmatmul.mubr.bf16.gmra.mxu0 %v4558
        %v5557 = vpop.f32.mrf.mxu0
        %v5558 = vadd.f32 %v5397, %v5557
        %v5559 = vpop.f32.mrf.mxu0
        %v5560 = vpop.f32.mrf.mxu0
        %v5561 = vadd.f32 %v5400, %v5560
        %v5562 = vpop.f32.mrf.mxu0
        %5563 = vmatprep.mubr.bf16.mxu0 %v4567
        %5564 = vmatmul.mubr.bf16.gmra.mxu0 %v4566
        %v5565 = vpop.f32.mrf.mxu0
        %v5566 = vadd.f32 %v5405, %v5565
        %v5567 = vpop.f32.mrf.mxu0
        %v5568 = vpop.f32.mrf.mxu0
        %v5569 = vadd.f32 %v5408, %v5568
        %v5570 = vpop.f32.mrf.mxu0
        %5571 = vmatprep.mubr.bf16.mxu0 %v4575
        %5572 = vmatmul.mubr.bf16.gmra.mxu0 %v4574
        %v5573 = vpop.f32.mrf.mxu0
        %v5574 = vadd.f32 %v5413, %v5573
        %v5575 = vpop.f32.mrf.mxu0
        %v5576 = vpop.f32.mrf.mxu0
        %v5577 = vadd.f32 %v5416, %v5576
        %v5578 = vpop.f32.mrf.mxu0
        %5579 = vmatprep.mubr.bf16.mxu0 %v4583
        %5580 = vmatmul.mubr.bf16.gmra.mxu0 %v4582
        %v5581 = vpop.f32.mrf.mxu0
        %v5582 = vadd.f32 %v5421, %v5581
        %v5583 = vpop.f32.mrf.mxu0
        %v5584 = vpop.f32.mrf.mxu0
        %v5585 = vadd.f32 %v5424, %v5584
        %v5586 = vpop.f32.mrf.mxu0
        %5587 = vmatprep.mubr.bf16.mxu0 %v4591
        %5588 = vmatmul.mubr.bf16.gmra.mxu0 %v4590
        %v5589 = vpop.f32.mrf.mxu0
        %v5590 = vadd.f32 %v5429, %v5589
        %v5591 = vpop.f32.mrf.mxu0
        %v5592 = vpop.f32.mrf.mxu0
        %v5593 = vadd.f32 %v5432, %v5592
        %v5594 = vpop.f32.mrf.mxu0
        %5595 = vmatprep.mubr.bf16.mxu0 %v4599
        %5596 = vmatmul.mubr.bf16.gmra.mxu0 %v4598
        %v5597 = vpop.f32.mrf.mxu0
        %v5598 = vadd.f32 %v5437, %v5597
        %v5599 = vpop.f32.mrf.mxu0
        %v5600 = vpop.f32.mrf.mxu0
        %v5601 = vadd.f32 %v5440, %v5600
        %v5602 = vpop.f32.mrf.mxu0
        %5603 = vmatprep.mubr.bf16.mxu0 %v4607
        %5604 = vmatmul.mubr.bf16.gmra.mxu0 %v4606
        %v5605 = vpop.f32.mrf.mxu0
        %v5606 = vadd.f32 %v5445, %v5605
        %v5607 = vpop.f32.mrf.mxu0
        %v5608 = vpop.f32.mrf.mxu0
        %v5609 = vadd.f32 %v5448, %v5608
        %v5610 = vpop.f32.mrf.mxu0
        %5611 = vmatprep.mubr.bf16.mxu0 %v4615
        %5612 = vmatmul.mubr.bf16.gmra.mxu0 %v4614
        %v5613 = vpop.f32.mrf.mxu0
        %v5614 = vadd.f32 %v5453, %v5613
        %v5615 = vpop.f32.mrf.mxu0
        %v5616 = vpop.f32.mrf.mxu0
        %v5617 = vadd.f32 %v5456, %v5616
        %v5618 = vpop.f32.mrf.mxu0
        %5619 = vmatprep.mubr.bf16.mxu0 %v4623
        %5620 = vmatmul.mubr.bf16.gmra.mxu0 %v4622
        %v5621 = vpop.f32.mrf.mxu0
        %v5622 = vadd.f32 %v5461, %v5621
        %v5623 = vpop.f32.mrf.mxu0
        %v5624 = vpop.f32.mrf.mxu0
        %v5625 = vadd.f32 %v5464, %v5624
        %v5626 = vpop.f32.mrf.mxu0
        %5627 = vdwg.mxu0
        %5628 = vmatprep.subr.bf16.mxu0 0
        %5629 = vmatpush1.bf16.msra.mxu0 %v5072
        %5630 = vmatprep.subr.bf16.mxu0 0
        %5631 = vmatpush1.bf16.msra.mxu0 %v5071
        %5632 = vmatprep.subr.bf16.mxu0 0
        %5633 = vmatpush1.bf16.msra.mxu0 %v5070
        %5634 = vmatprep.subr.bf16.mxu0 0
        %5635 = vmatpush1.bf16.msra.mxu0 %v5069
        %5636 = vmatprep.subr.bf16.mxu0 0
        %5637 = vmatpush1.bf16.msra.mxu0 %v5068
        %5638 = vmatprep.subr.bf16.mxu0 0
        %5639 = vmatpush1.bf16.msra.mxu0 %v5067
        %5640 = vmatprep.subr.bf16.mxu0 0
        %5641 = vmatpush1.bf16.msra.mxu0 %v5066
        %5642 = vmatprep.subr.bf16.mxu0 0
        %5643 = vmatpush1.bf16.msra.mxu0 %v5065
        %5644 = vmatprep.subr.bf16.mxu0 0
        %5645 = vmatpush2.bf16.msra.mxu0 %v5080
        %5646 = vmatprep.subr.bf16.mxu0 0
        %5647 = vmatpush2.bf16.msra.mxu0 %v5079
        %5648 = vmatprep.subr.bf16.mxu0 0
        %5649 = vmatpush2.bf16.msra.mxu0 %v5078
        %5650 = vmatprep.subr.bf16.mxu0 0
        %5651 = vmatpush2.bf16.msra.mxu0 %v5077
        %5652 = vmatprep.subr.bf16.mxu0 0
        %5653 = vmatpush2.bf16.msra.mxu0 %v5076
        %5654 = vmatprep.subr.bf16.mxu0 0
        %5655 = vmatpush2.bf16.msra.mxu0 %v5075
        %5656 = vmatprep.subr.bf16.mxu0 0
        %5657 = vmatpush2.bf16.msra.mxu0 %v5074
        %5658 = vmatprep.subr.bf16.mxu0 0
        %5659 = vmatpush2.bf16.msra.mxu0 %v5073
        %5660 = vmatprep.mubr.bf16.mxu0 %v4505
        %5661 = vmatmul.mubr.bf16.gmra.mxu0 %v4504
        %v5662 = vpop.f32.mrf.mxu0
        %v5663 = vadd.f32 %v5502, %v5662
        %v5664 = vpop.f32.mrf.mxu0
        %v5665 = vpop.f32.mrf.mxu0
        %v5666 = vadd.f32 %v5505, %v5665
        %v5667 = vpop.f32.mrf.mxu0
        %5668 = vmatprep.mubr.bf16.mxu0 %v4513
        %5669 = vmatmul.mubr.bf16.gmra.mxu0 %v4512
        %v5670 = vpop.f32.mrf.mxu0
        %v5671 = vadd.f32 %v5510, %v5670
        %v5672 = vpop.f32.mrf.mxu0
        %v5673 = vpop.f32.mrf.mxu0
        %v5674 = vadd.f32 %v5513, %v5673
        %v5675 = vpop.f32.mrf.mxu0
        %5676 = vmatprep.mubr.bf16.mxu0 %v4521
        %5677 = vmatmul.mubr.bf16.gmra.mxu0 %v4520
        %v5678 = vpop.f32.mrf.mxu0
        %v5679 = vadd.f32 %v5518, %v5678
        %v5680 = vpop.f32.mrf.mxu0
        %v5681 = vpop.f32.mrf.mxu0
        %v5682 = vadd.f32 %v5521, %v5681
        %v5683 = vpop.f32.mrf.mxu0
        %5684 = vmatprep.mubr.bf16.mxu0 %v4529
        %5685 = vmatmul.mubr.bf16.gmra.mxu0 %v4528
        %v5686 = vpop.f32.mrf.mxu0
        %v5687 = vadd.f32 %v5526, %v5686
        %v5688 = vpop.f32.mrf.mxu0
        %v5689 = vpop.f32.mrf.mxu0
        %v5690 = vadd.f32 %v5529, %v5689
        %v5691 = vpop.f32.mrf.mxu0
        %5692 = vmatprep.mubr.bf16.mxu0 %v4537
        %5693 = vmatmul.mubr.bf16.gmra.mxu0 %v4536
        %v5694 = vpop.f32.mrf.mxu0
        %v5695 = vadd.f32 %v5534, %v5694
        %v5696 = vpop.f32.mrf.mxu0
        %v5697 = vpop.f32.mrf.mxu0
        %v5698 = vadd.f32 %v5537, %v5697
        %v5699 = vpop.f32.mrf.mxu0
        %5700 = vmatprep.mubr.bf16.mxu0 %v4545
        %5701 = vmatmul.mubr.bf16.gmra.mxu0 %v4544
        %v5702 = vpop.f32.mrf.mxu0
        %v5703 = vadd.f32 %v5542, %v5702
        %v5704 = vpop.f32.mrf.mxu0
        %v5705 = vpop.f32.mrf.mxu0
        %v5706 = vadd.f32 %v5545, %v5705
        %v5707 = vpop.f32.mrf.mxu0
        %5708 = vmatprep.mubr.bf16.mxu0 %v4553
        %5709 = vmatmul.mubr.bf16.gmra.mxu0 %v4552
        %v5710 = vpop.f32.mrf.mxu0
        %v5711 = vadd.f32 %v5550, %v5710
        %v5712 = vpop.f32.mrf.mxu0
        %v5713 = vpop.f32.mrf.mxu0
        %v5714 = vadd.f32 %v5553, %v5713
        %v5715 = vpop.f32.mrf.mxu0
        %5716 = vmatprep.mubr.bf16.mxu0 %v4561
        %5717 = vmatmul.mubr.bf16.gmra.mxu0 %v4560
        %v5718 = vpop.f32.mrf.mxu0
        %v5719 = vadd.f32 %v5558, %v5718
        %v5720 = vpop.f32.mrf.mxu0
        %v5721 = vpop.f32.mrf.mxu0
        %v5722 = vadd.f32 %v5561, %v5721
        %v5723 = vpop.f32.mrf.mxu0
        %5724 = vmatprep.mubr.bf16.mxu0 %v4569
        %5725 = vmatmul.mubr.bf16.gmra.mxu0 %v4568
        %v5726 = vpop.f32.mrf.mxu0
        %v5727 = vadd.f32 %v5566, %v5726
        %v5728 = vpop.f32.mrf.mxu0
        %v5729 = vpop.f32.mrf.mxu0
        %v5730 = vadd.f32 %v5569, %v5729
        %v5731 = vpop.f32.mrf.mxu0
        %5732 = vmatprep.mubr.bf16.mxu0 %v4577
        %5733 = vmatmul.mubr.bf16.gmra.mxu0 %v4576
        %v5734 = vpop.f32.mrf.mxu0
        %v5735 = vadd.f32 %v5574, %v5734
        %v5736 = vpop.f32.mrf.mxu0
        %v5737 = vpop.f32.mrf.mxu0
        %v5738 = vadd.f32 %v5577, %v5737
        %v5739 = vpop.f32.mrf.mxu0
        %5740 = vmatprep.mubr.bf16.mxu0 %v4585
        %5741 = vmatmul.mubr.bf16.gmra.mxu0 %v4584
        %v5742 = vpop.f32.mrf.mxu0
        %v5743 = vadd.f32 %v5582, %v5742
        %v5744 = vpop.f32.mrf.mxu0
        %v5745 = vpop.f32.mrf.mxu0
        %v5746 = vadd.f32 %v5585, %v5745
        %v5747 = vpop.f32.mrf.mxu0
        %5748 = vmatprep.mubr.bf16.mxu0 %v4593
        %5749 = vmatmul.mubr.bf16.gmra.mxu0 %v4592
        %v5750 = vpop.f32.mrf.mxu0
        %v5751 = vadd.f32 %v5590, %v5750
        %v5752 = vpop.f32.mrf.mxu0
        %v5753 = vpop.f32.mrf.mxu0
        %v5754 = vadd.f32 %v5593, %v5753
        %v5755 = vpop.f32.mrf.mxu0
        %5756 = vmatprep.mubr.bf16.mxu0 %v4601
        %5757 = vmatmul.mubr.bf16.gmra.mxu0 %v4600
        %v5758 = vpop.f32.mrf.mxu0
        %v5759 = vadd.f32 %v5598, %v5758
        %v5760 = vpop.f32.mrf.mxu0
        %v5761 = vpop.f32.mrf.mxu0
        %v5762 = vadd.f32 %v5601, %v5761
        %v5763 = vpop.f32.mrf.mxu0
        %5764 = vmatprep.mubr.bf16.mxu0 %v4609
        %5765 = vmatmul.mubr.bf16.gmra.mxu0 %v4608
        %v5766 = vpop.f32.mrf.mxu0
        %v5767 = vadd.f32 %v5606, %v5766
        %v5768 = vpop.f32.mrf.mxu0
        %v5769 = vpop.f32.mrf.mxu0
        %v5770 = vadd.f32 %v5609, %v5769
        %v5771 = vpop.f32.mrf.mxu0
        %5772 = vmatprep.mubr.bf16.mxu0 %v4617
        %5773 = vmatmul.mubr.bf16.gmra.mxu0 %v4616
        %v5774 = vpop.f32.mrf.mxu0
        %v5775 = vadd.f32 %v5614, %v5774
        %v5776 = vpop.f32.mrf.mxu0
        %v5777 = vpop.f32.mrf.mxu0
        %v5778 = vadd.f32 %v5617, %v5777
        %v5779 = vpop.f32.mrf.mxu0
        %5780 = vmatprep.mubr.bf16.mxu0 %v4625
        %5781 = vmatmul.mubr.bf16.gmra.mxu0 %v4624
        %v5782 = vpop.f32.mrf.mxu0
        %v5783 = vadd.f32 %v5622, %v5782
        %v5784 = vpop.f32.mrf.mxu0
        %v5785 = vpop.f32.mrf.mxu0
        %v5786 = vadd.f32 %v5625, %v5785
        %v5787 = vpop.f32.mrf.mxu0
        %5788 = vdwg.mxu0
        %5789 = vmax.xlane.f32.xlu0 %v5663
        %v5790 = vpop.xlane.xlu0 %5789
        %5791 = vmax.xlane.f32.xlu0 %v5666
        %v5792 = vpop.xlane.xlu0 %5791
        %5793 = vmax.xlane.f32.xlu0 %v5671
        %v5794 = vpop.xlane.xlu0 %5793
        %5795 = vmax.xlane.f32.xlu0 %v5674
        %v5796 = vpop.xlane.xlu0 %5795
        %5797 = vmax.xlane.f32.xlu0 %v5679
        %v5798 = vpop.xlane.xlu0 %5797
        %5799 = vmax.xlane.f32.xlu0 %v5682
        %v5800 = vpop.xlane.xlu0 %5799
        %5801 = vmax.xlane.f32.xlu0 %v5687
        %v5802 = vpop.xlane.xlu0 %5801
        %5803 = vmax.xlane.f32.xlu0 %v5690
        %v5804 = vpop.xlane.xlu0 %5803
        %5805 = vmax.xlane.f32.xlu0 %v5695
        %v5806 = vpop.xlane.xlu0 %5805
        %5807 = vmax.xlane.f32.xlu0 %v5698
        %v5808 = vpop.xlane.xlu0 %5807
        %5809 = vmax.xlane.f32.xlu0 %v5703
        %v5810 = vpop.xlane.xlu0 %5809
        %5811 = vmax.xlane.f32.xlu0 %v5706
        %v5812 = vpop.xlane.xlu0 %5811
        %5813 = vmax.xlane.f32.xlu0 %v5711
        %v5814 = vpop.xlane.xlu0 %5813
        %5815 = vmax.xlane.f32.xlu0 %v5714
        %v5816 = vpop.xlane.xlu0 %5815
        %5817 = vmax.xlane.f32.xlu0 %v5719
        %v5818 = vpop.xlane.xlu0 %5817
        %5819 = vmax.xlane.f32.xlu0 %v5722
        %v5820 = vpop.xlane.xlu0 %5819
        %5821 = vmax.xlane.f32.xlu0 %v5727
        %v5822 = vpop.xlane.xlu0 %5821
        %5823 = vmax.xlane.f32.xlu0 %v5730
        %v5824 = vpop.xlane.xlu0 %5823
        %5825 = vmax.xlane.f32.xlu0 %v5735
        %v5826 = vpop.xlane.xlu0 %5825
        %5827 = vmax.xlane.f32.xlu0 %v5738
        %v5828 = vpop.xlane.xlu0 %5827
        %5829 = vmax.xlane.f32.xlu0 %v5743
        %v5830 = vpop.xlane.xlu0 %5829
        %5831 = vmax.xlane.f32.xlu0 %v5746
        %v5832 = vpop.xlane.xlu0 %5831
        %5833 = vmax.xlane.f32.xlu0 %v5751
        %v5834 = vpop.xlane.xlu0 %5833
        %5835 = vmax.xlane.f32.xlu0 %v5754
        %v5836 = vpop.xlane.xlu0 %5835
        %5837 = vmax.xlane.f32.xlu0 %v5759
        %v5838 = vpop.xlane.xlu0 %5837
        %5839 = vmax.xlane.f32.xlu0 %v5762
        %v5840 = vpop.xlane.xlu0 %5839
        %5841 = vmax.xlane.f32.xlu0 %v5767
        %v5842 = vpop.xlane.xlu0 %5841
        %5843 = vmax.xlane.f32.xlu0 %v5770
        %v5844 = vpop.xlane.xlu0 %5843
        %5845 = vmax.xlane.f32.xlu0 %v5775
        %v5846 = vpop.xlane.xlu0 %5845
        %5847 = vmax.xlane.f32.xlu0 %v5778
        %v5848 = vpop.xlane.xlu0 %5847
        %5849 = vmax.xlane.f32.xlu0 %v5783
        %v5850 = vpop.xlane.xlu0 %5849
        %5851 = vmax.xlane.f32.xlu0 %v5786
        %v5852 = vpop.xlane.xlu0 %5851
        %v5853 = vsub.f32 %v5663, %v5790
        %v5854 = vsub.f32 %v5666, %v5792
        %v5855 = vsub.f32 %v5671, %v5794
        %v5856 = vsub.f32 %v5674, %v5796
        %v5857 = vsub.f32 %v5679, %v5798
        %v5858 = vsub.f32 %v5682, %v5800
        %v5859 = vsub.f32 %v5687, %v5802
        %v5860 = vsub.f32 %v5690, %v5804
        %v5861 = vsub.f32 %v5695, %v5806
        %v5862 = vsub.f32 %v5698, %v5808
        %v5863 = vsub.f32 %v5703, %v5810
        %v5864 = vsub.f32 %v5706, %v5812
        %v5865 = vsub.f32 %v5711, %v5814
        %v5866 = vsub.f32 %v5714, %v5816
        %v5867 = vsub.f32 %v5719, %v5818
        %v5868 = vsub.f32 %v5722, %v5820
        %v5869 = vsub.f32 %v5727, %v5822
        %v5870 = vsub.f32 %v5730, %v5824
        %v5871 = vsub.f32 %v5735, %v5826
        %v5872 = vsub.f32 %v5738, %v5828
        %v5873 = vsub.f32 %v5743, %v5830
        %v5874 = vsub.f32 %v5746, %v5832
        %v5875 = vsub.f32 %v5751, %v5834
        %v5876 = vsub.f32 %v5754, %v5836
        %v5877 = vsub.f32 %v5759, %v5838
        %v5878 = vsub.f32 %v5762, %v5840
        %v5879 = vsub.f32 %v5767, %v5842
        %v5880 = vsub.f32 %v5770, %v5844
        %v5881 = vsub.f32 %v5775, %v5846
        %v5882 = vsub.f32 %v5778, %v5848
        %v5883 = vsub.f32 %v5783, %v5850
        %v5884 = vsub.f32 %v5786, %v5852
        %v5885 = vmul.f32 %v5853, 1.442695
        %v5886 = vpow.pop %v5885
        %v5887 = vmul.f32 %v5854, 1.442695
        %v5888 = vpow.pop %v5887
        %v5889 = vmul.f32 %v5855, 1.442695
        %v5890 = vpow.pop %v5889
        %v5891 = vmul.f32 %v5856, 1.442695
        %v5892 = vpow.pop %v5891
        %v5893 = vmul.f32 %v5857, 1.442695
        %v5894 = vpow.pop %v5893
        %v5895 = vmul.f32 %v5858, 1.442695
        %v5896 = vpow.pop %v5895
        %v5897 = vmul.f32 %v5859, 1.442695
        %v5898 = vpow.pop %v5897
        %v5899 = vmul.f32 %v5860, 1.442695
        %v5900 = vpow.pop %v5899
        %v5901 = vmul.f32 %v5861, 1.442695
        %v5902 = vpow.pop %v5901
        %v5903 = vmul.f32 %v5862, 1.442695
        %v5904 = vpow.pop %v5903
        %v5905 = vmul.f32 %v5863, 1.442695
        %v5906 = vpow.pop %v5905
        %v5907 = vmul.f32 %v5864, 1.442695
        %v5908 = vpow.pop %v5907
        %v5909 = vmul.f32 %v5865, 1.442695
        %v5910 = vpow.pop %v5909
        %v5911 = vmul.f32 %v5866, 1.442695
        %v5912 = vpow.pop %v5911
        %v5913 = vmul.f32 %v5867, 1.442695
        %v5914 = vpow.pop %v5913
        %v5915 = vmul.f32 %v5868, 1.442695
        %v5916 = vpow.pop %v5915
        %v5917 = vmul.f32 %v5869, 1.442695
        %v5918 = vpow.pop %v5917
        %v5919 = vmul.f32 %v5870, 1.442695
        %v5920 = vpow.pop %v5919
        %v5921 = vmul.f32 %v5871, 1.442695
        %v5922 = vpow.pop %v5921
        %v5923 = vmul.f32 %v5872, 1.442695
        %v5924 = vpow.pop %v5923
        %v5925 = vmul.f32 %v5873, 1.442695
        %v5926 = vpow.pop %v5925
        %v5927 = vmul.f32 %v5874, 1.442695
        %v5928 = vpow.pop %v5927
        %v5929 = vmul.f32 %v5875, 1.442695
        %v5930 = vpow.pop %v5929
        %v5931 = vmul.f32 %v5876, 1.442695
        %v5932 = vpow.pop %v5931
        %v5933 = vmul.f32 %v5877, 1.442695
        %v5934 = vpow.pop %v5933
        %v5935 = vmul.f32 %v5878, 1.442695
        %v5936 = vpow.pop %v5935
        %v5937 = vmul.f32 %v5879, 1.442695
        %v5938 = vpow.pop %v5937
        %v5939 = vmul.f32 %v5880, 1.442695
        %v5940 = vpow.pop %v5939
        %v5941 = vmul.f32 %v5881, 1.442695
        %v5942 = vpow.pop %v5941
        %v5943 = vmul.f32 %v5882, 1.442695
        %v5944 = vpow.pop %v5943
        %v5945 = vmul.f32 %v5883, 1.442695
        %v5946 = vpow.pop %v5945
        %v5947 = vmul.f32 %v5884, 1.442695
        %v5948 = vpow.pop %v5947
        %5949 = vadd.xlane.f32.xlu0 %v5886
        %v5950 = vpop.xlane.xlu0 %5949
        %5951 = vadd.xlane.f32.xlu0 %v5888
        %v5952 = vpop.xlane.xlu0 %5951
        %5953 = vadd.xlane.f32.xlu0 %v5890
        %v5954 = vpop.xlane.xlu0 %5953
        %5955 = vadd.xlane.f32.xlu0 %v5892
        %v5956 = vpop.xlane.xlu0 %5955
        %5957 = vadd.xlane.f32.xlu0 %v5894
        %v5958 = vpop.xlane.xlu0 %5957
        %5959 = vadd.xlane.f32.xlu0 %v5896
        %v5960 = vpop.xlane.xlu0 %5959
        %5961 = vadd.xlane.f32.xlu0 %v5898
        %v5962 = vpop.xlane.xlu0 %5961
        %5963 = vadd.xlane.f32.xlu0 %v5900
        %v5964 = vpop.xlane.xlu0 %5963
        %5965 = vadd.xlane.f32.xlu0 %v5902
        %v5966 = vpop.xlane.xlu0 %5965
        %5967 = vadd.xlane.f32.xlu0 %v5904
        %v5968 = vpop.xlane.xlu0 %5967
        %5969 = vadd.xlane.f32.xlu0 %v5906
        %v5970 = vpop.xlane.xlu0 %5969
        %5971 = vadd.xlane.f32.xlu0 %v5908
        %v5972 = vpop.xlane.xlu0 %5971
        %5973 = vadd.xlane.f32.xlu0 %v5910
        %v5974 = vpop.xlane.xlu0 %5973
        %5975 = vadd.xlane.f32.xlu0 %v5912
        %v5976 = vpop.xlane.xlu0 %5975
        %5977 = vadd.xlane.f32.xlu0 %v5914
        %v5978 = vpop.xlane.xlu0 %5977
        %5979 = vadd.xlane.f32.xlu0 %v5916
        %v5980 = vpop.xlane.xlu0 %5979
        %5981 = vadd.xlane.f32.xlu0 %v5918
        %v5982 = vpop.xlane.xlu0 %5981
        %5983 = vadd.xlane.f32.xlu0 %v5920
        %v5984 = vpop.xlane.xlu0 %5983
        %5985 = vadd.xlane.f32.xlu0 %v5922
        %v5986 = vpop.xlane.xlu0 %5985
        %5987 = vadd.xlane.f32.xlu0 %v5924
        %v5988 = vpop.xlane.xlu0 %5987
        %5989 = vadd.xlane.f32.xlu0 %v5926
        %v5990 = vpop.xlane.xlu0 %5989
        %5991 = vadd.xlane.f32.xlu0 %v5928
        %v5992 = vpop.xlane.xlu0 %5991
        %5993 = vadd.xlane.f32.xlu0 %v5930
        %v5994 = vpop.xlane.xlu0 %5993
        %5995 = vadd.xlane.f32.xlu0 %v5932
        %v5996 = vpop.xlane.xlu0 %5995
        %5997 = vadd.xlane.f32.xlu0 %v5934
        %v5998 = vpop.xlane.xlu0 %5997
        %5999 = vadd.xlane.f32.xlu0 %v5936
        %v6000 = vpop.xlane.xlu0 %5999
        %6001 = vadd.xlane.f32.xlu0 %v5938
        %v6002 = vpop.xlane.xlu0 %6001
        %6003 = vadd.xlane.f32.xlu0 %v5940
        %v6004 = vpop.xlane.xlu0 %6003
        %6005 = vadd.xlane.f32.xlu0 %v5942
        %v6006 = vpop.xlane.xlu0 %6005
        %6007 = vadd.xlane.f32.xlu0 %v5944
        %v6008 = vpop.xlane.xlu0 %6007
        %6009 = vadd.xlane.f32.xlu0 %v5946
        %v6010 = vpop.xlane.xlu0 %6009
        %6011 = vadd.xlane.f32.xlu0 %v5948
        %v6012 = vpop.xlane.xlu0 %6011
        %v6013 = vrcp.pop %v5950
        %v6014 = vmul.f32 %v5886, %v6013
        %v6015 = vrcp.pop %v5952
        %v6016 = vmul.f32 %v5888, %v6015
        %v6017 = vrcp.pop %v5954
        %v6018 = vmul.f32 %v5890, %v6017
        %v6019 = vrcp.pop %v5956
        %v6020 = vmul.f32 %v5892, %v6019
        %v6021 = vrcp.pop %v5958
        %v6022 = vmul.f32 %v5894, %v6021
        %v6023 = vrcp.pop %v5960
        %v6024 = vmul.f32 %v5896, %v6023
        %v6025 = vrcp.pop %v5962
        %v6026 = vmul.f32 %v5898, %v6025
        %v6027 = vrcp.pop %v5964
        %v6028 = vmul.f32 %v5900, %v6027
        %v6029 = vrcp.pop %v5966
        %v6030 = vmul.f32 %v5902, %v6029
        %v6031 = vrcp.pop %v5968
        %v6032 = vmul.f32 %v5904, %v6031
        %v6033 = vrcp.pop %v5970
        %v6034 = vmul.f32 %v5906, %v6033
        %v6035 = vrcp.pop %v5972
        %v6036 = vmul.f32 %v5908, %v6035
        %v6037 = vrcp.pop %v5974
        %v6038 = vmul.f32 %v5910, %v6037
        %v6039 = vrcp.pop %v5976
        %v6040 = vmul.f32 %v5912, %v6039
        %v6041 = vrcp.pop %v5978
        %v6042 = vmul.f32 %v5914, %v6041
        %v6043 = vrcp.pop %v5980
        %v6044 = vmul.f32 %v5916, %v6043
        %v6045 = vrcp.pop %v5982
        %v6046 = vmul.f32 %v5918, %v6045
        %v6047 = vrcp.pop %v5984
        %v6048 = vmul.f32 %v5920, %v6047
        %v6049 = vrcp.pop %v5986
        %v6050 = vmul.f32 %v5922, %v6049
        %v6051 = vrcp.pop %v5988
        %v6052 = vmul.f32 %v5924, %v6051
        %v6053 = vrcp.pop %v5990
        %v6054 = vmul.f32 %v5926, %v6053
        %v6055 = vrcp.pop %v5992
        %v6056 = vmul.f32 %v5928, %v6055
        %v6057 = vrcp.pop %v5994
        %v6058 = vmul.f32 %v5930, %v6057
        %v6059 = vrcp.pop %v5996
        %v6060 = vmul.f32 %v5932, %v6059
        %v6061 = vrcp.pop %v5998
        %v6062 = vmul.f32 %v5934, %v6061
        %v6063 = vrcp.pop %v6000
        %v6064 = vmul.f32 %v5936, %v6063
        %v6065 = vrcp.pop %v6002
        %v6066 = vmul.f32 %v5938, %v6065
        %v6067 = vrcp.pop %v6004
        %v6068 = vmul.f32 %v5940, %v6067
        %v6069 = vrcp.pop %v6006
        %v6070 = vmul.f32 %v5942, %v6069
        %v6071 = vrcp.pop %v6008
        %v6072 = vmul.f32 %v5944, %v6071
        %v6073 = vrcp.pop %v6010
        %v6074 = vmul.f32 %v5946, %v6073
        %v6075 = vrcp.pop %v6012
        %v6076 = vmul.f32 %v5948, %v6075
        %6077 = vst [vmem:[%s302] sm:$0xff] %v6014
        %6078 = vst [vmem:[%s302 + $0x8] sm:$0xff] %v6016
        %6079 = vst [vmem:[%s302 + $0x10] sm:$0xff] %v6018
        %6080 = vst [vmem:[%s302 + $0x18] sm:$0xff] %v6020
        %6081 = vst [vmem:[%s302 + $0x20] sm:$0xff] %v6022
        %6082 = vst [vmem:[%s302 + $0x28] sm:$0xff] %v6024
        %6083 = vst [vmem:[%s302 + $0x30] sm:$0xff] %v6026
        %6084 = vst [vmem:[%s302 + $0x38] sm:$0xff] %v6028
        %6085 = vst [vmem:[%s302 + $0x40] sm:$0xff] %v6030
        %6086 = vst [vmem:[%s302 + $0x48] sm:$0xff] %v6032
        %6087 = vst [vmem:[%s302 + $0x50] sm:$0xff] %v6034
        %6088 = vst [vmem:[%s302 + $0x58] sm:$0xff] %v6036
        %6089 = vst [vmem:[%s302 + $0x60] sm:$0xff] %v6038
        %6090 = vst [vmem:[%s302 + $0x68] sm:$0xff] %v6040
        %6091 = vst [vmem:[%s302 + $0x70] sm:$0xff] %v6042
        %6092 = vst [vmem:[%s302 + $0x78] sm:$0xff] %v6044
        %6093 = vst [vmem:[%s302 + $0x80] sm:$0xff] %v6046
        %6094 = vst [vmem:[%s302 + $0x88] sm:$0xff] %v6048
        %6095 = vst [vmem:[%s302 + $0x90] sm:$0xff] %v6050
        %6096 = vst [vmem:[%s302 + $0x98] sm:$0xff] %v6052
        %6097 = vst [vmem:[%s302 + $0xa0] sm:$0xff] %v6054
        %6098 = vst [vmem:[%s302 + $0xa8] sm:$0xff] %v6056
        %6099 = vst [vmem:[%s302 + $0xb0] sm:$0xff] %v6058
        %6100 = vst [vmem:[%s302 + $0xb8] sm:$0xff] %v6060
        %6101 = vst [vmem:[%s302 + $0xc0] sm:$0xff] %v6062
        %6102 = vst [vmem:[%s302 + $0xc8] sm:$0xff] %v6064
        %6103 = vst [vmem:[%s302 + $0xd0] sm:$0xff] %v6066
        %6104 = vst [vmem:[%s302 + $0xd8] sm:$0xff] %v6068
        %6105 = vst [vmem:[%s302 + $0xe0] sm:$0xff] %v6070
        %6106 = vst [vmem:[%s302 + $0xe8] sm:$0xff] %v6072
        %6107 = vst [vmem:[%s302 + $0xf0] sm:$0xff] %v6074
        %6108 = vst [vmem:[%s302 + $0xf8] sm:$0xff] %v6076
        %s6109 = sand.u32 %s183, 1
        %s6110 = scalar_lea.sflag [#allocation4], %s6109
        %s6111 = sand.u32 %s183, 1
        %s6112 = smul.addr %s6111, 256
        %s6113 = scalar_lea.vmem [#allocation7], %s6112
        // Predicated region
        $region57: #{tpu_custom_call.1} parent=47 // pred_check
          %p6114 = pneg %p193
        $region58: #{tpu_custom_call.1} parent=47 // pred_check_branch
          %6116 = sbr.rel (%p6114) target = $region60
        $region59: #{tpu_custom_call.1} parent=47 // pred_region
          %s6117 = smul.u32 32, %s23
          %s6119 = ssub.s32 4096, 4096
          %6120 = vsyncadd %s6110, %s6119
          %s6121 = smul.addr %s6117, 128
          %s6122 = scalar_lea.hbm %s7, %s6121
          %s6123 = sshll.u32 %s6113, 4
          %s6124 = int_to_ptr.vmem [resolvable:$true] %s6123
          %6129 = dma.vmem_to_hbm [thread:$0]  %s6124, 4096, %s6122, %s6110, 128, 128, 8
        $region60: #{tpu_custom_call.1} parent=47 // pred_fallthru
          _
      $region48: #{tpu_custom_call.1} parent=5 // pred_fallthru
        _
      %p6130 = scmp.le.s32.totalorder 2, %s18
      // Predicated region
      $region61: #{tpu_custom_call.1} parent=5 // pred_check
        %p6131 = pneg %p6130
      $region62: #{tpu_custom_call.1} parent=5 // pred_check_branch
        %6133 = sbr.rel (%p6131) target = $region64
      $region63: #{tpu_custom_call.1} parent=5 // pred_region
        %s6134 = ssub.s32 %s18, 2
        // Predicated region
        $region65: #{tpu_custom_call.1} parent=63 // pred_check
          %p6135 = pneg %p199
        $region66: #{tpu_custom_call.1} parent=63 // pred_check_branch
          %6137 = sbr.rel (%p6135) target = $region68
        $region67: #{tpu_custom_call.1} parent=63 // pred_region
          %s6138 = sand.u32 %s184, 1
          %s6139 = scalar_lea.sflag [#allocation4], %s6138
          %s6140 = sand.u32 %s184, 1
          %s6141 = smul.addr %s6140, 256
          %s6142 = scalar_lea.vmem [#allocation7], %s6141
          %6143 = dma.done %s6139, 4096
        $region68: #{tpu_custom_call.1} parent=63 // pred_fallthru
          _
      $region64: #{tpu_custom_call.1} parent=5 // pred_fallthru
        _
    $region6: #{tpu_custom_call.1} parent=1 // loop_footer
      %s22 = sadd.s32 1, %s18
    $region7: #{tpu_custom_call.1} parent=1 // loop_footer_branch
      %17 = sbr.rel target = $region3
    $region8: #{tpu_custom_call.1} parent=1 // loop_exit
      _
    %6144 = vsyncpa [#allocation3], 1
    %s6145 = scalar_lea.sflag [#allocation3], 1
    %6146 = vsyncpa %s6145, 1
    %6147 = vsyncpa [#allocation6], 1
    %6148 = vsyncpa [#allocation4], 1
    %s6149 = scalar_lea.sflag [#allocation4], 1
    %6150 = vsyncpa %s6149, 1

// kernel: tpu_custom_call.1
$region0: #{tpu_custom_call.1}
  #allocation0 [shape = 'u32[]', space=smem, size = 0x4, offset = 0x4, fixed_abs, tag = 'smem constant byte address 0x4 - core index']
  #allocation1 [shape = 'u32[144,128]{1,0:T(1,128)}', space=vmem, size = 0x12000, scoped, tag = 'internal scratch']
  %s0 = inlined_call_operand.vmem [shape: bf16[512,32], index: 0, kind: input, shape index: {}]
  %s1 = inlined_call_operand.vmem [shape: bf16[32,512], index: 1, kind: input, shape index: {}]
  %s2 = inlined_call_operand.vmem [shape: f32[1,512], index: 2, kind: input, shape index: {}]
  %s3 = inlined_call_operand.hbm [shape: bf16[512,1024], index: 3, kind: input, shape index: {}]
  %s4 = inlined_call_operand.vmem [shape: f32[1,1024], index: 4, kind: input, shape index: {}]
  %s5 = inlined_call_operand.hbm [shape: bf16[1024,128], index: 5, kind: input, shape index: {}]
  %s6 = inlined_call_operand.vmem [shape: f32[1,128], index: 6, kind: input, shape index: {}]
  %s7 = inlined_call_operand.hbm [shape: f32[512,128], index: 7, kind: output, shape index: {}]
  %s8 = sld [smem:[#allocation0]]
  $region69: #{tpu_custom_call.1} parent=0
    _
  %s10 = ssub.s32 1, %s8
  %s11 = scalar_select 0, %s10, %s8
  $region1: #{tpu_custom_call.1} parent=0
    #allocation2 [shape = 'u8[1048576]{0}', space=vmem, size = 0x100000, scoped, tag = 'input window, operand 3, single buffered']
    #allocation3 [shape = 's32[2]{0}', space=sflag, size = 0x8, scoped, tag = 'scoped memory for tpu_custom_call.1']
    #allocation4 [shape = 's32[2]{0}', space=sflag, size = 0x8, scoped, tag = 'scoped memory for tpu_custom_call.1']
    #allocation5 [shape = 'u8[262144]{0}', space=vmem, size = 0x40000, scoped, tag = 'input window, operand 5, single buffered']
    #allocation6 [shape = 's32[1]{0}', space=sflag, size = 0x4, scoped, tag = 'scoped memory for tpu_custom_call.1']
    #allocation7 [shape = 'u8[262144]{0}', space=vmem, size = 0x40000, scoped, tag = 'output window, operand 0']
    %12 = vsyncpa [#allocation3], 0
    %13 = vsyncpa [#allocation6], 0
    %14 = vsyncpa [#allocation4], 0
    %s15 = scalar_lea.sflag [#allocation4], 1
    %16 = vsyncpa %s15, 0
    loop: start=0, step=1, limit=4
    $region2: #{tpu_custom_call.1} parent=1 // loop_pre_header
      _
    $region3: #{tpu_custom_call.1} parent=1 // loop_header
      %s18 = sphi 0, %s22
      %p19 = scmp.ge.s32.totalorder %s18, 4
      %s28 = sphi 0, %s30
      %s31 = sphi 0, %s28
      %s32 = sphi 0, %s31
      %s48 = sphi 0, %s32
      %s52 = sphi 0, %s52
      %s54 = sphi 0, %s52
      %s55 = sphi 0, %s54
      %s69 = sphi 0, %s55
      %s73 = sphi 0, %s73
      %s75 = sphi 0, %s73
      %s76 = sphi 0, %s75
      %s90 = sphi 0, %s76
      %s94 = sphi 0, %s94
      %s96 = sphi 0, %s94
      %s97 = sphi 0, %s96
      %s111 = sphi 0, %s97
      %s115 = sphi 0, %s115
      %s117 = sphi 0, %s115
      %s118 = sphi 0, %s117
      %s132 = sphi 0, %s118
      %s136 = sphi 0, %s136
      %s138 = sphi 0, %s136
      %s139 = sphi 0, %s138
      %s153 = sphi 0, %s139
      %s157 = sphi 0, %s157
      %s159 = sphi 0, %s157
      %s160 = sphi 0, %s159
      %s174 = sphi 0, %s160
      %s180 = sphi 0, %s182
      %s183 = sphi 0, %s180
      %s184 = sphi 0, %s183
      %s200 = sphi 0, %s184
    $region4: #{tpu_custom_call.1} parent=1 // loop_header_branch
      %21 = sbr.rel (%p19) target = $region8
    $region5: #{tpu_custom_call.1} parent=1 // loop_body
      %s23 = ssub.s32 %s18, 1
      %s24 = ssub.s32 %s18, 2
      %s25 = sadd.s32 %s18, 1
      %s26 = ssub.s32 %s18, %s25
      %p27 = scmp.eq.s32.totalorder %s26, 0
      %s29 = sadd.s32 %s28, 1
      %s30 = scalar_select %p27, %s28, %s29
      %p33 = pneg %p27
      %p34 = scmp.eq.s32.totalorder %s18, 1
      %p35 = por %p33, %p34
      %p36 = scmp.ne.s32.totalorder %s28, %s31
      %p37 = scmp.eq.s32.totalorder %s18, 0
      %p38 = por %p36, %p37
      %p39 = scmp.ne.s32.totalorder %s28, %s31
      %p40 = scmp.eq.s32.totalorder %s23, 1
      %p41 = por %p39, %p40
      %p42 = scmp.ne.s32.totalorder %s31, %s32
      %p43 = scmp.eq.s32.totalorder %s23, 0
      %p44 = por %p42, %p43
      %p45 = scmp.ne.s32.totalorder %s31, %s32
      %p46 = scmp.eq.s32.totalorder %s24, 1
      %p47 = por %p45, %p46
      %p49 = scmp.ne.s32.totalorder %s32, %s48
      %p50 = scmp.eq.s32.totalorder %s24, 0
      %p51 = por %p49, %p50
      %s53 = sadd.s32 %s52, 1
      %p56 = scmp.eq.s32.totalorder %s18, 1
      %p57 = scmp.ne.s32.totalorder %s52, %s54
      %p58 = scmp.eq.s32.totalorder %s18, 0
      %p59 = por %p57, %p58
      %p60 = scmp.ne.s32.totalorder %s52, %s54
      %p61 = scmp.eq.s32.totalorder %s23, 1
      %p62 = por %p60, %p61
      %p63 = scmp.ne.s32.totalorder %s54, %s55
      %p64 = scmp.eq.s32.totalorder %s23, 0
      %p65 = por %p63, %p64
      %p66 = scmp.ne.s32.totalorder %s54, %s55
      %p67 = scmp.eq.s32.totalorder %s24, 1
      %p68 = por %p66, %p67
      %p70 = scmp.ne.s32.totalorder %s55, %s69
      %p71 = scmp.eq.s32.totalorder %s24, 0
      %p72 = por %p70, %p71
      %s74 = sadd.s32 %s73, 1
      %p77 = scmp.eq.s32.totalorder %s18, 1
      %p78 = scmp.ne.s32.totalorder %s73, %s75
      %p79 = scmp.eq.s32.totalorder %s18, 0
      %p80 = por %p78, %p79
      %p81 = scmp.ne.s32.totalorder %s73, %s75
      %p82 = scmp.eq.s32.totalorder %s23, 1
      %p83 = por %p81, %p82
      %p84 = scmp.ne.s32.totalorder %s75, %s76
      %p85 = scmp.eq.s32.totalorder %s23, 0
      %p86 = por %p84, %p85
      %p87 = scmp.ne.s32.totalorder %s75, %s76
      %p88 = scmp.eq.s32.totalorder %s24, 1
      %p89 = por %p87, %p88
      %p91 = scmp.ne.s32.totalorder %s76, %s90
      %p92 = scmp.eq.s32.totalorder %s24, 0
      %p93 = por %p91, %p92
      %s95 = sadd.s32 %s94, 1
      %p98 = scmp.eq.s32.totalorder %s18, 1
      %p99 = scmp.ne.s32.totalorder %s94, %s96
      %p100 = scmp.eq.s32.totalorder %s18, 0
      %p101 = por %p99, %p100
      %p102 = scmp.ne.s32.totalorder %s94, %s96
      %p103 = scmp.eq.s32.totalorder %s23, 1
      %p104 = por %p102, %p103
      %p105 = scmp.ne.s32.totalorder %s96, %s97
      %p106 = scmp.eq.s32.totalorder %s23, 0
      %p107 = por %p105, %p106
      %p108 = scmp.ne.s32.totalorder %s96, %s97
      %p109 = scmp.eq.s32.totalorder %s24, 1
      %p110 = por %p108, %p109
      %p112 = scmp.ne.s32.totalorder %s97, %s111
      %p113 = scmp.eq.s32.totalorder %s24, 0
      %p114 = por %p112, %p113
      %s116 = sadd.s32 %s115, 1
      %p119 = scmp.eq.s32.totalorder %s18, 1
      %p120 = scmp.ne.s32.totalorder %s115, %s117
      %p121 = scmp.eq.s32.totalorder %s18, 0
      %p122 = por %p120, %p121
      %p123 = scmp.ne.s32.totalorder %s115, %s117
      %p124 = scmp.eq.s32.totalorder %s23, 1
      %p125 = por %p123, %p124
      %p126 = scmp.ne.s32.totalorder %s117, %s118
      %p127 = scmp.eq.s32.totalorder %s23, 0
      %p128 = por %p126, %p127
      %p129 = scmp.ne.s32.totalorder %s117, %s118
      %p130 = scmp.eq.s32.totalorder %s24, 1
      %p131 = por %p129, %p130
      %p133 = scmp.ne.s32.totalorder %s118, %s132
      %p134 = scmp.eq.s32.totalorder %s24, 0
      %p135 = por %p133, %p134
      %s137 = sadd.s32 %s136, 1
      %p140 = scmp.eq.s32.totalorder %s18, 1
      %p141 = scmp.ne.s32.totalorder %s136, %s138
      %p142 = scmp.eq.s32.totalorder %s18, 0
      %p143 = por %p141, %p142
      %p144 = scmp.ne.s32.totalorder %s136, %s138
      %p145 = scmp.eq.s32.totalorder %s23, 1
      %p146 = por %p144, %p145
      %p147 = scmp.ne.s32.totalorder %s138, %s139
      %p148 = scmp.eq.s32.totalorder %s23, 0
      %p149 = por %p147, %p148
      %p150 = scmp.ne.s32.totalorder %s138, %s139
      %p151 = scmp.eq.s32.totalorder %s24, 1
      %p152 = por %p150, %p151
      %p154 = scmp.ne.s32.totalorder %s139, %s153
      %p155 = scmp.eq.s32.totalorder %s24, 0
      %p156 = por %p154, %p155
      %s158 = sadd.s32 %s157, 1
      %p161 = scmp.eq.s32.totalorder %s18, 1
      %p162 = scmp.ne.s32.totalorder %s157, %s159
      %p163 = scmp.eq.s32.totalorder %s18, 0
      %p164 = por %p162, %p163
      %p165 = scmp.ne.s32.totalorder %s157, %s159
      %p166 = scmp.eq.s32.totalorder %s23, 1
      %p167 = por %p165, %p166
      %p168 = scmp.ne.s32.totalorder %s159, %s160
      %p169 = scmp.eq.s32.totalorder %s23, 0
      %p170 = por %p168, %p169
      %p171 = scmp.ne.s32.totalorder %s159, %s160
      %p172 = scmp.eq.s32.totalorder %s24, 1
      %p173 = por %p171, %p172
      %p175 = scmp.ne.s32.totalorder %s160, %s174
      %p176 = scmp.eq.s32.totalorder %s24, 0
      %p177 = por %p175, %p176
      %s178 = ssub.s32 %s18, %s25
      %p179 = scmp.eq.s32.totalorder %s178, 0
      %s181 = sadd.s32 %s180, 1
      %s182 = scalar_select %p179, %s180, %s181
      %p185 = pneg %p179
      %p186 = scmp.eq.s32.totalorder %s18, 1
      %p187 = por %p185, %p186
      %p188 = scmp.ne.s32.totalorder %s180, %s183
      %p189 = scmp.eq.s32.totalorder %s18, 0
      %p190 = por %p188, %p189
      %p191 = scmp.ne.s32.totalorder %s180, %s183
      %p192 = scmp.eq.s32.totalorder %s23, 1
      %p193 = por %p191, %p192
      %p194 = scmp.ne.s32.totalorder %s183, %s184
      %p195 = scmp.eq.s32.totalorder %s23, 0
      %p196 = por %p194, %p195
      %p197 = scmp.ne.s32.totalorder %s183, %s184
      %p198 = scmp.eq.s32.totalorder %s24, 1
      %p199 = por %p197, %p198
      %p201 = scmp.ne.s32.totalorder %s184, %s200
      %p202 = scmp.eq.s32.totalorder %s24, 0
      %p203 = por %p201, %p202
      %p204 = scmp.le.s32.totalorder 1, %s18
      %p205 = scmp.lt.s32.totalorder %s18, 3
      %p206 = pnand %p204, %p205
      %p207 = pneg %p206
      // Predicated region
      $region9: #{tpu_custom_call.1} parent=5 // pred_check
        _
      $region10: #{tpu_custom_call.1} parent=5 // pred_check_branch
        %209 = sbr.rel (%p206) target = $region12
      $region11: #{tpu_custom_call.1} parent=5 // pred_region
        %s210 = ssub.s32 %s18, 1
        // Predicated region
        $region13: #{tpu_custom_call.1} parent=11 // pred_check
          %p211 = pneg %p65
        $region14: #{tpu_custom_call.1} parent=11 // pred_check_branch
          %213 = sbr.rel (%p211) target = $region16
        $region15: #{tpu_custom_call.1} parent=11 // pred_region
          _
        $region16: #{tpu_custom_call.1} parent=11 // pred_fallthru
          _
        // Predicated region
        $region17: #{tpu_custom_call.1} parent=11 // pred_check
          %p214 = pneg %p86
        $region18: #{tpu_custom_call.1} parent=11 // pred_check_branch
          %216 = sbr.rel (%p214) target = $region20
        $region19: #{tpu_custom_call.1} parent=11 // pred_region
          _
        $region20: #{tpu_custom_call.1} parent=11 // pred_fallthru
          _
        // Predicated region
        $region21: #{tpu_custom_call.1} parent=11 // pred_check
          %p217 = pneg %p107
        $region22: #{tpu_custom_call.1} parent=11 // pred_check_branch
          %219 = sbr.rel (%p217) target = $region24
        $region23: #{tpu_custom_call.1} parent=11 // pred_region
          %s221 = ssub.s32 32768, 32768
          %222 = vsyncadd [#allocation3], %s221
          %s223 = sshll.u32 [#allocation2], 4
          %s224 = int_to_ptr.vmem [resolvable:$true] %s223
          %229 = dma.hbm_to_vmem [thread:$0]  %s3, 32768, %s224, [#allocation3], 512, 512, 32
        $region24: #{tpu_custom_call.1} parent=11 // pred_fallthru
          _
        // Predicated region
        $region25: #{tpu_custom_call.1} parent=11 // pred_check
          %p230 = pneg %p128
        $region26: #{tpu_custom_call.1} parent=11 // pred_check_branch
          %232 = sbr.rel (%p230) target = $region28
        $region27: #{tpu_custom_call.1} parent=11 // pred_region
          _
        $region28: #{tpu_custom_call.1} parent=11 // pred_fallthru
          _
        // Predicated region
        $region29: #{tpu_custom_call.1} parent=11 // pred_check
          %p233 = pneg %p149
        $region30: #{tpu_custom_call.1} parent=11 // pred_check_branch
          %235 = sbr.rel (%p233) target = $region32
        $region31: #{tpu_custom_call.1} parent=11 // pred_region
          %s237 = ssub.s32 8192, 8192
          %238 = vsyncadd [#allocation6], %s237
          %s239 = sshll.u32 [#allocation5], 4
          %s240 = int_to_ptr.vmem [resolvable:$true] %s239
          %245 = dma.hbm_to_vmem [thread:$0]  %s5, 8192, %s240, [#allocation6], 64, 64, 4
        $region32: #{tpu_custom_call.1} parent=11 // pred_fallthru
          _
        // Predicated region
        $region33: #{tpu_custom_call.1} parent=11 // pred_check
          %p246 = pneg %p170
        $region34: #{tpu_custom_call.1} parent=11 // pred_check_branch
          %248 = sbr.rel (%p246) target = $region36
        $region35: #{tpu_custom_call.1} parent=11 // pred_region
          _
        $region36: #{tpu_custom_call.1} parent=11 // pred_fallthru
          _
      $region12: #{tpu_custom_call.1} parent=5 // pred_fallthru
        _
      %p249 = scmp.lt.s32.totalorder %s18, 2
      // Predicated region
      $region37: #{tpu_custom_call.1} parent=5 // pred_check
        %p250 = pneg %p249
      $region38: #{tpu_custom_call.1} parent=5 // pred_check_branch
        %252 = sbr.rel (%p250) target = $region40
      $region39: #{tpu_custom_call.1} parent=5 // pred_region
        // Predicated region
        $region41: #{tpu_custom_call.1} parent=39 // pred_check
          %p253 = pneg %p38
        $region42: #{tpu_custom_call.1} parent=39 // pred_check_branch
          %255 = sbr.rel (%p253) target = $region44
        $region43: #{tpu_custom_call.1} parent=39 // pred_region
          %s256 = smul.u32 32, %s18
          %p257 = scmp.lt.s32.totalorder %s256, 63
          %s258 = scalar_select %p257, %s256, 63
          %s259 = smul.addr %s258, 4
          %s260 = scalar_lea.vmem %s0, %s259
          %s261 = smul.u32 32, %s18
        $region44: #{tpu_custom_call.1} parent=39 // pred_fallthru
          _
      $region40: #{tpu_custom_call.1} parent=5 // pred_fallthru
        _
      %p262 = scmp.le.s32.totalorder 1, %s18
      %p263 = scmp.lt.s32.totalorder %s18, 3
      %p264 = pnand %p262, %p263
      %p265 = pneg %p264
      // Predicated region
      $region45: #{tpu_custom_call.1} parent=5 // pred_check
        _
      $region46: #{tpu_custom_call.1} parent=5 // pred_check_branch
        %267 = sbr.rel (%p264) target = $region48
      $region47: #{tpu_custom_call.1} parent=5 // pred_region
        %s268 = ssub.s32 %s18, 1
        // Predicated region
        $region49: #{tpu_custom_call.1} parent=47 // pred_check
          %p269 = pneg %p107
        $region50: #{tpu_custom_call.1} parent=47 // pred_check_branch
          %271 = sbr.rel (%p269) target = $region52
        $region51: #{tpu_custom_call.1} parent=47 // pred_region
          %272 = dma.done [#allocation3], 32768
        $region52: #{tpu_custom_call.1} parent=47 // pred_fallthru
          _
        // Predicated region
        $region53: #{tpu_custom_call.1} parent=47 // pred_check
          %p273 = pneg %p149
        $region54: #{tpu_custom_call.1} parent=47 // pred_check_branch
          %275 = sbr.rel (%p273) target = $region56
        $region55: #{tpu_custom_call.1} parent=47 // pred_region
          %276 = dma.done [#allocation6], 8192
        $region56: #{tpu_custom_call.1} parent=47 // pred_fallthru
          _
        %s277 = smul.u32 32, %s23
        %p278 = scmp.lt.s32.totalorder %s277, 63
        %s279 = scalar_select %p278, %s277, 63
        %s280 = smul.addr %s279, 4
        %s281 = scalar_lea.vmem %s0, %s280
        %p282 = pneg %p44
        %p283 = pneg %p41
        %p284 = pneg %p65
        %p285 = pneg %p62
        %p286 = pneg %p86
        %p287 = pneg %p83
        %p288 = pneg %p107
        %p289 = pneg %p104
        %p290 = pneg %p128
        %p291 = pneg %p125
        %p292 = pneg %p149
        %p293 = pneg %p146
        %p294 = pneg %p170
        %p295 = pneg %p167
        %p296 = pneg %p196
        %p297 = pneg %p193
        %s298 = sand.u32 %s183, 1
        %s299 = scalar_lea.sflag [#allocation4], %s298
        %s300 = sand.u32 %s183, 1
        %s301 = smul.addr %s300, 256
        %s302 = scalar_lea.vmem [#allocation7], %s301
        %s303 = smul.u32 32, %s23
        %p304 = scmp.lt.s32.totalorder %s303, 63
        %s305 = scalar_select %p304, %s303, 63
        %s306 = smul.addr %s305, 4
        %s307 = scalar_lea.vmem %s0, %s306
        %s308 = smul.u32 32, %s23
        %s309 = smul.u32 32, %s23
        %v311 = vld [vmem:[%s307] sm:$0xf]
        %v312 = vld [vmem:[%s307 + $0x4] sm:$0xf]
        %v313 = vld [vmem:[%s307 + $0x8] sm:$0xf]
        %v314 = vld [vmem:[%s307 + $0xc] sm:$0xf]
        %v315 = vld [vmem:[%s307 + $0x10] sm:$0xf]
        %v316 = vld [vmem:[%s307 + $0x14] sm:$0xf]
        %v317 = vld [vmem:[%s307 + $0x18] sm:$0xf]
        %v318 = vld [vmem:[%s307 + $0x1c] sm:$0xf]
        %v319 = vld [vmem:[%s307 + $0x20] sm:$0xf]
        %v320 = vld [vmem:[%s307 + $0x24] sm:$0xf]
        %v321 = vld [vmem:[%s307 + $0x28] sm:$0xf]
        %v322 = vld [vmem:[%s307 + $0x2c] sm:$0xf]
        %v323 = vld [vmem:[%s307 + $0x30] sm:$0xf]
        %v324 = vld [vmem:[%s307 + $0x34] sm:$0xf]
        %v325 = vld [vmem:[%s307 + $0x38] sm:$0xf]
        %v326 = vld [vmem:[%s307 + $0x3c] sm:$0xf]
        %v327 = vld [vmem:[%s307 + $0x40] sm:$0xf]
        %v328 = vld [vmem:[%s307 + $0x44] sm:$0xf]
        %v329 = vld [vmem:[%s307 + $0x48] sm:$0xf]
        %v330 = vld [vmem:[%s307 + $0x4c] sm:$0xf]
        %v331 = vld [vmem:[%s307 + $0x50] sm:$0xf]
        %v332 = vld [vmem:[%s307 + $0x54] sm:$0xf]
        %v333 = vld [vmem:[%s307 + $0x58] sm:$0xf]
        %v334 = vld [vmem:[%s307 + $0x5c] sm:$0xf]
        %v335 = vld [vmem:[%s307 + $0x60] sm:$0xf]
        %v336 = vld [vmem:[%s307 + $0x64] sm:$0xf]
        %v337 = vld [vmem:[%s307 + $0x68] sm:$0xf]
        %v338 = vld [vmem:[%s307 + $0x6c] sm:$0xf]
        %v339 = vld [vmem:[%s307 + $0x70] sm:$0xf]
        %v340 = vld [vmem:[%s307 + $0x74] sm:$0xf]
        %v341 = vld [vmem:[%s307 + $0x78] sm:$0xf]
        %v342 = vld [vmem:[%s307 + $0x7c] sm:$0xf]
        %v343 = vld [vmem:[%s1] sm:$0xff]
        %v344 = vld [vmem:[%s1 + $0x8] sm:$0xff]
        %v345 = vld [vmem:[%s1 + $0x10] sm:$0xff]
        %v346 = vld [vmem:[%s1 + $0x18] sm:$0xff]
        %v347 = vld [vmem:[%s1 + $0x20] sm:$0xff]
        %v348 = vld [vmem:[%s1 + $0x28] sm:$0xff]
        %v349 = vld [vmem:[%s1 + $0x30] sm:$0xff]
        %v350 = vld [vmem:[%s1 + $0x38] sm:$0xff]
        %v351 = vld [vmem:[%s2] sm:$0xf]
        %v353 = vlaneseq
        %v354 = vshrl.u32 %v353, 7
        %v355 = vsub.s32 0, %v354
        %v356 = vrot.slane %v351, %v355
        %v357 = vlaneseq
        %v358 = vshrl.u32 %v357, 7
        %v359 = vsub.s32 1, %v358
        %v360 = vrot.slane %v351, %v359
        %v361 = vlaneseq
        %v362 = vshrl.u32 %v361, 7
        %v363 = vsub.s32 2, %v362
        %v364 = vrot.slane %v351, %v363
        %v365 = vlaneseq
        %v366 = vshrl.u32 %v365, 7
        %v367 = vsub.s32 3, %v366
        %v368 = vrot.slane %v351, %v367
        %v405 = vunpack.c.l.b16 %v311
        %v406 = vunpack.c.l.b16 %v312
        %v407 = vunpack.c.l.b16 %v313
        %v408 = vunpack.c.l.b16 %v314
        %v409 = vunpack.c.l.b16 %v315
        %v410 = vunpack.c.l.b16 %v316
        %v411 = vunpack.c.l.b16 %v317
        %v412 = vunpack.c.l.b16 %v318
        %v413 = vunpack.c.l.b16 %v319
        %v414 = vunpack.c.l.b16 %v320
        %v415 = vunpack.c.l.b16 %v321
        %v416 = vunpack.c.l.b16 %v322
        %v417 = vunpack.c.l.b16 %v323
        %v418 = vunpack.c.l.b16 %v324
        %v419 = vunpack.c.l.b16 %v325
        %v420 = vunpack.c.l.b16 %v326
        %v421 = vunpack.c.l.b16 %v327
        %v422 = vunpack.c.l.b16 %v328
        %v423 = vunpack.c.l.b16 %v329
        %v424 = vunpack.c.l.b16 %v330
        %v425 = vunpack.c.l.b16 %v331
        %v426 = vunpack.c.l.b16 %v332
        %v427 = vunpack.c.l.b16 %v333
        %v428 = vunpack.c.l.b16 %v334
        %v429 = vunpack.c.l.b16 %v335
        %v430 = vunpack.c.l.b16 %v336
        %v431 = vunpack.c.l.b16 %v337
        %v432 = vunpack.c.l.b16 %v338
        %v433 = vunpack.c.l.b16 %v339
        %v434 = vunpack.c.l.b16 %v340
        %v435 = vunpack.c.l.b16 %v341
        %v436 = vunpack.c.l.b16 %v342
        %v437 = vpack.c.b16 %v406, %v405
        %v438 = vpack.c.b16 %v408, %v407
        %v439 = vpack.c.b16 %v410, %v409
        %v440 = vpack.c.b16 %v412, %v411
        %v441 = vpack.c.b16 %v414, %v413
        %v442 = vpack.c.b16 %v416, %v415
        %v443 = vpack.c.b16 %v418, %v417
        %v444 = vpack.c.b16 %v420, %v419
        %v445 = vpack.c.b16 %v422, %v421
        %v446 = vpack.c.b16 %v424, %v423
        %v447 = vpack.c.b16 %v426, %v425
        %v448 = vpack.c.b16 %v428, %v427
        %v449 = vpack.c.b16 %v430, %v429
        %v450 = vpack.c.b16 %v432, %v431
        %v451 = vpack.c.b16 %v434, %v433
        %v452 = vpack.c.b16 %v436, %v435
        %v461 = vunpack.c.l.b16 %v343
        %v462 = vunpack.c.h.b16 %v343
        %v463 = vunpack.c.l.b16 %v344
        %v464 = vunpack.c.h.b16 %v344
        %v465 = vunpack.c.l.b16 %v345
        %v466 = vunpack.c.h.b16 %v345
        %v467 = vunpack.c.l.b16 %v346
        %v468 = vunpack.c.h.b16 %v346
        %v469 = vunpack.c.l.b16 %v347
        %v470 = vunpack.c.h.b16 %v347
        %v471 = vunpack.c.l.b16 %v348
        %v472 = vunpack.c.h.b16 %v348
        %v473 = vunpack.c.l.b16 %v349
        %v474 = vunpack.c.h.b16 %v349
        %v475 = vunpack.c.l.b16 %v350
        %v476 = vunpack.c.h.b16 %v350
        %v477 = vpack.c.b16 %v465, %v461
        %v478 = vpack.c.b16 %v466, %v462
        %v479 = vpack.c.b16 %v467, %v463
        %v480 = vpack.c.b16 %v468, %v464
        %v481 = vpack.c.b16 %v473, %v469
        %v482 = vpack.c.b16 %v474, %v470
        %v483 = vpack.c.b16 %v475, %v471
        %v484 = vpack.c.b16 %v476, %v472
        %vm493 = vcmask 261120
        %v495 = vsel %vm493, %v437, 0
        %v498 = vsel %vm493, %v438, 0
        %v501 = vsel %vm493, %v439, 0
        %v504 = vsel %vm493, %v440, 0
        %v507 = vsel %vm493, %v441, 0
        %v510 = vsel %vm493, %v442, 0
        %v513 = vsel %vm493, %v443, 0
        %v516 = vsel %vm493, %v444, 0
        %v519 = vsel %vm493, %v445, 0
        %v522 = vsel %vm493, %v446, 0
        %v525 = vsel %vm493, %v447, 0
        %v528 = vsel %vm493, %v448, 0
        %v531 = vsel %vm493, %v449, 0
        %v534 = vsel %vm493, %v450, 0
        %v537 = vsel %vm493, %v451, 0
        %v540 = vsel %vm493, %v452, 0
        %542 = vmatprep.subr.bf16.mxu0 0
        %543 = vmatpush1.bf16.msra.mxu0 0
        %544 = vmatprep.subr.bf16.mxu0 0
        %545 = vmatpush1.bf16.msra.mxu0 0
        %546 = vmatprep.subr.bf16.mxu0 0
        %547 = vmatpush1.bf16.msra.mxu0 0
        %548 = vmatprep.subr.bf16.mxu0 0
        %549 = vmatpush1.bf16.msra.mxu0 0
        %550 = vmatprep.subr.bf16.mxu0 0
        %551 = vmatpush1.bf16.msra.mxu0 0
        %552 = vmatprep.subr.bf16.mxu0 0
        %553 = vmatpush1.bf16.msra.mxu0 0
        %554 = vmatprep.subr.bf16.mxu0 %v482
        %555 = vmatpush1.bf16.msra.mxu0 %v481
        %556 = vmatprep.subr.bf16.mxu0 %v478
        %557 = vmatpush1.bf16.msra.mxu0 %v477
        %558 = vmatprep.subr.bf16.mxu0 0
        %559 = vmatpush2.bf16.msra.mxu0 0
        %560 = vmatprep.subr.bf16.mxu0 0
        %561 = vmatpush2.bf16.msra.mxu0 0
        %562 = vmatprep.subr.bf16.mxu0 0
        %563 = vmatpush2.bf16.msra.mxu0 0
        %564 = vmatprep.subr.bf16.mxu0 0
        %565 = vmatpush2.bf16.msra.mxu0 0
        %566 = vmatprep.subr.bf16.mxu0 0
        %567 = vmatpush2.bf16.msra.mxu0 0
        %568 = vmatprep.subr.bf16.mxu0 0
        %569 = vmatpush2.bf16.msra.mxu0 0
        %570 = vmatprep.subr.bf16.mxu0 0
        %571 = vmatpush2.bf16.msra.mxu0 0
        %572 = vmatprep.subr.bf16.mxu0 0
        %573 = vmatpush2.bf16.msra.mxu0 0
        %574 = vmatprep.mubr.bf16.mxu0 0
        %575 = vmatmul.mubr.bf16.gmra.mxu0 %v495
        %v576 = vpop.f32.mrf.mxu0
        %v577 = vadd.f32 %v356, %v576
        %v578 = vpop.f32.mrf.mxu0
        %v579 = vadd.f32 %v360, %v578
        %v580 = vpop.f32.mrf.mxu0
        %v581 = vadd.f32 %v356, %v580
        %v582 = vpop.f32.mrf.mxu0
        %v583 = vadd.f32 %v360, %v582
        %584 = vmatprep.mubr.bf16.mxu0 0
        %585 = vmatmul.mubr.bf16.gmra.mxu0 %v498
        %v586 = vpop.f32.mrf.mxu0
        %v587 = vadd.f32 %v356, %v586
        %v588 = vpop.f32.mrf.mxu0
        %v589 = vadd.f32 %v360, %v588
        %v590 = vpop.f32.mrf.mxu0
        %v591 = vadd.f32 %v356, %v590
        %v592 = vpop.f32.mrf.mxu0
        %v593 = vadd.f32 %v360, %v592
        %594 = vmatprep.mubr.bf16.mxu0 0
        %595 = vmatmul.mubr.bf16.gmra.mxu0 %v501
        %v596 = vpop.f32.mrf.mxu0
        %v597 = vadd.f32 %v356, %v596
        %v598 = vpop.f32.mrf.mxu0
        %v599 = vadd.f32 %v360, %v598
        %v600 = vpop.f32.mrf.mxu0
        %v601 = vadd.f32 %v356, %v600
        %v602 = vpop.f32.mrf.mxu0
        %v603 = vadd.f32 %v360, %v602
        %604 = vmatprep.mubr.bf16.mxu0 0
        %605 = vmatmul.mubr.bf16.gmra.mxu0 %v504
        %v606 = vpop.f32.mrf.mxu0
        %v607 = vadd.f32 %v356, %v606
        %v608 = vpop.f32.mrf.mxu0
        %v609 = vadd.f32 %v360, %v608
        %v610 = vpop.f32.mrf.mxu0
        %v611 = vadd.f32 %v356, %v610
        %v612 = vpop.f32.mrf.mxu0
        %v613 = vadd.f32 %v360, %v612
        %614 = vmatprep.mubr.bf16.mxu0 0
        %615 = vmatmul.mubr.bf16.gmra.mxu0 %v507
        %v616 = vpop.f32.mrf.mxu0
        %v617 = vadd.f32 %v356, %v616
        %v618 = vpop.f32.mrf.mxu0
        %v619 = vadd.f32 %v360, %v618
        %v620 = vpop.f32.mrf.mxu0
        %v621 = vadd.f32 %v356, %v620
        %v622 = vpop.f32.mrf.mxu0
        %v623 = vadd.f32 %v360, %v622
        %624 = vmatprep.mubr.bf16.mxu0 0
        %625 = vmatmul.mubr.bf16.gmra.mxu0 %v510
        %v626 = vpop.f32.mrf.mxu0
        %v627 = vadd.f32 %v356, %v626
        %v628 = vpop.f32.mrf.mxu0
        %v629 = vadd.f32 %v360, %v628
        %v630 = vpop.f32.mrf.mxu0
        %v631 = vadd.f32 %v356, %v630
        %v632 = vpop.f32.mrf.mxu0
        %v633 = vadd.f32 %v360, %v632
        %634 = vmatprep.mubr.bf16.mxu0 0
        %635 = vmatmul.mubr.bf16.gmra.mxu0 %v513
        %v636 = vpop.f32.mrf.mxu0
        %v637 = vadd.f32 %v356, %v636
        %v638 = vpop.f32.mrf.mxu0
        %v639 = vadd.f32 %v360, %v638
        %v640 = vpop.f32.mrf.mxu0
        %v641 = vadd.f32 %v356, %v640
        %v642 = vpop.f32.mrf.mxu0
        %v643 = vadd.f32 %v360, %v642
        %644 = vmatprep.mubr.bf16.mxu0 0
        %645 = vmatmul.mubr.bf16.gmra.mxu0 %v516
        %v646 = vpop.f32.mrf.mxu0
        %v647 = vadd.f32 %v356, %v646
        %v648 = vpop.f32.mrf.mxu0
        %v649 = vadd.f32 %v360, %v648
        %v650 = vpop.f32.mrf.mxu0
        %v651 = vadd.f32 %v356, %v650
        %v652 = vpop.f32.mrf.mxu0
        %v653 = vadd.f32 %v360, %v652
        %654 = vmatprep.mubr.bf16.mxu0 0
        %655 = vmatmul.mubr.bf16.gmra.mxu0 %v519
        %v656 = vpop.f32.mrf.mxu0
        %v657 = vadd.f32 %v356, %v656
        %v658 = vpop.f32.mrf.mxu0
        %v659 = vadd.f32 %v360, %v658
        %v660 = vpop.f32.mrf.mxu0
        %v661 = vadd.f32 %v356, %v660
        %v662 = vpop.f32.mrf.mxu0
        %v663 = vadd.f32 %v360, %v662
        %664 = vmatprep.mubr.bf16.mxu0 0
        %665 = vmatmul.mubr.bf16.gmra.mxu0 %v522
        %v666 = vpop.f32.mrf.mxu0
        %v667 = vadd.f32 %v356, %v666
        %v668 = vpop.f32.mrf.mxu0
        %v669 = vadd.f32 %v360, %v668
        %v670 = vpop.f32.mrf.mxu0
        %v671 = vadd.f32 %v356, %v670
        %v672 = vpop.f32.mrf.mxu0
        %v673 = vadd.f32 %v360, %v672
        %674 = vmatprep.mubr.bf16.mxu0 0
        %675 = vmatmul.mubr.bf16.gmra.mxu0 %v525
        %v676 = vpop.f32.mrf.mxu0
        %v677 = vadd.f32 %v356, %v676
        %v678 = vpop.f32.mrf.mxu0
        %v679 = vadd.f32 %v360, %v678
        %v680 = vpop.f32.mrf.mxu0
        %v681 = vadd.f32 %v356, %v680
        %v682 = vpop.f32.mrf.mxu0
        %v683 = vadd.f32 %v360, %v682
        %684 = vmatprep.mubr.bf16.mxu0 0
        %685 = vmatmul.mubr.bf16.gmra.mxu0 %v528
        %v686 = vpop.f32.mrf.mxu0
        %v687 = vadd.f32 %v356, %v686
        %v688 = vpop.f32.mrf.mxu0
        %v689 = vadd.f32 %v360, %v688
        %v690 = vpop.f32.mrf.mxu0
        %v691 = vadd.f32 %v356, %v690
        %v692 = vpop.f32.mrf.mxu0
        %v693 = vadd.f32 %v360, %v692
        %694 = vmatprep.mubr.bf16.mxu0 0
        %695 = vmatmul.mubr.bf16.gmra.mxu0 %v531
        %v696 = vpop.f32.mrf.mxu0
        %v697 = vadd.f32 %v356, %v696
        %v698 = vpop.f32.mrf.mxu0
        %v699 = vadd.f32 %v360, %v698
        %v700 = vpop.f32.mrf.mxu0
        %v701 = vadd.f32 %v356, %v700
        %v702 = vpop.f32.mrf.mxu0
        %v703 = vadd.f32 %v360, %v702
        %704 = vmatprep.mubr.bf16.mxu0 0
        %705 = vmatmul.mubr.bf16.gmra.mxu0 %v534
        %v706 = vpop.f32.mrf.mxu0
        %v707 = vadd.f32 %v356, %v706
        %v708 = vpop.f32.mrf.mxu0
        %v709 = vadd.f32 %v360, %v708
        %v710 = vpop.f32.mrf.mxu0
        %v711 = vadd.f32 %v356, %v710
        %v712 = vpop.f32.mrf.mxu0
        %v713 = vadd.f32 %v360, %v712
        %714 = vmatprep.mubr.bf16.mxu0 0
        %715 = vmatmul.mubr.bf16.gmra.mxu0 %v537
        %v716 = vpop.f32.mrf.mxu0
        %v717 = vadd.f32 %v356, %v716
        %v718 = vpop.f32.mrf.mxu0
        %v719 = vadd.f32 %v360, %v718
        %v720 = vpop.f32.mrf.mxu0
        %v721 = vadd.f32 %v356, %v720
        %v722 = vpop.f32.mrf.mxu0
        %v723 = vadd.f32 %v360, %v722
        %724 = vmatprep.mubr.bf16.mxu0 0
        %725 = vmatmul.mubr.bf16.gmra.mxu0 %v540
        %v726 = vpop.f32.mrf.mxu0
        %v727 = vadd.f32 %v356, %v726
        %v728 = vpop.f32.mrf.mxu0
        %v729 = vadd.f32 %v360, %v728
        %v730 = vpop.f32.mrf.mxu0
        %v731 = vadd.f32 %v356, %v730
        %v732 = vpop.f32.mrf.mxu0
        %v733 = vadd.f32 %v360, %v732
        %734 = vdwg.mxu0
        %735 = vmatprep.subr.bf16.mxu0 0
        %736 = vmatpush1.bf16.msra.mxu0 0
        %737 = vmatprep.subr.bf16.mxu0 0
        %738 = vmatpush1.bf16.msra.mxu0 0
        %739 = vmatprep.subr.bf16.mxu0 0
        %740 = vmatpush1.bf16.msra.mxu0 0
        %741 = vmatprep.subr.bf16.mxu0 0
        %742 = vmatpush1.bf16.msra.mxu0 0
        %743 = vmatprep.subr.bf16.mxu0 0
        %744 = vmatpush1.bf16.msra.mxu0 0
        %745 = vmatprep.subr.bf16.mxu0 0
        %746 = vmatpush1.bf16.msra.mxu0 0
        %747 = vmatprep.subr.bf16.mxu0 %v484
        %748 = vmatpush1.bf16.msra.mxu0 %v483
        %749 = vmatprep.subr.bf16.mxu0 %v480
        %750 = vmatpush1.bf16.msra.mxu0 %v479
        %751 = vmatprep.subr.bf16.mxu0 0
        %752 = vmatpush2.bf16.msra.mxu0 0
        %753 = vmatprep.subr.bf16.mxu0 0
        %754 = vmatpush2.bf16.msra.mxu0 0
        %755 = vmatprep.subr.bf16.mxu0 0
        %756 = vmatpush2.bf16.msra.mxu0 0
        %757 = vmatprep.subr.bf16.mxu0 0
        %758 = vmatpush2.bf16.msra.mxu0 0
        %759 = vmatprep.subr.bf16.mxu0 0
        %760 = vmatpush2.bf16.msra.mxu0 0
        %761 = vmatprep.subr.bf16.mxu0 0
        %762 = vmatpush2.bf16.msra.mxu0 0
        %763 = vmatprep.subr.bf16.mxu0 0
        %764 = vmatpush2.bf16.msra.mxu0 0
        %765 = vmatprep.subr.bf16.mxu0 0
        %766 = vmatpush2.bf16.msra.mxu0 0
        %767 = vmatprep.mubr.bf16.mxu0 0
        %768 = vmatmul.mubr.bf16.gmra.mxu0 %v495
        %v769 = vpop.f32.mrf.mxu0
        %v770 = vadd.f32 %v364, %v769
        %v771 = vpop.f32.mrf.mxu0
        %v772 = vadd.f32 %v368, %v771
        %v773 = vpop.f32.mrf.mxu0
        %v774 = vadd.f32 %v364, %v773
        %v775 = vpop.f32.mrf.mxu0
        %v776 = vadd.f32 %v368, %v775
        %777 = vmatprep.mubr.bf16.mxu0 0
        %778 = vmatmul.mubr.bf16.gmra.mxu0 %v498
        %v779 = vpop.f32.mrf.mxu0
        %v780 = vadd.f32 %v364, %v779
        %v781 = vpop.f32.mrf.mxu0
        %v782 = vadd.f32 %v368, %v781
        %v783 = vpop.f32.mrf.mxu0
        %v784 = vadd.f32 %v364, %v783
        %v785 = vpop.f32.mrf.mxu0
        %v786 = vadd.f32 %v368, %v785
        %787 = vmatprep.mubr.bf16.mxu0 0
        %788 = vmatmul.mubr.bf16.gmra.mxu0 %v501
        %v789 = vpop.f32.mrf.mxu0
        %v790 = vadd.f32 %v364, %v789
        %v791 = vpop.f32.mrf.mxu0
        %v792 = vadd.f32 %v368, %v791
        %v793 = vpop.f32.mrf.mxu0
        %v794 = vadd.f32 %v364, %v793
        %v795 = vpop.f32.mrf.mxu0
        %v796 = vadd.f32 %v368, %v795
        %797 = vmatprep.mubr.bf16.mxu0 0
        %798 = vmatmul.mubr.bf16.gmra.mxu0 %v504
        %v799 = vpop.f32.mrf.mxu0
        %v800 = vadd.f32 %v364, %v799
        %v801 = vpop.f32.mrf.mxu0
        %v802 = vadd.f32 %v368, %v801
        %v803 = vpop.f32.mrf.mxu0
        %v804 = vadd.f32 %v364, %v803
        %v805 = vpop.f32.mrf.mxu0
        %v806 = vadd.f32 %v368, %v805
        %807 = vmatprep.mubr.bf16.mxu0 0
        %808 = vmatmul.mubr.bf16.gmra.mxu0 %v507
        %v809 = vpop.f32.mrf.mxu0
        %v810 = vadd.f32 %v364, %v809
        %v811 = vpop.f32.mrf.mxu0
        %v812 = vadd.f32 %v368, %v811
        %v813 = vpop.f32.mrf.mxu0
        %v814 = vadd.f32 %v364, %v813
        %v815 = vpop.f32.mrf.mxu0
        %v816 = vadd.f32 %v368, %v815
        %817 = vmatprep.mubr.bf16.mxu0 0
        %818 = vmatmul.mubr.bf16.gmra.mxu0 %v510
        %v819 = vpop.f32.mrf.mxu0
        %v820 = vadd.f32 %v364, %v819
        %v821 = vpop.f32.mrf.mxu0
        %v822 = vadd.f32 %v368, %v821
        %v823 = vpop.f32.mrf.mxu0
        %v824 = vadd.f32 %v364, %v823
        %v825 = vpop.f32.mrf.mxu0
        %v826 = vadd.f32 %v368, %v825
        %827 = vmatprep.mubr.bf16.mxu0 0
        %828 = vmatmul.mubr.bf16.gmra.mxu0 %v513
        %v829 = vpop.f32.mrf.mxu0
        %v830 = vadd.f32 %v364, %v829
        %v831 = vpop.f32.mrf.mxu0
        %v832 = vadd.f32 %v368, %v831
        %v833 = vpop.f32.mrf.mxu0
        %v834 = vadd.f32 %v364, %v833
        %v835 = vpop.f32.mrf.mxu0
        %v836 = vadd.f32 %v368, %v835
        %837 = vmatprep.mubr.bf16.mxu0 0
        %838 = vmatmul.mubr.bf16.gmra.mxu0 %v516
        %v839 = vpop.f32.mrf.mxu0
        %v840 = vadd.f32 %v364, %v839
        %v841 = vpop.f32.mrf.mxu0
        %v842 = vadd.f32 %v368, %v841
        %v843 = vpop.f32.mrf.mxu0
        %v844 = vadd.f32 %v364, %v843
        %v845 = vpop.f32.mrf.mxu0
        %v846 = vadd.f32 %v368, %v845
        %847 = vmatprep.mubr.bf16.mxu0 0
        %848 = vmatmul.mubr.bf16.gmra.mxu0 %v519
        %v849 = vpop.f32.mrf.mxu0
        %v850 = vadd.f32 %v364, %v849
        %v851 = vpop.f32.mrf.mxu0
        %v852 = vadd.f32 %v368, %v851
        %v853 = vpop.f32.mrf.mxu0
        %v854 = vadd.f32 %v364, %v853
        %v855 = vpop.f32.mrf.mxu0
        %v856 = vadd.f32 %v368, %v855
        %857 = vmatprep.mubr.bf16.mxu0 0
        %858 = vmatmul.mubr.bf16.gmra.mxu0 %v522
        %v859 = vpop.f32.mrf.mxu0
        %v860 = vadd.f32 %v364, %v859
        %v861 = vpop.f32.mrf.mxu0
        %v862 = vadd.f32 %v368, %v861
        %v863 = vpop.f32.mrf.mxu0
        %v864 = vadd.f32 %v364, %v863
        %v865 = vpop.f32.mrf.mxu0
        %v866 = vadd.f32 %v368, %v865
        %867 = vmatprep.mubr.bf16.mxu0 0
        %868 = vmatmul.mubr.bf16.gmra.mxu0 %v525
        %v869 = vpop.f32.mrf.mxu0
        %v870 = vadd.f32 %v364, %v869
        %v871 = vpop.f32.mrf.mxu0
        %v872 = vadd.f32 %v368, %v871
        %v873 = vpop.f32.mrf.mxu0
        %v874 = vadd.f32 %v364, %v873
        %v875 = vpop.f32.mrf.mxu0
        %v876 = vadd.f32 %v368, %v875
        %877 = vmatprep.mubr.bf16.mxu0 0
        %878 = vmatmul.mubr.bf16.gmra.mxu0 %v528
        %v879 = vpop.f32.mrf.mxu0
        %v880 = vadd.f32 %v364, %v879
        %v881 = vpop.f32.mrf.mxu0
        %v882 = vadd.f32 %v368, %v881
        %v883 = vpop.f32.mrf.mxu0
        %v884 = vadd.f32 %v364, %v883
        %v885 = vpop.f32.mrf.mxu0
        %v886 = vadd.f32 %v368, %v885
        %887 = vmatprep.mubr.bf16.mxu0 0
        %888 = vmatmul.mubr.bf16.gmra.mxu0 %v531
        %v889 = vpop.f32.mrf.mxu0
        %v890 = vadd.f32 %v364, %v889
        %v891 = vpop.f32.mrf.mxu0
        %v892 = vadd.f32 %v368, %v891
        %v893 = vpop.f32.mrf.mxu0
        %v894 = vadd.f32 %v364, %v893
        %v895 = vpop.f32.mrf.mxu0
        %v896 = vadd.f32 %v368, %v895
        %897 = vmatprep.mubr.bf16.mxu0 0
        %898 = vmatmul.mubr.bf16.gmra.mxu0 %v534
        %v899 = vpop.f32.mrf.mxu0
        %v900 = vadd.f32 %v364, %v899
        %v901 = vpop.f32.mrf.mxu0
        %v902 = vadd.f32 %v368, %v901
        %v903 = vpop.f32.mrf.mxu0
        %v904 = vadd.f32 %v364, %v903
        %v905 = vpop.f32.mrf.mxu0
        %v906 = vadd.f32 %v368, %v905
        %907 = vmatprep.mubr.bf16.mxu0 0
        %908 = vmatmul.mubr.bf16.gmra.mxu0 %v537
        %v909 = vpop.f32.mrf.mxu0
        %v910 = vadd.f32 %v364, %v909
        %v911 = vpop.f32.mrf.mxu0
        %v912 = vadd.f32 %v368, %v911
        %v913 = vpop.f32.mrf.mxu0
        %v914 = vadd.f32 %v364, %v913
        %v915 = vpop.f32.mrf.mxu0
        %v916 = vadd.f32 %v368, %v915
        %917 = vmatprep.mubr.bf16.mxu0 0
        %918 = vmatmul.mubr.bf16.gmra.mxu0 %v540
        %v919 = vpop.f32.mrf.mxu0
        %v920 = vadd.f32 %v364, %v919
        %v921 = vpop.f32.mrf.mxu0
        %v922 = vadd.f32 %v368, %v921
        %v923 = vpop.f32.mrf.mxu0
        %v924 = vadd.f32 %v364, %v923
        %v925 = vpop.f32.mrf.mxu0
        %v926 = vadd.f32 %v368, %v925
        %927 = vdwg.mxu0
        %v928 = vmax.f32 %v577, 0.0
        %v929 = vmax.f32 %v579, 0.0
        %v930 = vmax.f32 %v770, 0.0
        %v931 = vmax.f32 %v772, 0.0
        %v932 = vmax.f32 %v581, 0.0
        %v933 = vmax.f32 %v583, 0.0
        %v934 = vmax.f32 %v774, 0.0
        %v935 = vmax.f32 %v776, 0.0
        %v936 = vmax.f32 %v587, 0.0
        %v937 = vmax.f32 %v589, 0.0
        %v938 = vmax.f32 %v780, 0.0
        %v939 = vmax.f32 %v782, 0.0
        %v940 = vmax.f32 %v591, 0.0
        %v941 = vmax.f32 %v593, 0.0
        %v942 = vmax.f32 %v784, 0.0
        %v943 = vmax.f32 %v786, 0.0
        %v944 = vmax.f32 %v597, 0.0
        %v945 = vmax.f32 %v599, 0.0
        %v946 = vmax.f32 %v790, 0.0
        %v947 = vmax.f32 %v792, 0.0
        %v948 = vmax.f32 %v601, 0.0
        %v949 = vmax.f32 %v603, 0.0
        %v950 = vmax.f32 %v794, 0.0
        %v951 = vmax.f32 %v796, 0.0
        %v952 = vmax.f32 %v607, 0.0
        %v953 = vmax.f32 %v609, 0.0
        %v954 = vmax.f32 %v800, 0.0
        %v955 = vmax.f32 %v802, 0.0
        %v956 = vmax.f32 %v611, 0.0
        %v957 = vmax.f32 %v613, 0.0
        %v958 = vmax.f32 %v804, 0.0
        %v959 = vmax.f32 %v806, 0.0
        %v960 = vmax.f32 %v617, 0.0
        %v961 = vmax.f32 %v619, 0.0
        %v962 = vmax.f32 %v810, 0.0
        %v963 = vmax.f32 %v812, 0.0
        %v964 = vmax.f32 %v621, 0.0
        %v965 = vmax.f32 %v623, 0.0
        %v966 = vmax.f32 %v814, 0.0
        %v967 = vmax.f32 %v816, 0.0
        %v968 = vmax.f32 %v627, 0.0
        %v969 = vmax.f32 %v629, 0.0
        %v970 = vmax.f32 %v820, 0.0
        %v971 = vmax.f32 %v822, 0.0
        %v972 = vmax.f32 %v631, 0.0
        %v973 = vmax.f32 %v633, 0.0
        %v974 = vmax.f32 %v824, 0.0
        %v975 = vmax.f32 %v826, 0.0
        %v976 = vmax.f32 %v637, 0.0
        %v977 = vmax.f32 %v639, 0.0
        %v978 = vmax.f32 %v830, 0.0
        %v979 = vmax.f32 %v832, 0.0
        %v980 = vmax.f32 %v641, 0.0
        %v981 = vmax.f32 %v643, 0.0
        %v982 = vmax.f32 %v834, 0.0
        %v983 = vmax.f32 %v836, 0.0
        %v984 = vmax.f32 %v647, 0.0
        %v985 = vmax.f32 %v649, 0.0
        %v986 = vmax.f32 %v840, 0.0
        %v987 = vmax.f32 %v842, 0.0
        %v988 = vmax.f32 %v651, 0.0
        %v989 = vmax.f32 %v653, 0.0
        %v990 = vmax.f32 %v844, 0.0
        %v991 = vmax.f32 %v846, 0.0
        %v992 = vmax.f32 %v657, 0.0
        %v993 = vmax.f32 %v659, 0.0
        %v994 = vmax.f32 %v850, 0.0
        %v995 = vmax.f32 %v852, 0.0
        %v996 = vmax.f32 %v661, 0.0
        %v997 = vmax.f32 %v663, 0.0
        %v998 = vmax.f32 %v854, 0.0
        %v999 = vmax.f32 %v856, 0.0
        %v1000 = vmax.f32 %v667, 0.0
        %v1001 = vmax.f32 %v669, 0.0
        %v1002 = vmax.f32 %v860, 0.0
        %v1003 = vmax.f32 %v862, 0.0
        %v1004 = vmax.f32 %v671, 0.0
        %v1005 = vmax.f32 %v673, 0.0
        %v1006 = vmax.f32 %v864, 0.0
        %v1007 = vmax.f32 %v866, 0.0
        %v1008 = vmax.f32 %v677, 0.0
        %v1009 = vmax.f32 %v679, 0.0
        %v1010 = vmax.f32 %v870, 0.0
        %v1011 = vmax.f32 %v872, 0.0
        %v1012 = vmax.f32 %v681, 0.0
        %v1013 = vmax.f32 %v683, 0.0
        %v1014 = vmax.f32 %v874, 0.0
        %v1015 = vmax.f32 %v876, 0.0
        %v1016 = vmax.f32 %v687, 0.0
        %v1017 = vmax.f32 %v689, 0.0
        %v1018 = vmax.f32 %v880, 0.0
        %v1019 = vmax.f32 %v882, 0.0
        %v1020 = vmax.f32 %v691, 0.0
        %v1021 = vmax.f32 %v693, 0.0
        %v1022 = vmax.f32 %v884, 0.0
        %v1023 = vmax.f32 %v886, 0.0
        %v1024 = vmax.f32 %v697, 0.0
        %v1025 = vmax.f32 %v699, 0.0
        %v1026 = vmax.f32 %v890, 0.0
        %v1027 = vmax.f32 %v892, 0.0
        %v1028 = vmax.f32 %v701, 0.0
        %v1029 = vmax.f32 %v703, 0.0
        %v1030 = vmax.f32 %v894, 0.0
        %v1031 = vmax.f32 %v896, 0.0
        %v1032 = vmax.f32 %v707, 0.0
        %v1033 = vmax.f32 %v709, 0.0
        %v1034 = vmax.f32 %v900, 0.0
        %v1035 = vmax.f32 %v902, 0.0
        %v1036 = vmax.f32 %v711, 0.0
        %v1037 = vmax.f32 %v713, 0.0
        %v1038 = vmax.f32 %v904, 0.0
        %v1039 = vmax.f32 %v906, 0.0
        %v1040 = vmax.f32 %v717, 0.0
        %v1041 = vmax.f32 %v719, 0.0
        %v1042 = vmax.f32 %v910, 0.0
        %v1043 = vmax.f32 %v912, 0.0
        %v1044 = vmax.f32 %v721, 0.0
        %v1045 = vmax.f32 %v723, 0.0
        %v1046 = vmax.f32 %v914, 0.0
        %v1047 = vmax.f32 %v916, 0.0
        %v1048 = vmax.f32 %v727, 0.0
        %v1049 = vmax.f32 %v729, 0.0
        %v1050 = vmax.f32 %v920, 0.0
        %v1051 = vmax.f32 %v922, 0.0
        %v1052 = vmax.f32 %v731, 0.0
        %v1053 = vmax.f32 %v733, 0.0
        %v1054 = vmax.f32 %v924, 0.0
        %v1055 = vmax.f32 %v926, 0.0
        %v1056 = vpack.c.bf16 %v932, %v928
        %v1057 = vpack.c.bf16 %v933, %v929
        %v1058 = vpack.c.bf16 %v934, %v930
        %v1059 = vpack.c.bf16 %v935, %v931
        %v1060 = vpack.c.bf16 %v940, %v936
        %v1061 = vpack.c.bf16 %v941, %v937
        %v1062 = vpack.c.bf16 %v942, %v938
        %v1063 = vpack.c.bf16 %v943, %v939
        %v1064 = vpack.c.bf16 %v948, %v944
        %v1065 = vpack.c.bf16 %v949, %v945
        %v1066 = vpack.c.bf16 %v950, %v946
        %v1067 = vpack.c.bf16 %v951, %v947
        %v1068 = vpack.c.bf16 %v956, %v952
        %v1069 = vpack.c.bf16 %v957, %v953
        %v1070 = vpack.c.bf16 %v958, %v954
        %v1071 = vpack.c.bf16 %v959, %v955
        %v1072 = vpack.c.bf16 %v964, %v960
        %v1073 = vpack.c.bf16 %v965, %v961
        %v1074 = vpack.c.bf16 %v966, %v962
        %v1075 = vpack.c.bf16 %v967, %v963
        %v1076 = vpack.c.bf16 %v972, %v968
        %v1077 = vpack.c.bf16 %v973, %v969
        %v1078 = vpack.c.bf16 %v974, %v970
        %v1079 = vpack.c.bf16 %v975, %v971
        %v1080 = vpack.c.bf16 %v980, %v976
        %v1081 = vpack.c.bf16 %v981, %v977
        %v1082 = vpack.c.bf16 %v982, %v978
        %v1083 = vpack.c.bf16 %v983, %v979
        %v1084 = vpack.c.bf16 %v988, %v984
        %v1085 = vpack.c.bf16 %v989, %v985
        %v1086 = vpack.c.bf16 %v990, %v986
        %v1087 = vpack.c.bf16 %v991, %v987
        %v1088 = vpack.c.bf16 %v996, %v992
        %v1089 = vpack.c.bf16 %v997, %v993
        %v1090 = vpack.c.bf16 %v998, %v994
        %v1091 = vpack.c.bf16 %v999, %v995
        %v1092 = vpack.c.bf16 %v1004, %v1000
        %v1093 = vpack.c.bf16 %v1005, %v1001
        %v1094 = vpack.c.bf16 %v1006, %v1002
        %v1095 = vpack.c.bf16 %v1007, %v1003
        %v1096 = vpack.c.bf16 %v1012, %v1008
        %v1097 = vpack.c.bf16 %v1013, %v1009
        %v1098 = vpack.c.bf16 %v1014, %v1010
        %v1099 = vpack.c.bf16 %v1015, %v1011
        %v1100 = vpack.c.bf16 %v1020, %v1016
        %v1101 = vpack.c.bf16 %v1021, %v1017
        %v1102 = vpack.c.bf16 %v1022, %v1018
        %v1103 = vpack.c.bf16 %v1023, %v1019
        %v1104 = vpack.c.bf16 %v1028, %v1024
        %v1105 = vpack.c.bf16 %v1029, %v1025
        %v1106 = vpack.c.bf16 %v1030, %v1026
        %v1107 = vpack.c.bf16 %v1031, %v1027
        %v1108 = vpack.c.bf16 %v1036, %v1032
        %v1109 = vpack.c.bf16 %v1037, %v1033
        %v1110 = vpack.c.bf16 %v1038, %v1034
        %v1111 = vpack.c.bf16 %v1039, %v1035
        %v1112 = vpack.c.bf16 %v1044, %v1040
        %v1113 = vpack.c.bf16 %v1045, %v1041
        %v1114 = vpack.c.bf16 %v1046, %v1042
        %v1115 = vpack.c.bf16 %v1047, %v1043
        %v1116 = vpack.c.bf16 %v1052, %v1048
        %v1117 = vpack.c.bf16 %v1053, %v1049
        %v1118 = vpack.c.bf16 %v1054, %v1050
        %v1119 = vpack.c.bf16 %v1055, %v1051
        %v1120 = vld [vmem:[#allocation2] sm:$0xff]
        %v1121 = vld [vmem:[#allocation2 + $0x8] sm:$0xff]
        %v1122 = vld [vmem:[#allocation2 + $0x10] sm:$0xff]
        %v1123 = vld [vmem:[#allocation2 + $0x18] sm:$0xff]
        %v1124 = vld [vmem:[#allocation2 + $0x20] sm:$0xff]
        %v1125 = vld [vmem:[#allocation2 + $0x28] sm:$0xff]
        %v1126 = vld [vmem:[#allocation2 + $0x30] sm:$0xff]
        %v1127 = vld [vmem:[#allocation2 + $0x38] sm:$0xff]
        %v1128 = vld [vmem:[#allocation2 + $0x40] sm:$0xff]
        %v1129 = vld [vmem:[#allocation2 + $0x48] sm:$0xff]
        %v1130 = vld [vmem:[#allocation2 + $0x50] sm:$0xff]
        %v1131 = vld [vmem:[#allocation2 + $0x58] sm:$0xff]
        %v1132 = vld [vmem:[#allocation2 + $0x60] sm:$0xff]
        %v1133 = vld [vmem:[#allocation2 + $0x68] sm:$0xff]
        %v1134 = vld [vmem:[#allocation2 + $0x70] sm:$0xff]
        %v1135 = vld [vmem:[#allocation2 + $0x78] sm:$0xff]
        %v1136 = vld [vmem:[#allocation2 + $0x80] sm:$0xff]
        %v1137 = vld [vmem:[#allocation2 + $0x88] sm:$0xff]
        %v1138 = vld [vmem:[#allocation2 + $0x90] sm:$0xff]
        %v1139 = vld [vmem:[#allocation2 + $0x98] sm:$0xff]
        %v1140 = vld [vmem:[#allocation2 + $0xa0] sm:$0xff]
        %v1141 = vld [vmem:[#allocation2 + $0xa8] sm:$0xff]
        %v1142 = vld [vmem:[#allocation2 + $0xb0] sm:$0xff]
        %v1143 = vld [vmem:[#allocation2 + $0xb8] sm:$0xff]
        %v1144 = vld [vmem:[#allocation2 + $0xc0] sm:$0xff]
        %v1145 = vld [vmem:[#allocation2 + $0xc8] sm:$0xff]
        %v1146 = vld [vmem:[#allocation2 + $0xd0] sm:$0xff]
        %v1147 = vld [vmem:[#allocation2 + $0xd8] sm:$0xff]
        %v1148 = vld [vmem:[#allocation2 + $0xe0] sm:$0xff]
        %v1149 = vld [vmem:[#allocation2 + $0xe8] sm:$0xff]
        %v1150 = vld [vmem:[#allocation2 + $0xf0] sm:$0xff]
        %v1151 = vld [vmem:[#allocation2 + $0xf8] sm:$0xff]
        %v1152 = vld [vmem:[#allocation2 + $0x100] sm:$0xff]
        %v1153 = vld [vmem:[#allocation2 + $0x108] sm:$0xff]
        %v1154 = vld [vmem:[#allocation2 + $0x110] sm:$0xff]
        %v1155 = vld [vmem:[#allocation2 + $0x118] sm:$0xff]
        %v1156 = vld [vmem:[#allocation2 + $0x120] sm:$0xff]
        %v1157 = vld [vmem:[#allocation2 + $0x128] sm:$0xff]
        %v1158 = vld [vmem:[#allocation2 + $0x130] sm:$0xff]
        %v1159 = vld [vmem:[#allocation2 + $0x138] sm:$0xff]
        %v1160 = vld [vmem:[#allocation2 + $0x140] sm:$0xff]
        %v1161 = vld [vmem:[#allocation2 + $0x148] sm:$0xff]
        %v1162 = vld [vmem:[#allocation2 + $0x150] sm:$0xff]
        %v1163 = vld [vmem:[#allocation2 + $0x158] sm:$0xff]
        %v1164 = vld [vmem:[#allocation2 + $0x160] sm:$0xff]
        %v1165 = vld [vmem:[#allocation2 + $0x168] sm:$0xff]
        %v1166 = vld [vmem:[#allocation2 + $0x170] sm:$0xff]
        %v1167 = vld [vmem:[#allocation2 + $0x178] sm:$0xff]
        %v1168 = vld [vmem:[#allocation2 + $0x180] sm:$0xff]
        %v1169 = vld [vmem:[#allocation2 + $0x188] sm:$0xff]
        %v1170 = vld [vmem:[#allocation2 + $0x190] sm:$0xff]
        %v1171 = vld [vmem:[#allocation2 + $0x198] sm:$0xff]
        %v1172 = vld [vmem:[#allocation2 + $0x1a0] sm:$0xff]
        %v1173 = vld [vmem:[#allocation2 + $0x1a8] sm:$0xff]
        %v1174 = vld [vmem:[#allocation2 + $0x1b0] sm:$0xff]
        %v1175 = vld [vmem:[#allocation2 + $0x1b8] sm:$0xff]
        %v1176 = vld [vmem:[#allocation2 + $0x1c0] sm:$0xff]
        %v1177 = vld [vmem:[#allocation2 + $0x1c8] sm:$0xff]
        %v1178 = vld [vmem:[#allocation2 + $0x1d0] sm:$0xff]
        %v1179 = vld [vmem:[#allocation2 + $0x1d8] sm:$0xff]
        %v1180 = vld [vmem:[#allocation2 + $0x1e0] sm:$0xff]
        %v1181 = vld [vmem:[#allocation2 + $0x1e8] sm:$0xff]
        %v1182 = vld [vmem:[#allocation2 + $0x1f0] sm:$0xff]
        %v1183 = vld [vmem:[#allocation2 + $0x1f8] sm:$0xff]
        %v1184 = vld [vmem:[#allocation2 + $0x200] sm:$0xff]
        %v1185 = vld [vmem:[#allocation2 + $0x208] sm:$0xff]
        %v1186 = vld [vmem:[#allocation2 + $0x210] sm:$0xff]
        %v1187 = vld [vmem:[#allocation2 + $0x218] sm:$0xff]
        %v1188 = vld [vmem:[#allocation2 + $0x220] sm:$0xff]
        %v1189 = vld [vmem:[#allocation2 + $0x228] sm:$0xff]
        %v1190 = vld [vmem:[#allocation2 + $0x230] sm:$0xff]
        %v1191 = vld [vmem:[#allocation2 + $0x238] sm:$0xff]
        %v1192 = vld [vmem:[#allocation2 + $0x240] sm:$0xff]
        %v1193 = vld [vmem:[#allocation2 + $0x248] sm:$0xff]
        %v1194 = vld [vmem:[#allocation2 + $0x250] sm:$0xff]
        %v1195 = vld [vmem:[#allocation2 + $0x258] sm:$0xff]
        %v1196 = vld [vmem:[#allocation2 + $0x260] sm:$0xff]
        %v1197 = vld [vmem:[#allocation2 + $0x268] sm:$0xff]
        %v1198 = vld [vmem:[#allocation2 + $0x270] sm:$0xff]
        %v1199 = vld [vmem:[#allocation2 + $0x278] sm:$0xff]
        %v1200 = vld [vmem:[#allocation2 + $0x280] sm:$0xff]
        %v1201 = vld [vmem:[#allocation2 + $0x288] sm:$0xff]
        %v1202 = vld [vmem:[#allocation2 + $0x290] sm:$0xff]
        %v1203 = vld [vmem:[#allocation2 + $0x298] sm:$0xff]
        %v1204 = vld [vmem:[#allocation2 + $0x2a0] sm:$0xff]
        %v1205 = vld [vmem:[#allocation2 + $0x2a8] sm:$0xff]
        %v1206 = vld [vmem:[#allocation2 + $0x2b0] sm:$0xff]
        %v1207 = vld [vmem:[#allocation2 + $0x2b8] sm:$0xff]
        %v1208 = vld [vmem:[#allocation2 + $0x2c0] sm:$0xff]
        %v1209 = vld [vmem:[#allocation2 + $0x2c8] sm:$0xff]
        %v1210 = vld [vmem:[#allocation2 + $0x2d0] sm:$0xff]
        %v1211 = vld [vmem:[#allocation2 + $0x2d8] sm:$0xff]
        %v1212 = vld [vmem:[#allocation2 + $0x2e0] sm:$0xff]
        %v1213 = vld [vmem:[#allocation2 + $0x2e8] sm:$0xff]
        %v1214 = vld [vmem:[#allocation2 + $0x2f0] sm:$0xff]
        %v1215 = vld [vmem:[#allocation2 + $0x2f8] sm:$0xff]
        %v1216 = vld [vmem:[#allocation2 + $0x300] sm:$0xff]
        %v1217 = vld [vmem:[#allocation2 + $0x308] sm:$0xff]
        %v1218 = vld [vmem:[#allocation2 + $0x310] sm:$0xff]
        %v1219 = vld [vmem:[#allocation2 + $0x318] sm:$0xff]
        %v1220 = vld [vmem:[#allocation2 + $0x320] sm:$0xff]
        %v1221 = vld [vmem:[#allocation2 + $0x328] sm:$0xff]
        %v1222 = vld [vmem:[#allocation2 + $0x330] sm:$0xff]
        %v1223 = vld [vmem:[#allocation2 + $0x338] sm:$0xff]
        %v1224 = vld [vmem:[#allocation2 + $0x340] sm:$0xff]
        %v1225 = vld [vmem:[#allocation2 + $0x348] sm:$0xff]
        %v1226 = vld [vmem:[#allocation2 + $0x350] sm:$0xff]
        %v1227 = vld [vmem:[#allocation2 + $0x358] sm:$0xff]
        %v1228 = vld [vmem:[#allocation2 + $0x360] sm:$0xff]
        %v1229 = vld [vmem:[#allocation2 + $0x368] sm:$0xff]
        %v1230 = vld [vmem:[#allocation2 + $0x370] sm:$0xff]
        %v1231 = vld [vmem:[#allocation2 + $0x378] sm:$0xff]
        %v1232 = vld [vmem:[#allocation2 + $0x380] sm:$0xff]
        %v1233 = vld [vmem:[#allocation2 + $0x388] sm:$0xff]
        %v1234 = vld [vmem:[#allocation2 + $0x390] sm:$0xff]
        %v1235 = vld [vmem:[#allocation2 + $0x398] sm:$0xff]
        %v1236 = vld [vmem:[#allocation2 + $0x3a0] sm:$0xff]
        %v1237 = vld [vmem:[#allocation2 + $0x3a8] sm:$0xff]
        %v1238 = vld [vmem:[#allocation2 + $0x3b0] sm:$0xff]
        %v1239 = vld [vmem:[#allocation2 + $0x3b8] sm:$0xff]
        %v1240 = vld [vmem:[#allocation2 + $0x3c0] sm:$0xff]
        %v1241 = vld [vmem:[#allocation2 + $0x3c8] sm:$0xff]
        %v1242 = vld [vmem:[#allocation2 + $0x3d0] sm:$0xff]
        %v1243 = vld [vmem:[#allocation2 + $0x3d8] sm:$0xff]
        %v1244 = vld [vmem:[#allocation2 + $0x3e0] sm:$0xff]
        %v1245 = vld [vmem:[#allocation2 + $0x3e8] sm:$0xff]
        %v1246 = vld [vmem:[#allocation2 + $0x3f0] sm:$0xff]
        %v1247 = vld [vmem:[#allocation2 + $0x3f8] sm:$0xff]
        %v1248 = vld [vmem:[#allocation2 + $0x400] sm:$0xff]
        %v1249 = vld [vmem:[#allocation2 + $0x408] sm:$0xff]
        %v1250 = vld [vmem:[#allocation2 + $0x410] sm:$0xff]
        %v1251 = vld [vmem:[#allocation2 + $0x418] sm:$0xff]
        %v1252 = vld [vmem:[#allocation2 + $0x420] sm:$0xff]
        %v1253 = vld [vmem:[#allocation2 + $0x428] sm:$0xff]
        %v1254 = vld [vmem:[#allocation2 + $0x430] sm:$0xff]
        %v1255 = vld [vmem:[#allocation2 + $0x438] sm:$0xff]
        %v1256 = vld [vmem:[#allocation2 + $0x440] sm:$0xff]
        %v1257 = vld [vmem:[#allocation2 + $0x448] sm:$0xff]
        %v1258 = vld [vmem:[#allocation2 + $0x450] sm:$0xff]
        %v1259 = vld [vmem:[#allocation2 + $0x458] sm:$0xff]
        %v1260 = vld [vmem:[#allocation2 + $0x460] sm:$0xff]
        %v1261 = vld [vmem:[#allocation2 + $0x468] sm:$0xff]
        %v1262 = vld [vmem:[#allocation2 + $0x470] sm:$0xff]
        %v1263 = vld [vmem:[#allocation2 + $0x478] sm:$0xff]
        %v1264 = vld [vmem:[#allocation2 + $0x480] sm:$0xff]
        %v1265 = vld [vmem:[#allocation2 + $0x488] sm:$0xff]
        %v1266 = vld [vmem:[#allocation2 + $0x490] sm:$0xff]
        %v1267 = vld [vmem:[#allocation2 + $0x498] sm:$0xff]
        %v1268 = vld [vmem:[#allocation2 + $0x4a0] sm:$0xff]
        %v1269 = vld [vmem:[#allocation2 + $0x4a8] sm:$0xff]
        %v1270 = vld [vmem:[#allocation2 + $0x4b0] sm:$0xff]
        %v1271 = vld [vmem:[#allocation2 + $0x4b8] sm:$0xff]
        %v1272 = vld [vmem:[#allocation2 + $0x4c0] sm:$0xff]
        %v1273 = vld [vmem:[#allocation2 + $0x4c8] sm:$0xff]
        %v1274 = vld [vmem:[#allocation2 + $0x4d0] sm:$0xff]
        %v1275 = vld [vmem:[#allocation2 + $0x4d8] sm:$0xff]
        %v1276 = vld [vmem:[#allocation2 + $0x4e0] sm:$0xff]
        %v1277 = vld [vmem:[#allocation2 + $0x4e8] sm:$0xff]
        %v1278 = vld [vmem:[#allocation2 + $0x4f0] sm:$0xff]
        %v1279 = vld [vmem:[#allocation2 + $0x4f8] sm:$0xff]
        %v1280 = vld [vmem:[#allocation2 + $0x500] sm:$0xff]
        %v1281 = vld [vmem:[#allocation2 + $0x508] sm:$0xff]
        %v1282 = vld [vmem:[#allocation2 + $0x510] sm:$0xff]
        %v1283 = vld [vmem:[#allocation2 + $0x518] sm:$0xff]
        %v1284 = vld [vmem:[#allocation2 + $0x520] sm:$0xff]
        %v1285 = vld [vmem:[#allocation2 + $0x528] sm:$0xff]
        %v1286 = vld [vmem:[#allocation2 + $0x530] sm:$0xff]
        %v1287 = vld [vmem:[#allocation2 + $0x538] sm:$0xff]
        %v1288 = vld [vmem:[#allocation2 + $0x540] sm:$0xff]
        %v1289 = vld [vmem:[#allocation2 + $0x548] sm:$0xff]
        %v1290 = vld [vmem:[#allocation2 + $0x550] sm:$0xff]
        %v1291 = vld [vmem:[#allocation2 + $0x558] sm:$0xff]
        %v1292 = vld [vmem:[#allocation2 + $0x560] sm:$0xff]
        %v1293 = vld [vmem:[#allocation2 + $0x568] sm:$0xff]
        %v1294 = vld [vmem:[#allocation2 + $0x570] sm:$0xff]
        %v1295 = vld [vmem:[#allocation2 + $0x578] sm:$0xff]
        %v1296 = vld [vmem:[#allocation2 + $0x580] sm:$0xff]
        %v1297 = vld [vmem:[#allocation2 + $0x588] sm:$0xff]
        %v1298 = vld [vmem:[#allocation2 + $0x590] sm:$0xff]
        %v1299 = vld [vmem:[#allocation2 + $0x598] sm:$0xff]
        %v1300 = vld [vmem:[#allocation2 + $0x5a0] sm:$0xff]
        %v1301 = vld [vmem:[#allocation2 + $0x5a8] sm:$0xff]
        %v1302 = vld [vmem:[#allocation2 + $0x5b0] sm:$0xff]
        %v1303 = vld [vmem:[#allocation2 + $0x5b8] sm:$0xff]
        %v1304 = vld [vmem:[#allocation2 + $0x5c0] sm:$0xff]
        %v1305 = vld [vmem:[#allocation2 + $0x5c8] sm:$0xff]
        %v1306 = vld [vmem:[#allocation2 + $0x5d0] sm:$0xff]
        %v1307 = vld [vmem:[#allocation2 + $0x5d8] sm:$0xff]
        %v1308 = vld [vmem:[#allocation2 + $0x5e0] sm:$0xff]
        %v1309 = vld [vmem:[#allocation2 + $0x5e8] sm:$0xff]
        %v1310 = vld [vmem:[#allocation2 + $0x5f0] sm:$0xff]
        %v1311 = vld [vmem:[#allocation2 + $0x5f8] sm:$0xff]
        %v1312 = vld [vmem:[#allocation2 + $0x600] sm:$0xff]
        %v1313 = vld [vmem:[#allocation2 + $0x608] sm:$0xff]
        %v1314 = vld [vmem:[#allocation2 + $0x610] sm:$0xff]
        %v1315 = vld [vmem:[#allocation2 + $0x618] sm:$0xff]
        %v1316 = vld [vmem:[#allocation2 + $0x620] sm:$0xff]
        %v1317 = vld [vmem:[#allocation2 + $0x628] sm:$0xff]
        %v1318 = vld [vmem:[#allocation2 + $0x630] sm:$0xff]
        %v1319 = vld [vmem:[#allocation2 + $0x638] sm:$0xff]
        %v1320 = vld [vmem:[#allocation2 + $0x640] sm:$0xff]
        %v1321 = vld [vmem:[#allocation2 + $0x648] sm:$0xff]
        %v1322 = vld [vmem:[#allocation2 + $0x650] sm:$0xff]
        %v1323 = vld [vmem:[#allocation2 + $0x658] sm:$0xff]
        %v1324 = vld [vmem:[#allocation2 + $0x660] sm:$0xff]
        %v1325 = vld [vmem:[#allocation2 + $0x668] sm:$0xff]
        %v1326 = vld [vmem:[#allocation2 + $0x670] sm:$0xff]
        %v1327 = vld [vmem:[#allocation2 + $0x678] sm:$0xff]
        %v1328 = vld [vmem:[#allocation2 + $0x680] sm:$0xff]
        %v1329 = vld [vmem:[#allocation2 + $0x688] sm:$0xff]
        %v1330 = vld [vmem:[#allocation2 + $0x690] sm:$0xff]
        %v1331 = vld [vmem:[#allocation2 + $0x698] sm:$0xff]
        %v1332 = vld [vmem:[#allocation2 + $0x6a0] sm:$0xff]
        %v1333 = vld [vmem:[#allocation2 + $0x6a8] sm:$0xff]
        %v1334 = vld [vmem:[#allocation2 + $0x6b0] sm:$0xff]
        %v1335 = vld [vmem:[#allocation2 + $0x6b8] sm:$0xff]
        %v1336 = vld [vmem:[#allocation2 + $0x6c0] sm:$0xff]
        %v1337 = vld [vmem:[#allocation2 + $0x6c8] sm:$0xff]
        %v1338 = vld [vmem:[#allocation2 + $0x6d0] sm:$0xff]
        %v1339 = vld [vmem:[#allocation2 + $0x6d8] sm:$0xff]
        %v1340 = vld [vmem:[#allocation2 + $0x6e0] sm:$0xff]
        %v1341 = vld [vmem:[#allocation2 + $0x6e8] sm:$0xff]
        %v1342 = vld [vmem:[#allocation2 + $0x6f0] sm:$0xff]
        %v1343 = vld [vmem:[#allocation2 + $0x6f8] sm:$0xff]
        %v1344 = vld [vmem:[#allocation2 + $0x700] sm:$0xff]
        %v1345 = vld [vmem:[#allocation2 + $0x708] sm:$0xff]
        %v1346 = vld [vmem:[#allocation2 + $0x710] sm:$0xff]
        %v1347 = vld [vmem:[#allocation2 + $0x718] sm:$0xff]
        %v1348 = vld [vmem:[#allocation2 + $0x720] sm:$0xff]
        %v1349 = vld [vmem:[#allocation2 + $0x728] sm:$0xff]
        %v1350 = vld [vmem:[#allocation2 + $0x730] sm:$0xff]
        %v1351 = vld [vmem:[#allocation2 + $0x738] sm:$0xff]
        %v1352 = vld [vmem:[#allocation2 + $0x740] sm:$0xff]
        %v1353 = vld [vmem:[#allocation2 + $0x748] sm:$0xff]
        %v1354 = vld [vmem:[#allocation2 + $0x750] sm:$0xff]
        %v1355 = vld [vmem:[#allocation2 + $0x758] sm:$0xff]
        %v1356 = vld [vmem:[#allocation2 + $0x760] sm:$0xff]
        %v1357 = vld [vmem:[#allocation2 + $0x768] sm:$0xff]
        %v1358 = vld [vmem:[#allocation2 + $0x770] sm:$0xff]
        %v1359 = vld [vmem:[#allocation2 + $0x778] sm:$0xff]
        %v1360 = vld [vmem:[#allocation2 + $0x780] sm:$0xff]
        %v1361 = vld [vmem:[#allocation2 + $0x788] sm:$0xff]
        %v1362 = vld [vmem:[#allocation2 + $0x790] sm:$0xff]
        %v1363 = vld [vmem:[#allocation2 + $0x798] sm:$0xff]
        %v1364 = vld [vmem:[#allocation2 + $0x7a0] sm:$0xff]
        %v1365 = vld [vmem:[#allocation2 + $0x7a8] sm:$0xff]
        %v1366 = vld [vmem:[#allocation2 + $0x7b0] sm:$0xff]
        %v1367 = vld [vmem:[#allocation2 + $0x7b8] sm:$0xff]
        %v1368 = vld [vmem:[#allocation2 + $0x7c0] sm:$0xff]
        %v1369 = vld [vmem:[#allocation2 + $0x7c8] sm:$0xff]
        %v1370 = vld [vmem:[#allocation2 + $0x7d0] sm:$0xff]
        %v1371 = vld [vmem:[#allocation2 + $0x7d8] sm:$0xff]
        %v1372 = vld [vmem:[#allocation2 + $0x7e0] sm:$0xff]
        %v1373 = vld [vmem:[#allocation2 + $0x7e8] sm:$0xff]
        %v1374 = vld [vmem:[#allocation2 + $0x7f0] sm:$0xff]
        %v1375 = vld [vmem:[#allocation2 + $0x7f8] sm:$0xff]
        %v1376 = vld [vmem:[%s4] sm:$0xff]
        %v1378 = vlaneseq
        %v1379 = vshrl.u32 %v1378, 7
        %v1380 = vsub.s32 0, %v1379
        %v1381 = vrot.slane %v1376, %v1380
        %v1382 = vlaneseq
        %v1383 = vshrl.u32 %v1382, 7
        %v1384 = vsub.s32 1, %v1383
        %v1385 = vrot.slane %v1376, %v1384
        %v1386 = vlaneseq
        %v1387 = vshrl.u32 %v1386, 7
        %v1388 = vsub.s32 2, %v1387
        %v1389 = vrot.slane %v1376, %v1388
        %v1390 = vlaneseq
        %v1391 = vshrl.u32 %v1390, 7
        %v1392 = vsub.s32 3, %v1391
        %v1393 = vrot.slane %v1376, %v1392
        %v1394 = vlaneseq
        %v1395 = vshrl.u32 %v1394, 7
        %v1396 = vsub.s32 4, %v1395
        %v1397 = vrot.slane %v1376, %v1396
        %v1398 = vlaneseq
        %v1399 = vshrl.u32 %v1398, 7
        %v1400 = vsub.s32 5, %v1399
        %v1401 = vrot.slane %v1376, %v1400
        %v1402 = vlaneseq
        %v1403 = vshrl.u32 %v1402, 7
        %v1404 = vsub.s32 6, %v1403
        %v1405 = vrot.slane %v1376, %v1404
        %v1406 = vlaneseq
        %v1407 = vshrl.u32 %v1406, 7
        %v1408 = vsub.s32 7, %v1407
        %v1409 = vrot.slane %v1376, %v1408
        %v1674 = vunpack.c.l.b16 %v1120
        %v1675 = vunpack.c.h.b16 %v1120
        %v1676 = vunpack.c.l.b16 %v1121
        %v1677 = vunpack.c.h.b16 %v1121
        %v1678 = vunpack.c.l.b16 %v1122
        %v1679 = vunpack.c.h.b16 %v1122
        %v1680 = vunpack.c.l.b16 %v1123
        %v1681 = vunpack.c.h.b16 %v1123
        %v1682 = vunpack.c.l.b16 %v1124
        %v1683 = vunpack.c.h.b16 %v1124
        %v1684 = vunpack.c.l.b16 %v1125
        %v1685 = vunpack.c.h.b16 %v1125
        %v1686 = vunpack.c.l.b16 %v1126
        %v1687 = vunpack.c.h.b16 %v1126
        %v1688 = vunpack.c.l.b16 %v1127
        %v1689 = vunpack.c.h.b16 %v1127
        %v1690 = vunpack.c.l.b16 %v1128
        %v1691 = vunpack.c.h.b16 %v1128
        %v1692 = vunpack.c.l.b16 %v1129
        %v1693 = vunpack.c.h.b16 %v1129
        %v1694 = vunpack.c.l.b16 %v1130
        %v1695 = vunpack.c.h.b16 %v1130
        %v1696 = vunpack.c.l.b16 %v1131
        %v1697 = vunpack.c.h.b16 %v1131
        %v1698 = vunpack.c.l.b16 %v1132
        %v1699 = vunpack.c.h.b16 %v1132
        %v1700 = vunpack.c.l.b16 %v1133
        %v1701 = vunpack.c.h.b16 %v1133
        %v1702 = vunpack.c.l.b16 %v1134
        %v1703 = vunpack.c.h.b16 %v1134
        %v1704 = vunpack.c.l.b16 %v1135
        %v1705 = vunpack.c.h.b16 %v1135
        %v1706 = vunpack.c.l.b16 %v1136
        %v1707 = vunpack.c.h.b16 %v1136
        %v1708 = vunpack.c.l.b16 %v1137
        %v1709 = vunpack.c.h.b16 %v1137
        %v1710 = vunpack.c.l.b16 %v1138
        %v1711 = vunpack.c.h.b16 %v1138
        %v1712 = vunpack.c.l.b16 %v1139
        %v1713 = vunpack.c.h.b16 %v1139
        %v1714 = vunpack.c.l.b16 %v1140
        %v1715 = vunpack.c.h.b16 %v1140
        %v1716 = vunpack.c.l.b16 %v1141
        %v1717 = vunpack.c.h.b16 %v1141
        %v1718 = vunpack.c.l.b16 %v1142
        %v1719 = vunpack.c.h.b16 %v1142
        %v1720 = vunpack.c.l.b16 %v1143
        %v1721 = vunpack.c.h.b16 %v1143
        %v1722 = vunpack.c.l.b16 %v1144
        %v1723 = vunpack.c.h.b16 %v1144
        %v1724 = vunpack.c.l.b16 %v1145
        %v1725 = vunpack.c.h.b16 %v1145
        %v1726 = vunpack.c.l.b16 %v1146
        %v1727 = vunpack.c.h.b16 %v1146
        %v1728 = vunpack.c.l.b16 %v1147
        %v1729 = vunpack.c.h.b16 %v1147
        %v1730 = vunpack.c.l.b16 %v1148
        %v1731 = vunpack.c.h.b16 %v1148
        %v1732 = vunpack.c.l.b16 %v1149
        %v1733 = vunpack.c.h.b16 %v1149
        %v1734 = vunpack.c.l.b16 %v1150
        %v1735 = vunpack.c.h.b16 %v1150
        %v1736 = vunpack.c.l.b16 %v1151
        %v1737 = vunpack.c.h.b16 %v1151
        %v1738 = vunpack.c.l.b16 %v1152
        %v1739 = vunpack.c.h.b16 %v1152
        %v1740 = vunpack.c.l.b16 %v1153
        %v1741 = vunpack.c.h.b16 %v1153
        %v1742 = vunpack.c.l.b16 %v1154
        %v1743 = vunpack.c.h.b16 %v1154
        %v1744 = vunpack.c.l.b16 %v1155
        %v1745 = vunpack.c.h.b16 %v1155
        %v1746 = vunpack.c.l.b16 %v1156
        %v1747 = vunpack.c.h.b16 %v1156
        %v1748 = vunpack.c.l.b16 %v1157
        %v1749 = vunpack.c.h.b16 %v1157
        %v1750 = vunpack.c.l.b16 %v1158
        %v1751 = vunpack.c.h.b16 %v1158
        %v1752 = vunpack.c.l.b16 %v1159
        %v1753 = vunpack.c.h.b16 %v1159
        %v1754 = vunpack.c.l.b16 %v1160
        %v1755 = vunpack.c.h.b16 %v1160
        %v1756 = vunpack.c.l.b16 %v1161
        %v1757 = vunpack.c.h.b16 %v1161
        %v1758 = vunpack.c.l.b16 %v1162
        %v1759 = vunpack.c.h.b16 %v1162
        %v1760 = vunpack.c.l.b16 %v1163
        %v1761 = vunpack.c.h.b16 %v1163
        %v1762 = vunpack.c.l.b16 %v1164
        %v1763 = vunpack.c.h.b16 %v1164
        %v1764 = vunpack.c.l.b16 %v1165
        %v1765 = vunpack.c.h.b16 %v1165
        %v1766 = vunpack.c.l.b16 %v1166
        %v1767 = vunpack.c.h.b16 %v1166
        %v1768 = vunpack.c.l.b16 %v1167
        %v1769 = vunpack.c.h.b16 %v1167
        %v1770 = vunpack.c.l.b16 %v1168
        %v1771 = vunpack.c.h.b16 %v1168
        %v1772 = vunpack.c.l.b16 %v1169
        %v1773 = vunpack.c.h.b16 %v1169
        %v1774 = vunpack.c.l.b16 %v1170
        %v1775 = vunpack.c.h.b16 %v1170
        %v1776 = vunpack.c.l.b16 %v1171
        %v1777 = vunpack.c.h.b16 %v1171
        %v1778 = vunpack.c.l.b16 %v1172
        %v1779 = vunpack.c.h.b16 %v1172
        %v1780 = vunpack.c.l.b16 %v1173
        %v1781 = vunpack.c.h.b16 %v1173
        %v1782 = vunpack.c.l.b16 %v1174
        %v1783 = vunpack.c.h.b16 %v1174
        %v1784 = vunpack.c.l.b16 %v1175
        %v1785 = vunpack.c.h.b16 %v1175
        %v1786 = vunpack.c.l.b16 %v1176
        %v1787 = vunpack.c.h.b16 %v1176
        %v1788 = vunpack.c.l.b16 %v1177
        %v1789 = vunpack.c.h.b16 %v1177
        %v1790 = vunpack.c.l.b16 %v1178
        %v1791 = vunpack.c.h.b16 %v1178
        %v1792 = vunpack.c.l.b16 %v1179
        %v1793 = vunpack.c.h.b16 %v1179
        %v1794 = vunpack.c.l.b16 %v1180
        %v1795 = vunpack.c.h.b16 %v1180
        %v1796 = vunpack.c.l.b16 %v1181
        %v1797 = vunpack.c.h.b16 %v1181
        %v1798 = vunpack.c.l.b16 %v1182
        %v1799 = vunpack.c.h.b16 %v1182
        %v1800 = vunpack.c.l.b16 %v1183
        %v1801 = vunpack.c.h.b16 %v1183
        %v1802 = vunpack.c.l.b16 %v1184
        %v1803 = vunpack.c.h.b16 %v1184
        %v1804 = vunpack.c.l.b16 %v1185
        %v1805 = vunpack.c.h.b16 %v1185
        %v1806 = vunpack.c.l.b16 %v1186
        %v1807 = vunpack.c.h.b16 %v1186
        %v1808 = vunpack.c.l.b16 %v1187
        %v1809 = vunpack.c.h.b16 %v1187
        %v1810 = vunpack.c.l.b16 %v1188
        %v1811 = vunpack.c.h.b16 %v1188
        %v1812 = vunpack.c.l.b16 %v1189
        %v1813 = vunpack.c.h.b16 %v1189
        %v1814 = vunpack.c.l.b16 %v1190
        %v1815 = vunpack.c.h.b16 %v1190
        %v1816 = vunpack.c.l.b16 %v1191
        %v1817 = vunpack.c.h.b16 %v1191
        %v1818 = vunpack.c.l.b16 %v1192
        %v1819 = vunpack.c.h.b16 %v1192
        %v1820 = vunpack.c.l.b16 %v1193
        %v1821 = vunpack.c.h.b16 %v1193
        %v1822 = vunpack.c.l.b16 %v1194
        %v1823 = vunpack.c.h.b16 %v1194
        %v1824 = vunpack.c.l.b16 %v1195
        %v1825 = vunpack.c.h.b16 %v1195
        %v1826 = vunpack.c.l.b16 %v1196
        %v1827 = vunpack.c.h.b16 %v1196
        %v1828 = vunpack.c.l.b16 %v1197
        %v1829 = vunpack.c.h.b16 %v1197
        %v1830 = vunpack.c.l.b16 %v1198
        %v1831 = vunpack.c.h.b16 %v1198
        %v1832 = vunpack.c.l.b16 %v1199
        %v1833 = vunpack.c.h.b16 %v1199
        %v1834 = vunpack.c.l.b16 %v1200
        %v1835 = vunpack.c.h.b16 %v1200
        %v1836 = vunpack.c.l.b16 %v1201
        %v1837 = vunpack.c.h.b16 %v1201
        %v1838 = vunpack.c.l.b16 %v1202
        %v1839 = vunpack.c.h.b16 %v1202
        %v1840 = vunpack.c.l.b16 %v1203
        %v1841 = vunpack.c.h.b16 %v1203
        %v1842 = vunpack.c.l.b16 %v1204
        %v1843 = vunpack.c.h.b16 %v1204
        %v1844 = vunpack.c.l.b16 %v1205
        %v1845 = vunpack.c.h.b16 %v1205
        %v1846 = vunpack.c.l.b16 %v1206
        %v1847 = vunpack.c.h.b16 %v1206
        %v1848 = vunpack.c.l.b16 %v1207
        %v1849 = vunpack.c.h.b16 %v1207
        %v1850 = vunpack.c.l.b16 %v1208
        %v1851 = vunpack.c.h.b16 %v1208
        %v1852 = vunpack.c.l.b16 %v1209
        %v1853 = vunpack.c.h.b16 %v1209
        %v1854 = vunpack.c.l.b16 %v1210
        %v1855 = vunpack.c.h.b16 %v1210
        %v1856 = vunpack.c.l.b16 %v1211
        %v1857 = vunpack.c.h.b16 %v1211
        %v1858 = vunpack.c.l.b16 %v1212
        %v1859 = vunpack.c.h.b16 %v1212
        %v1860 = vunpack.c.l.b16 %v1213
        %v1861 = vunpack.c.h.b16 %v1213
        %v1862 = vunpack.c.l.b16 %v1214
        %v1863 = vunpack.c.h.b16 %v1214
        %v1864 = vunpack.c.l.b16 %v1215
        %v1865 = vunpack.c.h.b16 %v1215
        %v1866 = vunpack.c.l.b16 %v1216
        %v1867 = vunpack.c.h.b16 %v1216
        %v1868 = vunpack.c.l.b16 %v1217
        %v1869 = vunpack.c.h.b16 %v1217
        %v1870 = vunpack.c.l.b16 %v1218
        %v1871 = vunpack.c.h.b16 %v1218
        %v1872 = vunpack.c.l.b16 %v1219
        %v1873 = vunpack.c.h.b16 %v1219
        %v1874 = vunpack.c.l.b16 %v1220
        %v1875 = vunpack.c.h.b16 %v1220
        %v1876 = vunpack.c.l.b16 %v1221
        %v1877 = vunpack.c.h.b16 %v1221
        %v1878 = vunpack.c.l.b16 %v1222
        %v1879 = vunpack.c.h.b16 %v1222
        %v1880 = vunpack.c.l.b16 %v1223
        %v1881 = vunpack.c.h.b16 %v1223
        %v1882 = vunpack.c.l.b16 %v1224
        %v1883 = vunpack.c.h.b16 %v1224
        %v1884 = vunpack.c.l.b16 %v1225
        %v1885 = vunpack.c.h.b16 %v1225
        %v1886 = vunpack.c.l.b16 %v1226
        %v1887 = vunpack.c.h.b16 %v1226
        %v1888 = vunpack.c.l.b16 %v1227
        %v1889 = vunpack.c.h.b16 %v1227
        %v1890 = vunpack.c.l.b16 %v1228
        %v1891 = vunpack.c.h.b16 %v1228
        %v1892 = vunpack.c.l.b16 %v1229
        %v1893 = vunpack.c.h.b16 %v1229
        %v1894 = vunpack.c.l.b16 %v1230
        %v1895 = vunpack.c.h.b16 %v1230
        %v1896 = vunpack.c.l.b16 %v1231
        %v1897 = vunpack.c.h.b16 %v1231
        %v1898 = vunpack.c.l.b16 %v1232
        %v1899 = vunpack.c.h.b16 %v1232
        %v1900 = vunpack.c.l.b16 %v1233
        %v1901 = vunpack.c.h.b16 %v1233
        %v1902 = vunpack.c.l.b16 %v1234
        %v1903 = vunpack.c.h.b16 %v1234
        %v1904 = vunpack.c.l.b16 %v1235
        %v1905 = vunpack.c.h.b16 %v1235
        %v1906 = vunpack.c.l.b16 %v1236
        %v1907 = vunpack.c.h.b16 %v1236
        %v1908 = vunpack.c.l.b16 %v1237
        %v1909 = vunpack.c.h.b16 %v1237
        %v1910 = vunpack.c.l.b16 %v1238
        %v1911 = vunpack.c.h.b16 %v1238
        %v1912 = vunpack.c.l.b16 %v1239
        %v1913 = vunpack.c.h.b16 %v1239
        %v1914 = vunpack.c.l.b16 %v1240
        %v1915 = vunpack.c.h.b16 %v1240
        %v1916 = vunpack.c.l.b16 %v1241
        %v1917 = vunpack.c.h.b16 %v1241
        %v1918 = vunpack.c.l.b16 %v1242
        %v1919 = vunpack.c.h.b16 %v1242
        %v1920 = vunpack.c.l.b16 %v1243
        %v1921 = vunpack.c.h.b16 %v1243
        %v1922 = vunpack.c.l.b16 %v1244
        %v1923 = vunpack.c.h.b16 %v1244
        %v1924 = vunpack.c.l.b16 %v1245
        %v1925 = vunpack.c.h.b16 %v1245
        %v1926 = vunpack.c.l.b16 %v1246
        %v1927 = vunpack.c.h.b16 %v1246
        %v1928 = vunpack.c.l.b16 %v1247
        %v1929 = vunpack.c.h.b16 %v1247
        %v1930 = vunpack.c.l.b16 %v1248
        %v1931 = vunpack.c.h.b16 %v1248
        %v1932 = vunpack.c.l.b16 %v1249
        %v1933 = vunpack.c.h.b16 %v1249
        %v1934 = vunpack.c.l.b16 %v1250
        %v1935 = vunpack.c.h.b16 %v1250
        %v1936 = vunpack.c.l.b16 %v1251
        %v1937 = vunpack.c.h.b16 %v1251
        %v1938 = vunpack.c.l.b16 %v1252
        %v1939 = vunpack.c.h.b16 %v1252
        %v1940 = vunpack.c.l.b16 %v1253
        %v1941 = vunpack.c.h.b16 %v1253
        %v1942 = vunpack.c.l.b16 %v1254
        %v1943 = vunpack.c.h.b16 %v1254
        %v1944 = vunpack.c.l.b16 %v1255
        %v1945 = vunpack.c.h.b16 %v1255
        %v1946 = vunpack.c.l.b16 %v1256
        %v1947 = vunpack.c.h.b16 %v1256
        %v1948 = vunpack.c.l.b16 %v1257
        %v1949 = vunpack.c.h.b16 %v1257
        %v1950 = vunpack.c.l.b16 %v1258
        %v1951 = vunpack.c.h.b16 %v1258
        %v1952 = vunpack.c.l.b16 %v1259
        %v1953 = vunpack.c.h.b16 %v1259
        %v1954 = vunpack.c.l.b16 %v1260
        %v1955 = vunpack.c.h.b16 %v1260
        %v1956 = vunpack.c.l.b16 %v1261
        %v1957 = vunpack.c.h.b16 %v1261
        %v1958 = vunpack.c.l.b16 %v1262
        %v1959 = vunpack.c.h.b16 %v1262
        %v1960 = vunpack.c.l.b16 %v1263
        %v1961 = vunpack.c.h.b16 %v1263
        %v1962 = vunpack.c.l.b16 %v1264
        %v1963 = vunpack.c.h.b16 %v1264
        %v1964 = vunpack.c.l.b16 %v1265
        %v1965 = vunpack.c.h.b16 %v1265
        %v1966 = vunpack.c.l.b16 %v1266
        %v1967 = vunpack.c.h.b16 %v1266
        %v1968 = vunpack.c.l.b16 %v1267
        %v1969 = vunpack.c.h.b16 %v1267
        %v1970 = vunpack.c.l.b16 %v1268
        %v1971 = vunpack.c.h.b16 %v1268
        %v1972 = vunpack.c.l.b16 %v1269
        %v1973 = vunpack.c.h.b16 %v1269
        %v1974 = vunpack.c.l.b16 %v1270
        %v1975 = vunpack.c.h.b16 %v1270
        %v1976 = vunpack.c.l.b16 %v1271
        %v1977 = vunpack.c.h.b16 %v1271
        %v1978 = vunpack.c.l.b16 %v1272
        %v1979 = vunpack.c.h.b16 %v1272
        %v1980 = vunpack.c.l.b16 %v1273
        %v1981 = vunpack.c.h.b16 %v1273
        %v1982 = vunpack.c.l.b16 %v1274
        %v1983 = vunpack.c.h.b16 %v1274
        %v1984 = vunpack.c.l.b16 %v1275
        %v1985 = vunpack.c.h.b16 %v1275
        %v1986 = vunpack.c.l.b16 %v1276
        %v1987 = vunpack.c.h.b16 %v1276
        %v1988 = vunpack.c.l.b16 %v1277
        %v1989 = vunpack.c.h.b16 %v1277
        %v1990 = vunpack.c.l.b16 %v1278
        %v1991 = vunpack.c.h.b16 %v1278
        %v1992 = vunpack.c.l.b16 %v1279
        %v1993 = vunpack.c.h.b16 %v1279
        %v1994 = vunpack.c.l.b16 %v1280
        %v1995 = vunpack.c.h.b16 %v1280
        %v1996 = vunpack.c.l.b16 %v1281
        %v1997 = vunpack.c.h.b16 %v1281
        %v1998 = vunpack.c.l.b16 %v1282
        %v1999 = vunpack.c.h.b16 %v1282
        %v2000 = vunpack.c.l.b16 %v1283
        %v2001 = vunpack.c.h.b16 %v1283
        %v2002 = vunpack.c.l.b16 %v1284
        %v2003 = vunpack.c.h.b16 %v1284
        %v2004 = vunpack.c.l.b16 %v1285
        %v2005 = vunpack.c.h.b16 %v1285
        %v2006 = vunpack.c.l.b16 %v1286
        %v2007 = vunpack.c.h.b16 %v1286
        %v2008 = vunpack.c.l.b16 %v1287
        %v2009 = vunpack.c.h.b16 %v1287
        %v2010 = vunpack.c.l.b16 %v1288
        %v2011 = vunpack.c.h.b16 %v1288
        %v2012 = vunpack.c.l.b16 %v1289
        %v2013 = vunpack.c.h.b16 %v1289
        %v2014 = vunpack.c.l.b16 %v1290
        %v2015 = vunpack.c.h.b16 %v1290
        %v2016 = vunpack.c.l.b16 %v1291
        %v2017 = vunpack.c.h.b16 %v1291
        %v2018 = vunpack.c.l.b16 %v1292
        %v2019 = vunpack.c.h.b16 %v1292
        %v2020 = vunpack.c.l.b16 %v1293
        %v2021 = vunpack.c.h.b16 %v1293
        %v2022 = vunpack.c.l.b16 %v1294
        %v2023 = vunpack.c.h.b16 %v1294
        %v2024 = vunpack.c.l.b16 %v1295
        %v2025 = vunpack.c.h.b16 %v1295
        %v2026 = vunpack.c.l.b16 %v1296
        %v2027 = vunpack.c.h.b16 %v1296
        %v2028 = vunpack.c.l.b16 %v1297
        %v2029 = vunpack.c.h.b16 %v1297
        %v2030 = vunpack.c.l.b16 %v1298
        %v2031 = vunpack.c.h.b16 %v1298
        %v2032 = vunpack.c.l.b16 %v1299
        %v2033 = vunpack.c.h.b16 %v1299
        %v2034 = vunpack.c.l.b16 %v1300
        %v2035 = vunpack.c.h.b16 %v1300
        %v2036 = vunpack.c.l.b16 %v1301
        %v2037 = vunpack.c.h.b16 %v1301
        %v2038 = vunpack.c.l.b16 %v1302
        %v2039 = vunpack.c.h.b16 %v1302
        %v2040 = vunpack.c.l.b16 %v1303
        %v2041 = vunpack.c.h.b16 %v1303
        %v2042 = vunpack.c.l.b16 %v1304
        %v2043 = vunpack.c.h.b16 %v1304
        %v2044 = vunpack.c.l.b16 %v1305
        %v2045 = vunpack.c.h.b16 %v1305
        %v2046 = vunpack.c.l.b16 %v1306
        %v2047 = vunpack.c.h.b16 %v1306
        %v2048 = vunpack.c.l.b16 %v1307
        %v2049 = vunpack.c.h.b16 %v1307
        %v2050 = vunpack.c.l.b16 %v1308
        %v2051 = vunpack.c.h.b16 %v1308
        %v2052 = vunpack.c.l.b16 %v1309
        %v2053 = vunpack.c.h.b16 %v1309
        %v2054 = vunpack.c.l.b16 %v1310
        %v2055 = vunpack.c.h.b16 %v1310
        %v2056 = vunpack.c.l.b16 %v1311
        %v2057 = vunpack.c.h.b16 %v1311
        %v2058 = vunpack.c.l.b16 %v1312
        %v2059 = vunpack.c.h.b16 %v1312
        %v2060 = vunpack.c.l.b16 %v1313
        %v2061 = vunpack.c.h.b16 %v1313
        %v2062 = vunpack.c.l.b16 %v1314
        %v2063 = vunpack.c.h.b16 %v1314
        %v2064 = vunpack.c.l.b16 %v1315
        %v2065 = vunpack.c.h.b16 %v1315
        %v2066 = vunpack.c.l.b16 %v1316
        %v2067 = vunpack.c.h.b16 %v1316
        %v2068 = vunpack.c.l.b16 %v1317
        %v2069 = vunpack.c.h.b16 %v1317
        %v2070 = vunpack.c.l.b16 %v1318
        %v2071 = vunpack.c.h.b16 %v1318
        %v2072 = vunpack.c.l.b16 %v1319
        %v2073 = vunpack.c.h.b16 %v1319
        %v2074 = vunpack.c.l.b16 %v1320
        %v2075 = vunpack.c.h.b16 %v1320
        %v2076 = vunpack.c.l.b16 %v1321
        %v2077 = vunpack.c.h.b16 %v1321
        %v2078 = vunpack.c.l.b16 %v1322
        %v2079 = vunpack.c.h.b16 %v1322
        %v2080 = vunpack.c.l.b16 %v1323
        %v2081 = vunpack.c.h.b16 %v1323
        %v2082 = vunpack.c.l.b16 %v1324
        %v2083 = vunpack.c.h.b16 %v1324
        %v2084 = vunpack.c.l.b16 %v1325
        %v2085 = vunpack.c.h.b16 %v1325
        %v2086 = vunpack.c.l.b16 %v1326
        %v2087 = vunpack.c.h.b16 %v1326
        %v2088 = vunpack.c.l.b16 %v1327
        %v2089 = vunpack.c.h.b16 %v1327
        %v2090 = vunpack.c.l.b16 %v1328
        %v2091 = vunpack.c.h.b16 %v1328
        %v2092 = vunpack.c.l.b16 %v1329
        %v2093 = vunpack.c.h.b16 %v1329
        %v2094 = vunpack.c.l.b16 %v1330
        %v2095 = vunpack.c.h.b16 %v1330
        %v2096 = vunpack.c.l.b16 %v1331
        %v2097 = vunpack.c.h.b16 %v1331
        %v2098 = vunpack.c.l.b16 %v1332
        %v2099 = vunpack.c.h.b16 %v1332
        %v2100 = vunpack.c.l.b16 %v1333
        %v2101 = vunpack.c.h.b16 %v1333
        %v2102 = vunpack.c.l.b16 %v1334
        %v2103 = vunpack.c.h.b16 %v1334
        %v2104 = vunpack.c.l.b16 %v1335
        %v2105 = vunpack.c.h.b16 %v1335
        %v2106 = vunpack.c.l.b16 %v1336
        %v2107 = vunpack.c.h.b16 %v1336
        %v2108 = vunpack.c.l.b16 %v1337
        %v2109 = vunpack.c.h.b16 %v1337
        %v2110 = vunpack.c.l.b16 %v1338
        %v2111 = vunpack.c.h.b16 %v1338
        %v2112 = vunpack.c.l.b16 %v1339
        %v2113 = vunpack.c.h.b16 %v1339
        %v2114 = vunpack.c.l.b16 %v1340
        %v2115 = vunpack.c.h.b16 %v1340
        %v2116 = vunpack.c.l.b16 %v1341
        %v2117 = vunpack.c.h.b16 %v1341
        %v2118 = vunpack.c.l.b16 %v1342
        %v2119 = vunpack.c.h.b16 %v1342
        %v2120 = vunpack.c.l.b16 %v1343
        %v2121 = vunpack.c.h.b16 %v1343
        %v2122 = vunpack.c.l.b16 %v1344
        %v2123 = vunpack.c.h.b16 %v1344
        %v2124 = vunpack.c.l.b16 %v1345
        %v2125 = vunpack.c.h.b16 %v1345
        %v2126 = vunpack.c.l.b16 %v1346
        %v2127 = vunpack.c.h.b16 %v1346
        %v2128 = vunpack.c.l.b16 %v1347
        %v2129 = vunpack.c.h.b16 %v1347
        %v2130 = vunpack.c.l.b16 %v1348
        %v2131 = vunpack.c.h.b16 %v1348
        %v2132 = vunpack.c.l.b16 %v1349
        %v2133 = vunpack.c.h.b16 %v1349
        %v2134 = vunpack.c.l.b16 %v1350
        %v2135 = vunpack.c.h.b16 %v1350
        %v2136 = vunpack.c.l.b16 %v1351
        %v2137 = vunpack.c.h.b16 %v1351
        %v2138 = vunpack.c.l.b16 %v1352
        %v2139 = vunpack.c.h.b16 %v1352
        %v2140 = vunpack.c.l.b16 %v1353
        %v2141 = vunpack.c.h.b16 %v1353
        %v2142 = vunpack.c.l.b16 %v1354
        %v2143 = vunpack.c.h.b16 %v1354
        %v2144 = vunpack.c.l.b16 %v1355
        %v2145 = vunpack.c.h.b16 %v1355
        %v2146 = vunpack.c.l.b16 %v1356
        %v2147 = vunpack.c.h.b16 %v1356
        %v2148 = vunpack.c.l.b16 %v1357
        %v2149 = vunpack.c.h.b16 %v1357
        %v2150 = vunpack.c.l.b16 %v1358
        %v2151 = vunpack.c.h.b16 %v1358
        %v2152 = vunpack.c.l.b16 %v1359
        %v2153 = vunpack.c.h.b16 %v1359
        %v2154 = vunpack.c.l.b16 %v1360
        %v2155 = vunpack.c.h.b16 %v1360
        %v2156 = vunpack.c.l.b16 %v1361
        %v2157 = vunpack.c.h.b16 %v1361
        %v2158 = vunpack.c.l.b16 %v1362
        %v2159 = vunpack.c.h.b16 %v1362
        %v2160 = vunpack.c.l.b16 %v1363
        %v2161 = vunpack.c.h.b16 %v1363
        %v2162 = vunpack.c.l.b16 %v1364
        %v2163 = vunpack.c.h.b16 %v1364
        %v2164 = vunpack.c.l.b16 %v1365
        %v2165 = vunpack.c.h.b16 %v1365
        %v2166 = vunpack.c.l.b16 %v1366
        %v2167 = vunpack.c.h.b16 %v1366
        %v2168 = vunpack.c.l.b16 %v1367
        %v2169 = vunpack.c.h.b16 %v1367
        %v2170 = vunpack.c.l.b16 %v1368
        %v2171 = vunpack.c.h.b16 %v1368
        %v2172 = vunpack.c.l.b16 %v1369
        %v2173 = vunpack.c.h.b16 %v1369
        %v2174 = vunpack.c.l.b16 %v1370
        %v2175 = vunpack.c.h.b16 %v1370
        %v2176 = vunpack.c.l.b16 %v1371
        %v2177 = vunpack.c.h.b16 %v1371
        %v2178 = vunpack.c.l.b16 %v1372
        %v2179 = vunpack.c.h.b16 %v1372
        %v2180 = vunpack.c.l.b16 %v1373
        %v2181 = vunpack.c.h.b16 %v1373
        %v2182 = vunpack.c.l.b16 %v1374
        %v2183 = vunpack.c.h.b16 %v1374
        %v2184 = vunpack.c.l.b16 %v1375
        %v2185 = vunpack.c.h.b16 %v1375
        %v2186 = vpack.c.b16 %v1682, %v1674
        %v2187 = vpack.c.b16 %v1683, %v1675
        %v2188 = vpack.c.b16 %v1684, %v1676
        %v2189 = vpack.c.b16 %v1685, %v1677
        %v2190 = vpack.c.b16 %v1686, %v1678
        %v2191 = vpack.c.b16 %v1687, %v1679
        %v2192 = vpack.c.b16 %v1688, %v1680
        %v2193 = vpack.c.b16 %v1689, %v1681
        %v2194 = vpack.c.b16 %v1698, %v1690
        %v2195 = vpack.c.b16 %v1699, %v1691
        %v2196 = vpack.c.b16 %v1700, %v1692
        %v2197 = vpack.c.b16 %v1701, %v1693
        %v2198 = vpack.c.b16 %v1702, %v1694
        %v2199 = vpack.c.b16 %v1703, %v1695
        %v2200 = vpack.c.b16 %v1704, %v1696
        %v2201 = vpack.c.b16 %v1705, %v1697
        %v2202 = vpack.c.b16 %v1714, %v1706
        %v2203 = vpack.c.b16 %v1715, %v1707
        %v2204 = vpack.c.b16 %v1716, %v1708
        %v2205 = vpack.c.b16 %v1717, %v1709
        %v2206 = vpack.c.b16 %v1718, %v1710
        %v2207 = vpack.c.b16 %v1719, %v1711
        %v2208 = vpack.c.b16 %v1720, %v1712
        %v2209 = vpack.c.b16 %v1721, %v1713
        %v2210 = vpack.c.b16 %v1730, %v1722
        %v2211 = vpack.c.b16 %v1731, %v1723
        %v2212 = vpack.c.b16 %v1732, %v1724
        %v2213 = vpack.c.b16 %v1733, %v1725
        %v2214 = vpack.c.b16 %v1734, %v1726
        %v2215 = vpack.c.b16 %v1735, %v1727
        %v2216 = vpack.c.b16 %v1736, %v1728
        %v2217 = vpack.c.b16 %v1737, %v1729
        %v2218 = vpack.c.b16 %v1746, %v1738
        %v2219 = vpack.c.b16 %v1747, %v1739
        %v2220 = vpack.c.b16 %v1748, %v1740
        %v2221 = vpack.c.b16 %v1749, %v1741
        %v2222 = vpack.c.b16 %v1750, %v1742
        %v2223 = vpack.c.b16 %v1751, %v1743
        %v2224 = vpack.c.b16 %v1752, %v1744
        %v2225 = vpack.c.b16 %v1753, %v1745
        %v2226 = vpack.c.b16 %v1762, %v1754
        %v2227 = vpack.c.b16 %v1763, %v1755
        %v2228 = vpack.c.b16 %v1764, %v1756
        %v2229 = vpack.c.b16 %v1765, %v1757
        %v2230 = vpack.c.b16 %v1766, %v1758
        %v2231 = vpack.c.b16 %v1767, %v1759
        %v2232 = vpack.c.b16 %v1768, %v1760
        %v2233 = vpack.c.b16 %v1769, %v1761
        %v2234 = vpack.c.b16 %v1778, %v1770
        %v2235 = vpack.c.b16 %v1779, %v1771
        %v2236 = vpack.c.b16 %v1780, %v1772
        %v2237 = vpack.c.b16 %v1781, %v1773
        %v2238 = vpack.c.b16 %v1782, %v1774
        %v2239 = vpack.c.b16 %v1783, %v1775
        %v2240 = vpack.c.b16 %v1784, %v1776
        %v2241 = vpack.c.b16 %v1785, %v1777
        %v2242 = vpack.c.b16 %v1794, %v1786
        %v2243 = vpack.c.b16 %v1795, %v1787
        %v2244 = vpack.c.b16 %v1796, %v1788
        %v2245 = vpack.c.b16 %v1797, %v1789
        %v2246 = vpack.c.b16 %v1798, %v1790
        %v2247 = vpack.c.b16 %v1799, %v1791
        %v2248 = vpack.c.b16 %v1800, %v1792
        %v2249 = vpack.c.b16 %v1801, %v1793
        %v2250 = vpack.c.b16 %v1810, %v1802
        %v2251 = vpack.c.b16 %v1811, %v1803
        %v2252 = vpack.c.b16 %v1812, %v1804
        %v2253 = vpack.c.b16 %v1813, %v1805
        %v2254 = vpack.c.b16 %v1814, %v1806
        %v2255 = vpack.c.b16 %v1815, %v1807
        %v2256 = vpack.c.b16 %v1816, %v1808
        %v2257 = vpack.c.b16 %v1817, %v1809
        %v2258 = vpack.c.b16 %v1826, %v1818
        %v2259 = vpack.c.b16 %v1827, %v1819
        %v2260 = vpack.c.b16 %v1828, %v1820
        %v2261 = vpack.c.b16 %v1829, %v1821
        %v2262 = vpack.c.b16 %v1830, %v1822
        %v2263 = vpack.c.b16 %v1831, %v1823
        %v2264 = vpack.c.b16 %v1832, %v1824
        %v2265 = vpack.c.b16 %v1833, %v1825
        %v2266 = vpack.c.b16 %v1842, %v1834
        %v2267 = vpack.c.b16 %v1843, %v1835
        %v2268 = vpack.c.b16 %v1844, %v1836
        %v2269 = vpack.c.b16 %v1845, %v1837
        %v2270 = vpack.c.b16 %v1846, %v1838
        %v2271 = vpack.c.b16 %v1847, %v1839
        %v2272 = vpack.c.b16 %v1848, %v1840
        %v2273 = vpack.c.b16 %v1849, %v1841
        %v2274 = vpack.c.b16 %v1858, %v1850
        %v2275 = vpack.c.b16 %v1859, %v1851
        %v2276 = vpack.c.b16 %v1860, %v1852
        %v2277 = vpack.c.b16 %v1861, %v1853
        %v2278 = vpack.c.b16 %v1862, %v1854
        %v2279 = vpack.c.b16 %v1863, %v1855
        %v2280 = vpack.c.b16 %v1864, %v1856
        %v2281 = vpack.c.b16 %v1865, %v1857
        %v2282 = vpack.c.b16 %v1874, %v1866
        %v2283 = vpack.c.b16 %v1875, %v1867
        %v2284 = vpack.c.b16 %v1876, %v1868
        %v2285 = vpack.c.b16 %v1877, %v1869
        %v2286 = vpack.c.b16 %v1878, %v1870
        %v2287 = vpack.c.b16 %v1879, %v1871
        %v2288 = vpack.c.b16 %v1880, %v1872
        %v2289 = vpack.c.b16 %v1881, %v1873
        %v2290 = vpack.c.b16 %v1890, %v1882
        %v2291 = vpack.c.b16 %v1891, %v1883
        %v2292 = vpack.c.b16 %v1892, %v1884
        %v2293 = vpack.c.b16 %v1893, %v1885
        %v2294 = vpack.c.b16 %v1894, %v1886
        %v2295 = vpack.c.b16 %v1895, %v1887
        %v2296 = vpack.c.b16 %v1896, %v1888
        %v2297 = vpack.c.b16 %v1897, %v1889
        %v2298 = vpack.c.b16 %v1906, %v1898
        %v2299 = vpack.c.b16 %v1907, %v1899
        %v2300 = vpack.c.b16 %v1908, %v1900
        %v2301 = vpack.c.b16 %v1909, %v1901
        %v2302 = vpack.c.b16 %v1910, %v1902
        %v2303 = vpack.c.b16 %v1911, %v1903
        %v2304 = vpack.c.b16 %v1912, %v1904
        %v2305 = vpack.c.b16 %v1913, %v1905
        %v2306 = vpack.c.b16 %v1922, %v1914
        %v2307 = vpack.c.b16 %v1923, %v1915
        %v2308 = vpack.c.b16 %v1924, %v1916
        %v2309 = vpack.c.b16 %v1925, %v1917
        %v2310 = vpack.c.b16 %v1926, %v1918
        %v2311 = vpack.c.b16 %v1927, %v1919
        %v2312 = vpack.c.b16 %v1928, %v1920
        %v2313 = vpack.c.b16 %v1929, %v1921
        %v2314 = vpack.c.b16 %v1938, %v1930
        %v2315 = vpack.c.b16 %v1939, %v1931
        %v2316 = vpack.c.b16 %v1940, %v1932
        %v2317 = vpack.c.b16 %v1941, %v1933
        %v2318 = vpack.c.b16 %v1942, %v1934
        %v2319 = vpack.c.b16 %v1943, %v1935
        %v2320 = vpack.c.b16 %v1944, %v1936
        %v2321 = vpack.c.b16 %v1945, %v1937
        %v2322 = vpack.c.b16 %v1954, %v1946
        %v2323 = vpack.c.b16 %v1955, %v1947
        %v2324 = vpack.c.b16 %v1956, %v1948
        %v2325 = vpack.c.b16 %v1957, %v1949
        %v2326 = vpack.c.b16 %v1958, %v1950
        %v2327 = vpack.c.b16 %v1959, %v1951
        %v2328 = vpack.c.b16 %v1960, %v1952
        %v2329 = vpack.c.b16 %v1961, %v1953
        %v2330 = vpack.c.b16 %v1970, %v1962
        %v2331 = vpack.c.b16 %v1971, %v1963
        %v2332 = vpack.c.b16 %v1972, %v1964
        %v2333 = vpack.c.b16 %v1973, %v1965
        %v2334 = vpack.c.b16 %v1974, %v1966
        %v2335 = vpack.c.b16 %v1975, %v1967
        %v2336 = vpack.c.b16 %v1976, %v1968
        %v2337 = vpack.c.b16 %v1977, %v1969
        %v2338 = vpack.c.b16 %v1986, %v1978
        %v2339 = vpack.c.b16 %v1987, %v1979
        %v2340 = vpack.c.b16 %v1988, %v1980
        %v2341 = vpack.c.b16 %v1989, %v1981
        %v2342 = vpack.c.b16 %v1990, %v1982
        %v2343 = vpack.c.b16 %v1991, %v1983
        %v2344 = vpack.c.b16 %v1992, %v1984
        %v2345 = vpack.c.b16 %v1993, %v1985
        %v2346 = vpack.c.b16 %v2002, %v1994
        %v2347 = vpack.c.b16 %v2003, %v1995
        %v2348 = vpack.c.b16 %v2004, %v1996
        %v2349 = vpack.c.b16 %v2005, %v1997
        %v2350 = vpack.c.b16 %v2006, %v1998
        %v2351 = vpack.c.b16 %v2007, %v1999
        %v2352 = vpack.c.b16 %v2008, %v2000
        %v2353 = vpack.c.b16 %v2009, %v2001
        %v2354 = vpack.c.b16 %v2018, %v2010
        %v2355 = vpack.c.b16 %v2019, %v2011
        %v2356 = vpack.c.b16 %v2020, %v2012
        %v2357 = vpack.c.b16 %v2021, %v2013
        %v2358 = vpack.c.b16 %v2022, %v2014
        %v2359 = vpack.c.b16 %v2023, %v2015
        %v2360 = vpack.c.b16 %v2024, %v2016
        %v2361 = vpack.c.b16 %v2025, %v2017
        %v2362 = vpack.c.b16 %v2034, %v2026
        %v2363 = vpack.c.b16 %v2035, %v2027
        %v2364 = vpack.c.b16 %v2036, %v2028
        %v2365 = vpack.c.b16 %v2037, %v2029
        %v2366 = vpack.c.b16 %v2038, %v2030
        %v2367 = vpack.c.b16 %v2039, %v2031
        %v2368 = vpack.c.b16 %v2040, %v2032
        %v2369 = vpack.c.b16 %v2041, %v2033
        %v2370 = vpack.c.b16 %v2050, %v2042
        %v2371 = vpack.c.b16 %v2051, %v2043
        %v2372 = vpack.c.b16 %v2052, %v2044
        %v2373 = vpack.c.b16 %v2053, %v2045
        %v2374 = vpack.c.b16 %v2054, %v2046
        %v2375 = vpack.c.b16 %v2055, %v2047
        %v2376 = vpack.c.b16 %v2056, %v2048
        %v2377 = vpack.c.b16 %v2057, %v2049
        %v2378 = vpack.c.b16 %v2066, %v2058
        %v2379 = vpack.c.b16 %v2067, %v2059
        %v2380 = vpack.c.b16 %v2068, %v2060
        %v2381 = vpack.c.b16 %v2069, %v2061
        %v2382 = vpack.c.b16 %v2070, %v2062
        %v2383 = vpack.c.b16 %v2071, %v2063
        %v2384 = vpack.c.b16 %v2072, %v2064
        %v2385 = vpack.c.b16 %v2073, %v2065
        %v2386 = vpack.c.b16 %v2082, %v2074
        %v2387 = vpack.c.b16 %v2083, %v2075
        %v2388 = vpack.c.b16 %v2084, %v2076
        %v2389 = vpack.c.b16 %v2085, %v2077
        %v2390 = vpack.c.b16 %v2086, %v2078
        %v2391 = vpack.c.b16 %v2087, %v2079
        %v2392 = vpack.c.b16 %v2088, %v2080
        %v2393 = vpack.c.b16 %v2089, %v2081
        %v2394 = vpack.c.b16 %v2098, %v2090
        %v2395 = vpack.c.b16 %v2099, %v2091
        %v2396 = vpack.c.b16 %v2100, %v2092
        %v2397 = vpack.c.b16 %v2101, %v2093
        %v2398 = vpack.c.b16 %v2102, %v2094
        %v2399 = vpack.c.b16 %v2103, %v2095
        %v2400 = vpack.c.b16 %v2104, %v2096
        %v2401 = vpack.c.b16 %v2105, %v2097
        %v2402 = vpack.c.b16 %v2114, %v2106
        %v2403 = vpack.c.b16 %v2115, %v2107
        %v2404 = vpack.c.b16 %v2116, %v2108
        %v2405 = vpack.c.b16 %v2117, %v2109
        %v2406 = vpack.c.b16 %v2118, %v2110
        %v2407 = vpack.c.b16 %v2119, %v2111
        %v2408 = vpack.c.b16 %v2120, %v2112
        %v2409 = vpack.c.b16 %v2121, %v2113
        %v2410 = vpack.c.b16 %v2130, %v2122
        %v2411 = vpack.c.b16 %v2131, %v2123
        %v2412 = vpack.c.b16 %v2132, %v2124
        %v2413 = vpack.c.b16 %v2133, %v2125
        %v2414 = vpack.c.b16 %v2134, %v2126
        %v2415 = vpack.c.b16 %v2135, %v2127
        %v2416 = vpack.c.b16 %v2136, %v2128
        %v2417 = vpack.c.b16 %v2137, %v2129
        %v2418 = vpack.c.b16 %v2146, %v2138
        %v2419 = vpack.c.b16 %v2147, %v2139
        %v2420 = vpack.c.b16 %v2148, %v2140
        %v2421 = vpack.c.b16 %v2149, %v2141
        %v2422 = vpack.c.b16 %v2150, %v2142
        %v2423 = vpack.c.b16 %v2151, %v2143
        %v2424 = vpack.c.b16 %v2152, %v2144
        %v2425 = vpack.c.b16 %v2153, %v2145
        %v2426 = vpack.c.b16 %v2162, %v2154
        %v2427 = vpack.c.b16 %v2163, %v2155
        %v2428 = vpack.c.b16 %v2164, %v2156
        %v2429 = vpack.c.b16 %v2165, %v2157
        %v2430 = vpack.c.b16 %v2166, %v2158
        %v2431 = vpack.c.b16 %v2167, %v2159
        %v2432 = vpack.c.b16 %v2168, %v2160
        %v2433 = vpack.c.b16 %v2169, %v2161
        %v2434 = vpack.c.b16 %v2178, %v2170
        %v2435 = vpack.c.b16 %v2179, %v2171
        %v2436 = vpack.c.b16 %v2180, %v2172
        %v2437 = vpack.c.b16 %v2181, %v2173
        %v2438 = vpack.c.b16 %v2182, %v2174
        %v2439 = vpack.c.b16 %v2183, %v2175
        %v2440 = vpack.c.b16 %v2184, %v2176
        %v2441 = vpack.c.b16 %v2185, %v2177
        %2698 = vmatprep.subr.bf16.mxu0 %v2243
        %2699 = vmatpush1.bf16.msra.mxu0 %v2242
        %2700 = vmatprep.subr.bf16.mxu0 %v2235
        %2701 = vmatpush1.bf16.msra.mxu0 %v2234
        %2702 = vmatprep.subr.bf16.mxu0 %v2227
        %2703 = vmatpush1.bf16.msra.mxu0 %v2226
        %2704 = vmatprep.subr.bf16.mxu0 %v2219
        %2705 = vmatpush1.bf16.msra.mxu0 %v2218
        %2706 = vmatprep.subr.bf16.mxu0 %v2211
        %2707 = vmatpush1.bf16.msra.mxu0 %v2210
        %2708 = vmatprep.subr.bf16.mxu0 %v2203
        %2709 = vmatpush1.bf16.msra.mxu0 %v2202
        %2710 = vmatprep.subr.bf16.mxu0 %v2195
        %2711 = vmatpush1.bf16.msra.mxu0 %v2194
        %2712 = vmatprep.subr.bf16.mxu0 %v2187
        %2713 = vmatpush1.bf16.msra.mxu0 %v2186
        %2714 = vmatprep.subr.bf16.mxu0 %v2307
        %2715 = vmatpush2.bf16.msra.mxu0 %v2306
        %2716 = vmatprep.subr.bf16.mxu0 %v2299
        %2717 = vmatpush2.bf16.msra.mxu0 %v2298
        %2718 = vmatprep.subr.bf16.mxu0 %v2291
        %2719 = vmatpush2.bf16.msra.mxu0 %v2290
        %2720 = vmatprep.subr.bf16.mxu0 %v2283
        %2721 = vmatpush2.bf16.msra.mxu0 %v2282
        %2722 = vmatprep.subr.bf16.mxu0 %v2275
        %2723 = vmatpush2.bf16.msra.mxu0 %v2274
        %2724 = vmatprep.subr.bf16.mxu0 %v2267
        %2725 = vmatpush2.bf16.msra.mxu0 %v2266
        %2726 = vmatprep.subr.bf16.mxu0 %v2259
        %2727 = vmatpush2.bf16.msra.mxu0 %v2258
        %2728 = vmatprep.subr.bf16.mxu0 %v2251
        %2729 = vmatpush2.bf16.msra.mxu0 %v2250
        %2730 = vmatprep.mubr.bf16.mxu0 %v1057
        %2731 = vmatmul.mubr.bf16.gmra.mxu0 %v1056
        %v2732 = vpop.f32.mrf.mxu0
        %v2733 = vadd.f32 %v1381, %v2732
        %v2734 = vpop.f32.mrf.mxu0
        %v2735 = vadd.f32 %v1385, %v2734
        %v2736 = vpop.f32.mrf.mxu0
        %v2737 = vadd.f32 %v1381, %v2736
        %v2738 = vpop.f32.mrf.mxu0
        %v2739 = vadd.f32 %v1385, %v2738
        %2740 = vmatprep.mubr.bf16.mxu0 %v1061
        %2741 = vmatmul.mubr.bf16.gmra.mxu0 %v1060
        %v2742 = vpop.f32.mrf.mxu0
        %v2743 = vadd.f32 %v1381, %v2742
        %v2744 = vpop.f32.mrf.mxu0
        %v2745 = vadd.f32 %v1385, %v2744
        %v2746 = vpop.f32.mrf.mxu0
        %v2747 = vadd.f32 %v1381, %v2746
        %v2748 = vpop.f32.mrf.mxu0
        %v2749 = vadd.f32 %v1385, %v2748
        %2750 = vmatprep.mubr.bf16.mxu0 %v1065
        %2751 = vmatmul.mubr.bf16.gmra.mxu0 %v1064
        %v2752 = vpop.f32.mrf.mxu0
        %v2753 = vadd.f32 %v1381, %v2752
        %v2754 = vpop.f32.mrf.mxu0
        %v2755 = vadd.f32 %v1385, %v2754
        %v2756 = vpop.f32.mrf.mxu0
        %v2757 = vadd.f32 %v1381, %v2756
        %v2758 = vpop.f32.mrf.mxu0
        %v2759 = vadd.f32 %v1385, %v2758
        %2760 = vmatprep.mubr.bf16.mxu0 %v1069
        %2761 = vmatmul.mubr.bf16.gmra.mxu0 %v1068
        %v2762 = vpop.f32.mrf.mxu0
        %v2763 = vadd.f32 %v1381, %v2762
        %v2764 = vpop.f32.mrf.mxu0
        %v2765 = vadd.f32 %v1385, %v2764
        %v2766 = vpop.f32.mrf.mxu0
        %v2767 = vadd.f32 %v1381, %v2766
        %v2768 = vpop.f32.mrf.mxu0
        %v2769 = vadd.f32 %v1385, %v2768
        %2770 = vmatprep.mubr.bf16.mxu0 %v1073
        %2771 = vmatmul.mubr.bf16.gmra.mxu0 %v1072
        %v2772 = vpop.f32.mrf.mxu0
        %v2773 = vadd.f32 %v1381, %v2772
        %v2774 = vpop.f32.mrf.mxu0
        %v2775 = vadd.f32 %v1385, %v2774
        %v2776 = vpop.f32.mrf.mxu0
        %v2777 = vadd.f32 %v1381, %v2776
        %v2778 = vpop.f32.mrf.mxu0
        %v2779 = vadd.f32 %v1385, %v2778
        %2780 = vmatprep.mubr.bf16.mxu0 %v1077
        %2781 = vmatmul.mubr.bf16.gmra.mxu0 %v1076
        %v2782 = vpop.f32.mrf.mxu0
        %v2783 = vadd.f32 %v1381, %v2782
        %v2784 = vpop.f32.mrf.mxu0
        %v2785 = vadd.f32 %v1385, %v2784
        %v2786 = vpop.f32.mrf.mxu0
        %v2787 = vadd.f32 %v1381, %v2786
        %v2788 = vpop.f32.mrf.mxu0
        %v2789 = vadd.f32 %v1385, %v2788
        %2790 = vmatprep.mubr.bf16.mxu0 %v1081
        %2791 = vmatmul.mubr.bf16.gmra.mxu0 %v1080
        %v2792 = vpop.f32.mrf.mxu0
        %v2793 = vadd.f32 %v1381, %v2792
        %v2794 = vpop.f32.mrf.mxu0
        %v2795 = vadd.f32 %v1385, %v2794
        %v2796 = vpop.f32.mrf.mxu0
        %v2797 = vadd.f32 %v1381, %v2796
        %v2798 = vpop.f32.mrf.mxu0
        %v2799 = vadd.f32 %v1385, %v2798
        %2800 = vmatprep.mubr.bf16.mxu0 %v1085
        %2801 = vmatmul.mubr.bf16.gmra.mxu0 %v1084
        %v2802 = vpop.f32.mrf.mxu0
        %v2803 = vadd.f32 %v1381, %v2802
        %v2804 = vpop.f32.mrf.mxu0
        %v2805 = vadd.f32 %v1385, %v2804
        %v2806 = vpop.f32.mrf.mxu0
        %v2807 = vadd.f32 %v1381, %v2806
        %v2808 = vpop.f32.mrf.mxu0
        %v2809 = vadd.f32 %v1385, %v2808
        %2810 = vmatprep.mubr.bf16.mxu0 %v1089
        %2811 = vmatmul.mubr.bf16.gmra.mxu0 %v1088
        %v2812 = vpop.f32.mrf.mxu0
        %v2813 = vadd.f32 %v1381, %v2812
        %v2814 = vpop.f32.mrf.mxu0
        %v2815 = vadd.f32 %v1385, %v2814
        %v2816 = vpop.f32.mrf.mxu0
        %v2817 = vadd.f32 %v1381, %v2816
        %v2818 = vpop.f32.mrf.mxu0
        %v2819 = vadd.f32 %v1385, %v2818
        %2820 = vmatprep.mubr.bf16.mxu0 %v1093
        %2821 = vmatmul.mubr.bf16.gmra.mxu0 %v1092
        %v2822 = vpop.f32.mrf.mxu0
        %v2823 = vadd.f32 %v1381, %v2822
        %v2824 = vpop.f32.mrf.mxu0
        %v2825 = vadd.f32 %v1385, %v2824
        %v2826 = vpop.f32.mrf.mxu0
        %v2827 = vadd.f32 %v1381, %v2826
        %v2828 = vpop.f32.mrf.mxu0
        %v2829 = vadd.f32 %v1385, %v2828
        %2830 = vmatprep.mubr.bf16.mxu0 %v1097
        %2831 = vmatmul.mubr.bf16.gmra.mxu0 %v1096
        %v2832 = vpop.f32.mrf.mxu0
        %v2833 = vadd.f32 %v1381, %v2832
        %v2834 = vpop.f32.mrf.mxu0
        %v2835 = vadd.f32 %v1385, %v2834
        %v2836 = vpop.f32.mrf.mxu0
        %v2837 = vadd.f32 %v1381, %v2836
        %v2838 = vpop.f32.mrf.mxu0
        %v2839 = vadd.f32 %v1385, %v2838
        %2840 = vmatprep.mubr.bf16.mxu0 %v1101
        %2841 = vmatmul.mubr.bf16.gmra.mxu0 %v1100
        %v2842 = vpop.f32.mrf.mxu0
        %v2843 = vadd.f32 %v1381, %v2842
        %v2844 = vpop.f32.mrf.mxu0
        %v2845 = vadd.f32 %v1385, %v2844
        %v2846 = vpop.f32.mrf.mxu0
        %v2847 = vadd.f32 %v1381, %v2846
        %v2848 = vpop.f32.mrf.mxu0
        %v2849 = vadd.f32 %v1385, %v2848
        %2850 = vmatprep.mubr.bf16.mxu0 %v1105
        %2851 = vmatmul.mubr.bf16.gmra.mxu0 %v1104
        %v2852 = vpop.f32.mrf.mxu0
        %v2853 = vadd.f32 %v1381, %v2852
        %v2854 = vpop.f32.mrf.mxu0
        %v2855 = vadd.f32 %v1385, %v2854
        %v2856 = vpop.f32.mrf.mxu0
        %v2857 = vadd.f32 %v1381, %v2856
        %v2858 = vpop.f32.mrf.mxu0
        %v2859 = vadd.f32 %v1385, %v2858
        %2860 = vmatprep.mubr.bf16.mxu0 %v1109
        %2861 = vmatmul.mubr.bf16.gmra.mxu0 %v1108
        %v2862 = vpop.f32.mrf.mxu0
        %v2863 = vadd.f32 %v1381, %v2862
        %v2864 = vpop.f32.mrf.mxu0
        %v2865 = vadd.f32 %v1385, %v2864
        %v2866 = vpop.f32.mrf.mxu0
        %v2867 = vadd.f32 %v1381, %v2866
        %v2868 = vpop.f32.mrf.mxu0
        %v2869 = vadd.f32 %v1385, %v2868
        %2870 = vmatprep.mubr.bf16.mxu0 %v1113
        %2871 = vmatmul.mubr.bf16.gmra.mxu0 %v1112
        %v2872 = vpop.f32.mrf.mxu0
        %v2873 = vadd.f32 %v1381, %v2872
        %v2874 = vpop.f32.mrf.mxu0
        %v2875 = vadd.f32 %v1385, %v2874
        %v2876 = vpop.f32.mrf.mxu0
        %v2877 = vadd.f32 %v1381, %v2876
        %v2878 = vpop.f32.mrf.mxu0
        %v2879 = vadd.f32 %v1385, %v2878
        %2880 = vmatprep.mubr.bf16.mxu0 %v1117
        %2881 = vmatmul.mubr.bf16.gmra.mxu0 %v1116
        %v2882 = vpop.f32.mrf.mxu0
        %v2883 = vadd.f32 %v1381, %v2882
        %v2884 = vpop.f32.mrf.mxu0
        %v2885 = vadd.f32 %v1385, %v2884
        %v2886 = vpop.f32.mrf.mxu0
        %v2887 = vadd.f32 %v1381, %v2886
        %v2888 = vpop.f32.mrf.mxu0
        %v2889 = vadd.f32 %v1385, %v2888
        %2890 = vdwg.mxu0
        %2891 = vmatprep.subr.bf16.mxu0 %v2371
        %2892 = vmatpush1.bf16.msra.mxu0 %v2370
        %2893 = vmatprep.subr.bf16.mxu0 %v2363
        %2894 = vmatpush1.bf16.msra.mxu0 %v2362
        %2895 = vmatprep.subr.bf16.mxu0 %v2355
        %2896 = vmatpush1.bf16.msra.mxu0 %v2354
        %2897 = vmatprep.subr.bf16.mxu0 %v2347
        %2898 = vmatpush1.bf16.msra.mxu0 %v2346
        %2899 = vmatprep.subr.bf16.mxu0 %v2339
        %2900 = vmatpush1.bf16.msra.mxu0 %v2338
        %2901 = vmatprep.subr.bf16.mxu0 %v2331
        %2902 = vmatpush1.bf16.msra.mxu0 %v2330
        %2903 = vmatprep.subr.bf16.mxu0 %v2323
        %2904 = vmatpush1.bf16.msra.mxu0 %v2322
        %2905 = vmatprep.subr.bf16.mxu0 %v2315
        %2906 = vmatpush1.bf16.msra.mxu0 %v2314
        %2907 = vmatprep.subr.bf16.mxu0 %v2435
        %2908 = vmatpush2.bf16.msra.mxu0 %v2434
        %2909 = vmatprep.subr.bf16.mxu0 %v2427
        %2910 = vmatpush2.bf16.msra.mxu0 %v2426
        %2911 = vmatprep.subr.bf16.mxu0 %v2419
        %2912 = vmatpush2.bf16.msra.mxu0 %v2418
        %2913 = vmatprep.subr.bf16.mxu0 %v2411
        %2914 = vmatpush2.bf16.msra.mxu0 %v2410
        %2915 = vmatprep.subr.bf16.mxu0 %v2403
        %2916 = vmatpush2.bf16.msra.mxu0 %v2402
        %2917 = vmatprep.subr.bf16.mxu0 %v2395
        %2918 = vmatpush2.bf16.msra.mxu0 %v2394
        %2919 = vmatprep.subr.bf16.mxu0 %v2387
        %2920 = vmatpush2.bf16.msra.mxu0 %v2386
        %2921 = vmatprep.subr.bf16.mxu0 %v2379
        %2922 = vmatpush2.bf16.msra.mxu0 %v2378
        %2923 = vmatprep.mubr.bf16.mxu0 %v1059
        %2924 = vmatmul.mubr.bf16.gmra.mxu0 %v1058
        %v2925 = vpop.f32.mrf.mxu0
        %v2926 = vadd.f32 %v2733, %v2925
        %v2927 = vpop.f32.mrf.mxu0
        %v2928 = vadd.f32 %v2735, %v2927
        %v2929 = vpop.f32.mrf.mxu0
        %v2930 = vadd.f32 %v2737, %v2929
        %v2931 = vpop.f32.mrf.mxu0
        %v2932 = vadd.f32 %v2739, %v2931
        %2933 = vmatprep.mubr.bf16.mxu0 %v1063
        %2934 = vmatmul.mubr.bf16.gmra.mxu0 %v1062
        %v2935 = vpop.f32.mrf.mxu0
        %v2936 = vadd.f32 %v2743, %v2935
        %v2937 = vpop.f32.mrf.mxu0
        %v2938 = vadd.f32 %v2745, %v2937
        %v2939 = vpop.f32.mrf.mxu0
        %v2940 = vadd.f32 %v2747, %v2939
        %v2941 = vpop.f32.mrf.mxu0
        %v2942 = vadd.f32 %v2749, %v2941
        %2943 = vmatprep.mubr.bf16.mxu0 %v1067
        %2944 = vmatmul.mubr.bf16.gmra.mxu0 %v1066
        %v2945 = vpop.f32.mrf.mxu0
        %v2946 = vadd.f32 %v2753, %v2945
        %v2947 = vpop.f32.mrf.mxu0
        %v2948 = vadd.f32 %v2755, %v2947
        %v2949 = vpop.f32.mrf.mxu0
        %v2950 = vadd.f32 %v2757, %v2949
        %v2951 = vpop.f32.mrf.mxu0
        %v2952 = vadd.f32 %v2759, %v2951
        %2953 = vmatprep.mubr.bf16.mxu0 %v1071
        %2954 = vmatmul.mubr.bf16.gmra.mxu0 %v1070
        %v2955 = vpop.f32.mrf.mxu0
        %v2956 = vadd.f32 %v2763, %v2955
        %v2957 = vpop.f32.mrf.mxu0
        %v2958 = vadd.f32 %v2765, %v2957
        %v2959 = vpop.f32.mrf.mxu0
        %v2960 = vadd.f32 %v2767, %v2959
        %v2961 = vpop.f32.mrf.mxu0
        %v2962 = vadd.f32 %v2769, %v2961
        %2963 = vmatprep.mubr.bf16.mxu0 %v1075
        %2964 = vmatmul.mubr.bf16.gmra.mxu0 %v1074
        %v2965 = vpop.f32.mrf.mxu0
        %v2966 = vadd.f32 %v2773, %v2965
        %v2967 = vpop.f32.mrf.mxu0
        %v2968 = vadd.f32 %v2775, %v2967
        %v2969 = vpop.f32.mrf.mxu0
        %v2970 = vadd.f32 %v2777, %v2969
        %v2971 = vpop.f32.mrf.mxu0
        %v2972 = vadd.f32 %v2779, %v2971
        %2973 = vmatprep.mubr.bf16.mxu0 %v1079
        %2974 = vmatmul.mubr.bf16.gmra.mxu0 %v1078
        %v2975 = vpop.f32.mrf.mxu0
        %v2976 = vadd.f32 %v2783, %v2975
        %v2977 = vpop.f32.mrf.mxu0
        %v2978 = vadd.f32 %v2785, %v2977
        %v2979 = vpop.f32.mrf.mxu0
        %v2980 = vadd.f32 %v2787, %v2979
        %v2981 = vpop.f32.mrf.mxu0
        %v2982 = vadd.f32 %v2789, %v2981
        %2983 = vmatprep.mubr.bf16.mxu0 %v1083
        %2984 = vmatmul.mubr.bf16.gmra.mxu0 %v1082
        %v2985 = vpop.f32.mrf.mxu0
        %v2986 = vadd.f32 %v2793, %v2985
        %v2987 = vpop.f32.mrf.mxu0
        %v2988 = vadd.f32 %v2795, %v2987
        %v2989 = vpop.f32.mrf.mxu0
        %v2990 = vadd.f32 %v2797, %v2989
        %v2991 = vpop.f32.mrf.mxu0
        %v2992 = vadd.f32 %v2799, %v2991
        %2993 = vmatprep.mubr.bf16.mxu0 %v1087
        %2994 = vmatmul.mubr.bf16.gmra.mxu0 %v1086
        %v2995 = vpop.f32.mrf.mxu0
        %v2996 = vadd.f32 %v2803, %v2995
        %v2997 = vpop.f32.mrf.mxu0
        %v2998 = vadd.f32 %v2805, %v2997
        %v2999 = vpop.f32.mrf.mxu0
        %v3000 = vadd.f32 %v2807, %v2999
        %v3001 = vpop.f32.mrf.mxu0
        %v3002 = vadd.f32 %v2809, %v3001
        %3003 = vmatprep.mubr.bf16.mxu0 %v1091
        %3004 = vmatmul.mubr.bf16.gmra.mxu0 %v1090
        %v3005 = vpop.f32.mrf.mxu0
        %v3006 = vadd.f32 %v2813, %v3005
        %v3007 = vpop.f32.mrf.mxu0
        %v3008 = vadd.f32 %v2815, %v3007
        %v3009 = vpop.f32.mrf.mxu0
        %v3010 = vadd.f32 %v2817, %v3009
        %v3011 = vpop.f32.mrf.mxu0
        %v3012 = vadd.f32 %v2819, %v3011
        %3013 = vmatprep.mubr.bf16.mxu0 %v1095
        %3014 = vmatmul.mubr.bf16.gmra.mxu0 %v1094
        %v3015 = vpop.f32.mrf.mxu0
        %v3016 = vadd.f32 %v2823, %v3015
        %v3017 = vpop.f32.mrf.mxu0
        %v3018 = vadd.f32 %v2825, %v3017
        %v3019 = vpop.f32.mrf.mxu0
        %v3020 = vadd.f32 %v2827, %v3019
        %v3021 = vpop.f32.mrf.mxu0
        %v3022 = vadd.f32 %v2829, %v3021
        %3023 = vmatprep.mubr.bf16.mxu0 %v1099
        %3024 = vmatmul.mubr.bf16.gmra.mxu0 %v1098
        %v3025 = vpop.f32.mrf.mxu0
        %v3026 = vadd.f32 %v2833, %v3025
        %v3027 = vpop.f32.mrf.mxu0
        %v3028 = vadd.f32 %v2835, %v3027
        %v3029 = vpop.f32.mrf.mxu0
        %v3030 = vadd.f32 %v2837, %v3029
        %v3031 = vpop.f32.mrf.mxu0
        %v3032 = vadd.f32 %v2839, %v3031
        %3033 = vmatprep.mubr.bf16.mxu0 %v1103
        %3034 = vmatmul.mubr.bf16.gmra.mxu0 %v1102
        %v3035 = vpop.f32.mrf.mxu0
        %v3036 = vadd.f32 %v2843, %v3035
        %v3037 = vpop.f32.mrf.mxu0
        %v3038 = vadd.f32 %v2845, %v3037
        %v3039 = vpop.f32.mrf.mxu0
        %v3040 = vadd.f32 %v2847, %v3039
        %v3041 = vpop.f32.mrf.mxu0
        %v3042 = vadd.f32 %v2849, %v3041
        %3043 = vmatprep.mubr.bf16.mxu0 %v1107
        %3044 = vmatmul.mubr.bf16.gmra.mxu0 %v1106
        %v3045 = vpop.f32.mrf.mxu0
        %v3046 = vadd.f32 %v2853, %v3045
        %v3047 = vpop.f32.mrf.mxu0
        %v3048 = vadd.f32 %v2855, %v3047
        %v3049 = vpop.f32.mrf.mxu0
        %v3050 = vadd.f32 %v2857, %v3049
        %v3051 = vpop.f32.mrf.mxu0
        %v3052 = vadd.f32 %v2859, %v3051
        %3053 = vmatprep.mubr.bf16.mxu0 %v1111
        %3054 = vmatmul.mubr.bf16.gmra.mxu0 %v1110
        %v3055 = vpop.f32.mrf.mxu0
        %v3056 = vadd.f32 %v2863, %v3055
        %v3057 = vpop.f32.mrf.mxu0
        %v3058 = vadd.f32 %v2865, %v3057
        %v3059 = vpop.f32.mrf.mxu0
        %v3060 = vadd.f32 %v2867, %v3059
        %v3061 = vpop.f32.mrf.mxu0
        %v3062 = vadd.f32 %v2869, %v3061
        %3063 = vmatprep.mubr.bf16.mxu0 %v1115
        %3064 = vmatmul.mubr.bf16.gmra.mxu0 %v1114
        %v3065 = vpop.f32.mrf.mxu0
        %v3066 = vadd.f32 %v2873, %v3065
        %v3067 = vpop.f32.mrf.mxu0
        %v3068 = vadd.f32 %v2875, %v3067
        %v3069 = vpop.f32.mrf.mxu0
        %v3070 = vadd.f32 %v2877, %v3069
        %v3071 = vpop.f32.mrf.mxu0
        %v3072 = vadd.f32 %v2879, %v3071
        %3073 = vmatprep.mubr.bf16.mxu0 %v1119
        %3074 = vmatmul.mubr.bf16.gmra.mxu0 %v1118
        %v3075 = vpop.f32.mrf.mxu0
        %v3076 = vadd.f32 %v2883, %v3075
        %v3077 = vpop.f32.mrf.mxu0
        %v3078 = vadd.f32 %v2885, %v3077
        %v3079 = vpop.f32.mrf.mxu0
        %v3080 = vadd.f32 %v2887, %v3079
        %v3081 = vpop.f32.mrf.mxu0
        %v3082 = vadd.f32 %v2889, %v3081
        %3083 = vdwg.mxu0
        %3084 = vmatprep.subr.bf16.mxu0 %v2245
        %3085 = vmatpush1.bf16.msra.mxu0 %v2244
        %3086 = vmatprep.subr.bf16.mxu0 %v2237
        %3087 = vmatpush1.bf16.msra.mxu0 %v2236
        %3088 = vmatprep.subr.bf16.mxu0 %v2229
        %3089 = vmatpush1.bf16.msra.mxu0 %v2228
        %3090 = vmatprep.subr.bf16.mxu0 %v2221
        %3091 = vmatpush1.bf16.msra.mxu0 %v2220
        %3092 = vmatprep.subr.bf16.mxu0 %v2213
        %3093 = vmatpush1.bf16.msra.mxu0 %v2212
        %3094 = vmatprep.subr.bf16.mxu0 %v2205
        %3095 = vmatpush1.bf16.msra.mxu0 %v2204
        %3096 = vmatprep.subr.bf16.mxu0 %v2197
        %3097 = vmatpush1.bf16.msra.mxu0 %v2196
        %3098 = vmatprep.subr.bf16.mxu0 %v2189
        %3099 = vmatpush1.bf16.msra.mxu0 %v2188
        %3100 = vmatprep.subr.bf16.mxu0 %v2309
        %3101 = vmatpush2.bf16.msra.mxu0 %v2308
        %3102 = vmatprep.subr.bf16.mxu0 %v2301
        %3103 = vmatpush2.bf16.msra.mxu0 %v2300
        %3104 = vmatprep.subr.bf16.mxu0 %v2293
        %3105 = vmatpush2.bf16.msra.mxu0 %v2292
        %3106 = vmatprep.subr.bf16.mxu0 %v2285
        %3107 = vmatpush2.bf16.msra.mxu0 %v2284
        %3108 = vmatprep.subr.bf16.mxu0 %v2277
        %3109 = vmatpush2.bf16.msra.mxu0 %v2276
        %3110 = vmatprep.subr.bf16.mxu0 %v2269
        %3111 = vmatpush2.bf16.msra.mxu0 %v2268
        %3112 = vmatprep.subr.bf16.mxu0 %v2261
        %3113 = vmatpush2.bf16.msra.mxu0 %v2260
        %3114 = vmatprep.subr.bf16.mxu0 %v2253
        %3115 = vmatpush2.bf16.msra.mxu0 %v2252
        %3116 = vmatprep.mubr.bf16.mxu0 %v1057
        %3117 = vmatmul.mubr.bf16.gmra.mxu0 %v1056
        %v3118 = vpop.f32.mrf.mxu0
        %v3119 = vadd.f32 %v1389, %v3118
        %v3120 = vpop.f32.mrf.mxu0
        %v3121 = vadd.f32 %v1393, %v3120
        %v3122 = vpop.f32.mrf.mxu0
        %v3123 = vadd.f32 %v1389, %v3122
        %v3124 = vpop.f32.mrf.mxu0
        %v3125 = vadd.f32 %v1393, %v3124
        %3126 = vmatprep.mubr.bf16.mxu0 %v1061
        %3127 = vmatmul.mubr.bf16.gmra.mxu0 %v1060
        %v3128 = vpop.f32.mrf.mxu0
        %v3129 = vadd.f32 %v1389, %v3128
        %v3130 = vpop.f32.mrf.mxu0
        %v3131 = vadd.f32 %v1393, %v3130
        %v3132 = vpop.f32.mrf.mxu0
        %v3133 = vadd.f32 %v1389, %v3132
        %v3134 = vpop.f32.mrf.mxu0
        %v3135 = vadd.f32 %v1393, %v3134
        %3136 = vmatprep.mubr.bf16.mxu0 %v1065
        %3137 = vmatmul.mubr.bf16.gmra.mxu0 %v1064
        %v3138 = vpop.f32.mrf.mxu0
        %v3139 = vadd.f32 %v1389, %v3138
        %v3140 = vpop.f32.mrf.mxu0
        %v3141 = vadd.f32 %v1393, %v3140
        %v3142 = vpop.f32.mrf.mxu0
        %v3143 = vadd.f32 %v1389, %v3142
        %v3144 = vpop.f32.mrf.mxu0
        %v3145 = vadd.f32 %v1393, %v3144
        %3146 = vmatprep.mubr.bf16.mxu0 %v1069
        %3147 = vmatmul.mubr.bf16.gmra.mxu0 %v1068
        %v3148 = vpop.f32.mrf.mxu0
        %v3149 = vadd.f32 %v1389, %v3148
        %v3150 = vpop.f32.mrf.mxu0
        %v3151 = vadd.f32 %v1393, %v3150
        %v3152 = vpop.f32.mrf.mxu0
        %v3153 = vadd.f32 %v1389, %v3152
        %v3154 = vpop.f32.mrf.mxu0
        %v3155 = vadd.f32 %v1393, %v3154
        %3156 = vmatprep.mubr.bf16.mxu0 %v1073
        %3157 = vmatmul.mubr.bf16.gmra.mxu0 %v1072
        %v3158 = vpop.f32.mrf.mxu0
        %v3159 = vadd.f32 %v1389, %v3158
        %v3160 = vpop.f32.mrf.mxu0
        %v3161 = vadd.f32 %v1393, %v3160
        %v3162 = vpop.f32.mrf.mxu0
        %v3163 = vadd.f32 %v1389, %v3162
        %v3164 = vpop.f32.mrf.mxu0
        %v3165 = vadd.f32 %v1393, %v3164
        %3166 = vmatprep.mubr.bf16.mxu0 %v1077
        %3167 = vmatmul.mubr.bf16.gmra.mxu0 %v1076
        %v3168 = vpop.f32.mrf.mxu0
        %v3169 = vadd.f32 %v1389, %v3168
        %v3170 = vpop.f32.mrf.mxu0
        %v3171 = vadd.f32 %v1393, %v3170
        %v3172 = vpop.f32.mrf.mxu0
        %v3173 = vadd.f32 %v1389, %v3172
        %v3174 = vpop.f32.mrf.mxu0
        %v3175 = vadd.f32 %v1393, %v3174
        %3176 = vmatprep.mubr.bf16.mxu0 %v1081
        %3177 = vmatmul.mubr.bf16.gmra.mxu0 %v1080
        %v3178 = vpop.f32.mrf.mxu0
        %v3179 = vadd.f32 %v1389, %v3178
        %v3180 = vpop.f32.mrf.mxu0
        %v3181 = vadd.f32 %v1393, %v3180
        %v3182 = vpop.f32.mrf.mxu0
        %v3183 = vadd.f32 %v1389, %v3182
        %v3184 = vpop.f32.mrf.mxu0
        %v3185 = vadd.f32 %v1393, %v3184
        %3186 = vmatprep.mubr.bf16.mxu0 %v1085
        %3187 = vmatmul.mubr.bf16.gmra.mxu0 %v1084
        %v3188 = vpop.f32.mrf.mxu0
        %v3189 = vadd.f32 %v1389, %v3188
        %v3190 = vpop.f32.mrf.mxu0
        %v3191 = vadd.f32 %v1393, %v3190
        %v3192 = vpop.f32.mrf.mxu0
        %v3193 = vadd.f32 %v1389, %v3192
        %v3194 = vpop.f32.mrf.mxu0
        %v3195 = vadd.f32 %v1393, %v3194
        %3196 = vmatprep.mubr.bf16.mxu0 %v1089
        %3197 = vmatmul.mubr.bf16.gmra.mxu0 %v1088
        %v3198 = vpop.f32.mrf.mxu0
        %v3199 = vadd.f32 %v1389, %v3198
        %v3200 = vpop.f32.mrf.mxu0
        %v3201 = vadd.f32 %v1393, %v3200
        %v3202 = vpop.f32.mrf.mxu0
        %v3203 = vadd.f32 %v1389, %v3202
        %v3204 = vpop.f32.mrf.mxu0
        %v3205 = vadd.f32 %v1393, %v3204
        %3206 = vmatprep.mubr.bf16.mxu0 %v1093
        %3207 = vmatmul.mubr.bf16.gmra.mxu0 %v1092
        %v3208 = vpop.f32.mrf.mxu0
        %v3209 = vadd.f32 %v1389, %v3208
        %v3210 = vpop.f32.mrf.mxu0
        %v3211 = vadd.f32 %v1393, %v3210
        %v3212 = vpop.f32.mrf.mxu0
        %v3213 = vadd.f32 %v1389, %v3212
        %v3214 = vpop.f32.mrf.mxu0
        %v3215 = vadd.f32 %v1393, %v3214
        %3216 = vmatprep.mubr.bf16.mxu0 %v1097
        %3217 = vmatmul.mubr.bf16.gmra.mxu0 %v1096
        %v3218 = vpop.f32.mrf.mxu0
        %v3219 = vadd.f32 %v1389, %v3218
        %v3220 = vpop.f32.mrf.mxu0
        %v3221 = vadd.f32 %v1393, %v3220
        %v3222 = vpop.f32.mrf.mxu0
        %v3223 = vadd.f32 %v1389, %v3222
        %v3224 = vpop.f32.mrf.mxu0
        %v3225 = vadd.f32 %v1393, %v3224
        %3226 = vmatprep.mubr.bf16.mxu0 %v1101
        %3227 = vmatmul.mubr.bf16.gmra.mxu0 %v1100
        %v3228 = vpop.f32.mrf.mxu0
        %v3229 = vadd.f32 %v1389, %v3228
        %v3230 = vpop.f32.mrf.mxu0
        %v3231 = vadd.f32 %v1393, %v3230
        %v3232 = vpop.f32.mrf.mxu0
        %v3233 = vadd.f32 %v1389, %v3232
        %v3234 = vpop.f32.mrf.mxu0
        %v3235 = vadd.f32 %v1393, %v3234
        %3236 = vmatprep.mubr.bf16.mxu0 %v1105
        %3237 = vmatmul.mubr.bf16.gmra.mxu0 %v1104
        %v3238 = vpop.f32.mrf.mxu0
        %v3239 = vadd.f32 %v1389, %v3238
        %v3240 = vpop.f32.mrf.mxu0
        %v3241 = vadd.f32 %v1393, %v3240
        %v3242 = vpop.f32.mrf.mxu0
        %v3243 = vadd.f32 %v1389, %v3242
        %v3244 = vpop.f32.mrf.mxu0
        %v3245 = vadd.f32 %v1393, %v3244
        %3246 = vmatprep.mubr.bf16.mxu0 %v1109
        %3247 = vmatmul.mubr.bf16.gmra.mxu0 %v1108
        %v3248 = vpop.f32.mrf.mxu0
        %v3249 = vadd.f32 %v1389, %v3248
        %v3250 = vpop.f32.mrf.mxu0
        %v3251 = vadd.f32 %v1393, %v3250
        %v3252 = vpop.f32.mrf.mxu0
        %v3253 = vadd.f32 %v1389, %v3252
        %v3254 = vpop.f32.mrf.mxu0
        %v3255 = vadd.f32 %v1393, %v3254
        %3256 = vmatprep.mubr.bf16.mxu0 %v1113
        %3257 = vmatmul.mubr.bf16.gmra.mxu0 %v1112
        %v3258 = vpop.f32.mrf.mxu0
        %v3259 = vadd.f32 %v1389, %v3258
        %v3260 = vpop.f32.mrf.mxu0
        %v3261 = vadd.f32 %v1393, %v3260
        %v3262 = vpop.f32.mrf.mxu0
        %v3263 = vadd.f32 %v1389, %v3262
        %v3264 = vpop.f32.mrf.mxu0
        %v3265 = vadd.f32 %v1393, %v3264
        %3266 = vmatprep.mubr.bf16.mxu0 %v1117
        %3267 = vmatmul.mubr.bf16.gmra.mxu0 %v1116
        %v3268 = vpop.f32.mrf.mxu0
        %v3269 = vadd.f32 %v1389, %v3268
        %v3270 = vpop.f32.mrf.mxu0
        %v3271 = vadd.f32 %v1393, %v3270
        %v3272 = vpop.f32.mrf.mxu0
        %v3273 = vadd.f32 %v1389, %v3272
        %v3274 = vpop.f32.mrf.mxu0
        %v3275 = vadd.f32 %v1393, %v3274
        %3276 = vdwg.mxu0
        %3277 = vmatprep.subr.bf16.mxu0 %v2373
        %3278 = vmatpush1.bf16.msra.mxu0 %v2372
        %3279 = vmatprep.subr.bf16.mxu0 %v2365
        %3280 = vmatpush1.bf16.msra.mxu0 %v2364
        %3281 = vmatprep.subr.bf16.mxu0 %v2357
        %3282 = vmatpush1.bf16.msra.mxu0 %v2356
        %3283 = vmatprep.subr.bf16.mxu0 %v2349
        %3284 = vmatpush1.bf16.msra.mxu0 %v2348
        %3285 = vmatprep.subr.bf16.mxu0 %v2341
        %3286 = vmatpush1.bf16.msra.mxu0 %v2340
        %3287 = vmatprep.subr.bf16.mxu0 %v2333
        %3288 = vmatpush1.bf16.msra.mxu0 %v2332
        %3289 = vmatprep.subr.bf16.mxu0 %v2325
        %3290 = vmatpush1.bf16.msra.mxu0 %v2324
        %3291 = vmatprep.subr.bf16.mxu0 %v2317
        %3292 = vmatpush1.bf16.msra.mxu0 %v2316
        %3293 = vmatprep.subr.bf16.mxu0 %v2437
        %3294 = vmatpush2.bf16.msra.mxu0 %v2436
        %3295 = vmatprep.subr.bf16.mxu0 %v2429
        %3296 = vmatpush2.bf16.msra.mxu0 %v2428
        %3297 = vmatprep.subr.bf16.mxu0 %v2421
        %3298 = vmatpush2.bf16.msra.mxu0 %v2420
        %3299 = vmatprep.subr.bf16.mxu0 %v2413
        %3300 = vmatpush2.bf16.msra.mxu0 %v2412
        %3301 = vmatprep.subr.bf16.mxu0 %v2405
        %3302 = vmatpush2.bf16.msra.mxu0 %v2404
        %3303 = vmatprep.subr.bf16.mxu0 %v2397
        %3304 = vmatpush2.bf16.msra.mxu0 %v2396
        %3305 = vmatprep.subr.bf16.mxu0 %v2389
        %3306 = vmatpush2.bf16.msra.mxu0 %v2388
        %3307 = vmatprep.subr.bf16.mxu0 %v2381
        %3308 = vmatpush2.bf16.msra.mxu0 %v2380
        %3309 = vmatprep.mubr.bf16.mxu0 %v1059
        %3310 = vmatmul.mubr.bf16.gmra.mxu0 %v1058
        %v3311 = vpop.f32.mrf.mxu0
        %v3312 = vadd.f32 %v3119, %v3311
        %v3313 = vpop.f32.mrf.mxu0
        %v3314 = vadd.f32 %v3121, %v3313
        %v3315 = vpop.f32.mrf.mxu0
        %v3316 = vadd.f32 %v3123, %v3315
        %v3317 = vpop.f32.mrf.mxu0
        %v3318 = vadd.f32 %v3125, %v3317
        %3319 = vmatprep.mubr.bf16.mxu0 %v1063
        %3320 = vmatmul.mubr.bf16.gmra.mxu0 %v1062
        %v3321 = vpop.f32.mrf.mxu0
        %v3322 = vadd.f32 %v3129, %v3321
        %v3323 = vpop.f32.mrf.mxu0
        %v3324 = vadd.f32 %v3131, %v3323
        %v3325 = vpop.f32.mrf.mxu0
        %v3326 = vadd.f32 %v3133, %v3325
        %v3327 = vpop.f32.mrf.mxu0
        %v3328 = vadd.f32 %v3135, %v3327
        %3329 = vmatprep.mubr.bf16.mxu0 %v1067
        %3330 = vmatmul.mubr.bf16.gmra.mxu0 %v1066
        %v3331 = vpop.f32.mrf.mxu0
        %v3332 = vadd.f32 %v3139, %v3331
        %v3333 = vpop.f32.mrf.mxu0
        %v3334 = vadd.f32 %v3141, %v3333
        %v3335 = vpop.f32.mrf.mxu0
        %v3336 = vadd.f32 %v3143, %v3335
        %v3337 = vpop.f32.mrf.mxu0
        %v3338 = vadd.f32 %v3145, %v3337
        %3339 = vmatprep.mubr.bf16.mxu0 %v1071
        %3340 = vmatmul.mubr.bf16.gmra.mxu0 %v1070
        %v3341 = vpop.f32.mrf.mxu0
        %v3342 = vadd.f32 %v3149, %v3341
        %v3343 = vpop.f32.mrf.mxu0
        %v3344 = vadd.f32 %v3151, %v3343
        %v3345 = vpop.f32.mrf.mxu0
        %v3346 = vadd.f32 %v3153, %v3345
        %v3347 = vpop.f32.mrf.mxu0
        %v3348 = vadd.f32 %v3155, %v3347
        %3349 = vmatprep.mubr.bf16.mxu0 %v1075
        %3350 = vmatmul.mubr.bf16.gmra.mxu0 %v1074
        %v3351 = vpop.f32.mrf.mxu0
        %v3352 = vadd.f32 %v3159, %v3351
        %v3353 = vpop.f32.mrf.mxu0
        %v3354 = vadd.f32 %v3161, %v3353
        %v3355 = vpop.f32.mrf.mxu0
        %v3356 = vadd.f32 %v3163, %v3355
        %v3357 = vpop.f32.mrf.mxu0
        %v3358 = vadd.f32 %v3165, %v3357
        %3359 = vmatprep.mubr.bf16.mxu0 %v1079
        %3360 = vmatmul.mubr.bf16.gmra.mxu0 %v1078
        %v3361 = vpop.f32.mrf.mxu0
        %v3362 = vadd.f32 %v3169, %v3361
        %v3363 = vpop.f32.mrf.mxu0
        %v3364 = vadd.f32 %v3171, %v3363
        %v3365 = vpop.f32.mrf.mxu0
        %v3366 = vadd.f32 %v3173, %v3365
        %v3367 = vpop.f32.mrf.mxu0
        %v3368 = vadd.f32 %v3175, %v3367
        %3369 = vmatprep.mubr.bf16.mxu0 %v1083
        %3370 = vmatmul.mubr.bf16.gmra.mxu0 %v1082
        %v3371 = vpop.f32.mrf.mxu0
        %v3372 = vadd.f32 %v3179, %v3371
        %v3373 = vpop.f32.mrf.mxu0
        %v3374 = vadd.f32 %v3181, %v3373
        %v3375 = vpop.f32.mrf.mxu0
        %v3376 = vadd.f32 %v3183, %v3375
        %v3377 = vpop.f32.mrf.mxu0
        %v3378 = vadd.f32 %v3185, %v3377
        %3379 = vmatprep.mubr.bf16.mxu0 %v1087
        %3380 = vmatmul.mubr.bf16.gmra.mxu0 %v1086
        %v3381 = vpop.f32.mrf.mxu0
        %v3382 = vadd.f32 %v3189, %v3381
        %v3383 = vpop.f32.mrf.mxu0
        %v3384 = vadd.f32 %v3191, %v3383
        %v3385 = vpop.f32.mrf.mxu0
        %v3386 = vadd.f32 %v3193, %v3385
        %v3387 = vpop.f32.mrf.mxu0
        %v3388 = vadd.f32 %v3195, %v3387
        %3389 = vmatprep.mubr.bf16.mxu0 %v1091
        %3390 = vmatmul.mubr.bf16.gmra.mxu0 %v1090
        %v3391 = vpop.f32.mrf.mxu0
        %v3392 = vadd.f32 %v3199, %v3391
        %v3393 = vpop.f32.mrf.mxu0
        %v3394 = vadd.f32 %v3201, %v3393
        %v3395 = vpop.f32.mrf.mxu0
        %v3396 = vadd.f32 %v3203, %v3395
        %v3397 = vpop.f32.mrf.mxu0
        %v3398 = vadd.f32 %v3205, %v3397
        %3399 = vmatprep.mubr.bf16.mxu0 %v1095
        %3400 = vmatmul.mubr.bf16.gmra.mxu0 %v1094
        %v3401 = vpop.f32.mrf.mxu0
        %v3402 = vadd.f32 %v3209, %v3401
        %v3403 = vpop.f32.mrf.mxu0
        %v3404 = vadd.f32 %v3211, %v3403
        %v3405 = vpop.f32.mrf.mxu0
        %v3406 = vadd.f32 %v3213, %v3405
        %v3407 = vpop.f32.mrf.mxu0
        %v3408 = vadd.f32 %v3215, %v3407
        %3409 = vmatprep.mubr.bf16.mxu0 %v1099
        %3410 = vmatmul.mubr.bf16.gmra.mxu0 %v1098
        %v3411 = vpop.f32.mrf.mxu0
        %v3412 = vadd.f32 %v3219, %v3411
        %v3413 = vpop.f32.mrf.mxu0
        %v3414 = vadd.f32 %v3221, %v3413
        %v3415 = vpop.f32.mrf.mxu0
        %v3416 = vadd.f32 %v3223, %v3415
        %v3417 = vpop.f32.mrf.mxu0
        %v3418 = vadd.f32 %v3225, %v3417
        %3419 = vmatprep.mubr.bf16.mxu0 %v1103
        %3420 = vmatmul.mubr.bf16.gmra.mxu0 %v1102
        %v3421 = vpop.f32.mrf.mxu0
        %v3422 = vadd.f32 %v3229, %v3421
        %v3423 = vpop.f32.mrf.mxu0
        %v3424 = vadd.f32 %v3231, %v3423
        %v3425 = vpop.f32.mrf.mxu0
        %v3426 = vadd.f32 %v3233, %v3425
        %v3427 = vpop.f32.mrf.mxu0
        %v3428 = vadd.f32 %v3235, %v3427
        %3429 = vmatprep.mubr.bf16.mxu0 %v1107
        %3430 = vmatmul.mubr.bf16.gmra.mxu0 %v1106
        %v3431 = vpop.f32.mrf.mxu0
        %v3432 = vadd.f32 %v3239, %v3431
        %v3433 = vpop.f32.mrf.mxu0
        %v3434 = vadd.f32 %v3241, %v3433
        %v3435 = vpop.f32.mrf.mxu0
        %v3436 = vadd.f32 %v3243, %v3435
        %v3437 = vpop.f32.mrf.mxu0
        %v3438 = vadd.f32 %v3245, %v3437
        %3439 = vmatprep.mubr.bf16.mxu0 %v1111
        %3440 = vmatmul.mubr.bf16.gmra.mxu0 %v1110
        %v3441 = vpop.f32.mrf.mxu0
        %v3442 = vadd.f32 %v3249, %v3441
        %v3443 = vpop.f32.mrf.mxu0
        %v3444 = vadd.f32 %v3251, %v3443
        %v3445 = vpop.f32.mrf.mxu0
        %v3446 = vadd.f32 %v3253, %v3445
        %v3447 = vpop.f32.mrf.mxu0
        %v3448 = vadd.f32 %v3255, %v3447
        %3449 = vmatprep.mubr.bf16.mxu0 %v1115
        %3450 = vmatmul.mubr.bf16.gmra.mxu0 %v1114
        %v3451 = vpop.f32.mrf.mxu0
        %v3452 = vadd.f32 %v3259, %v3451
        %v3453 = vpop.f32.mrf.mxu0
        %v3454 = vadd.f32 %v3261, %v3453
        %v3455 = vpop.f32.mrf.mxu0
        %v3456 = vadd.f32 %v3263, %v3455
        %v3457 = vpop.f32.mrf.mxu0
        %v3458 = vadd.f32 %v3265, %v3457
        %3459 = vmatprep.mubr.bf16.mxu0 %v1119
        %3460 = vmatmul.mubr.bf16.gmra.mxu0 %v1118
        %v3461 = vpop.f32.mrf.mxu0
        %v3462 = vadd.f32 %v3269, %v3461
        %v3463 = vpop.f32.mrf.mxu0
        %v3464 = vadd.f32 %v3271, %v3463
        %v3465 = vpop.f32.mrf.mxu0
        %v3466 = vadd.f32 %v3273, %v3465
        %v3467 = vpop.f32.mrf.mxu0
        %v3468 = vadd.f32 %v3275, %v3467
        %3469 = vdwg.mxu0
        %3470 = vmatprep.subr.bf16.mxu0 %v2247
        %3471 = vmatpush1.bf16.msra.mxu0 %v2246
        %3472 = vmatprep.subr.bf16.mxu0 %v2239
        %3473 = vmatpush1.bf16.msra.mxu0 %v2238
        %3474 = vmatprep.subr.bf16.mxu0 %v2231
        %3475 = vmatpush1.bf16.msra.mxu0 %v2230
        %3476 = vmatprep.subr.bf16.mxu0 %v2223
        %3477 = vmatpush1.bf16.msra.mxu0 %v2222
        %3478 = vmatprep.subr.bf16.mxu0 %v2215
        %3479 = vmatpush1.bf16.msra.mxu0 %v2214
        %3480 = vmatprep.subr.bf16.mxu0 %v2207
        %3481 = vmatpush1.bf16.msra.mxu0 %v2206
        %3482 = vmatprep.subr.bf16.mxu0 %v2199
        %3483 = vmatpush1.bf16.msra.mxu0 %v2198
        %3484 = vmatprep.subr.bf16.mxu0 %v2191
        %3485 = vmatpush1.bf16.msra.mxu0 %v2190
        %3486 = vmatprep.subr.bf16.mxu0 %v2311
        %3487 = vmatpush2.bf16.msra.mxu0 %v2310
        %3488 = vmatprep.subr.bf16.mxu0 %v2303
        %3489 = vmatpush2.bf16.msra.mxu0 %v2302
        %3490 = vmatprep.subr.bf16.mxu0 %v2295
        %3491 = vmatpush2.bf16.msra.mxu0 %v2294
        %3492 = vmatprep.subr.bf16.mxu0 %v2287
        %3493 = vmatpush2.bf16.msra.mxu0 %v2286
        %3494 = vmatprep.subr.bf16.mxu0 %v2279
        %3495 = vmatpush2.bf16.msra.mxu0 %v2278
        %3496 = vmatprep.subr.bf16.mxu0 %v2271
        %3497 = vmatpush2.bf16.msra.mxu0 %v2270
        %3498 = vmatprep.subr.bf16.mxu0 %v2263
        %3499 = vmatpush2.bf16.msra.mxu0 %v2262
        %3500 = vmatprep.subr.bf16.mxu0 %v2255
        %3501 = vmatpush2.bf16.msra.mxu0 %v2254
        %3502 = vmatprep.mubr.bf16.mxu0 %v1057
        %3503 = vmatmul.mubr.bf16.gmra.mxu0 %v1056
        %v3504 = vpop.f32.mrf.mxu0
        %v3505 = vadd.f32 %v1397, %v3504
        %v3506 = vpop.f32.mrf.mxu0
        %v3507 = vadd.f32 %v1401, %v3506
        %v3508 = vpop.f32.mrf.mxu0
        %v3509 = vadd.f32 %v1397, %v3508
        %v3510 = vpop.f32.mrf.mxu0
        %v3511 = vadd.f32 %v1401, %v3510
        %3512 = vmatprep.mubr.bf16.mxu0 %v1061
        %3513 = vmatmul.mubr.bf16.gmra.mxu0 %v1060
        %v3514 = vpop.f32.mrf.mxu0
        %v3515 = vadd.f32 %v1397, %v3514
        %v3516 = vpop.f32.mrf.mxu0
        %v3517 = vadd.f32 %v1401, %v3516
        %v3518 = vpop.f32.mrf.mxu0
        %v3519 = vadd.f32 %v1397, %v3518
        %v3520 = vpop.f32.mrf.mxu0
        %v3521 = vadd.f32 %v1401, %v3520
        %3522 = vmatprep.mubr.bf16.mxu0 %v1065
        %3523 = vmatmul.mubr.bf16.gmra.mxu0 %v1064
        %v3524 = vpop.f32.mrf.mxu0
        %v3525 = vadd.f32 %v1397, %v3524
        %v3526 = vpop.f32.mrf.mxu0
        %v3527 = vadd.f32 %v1401, %v3526
        %v3528 = vpop.f32.mrf.mxu0
        %v3529 = vadd.f32 %v1397, %v3528
        %v3530 = vpop.f32.mrf.mxu0
        %v3531 = vadd.f32 %v1401, %v3530
        %3532 = vmatprep.mubr.bf16.mxu0 %v1069
        %3533 = vmatmul.mubr.bf16.gmra.mxu0 %v1068
        %v3534 = vpop.f32.mrf.mxu0
        %v3535 = vadd.f32 %v1397, %v3534
        %v3536 = vpop.f32.mrf.mxu0
        %v3537 = vadd.f32 %v1401, %v3536
        %v3538 = vpop.f32.mrf.mxu0
        %v3539 = vadd.f32 %v1397, %v3538
        %v3540 = vpop.f32.mrf.mxu0
        %v3541 = vadd.f32 %v1401, %v3540
        %3542 = vmatprep.mubr.bf16.mxu0 %v1073
        %3543 = vmatmul.mubr.bf16.gmra.mxu0 %v1072
        %v3544 = vpop.f32.mrf.mxu0
        %v3545 = vadd.f32 %v1397, %v3544
        %v3546 = vpop.f32.mrf.mxu0
        %v3547 = vadd.f32 %v1401, %v3546
        %v3548 = vpop.f32.mrf.mxu0
        %v3549 = vadd.f32 %v1397, %v3548
        %v3550 = vpop.f32.mrf.mxu0
        %v3551 = vadd.f32 %v1401, %v3550
        %3552 = vmatprep.mubr.bf16.mxu0 %v1077
        %3553 = vmatmul.mubr.bf16.gmra.mxu0 %v1076
        %v3554 = vpop.f32.mrf.mxu0
        %v3555 = vadd.f32 %v1397, %v3554
        %v3556 = vpop.f32.mrf.mxu0
        %v3557 = vadd.f32 %v1401, %v3556
        %v3558 = vpop.f32.mrf.mxu0
        %v3559 = vadd.f32 %v1397, %v3558
        %v3560 = vpop.f32.mrf.mxu0
        %v3561 = vadd.f32 %v1401, %v3560
        %3562 = vmatprep.mubr.bf16.mxu0 %v1081
        %3563 = vmatmul.mubr.bf16.gmra.mxu0 %v1080
        %v3564 = vpop.f32.mrf.mxu0
        %v3565 = vadd.f32 %v1397, %v3564
        %v3566 = vpop.f32.mrf.mxu0
        %v3567 = vadd.f32 %v1401, %v3566
        %v3568 = vpop.f32.mrf.mxu0
        %v3569 = vadd.f32 %v1397, %v3568
        %v3570 = vpop.f32.mrf.mxu0
        %v3571 = vadd.f32 %v1401, %v3570
        %3572 = vmatprep.mubr.bf16.mxu0 %v1085
        %3573 = vmatmul.mubr.bf16.gmra.mxu0 %v1084
        %v3574 = vpop.f32.mrf.mxu0
        %v3575 = vadd.f32 %v1397, %v3574
        %v3576 = vpop.f32.mrf.mxu0
        %v3577 = vadd.f32 %v1401, %v3576
        %v3578 = vpop.f32.mrf.mxu0
        %v3579 = vadd.f32 %v1397, %v3578
        %v3580 = vpop.f32.mrf.mxu0
        %v3581 = vadd.f32 %v1401, %v3580
        %3582 = vmatprep.mubr.bf16.mxu0 %v1089
        %3583 = vmatmul.mubr.bf16.gmra.mxu0 %v1088
        %v3584 = vpop.f32.mrf.mxu0
        %v3585 = vadd.f32 %v1397, %v3584
        %v3586 = vpop.f32.mrf.mxu0
        %v3587 = vadd.f32 %v1401, %v3586
        %v3588 = vpop.f32.mrf.mxu0
        %v3589 = vadd.f32 %v1397, %v3588
        %v3590 = vpop.f32.mrf.mxu0
        %v3591 = vadd.f32 %v1401, %v3590
        %3592 = vmatprep.mubr.bf16.mxu0 %v1093
        %3593 = vmatmul.mubr.bf16.gmra.mxu0 %v1092
        %v3594 = vpop.f32.mrf.mxu0
        %v3595 = vadd.f32 %v1397, %v3594
        %v3596 = vpop.f32.mrf.mxu0
        %v3597 = vadd.f32 %v1401, %v3596
        %v3598 = vpop.f32.mrf.mxu0
        %v3599 = vadd.f32 %v1397, %v3598
        %v3600 = vpop.f32.mrf.mxu0
        %v3601 = vadd.f32 %v1401, %v3600
        %3602 = vmatprep.mubr.bf16.mxu0 %v1097
        %3603 = vmatmul.mubr.bf16.gmra.mxu0 %v1096
        %v3604 = vpop.f32.mrf.mxu0
        %v3605 = vadd.f32 %v1397, %v3604
        %v3606 = vpop.f32.mrf.mxu0
        %v3607 = vadd.f32 %v1401, %v3606
        %v3608 = vpop.f32.mrf.mxu0
        %v3609 = vadd.f32 %v1397, %v3608
        %v3610 = vpop.f32.mrf.mxu0
        %v3611 = vadd.f32 %v1401, %v3610
        %3612 = vmatprep.mubr.bf16.mxu0 %v1101
        %3613 = vmatmul.mubr.bf16.gmra.mxu0 %v1100
        %v3614 = vpop.f32.mrf.mxu0
        %v3615 = vadd.f32 %v1397, %v3614
        %v3616 = vpop.f32.mrf.mxu0
        %v3617 = vadd.f32 %v1401, %v3616
        %v3618 = vpop.f32.mrf.mxu0
        %v3619 = vadd.f32 %v1397, %v3618
        %v3620 = vpop.f32.mrf.mxu0
        %v3621 = vadd.f32 %v1401, %v3620
        %3622 = vmatprep.mubr.bf16.mxu0 %v1105
        %3623 = vmatmul.mubr.bf16.gmra.mxu0 %v1104
        %v3624 = vpop.f32.mrf.mxu0
        %v3625 = vadd.f32 %v1397, %v3624
        %v3626 = vpop.f32.mrf.mxu0
        %v3627 = vadd.f32 %v1401, %v3626
        %v3628 = vpop.f32.mrf.mxu0
        %v3629 = vadd.f32 %v1397, %v3628
        %v3630 = vpop.f32.mrf.mxu0
        %v3631 = vadd.f32 %v1401, %v3630
        %3632 = vmatprep.mubr.bf16.mxu0 %v1109
        %3633 = vmatmul.mubr.bf16.gmra.mxu0 %v1108
        %v3634 = vpop.f32.mrf.mxu0
        %v3635 = vadd.f32 %v1397, %v3634
        %v3636 = vpop.f32.mrf.mxu0
        %v3637 = vadd.f32 %v1401, %v3636
        %v3638 = vpop.f32.mrf.mxu0
        %v3639 = vadd.f32 %v1397, %v3638
        %v3640 = vpop.f32.mrf.mxu0
        %v3641 = vadd.f32 %v1401, %v3640
        %3642 = vmatprep.mubr.bf16.mxu0 %v1113
        %3643 = vmatmul.mubr.bf16.gmra.mxu0 %v1112
        %v3644 = vpop.f32.mrf.mxu0
        %v3645 = vadd.f32 %v1397, %v3644
        %v3646 = vpop.f32.mrf.mxu0
        %v3647 = vadd.f32 %v1401, %v3646
        %v3648 = vpop.f32.mrf.mxu0
        %v3649 = vadd.f32 %v1397, %v3648
        %v3650 = vpop.f32.mrf.mxu0
        %v3651 = vadd.f32 %v1401, %v3650
        %3652 = vmatprep.mubr.bf16.mxu0 %v1117
        %3653 = vmatmul.mubr.bf16.gmra.mxu0 %v1116
        %v3654 = vpop.f32.mrf.mxu0
        %v3655 = vadd.f32 %v1397, %v3654
        %v3656 = vpop.f32.mrf.mxu0
        %v3657 = vadd.f32 %v1401, %v3656
        %v3658 = vpop.f32.mrf.mxu0
        %v3659 = vadd.f32 %v1397, %v3658
        %v3660 = vpop.f32.mrf.mxu0
        %v3661 = vadd.f32 %v1401, %v3660
        %3662 = vdwg.mxu0
        %3663 = vmatprep.subr.bf16.mxu0 %v2375
        %3664 = vmatpush1.bf16.msra.mxu0 %v2374
        %3665 = vmatprep.subr.bf16.mxu0 %v2367
        %3666 = vmatpush1.bf16.msra.mxu0 %v2366
        %3667 = vmatprep.subr.bf16.mxu0 %v2359
        %3668 = vmatpush1.bf16.msra.mxu0 %v2358
        %3669 = vmatprep.subr.bf16.mxu0 %v2351
        %3670 = vmatpush1.bf16.msra.mxu0 %v2350
        %3671 = vmatprep.subr.bf16.mxu0 %v2343
        %3672 = vmatpush1.bf16.msra.mxu0 %v2342
        %3673 = vmatprep.subr.bf16.mxu0 %v2335
        %3674 = vmatpush1.bf16.msra.mxu0 %v2334
        %3675 = vmatprep.subr.bf16.mxu0 %v2327
        %3676 = vmatpush1.bf16.msra.mxu0 %v2326
        %3677 = vmatprep.subr.bf16.mxu0 %v2319
        %3678 = vmatpush1.bf16.msra.mxu0 %v2318
        %3679 = vmatprep.subr.bf16.mxu0 %v2439
        %3680 = vmatpush2.bf16.msra.mxu0 %v2438
        %3681 = vmatprep.subr.bf16.mxu0 %v2431
        %3682 = vmatpush2.bf16.msra.mxu0 %v2430
        %3683 = vmatprep.subr.bf16.mxu0 %v2423
        %3684 = vmatpush2.bf16.msra.mxu0 %v2422
        %3685 = vmatprep.subr.bf16.mxu0 %v2415
        %3686 = vmatpush2.bf16.msra.mxu0 %v2414
        %3687 = vmatprep.subr.bf16.mxu0 %v2407
        %3688 = vmatpush2.bf16.msra.mxu0 %v2406
        %3689 = vmatprep.subr.bf16.mxu0 %v2399
        %3690 = vmatpush2.bf16.msra.mxu0 %v2398
        %3691 = vmatprep.subr.bf16.mxu0 %v2391
        %3692 = vmatpush2.bf16.msra.mxu0 %v2390
        %3693 = vmatprep.subr.bf16.mxu0 %v2383
        %3694 = vmatpush2.bf16.msra.mxu0 %v2382
        %3695 = vmatprep.mubr.bf16.mxu0 %v1059
        %3696 = vmatmul.mubr.bf16.gmra.mxu0 %v1058
        %v3697 = vpop.f32.mrf.mxu0
        %v3698 = vadd.f32 %v3505, %v3697
        %v3699 = vpop.f32.mrf.mxu0
        %v3700 = vadd.f32 %v3507, %v3699
        %v3701 = vpop.f32.mrf.mxu0
        %v3702 = vadd.f32 %v3509, %v3701
        %v3703 = vpop.f32.mrf.mxu0
        %v3704 = vadd.f32 %v3511, %v3703
        %3705 = vmatprep.mubr.bf16.mxu0 %v1063
        %3706 = vmatmul.mubr.bf16.gmra.mxu0 %v1062
        %v3707 = vpop.f32.mrf.mxu0
        %v3708 = vadd.f32 %v3515, %v3707
        %v3709 = vpop.f32.mrf.mxu0
        %v3710 = vadd.f32 %v3517, %v3709
        %v3711 = vpop.f32.mrf.mxu0
        %v3712 = vadd.f32 %v3519, %v3711
        %v3713 = vpop.f32.mrf.mxu0
        %v3714 = vadd.f32 %v3521, %v3713
        %3715 = vmatprep.mubr.bf16.mxu0 %v1067
        %3716 = vmatmul.mubr.bf16.gmra.mxu0 %v1066
        %v3717 = vpop.f32.mrf.mxu0
        %v3718 = vadd.f32 %v3525, %v3717
        %v3719 = vpop.f32.mrf.mxu0
        %v3720 = vadd.f32 %v3527, %v3719
        %v3721 = vpop.f32.mrf.mxu0
        %v3722 = vadd.f32 %v3529, %v3721
        %v3723 = vpop.f32.mrf.mxu0
        %v3724 = vadd.f32 %v3531, %v3723
        %3725 = vmatprep.mubr.bf16.mxu0 %v1071
        %3726 = vmatmul.mubr.bf16.gmra.mxu0 %v1070
        %v3727 = vpop.f32.mrf.mxu0
        %v3728 = vadd.f32 %v3535, %v3727
        %v3729 = vpop.f32.mrf.mxu0
        %v3730 = vadd.f32 %v3537, %v3729
        %v3731 = vpop.f32.mrf.mxu0
        %v3732 = vadd.f32 %v3539, %v3731
        %v3733 = vpop.f32.mrf.mxu0
        %v3734 = vadd.f32 %v3541, %v3733
        %3735 = vmatprep.mubr.bf16.mxu0 %v1075
        %3736 = vmatmul.mubr.bf16.gmra.mxu0 %v1074
        %v3737 = vpop.f32.mrf.mxu0
        %v3738 = vadd.f32 %v3545, %v3737
        %v3739 = vpop.f32.mrf.mxu0
        %v3740 = vadd.f32 %v3547, %v3739
        %v3741 = vpop.f32.mrf.mxu0
        %v3742 = vadd.f32 %v3549, %v3741
        %v3743 = vpop.f32.mrf.mxu0
        %v3744 = vadd.f32 %v3551, %v3743
        %3745 = vmatprep.mubr.bf16.mxu0 %v1079
        %3746 = vmatmul.mubr.bf16.gmra.mxu0 %v1078
        %v3747 = vpop.f32.mrf.mxu0
        %v3748 = vadd.f32 %v3555, %v3747
        %v3749 = vpop.f32.mrf.mxu0
        %v3750 = vadd.f32 %v3557, %v3749
        %v3751 = vpop.f32.mrf.mxu0
        %v3752 = vadd.f32 %v3559, %v3751
        %v3753 = vpop.f32.mrf.mxu0
        %v3754 = vadd.f32 %v3561, %v3753
        %3755 = vmatprep.mubr.bf16.mxu0 %v1083
        %3756 = vmatmul.mubr.bf16.gmra.mxu0 %v1082
        %v3757 = vpop.f32.mrf.mxu0
        %v3758 = vadd.f32 %v3565, %v3757
        %v3759 = vpop.f32.mrf.mxu0
        %v3760 = vadd.f32 %v3567, %v3759
        %v3761 = vpop.f32.mrf.mxu0
        %v3762 = vadd.f32 %v3569, %v3761
        %v3763 = vpop.f32.mrf.mxu0
        %v3764 = vadd.f32 %v3571, %v3763
        %3765 = vmatprep.mubr.bf16.mxu0 %v1087
        %3766 = vmatmul.mubr.bf16.gmra.mxu0 %v1086
        %v3767 = vpop.f32.mrf.mxu0
        %v3768 = vadd.f32 %v3575, %v3767
        %v3769 = vpop.f32.mrf.mxu0
        %v3770 = vadd.f32 %v3577, %v3769
        %v3771 = vpop.f32.mrf.mxu0
        %v3772 = vadd.f32 %v3579, %v3771
        %v3773 = vpop.f32.mrf.mxu0
        %v3774 = vadd.f32 %v3581, %v3773
        %3775 = vmatprep.mubr.bf16.mxu0 %v1091
        %3776 = vmatmul.mubr.bf16.gmra.mxu0 %v1090
        %v3777 = vpop.f32.mrf.mxu0
        %v3778 = vadd.f32 %v3585, %v3777
        %v3779 = vpop.f32.mrf.mxu0
        %v3780 = vadd.f32 %v3587, %v3779
        %v3781 = vpop.f32.mrf.mxu0
        %v3782 = vadd.f32 %v3589, %v3781
        %v3783 = vpop.f32.mrf.mxu0
        %v3784 = vadd.f32 %v3591, %v3783
        %3785 = vmatprep.mubr.bf16.mxu0 %v1095
        %3786 = vmatmul.mubr.bf16.gmra.mxu0 %v1094
        %v3787 = vpop.f32.mrf.mxu0
        %v3788 = vadd.f32 %v3595, %v3787
        %v3789 = vpop.f32.mrf.mxu0
        %v3790 = vadd.f32 %v3597, %v3789
        %v3791 = vpop.f32.mrf.mxu0
        %v3792 = vadd.f32 %v3599, %v3791
        %v3793 = vpop.f32.mrf.mxu0
        %v3794 = vadd.f32 %v3601, %v3793
        %3795 = vmatprep.mubr.bf16.mxu0 %v1099
        %3796 = vmatmul.mubr.bf16.gmra.mxu0 %v1098
        %v3797 = vpop.f32.mrf.mxu0
        %v3798 = vadd.f32 %v3605, %v3797
        %v3799 = vpop.f32.mrf.mxu0
        %v3800 = vadd.f32 %v3607, %v3799
        %v3801 = vpop.f32.mrf.mxu0
        %v3802 = vadd.f32 %v3609, %v3801
        %v3803 = vpop.f32.mrf.mxu0
        %v3804 = vadd.f32 %v3611, %v3803
        %3805 = vmatprep.mubr.bf16.mxu0 %v1103
        %3806 = vmatmul.mubr.bf16.gmra.mxu0 %v1102
        %v3807 = vpop.f32.mrf.mxu0
        %v3808 = vadd.f32 %v3615, %v3807
        %v3809 = vpop.f32.mrf.mxu0
        %v3810 = vadd.f32 %v3617, %v3809
        %v3811 = vpop.f32.mrf.mxu0
        %v3812 = vadd.f32 %v3619, %v3811
        %v3813 = vpop.f32.mrf.mxu0
        %v3814 = vadd.f32 %v3621, %v3813
        %3815 = vmatprep.mubr.bf16.mxu0 %v1107
        %3816 = vmatmul.mubr.bf16.gmra.mxu0 %v1106
        %v3817 = vpop.f32.mrf.mxu0
        %v3818 = vadd.f32 %v3625, %v3817
        %v3819 = vpop.f32.mrf.mxu0
        %v3820 = vadd.f32 %v3627, %v3819
        %v3821 = vpop.f32.mrf.mxu0
        %v3822 = vadd.f32 %v3629, %v3821
        %v3823 = vpop.f32.mrf.mxu0
        %v3824 = vadd.f32 %v3631, %v3823
        %3825 = vmatprep.mubr.bf16.mxu0 %v1111
        %3826 = vmatmul.mubr.bf16.gmra.mxu0 %v1110
        %v3827 = vpop.f32.mrf.mxu0
        %v3828 = vadd.f32 %v3635, %v3827
        %v3829 = vpop.f32.mrf.mxu0
        %v3830 = vadd.f32 %v3637, %v3829
        %v3831 = vpop.f32.mrf.mxu0
        %v3832 = vadd.f32 %v3639, %v3831
        %v3833 = vpop.f32.mrf.mxu0
        %v3834 = vadd.f32 %v3641, %v3833
        %3835 = vmatprep.mubr.bf16.mxu0 %v1115
        %3836 = vmatmul.mubr.bf16.gmra.mxu0 %v1114
        %v3837 = vpop.f32.mrf.mxu0
        %v3838 = vadd.f32 %v3645, %v3837
        %v3839 = vpop.f32.mrf.mxu0
        %v3840 = vadd.f32 %v3647, %v3839
        %v3841 = vpop.f32.mrf.mxu0
        %v3842 = vadd.f32 %v3649, %v3841
        %v3843 = vpop.f32.mrf.mxu0
        %v3844 = vadd.f32 %v3651, %v3843
        %3845 = vmatprep.mubr.bf16.mxu0 %v1119
        %3846 = vmatmul.mubr.bf16.gmra.mxu0 %v1118
        %v3847 = vpop.f32.mrf.mxu0
        %v3848 = vadd.f32 %v3655, %v3847
        %v3849 = vpop.f32.mrf.mxu0
        %v3850 = vadd.f32 %v3657, %v3849
        %v3851 = vpop.f32.mrf.mxu0
        %v3852 = vadd.f32 %v3659, %v3851
        %v3853 = vpop.f32.mrf.mxu0
        %v3854 = vadd.f32 %v3661, %v3853
        %3855 = vdwg.mxu0
        %3856 = vmatprep.subr.bf16.mxu0 %v2249
        %3857 = vmatpush1.bf16.msra.mxu0 %v2248
        %3858 = vmatprep.subr.bf16.mxu0 %v2241
        %3859 = vmatpush1.bf16.msra.mxu0 %v2240
        %3860 = vmatprep.subr.bf16.mxu0 %v2233
        %3861 = vmatpush1.bf16.msra.mxu0 %v2232
        %3862 = vmatprep.subr.bf16.mxu0 %v2225
        %3863 = vmatpush1.bf16.msra.mxu0 %v2224
        %3864 = vmatprep.subr.bf16.mxu0 %v2217
        %3865 = vmatpush1.bf16.msra.mxu0 %v2216
        %3866 = vmatprep.subr.bf16.mxu0 %v2209
        %3867 = vmatpush1.bf16.msra.mxu0 %v2208
        %3868 = vmatprep.subr.bf16.mxu0 %v2201
        %3869 = vmatpush1.bf16.msra.mxu0 %v2200
        %3870 = vmatprep.subr.bf16.mxu0 %v2193
        %3871 = vmatpush1.bf16.msra.mxu0 %v2192
        %3872 = vmatprep.subr.bf16.mxu0 %v2313
        %3873 = vmatpush2.bf16.msra.mxu0 %v2312
        %3874 = vmatprep.subr.bf16.mxu0 %v2305
        %3875 = vmatpush2.bf16.msra.mxu0 %v2304
        %3876 = vmatprep.subr.bf16.mxu0 %v2297
        %3877 = vmatpush2.bf16.msra.mxu0 %v2296
        %3878 = vmatprep.subr.bf16.mxu0 %v2289
        %3879 = vmatpush2.bf16.msra.mxu0 %v2288
        %3880 = vmatprep.subr.bf16.mxu0 %v2281
        %3881 = vmatpush2.bf16.msra.mxu0 %v2280
        %3882 = vmatprep.subr.bf16.mxu0 %v2273
        %3883 = vmatpush2.bf16.msra.mxu0 %v2272
        %3884 = vmatprep.subr.bf16.mxu0 %v2265
        %3885 = vmatpush2.bf16.msra.mxu0 %v2264
        %3886 = vmatprep.subr.bf16.mxu0 %v2257
        %3887 = vmatpush2.bf16.msra.mxu0 %v2256
        %3888 = vmatprep.mubr.bf16.mxu0 %v1057
        %3889 = vmatmul.mubr.bf16.gmra.mxu0 %v1056
        %v3890 = vpop.f32.mrf.mxu0
        %v3891 = vadd.f32 %v1405, %v3890
        %v3892 = vpop.f32.mrf.mxu0
        %v3893 = vadd.f32 %v1409, %v3892
        %v3894 = vpop.f32.mrf.mxu0
        %v3895 = vadd.f32 %v1405, %v3894
        %v3896 = vpop.f32.mrf.mxu0
        %v3897 = vadd.f32 %v1409, %v3896
        %3898 = vmatprep.mubr.bf16.mxu0 %v1061
        %3899 = vmatmul.mubr.bf16.gmra.mxu0 %v1060
        %v3900 = vpop.f32.mrf.mxu0
        %v3901 = vadd.f32 %v1405, %v3900
        %v3902 = vpop.f32.mrf.mxu0
        %v3903 = vadd.f32 %v1409, %v3902
        %v3904 = vpop.f32.mrf.mxu0
        %v3905 = vadd.f32 %v1405, %v3904
        %v3906 = vpop.f32.mrf.mxu0
        %v3907 = vadd.f32 %v1409, %v3906
        %3908 = vmatprep.mubr.bf16.mxu0 %v1065
        %3909 = vmatmul.mubr.bf16.gmra.mxu0 %v1064
        %v3910 = vpop.f32.mrf.mxu0
        %v3911 = vadd.f32 %v1405, %v3910
        %v3912 = vpop.f32.mrf.mxu0
        %v3913 = vadd.f32 %v1409, %v3912
        %v3914 = vpop.f32.mrf.mxu0
        %v3915 = vadd.f32 %v1405, %v3914
        %v3916 = vpop.f32.mrf.mxu0
        %v3917 = vadd.f32 %v1409, %v3916
        %3918 = vmatprep.mubr.bf16.mxu0 %v1069
        %3919 = vmatmul.mubr.bf16.gmra.mxu0 %v1068
        %v3920 = vpop.f32.mrf.mxu0
        %v3921 = vadd.f32 %v1405, %v3920
        %v3922 = vpop.f32.mrf.mxu0
        %v3923 = vadd.f32 %v1409, %v3922
        %v3924 = vpop.f32.mrf.mxu0
        %v3925 = vadd.f32 %v1405, %v3924
        %v3926 = vpop.f32.mrf.mxu0
        %v3927 = vadd.f32 %v1409, %v3926
        %3928 = vmatprep.mubr.bf16.mxu0 %v1073
        %3929 = vmatmul.mubr.bf16.gmra.mxu0 %v1072
        %v3930 = vpop.f32.mrf.mxu0
        %v3931 = vadd.f32 %v1405, %v3930
        %v3932 = vpop.f32.mrf.mxu0
        %v3933 = vadd.f32 %v1409, %v3932
        %v3934 = vpop.f32.mrf.mxu0
        %v3935 = vadd.f32 %v1405, %v3934
        %v3936 = vpop.f32.mrf.mxu0
        %v3937 = vadd.f32 %v1409, %v3936
        %3938 = vmatprep.mubr.bf16.mxu0 %v1077
        %3939 = vmatmul.mubr.bf16.gmra.mxu0 %v1076
        %v3940 = vpop.f32.mrf.mxu0
        %v3941 = vadd.f32 %v1405, %v3940
        %v3942 = vpop.f32.mrf.mxu0
        %v3943 = vadd.f32 %v1409, %v3942
        %v3944 = vpop.f32.mrf.mxu0
        %v3945 = vadd.f32 %v1405, %v3944
        %v3946 = vpop.f32.mrf.mxu0
        %v3947 = vadd.f32 %v1409, %v3946
        %3948 = vmatprep.mubr.bf16.mxu0 %v1081
        %3949 = vmatmul.mubr.bf16.gmra.mxu0 %v1080
        %v3950 = vpop.f32.mrf.mxu0
        %v3951 = vadd.f32 %v1405, %v3950
        %v3952 = vpop.f32.mrf.mxu0
        %v3953 = vadd.f32 %v1409, %v3952
        %v3954 = vpop.f32.mrf.mxu0
        %v3955 = vadd.f32 %v1405, %v3954
        %v3956 = vpop.f32.mrf.mxu0
        %v3957 = vadd.f32 %v1409, %v3956
        %3958 = vmatprep.mubr.bf16.mxu0 %v1085
        %3959 = vmatmul.mubr.bf16.gmra.mxu0 %v1084
        %v3960 = vpop.f32.mrf.mxu0
        %v3961 = vadd.f32 %v1405, %v3960
        %v3962 = vpop.f32.mrf.mxu0
        %v3963 = vadd.f32 %v1409, %v3962
        %v3964 = vpop.f32.mrf.mxu0
        %v3965 = vadd.f32 %v1405, %v3964
        %v3966 = vpop.f32.mrf.mxu0
        %v3967 = vadd.f32 %v1409, %v3966
        %3968 = vmatprep.mubr.bf16.mxu0 %v1089
        %3969 = vmatmul.mubr.bf16.gmra.mxu0 %v1088
        %v3970 = vpop.f32.mrf.mxu0
        %v3971 = vadd.f32 %v1405, %v3970
        %v3972 = vpop.f32.mrf.mxu0
        %v3973 = vadd.f32 %v1409, %v3972
        %v3974 = vpop.f32.mrf.mxu0
        %v3975 = vadd.f32 %v1405, %v3974
        %v3976 = vpop.f32.mrf.mxu0
        %v3977 = vadd.f32 %v1409, %v3976
        %3978 = vmatprep.mubr.bf16.mxu0 %v1093
        %3979 = vmatmul.mubr.bf16.gmra.mxu0 %v1092
        %v3980 = vpop.f32.mrf.mxu0
        %v3981 = vadd.f32 %v1405, %v3980
        %v3982 = vpop.f32.mrf.mxu0
        %v3983 = vadd.f32 %v1409, %v3982
        %v3984 = vpop.f32.mrf.mxu0
        %v3985 = vadd.f32 %v1405, %v3984
        %v3986 = vpop.f32.mrf.mxu0
        %v3987 = vadd.f32 %v1409, %v3986
        %3988 = vmatprep.mubr.bf16.mxu0 %v1097
        %3989 = vmatmul.mubr.bf16.gmra.mxu0 %v1096
        %v3990 = vpop.f32.mrf.mxu0
        %v3991 = vadd.f32 %v1405, %v3990
        %v3992 = vpop.f32.mrf.mxu0
        %v3993 = vadd.f32 %v1409, %v3992
        %v3994 = vpop.f32.mrf.mxu0
        %v3995 = vadd.f32 %v1405, %v3994
        %v3996 = vpop.f32.mrf.mxu0
        %v3997 = vadd.f32 %v1409, %v3996
        %3998 = vmatprep.mubr.bf16.mxu0 %v1101
        %3999 = vmatmul.mubr.bf16.gmra.mxu0 %v1100
        %v4000 = vpop.f32.mrf.mxu0
        %v4001 = vadd.f32 %v1405, %v4000
        %v4002 = vpop.f32.mrf.mxu0
        %v4003 = vadd.f32 %v1409, %v4002
        %v4004 = vpop.f32.mrf.mxu0
        %v4005 = vadd.f32 %v1405, %v4004
        %v4006 = vpop.f32.mrf.mxu0
        %v4007 = vadd.f32 %v1409, %v4006
        %4008 = vmatprep.mubr.bf16.mxu0 %v1105
        %4009 = vmatmul.mubr.bf16.gmra.mxu0 %v1104
        %v4010 = vpop.f32.mrf.mxu0
        %v4011 = vadd.f32 %v1405, %v4010
        %v4012 = vpop.f32.mrf.mxu0
        %v4013 = vadd.f32 %v1409, %v4012
        %v4014 = vpop.f32.mrf.mxu0
        %v4015 = vadd.f32 %v1405, %v4014
        %v4016 = vpop.f32.mrf.mxu0
        %v4017 = vadd.f32 %v1409, %v4016
        %4018 = vmatprep.mubr.bf16.mxu0 %v1109
        %4019 = vmatmul.mubr.bf16.gmra.mxu0 %v1108
        %v4020 = vpop.f32.mrf.mxu0
        %v4021 = vadd.f32 %v1405, %v4020
        %v4022 = vpop.f32.mrf.mxu0
        %v4023 = vadd.f32 %v1409, %v4022
        %v4024 = vpop.f32.mrf.mxu0
        %v4025 = vadd.f32 %v1405, %v4024
        %v4026 = vpop.f32.mrf.mxu0
        %v4027 = vadd.f32 %v1409, %v4026
        %4028 = vmatprep.mubr.bf16.mxu0 %v1113
        %4029 = vmatmul.mubr.bf16.gmra.mxu0 %v1112
        %v4030 = vpop.f32.mrf.mxu0
        %v4031 = vadd.f32 %v1405, %v4030
        %v4032 = vpop.f32.mrf.mxu0
        %v4033 = vadd.f32 %v1409, %v4032
        %v4034 = vpop.f32.mrf.mxu0
        %v4035 = vadd.f32 %v1405, %v4034
        %v4036 = vpop.f32.mrf.mxu0
        %v4037 = vadd.f32 %v1409, %v4036
        %4038 = vmatprep.mubr.bf16.mxu0 %v1117
        %4039 = vmatmul.mubr.bf16.gmra.mxu0 %v1116
        %v4040 = vpop.f32.mrf.mxu0
        %v4041 = vadd.f32 %v1405, %v4040
        %v4042 = vpop.f32.mrf.mxu0
        %v4043 = vadd.f32 %v1409, %v4042
        %v4044 = vpop.f32.mrf.mxu0
        %v4045 = vadd.f32 %v1405, %v4044
        %v4046 = vpop.f32.mrf.mxu0
        %v4047 = vadd.f32 %v1409, %v4046
        %4048 = vdwg.mxu0
        %4049 = vmatprep.subr.bf16.mxu0 %v2377
        %4050 = vmatpush1.bf16.msra.mxu0 %v2376
        %4051 = vmatprep.subr.bf16.mxu0 %v2369
        %4052 = vmatpush1.bf16.msra.mxu0 %v2368
        %4053 = vmatprep.subr.bf16.mxu0 %v2361
        %4054 = vmatpush1.bf16.msra.mxu0 %v2360
        %4055 = vmatprep.subr.bf16.mxu0 %v2353
        %4056 = vmatpush1.bf16.msra.mxu0 %v2352
        %4057 = vmatprep.subr.bf16.mxu0 %v2345
        %4058 = vmatpush1.bf16.msra.mxu0 %v2344
        %4059 = vmatprep.subr.bf16.mxu0 %v2337
        %4060 = vmatpush1.bf16.msra.mxu0 %v2336
        %4061 = vmatprep.subr.bf16.mxu0 %v2329
        %4062 = vmatpush1.bf16.msra.mxu0 %v2328
        %4063 = vmatprep.subr.bf16.mxu0 %v2321
        %4064 = vmatpush1.bf16.msra.mxu0 %v2320
        %4065 = vmatprep.subr.bf16.mxu0 %v2441
        %4066 = vmatpush2.bf16.msra.mxu0 %v2440
        %4067 = vmatprep.subr.bf16.mxu0 %v2433
        %4068 = vmatpush2.bf16.msra.mxu0 %v2432
        %4069 = vmatprep.subr.bf16.mxu0 %v2425
        %4070 = vmatpush2.bf16.msra.mxu0 %v2424
        %4071 = vmatprep.subr.bf16.mxu0 %v2417
        %4072 = vmatpush2.bf16.msra.mxu0 %v2416
        %4073 = vmatprep.subr.bf16.mxu0 %v2409
        %4074 = vmatpush2.bf16.msra.mxu0 %v2408
        %4075 = vmatprep.subr.bf16.mxu0 %v2401
        %4076 = vmatpush2.bf16.msra.mxu0 %v2400
        %4077 = vmatprep.subr.bf16.mxu0 %v2393
        %4078 = vmatpush2.bf16.msra.mxu0 %v2392
        %4079 = vmatprep.subr.bf16.mxu0 %v2385
        %4080 = vmatpush2.bf16.msra.mxu0 %v2384
        %4081 = vmatprep.mubr.bf16.mxu0 %v1059
        %4082 = vmatmul.mubr.bf16.gmra.mxu0 %v1058
        %v4083 = vpop.f32.mrf.mxu0
        %v4084 = vadd.f32 %v3891, %v4083
        %v4085 = vpop.f32.mrf.mxu0
        %v4086 = vadd.f32 %v3893, %v4085
        %v4087 = vpop.f32.mrf.mxu0
        %v4088 = vadd.f32 %v3895, %v4087
        %v4089 = vpop.f32.mrf.mxu0
        %v4090 = vadd.f32 %v3897, %v4089
        %4091 = vmatprep.mubr.bf16.mxu0 %v1063
        %4092 = vmatmul.mubr.bf16.gmra.mxu0 %v1062
        %v4093 = vpop.f32.mrf.mxu0
        %v4094 = vadd.f32 %v3901, %v4093
        %v4095 = vpop.f32.mrf.mxu0
        %v4096 = vadd.f32 %v3903, %v4095
        %v4097 = vpop.f32.mrf.mxu0
        %v4098 = vadd.f32 %v3905, %v4097
        %v4099 = vpop.f32.mrf.mxu0
        %v4100 = vadd.f32 %v3907, %v4099
        %4101 = vmatprep.mubr.bf16.mxu0 %v1067
        %4102 = vmatmul.mubr.bf16.gmra.mxu0 %v1066
        %v4103 = vpop.f32.mrf.mxu0
        %v4104 = vadd.f32 %v3911, %v4103
        %v4105 = vpop.f32.mrf.mxu0
        %v4106 = vadd.f32 %v3913, %v4105
        %v4107 = vpop.f32.mrf.mxu0
        %v4108 = vadd.f32 %v3915, %v4107
        %v4109 = vpop.f32.mrf.mxu0
        %v4110 = vadd.f32 %v3917, %v4109
        %4111 = vmatprep.mubr.bf16.mxu0 %v1071
        %4112 = vmatmul.mubr.bf16.gmra.mxu0 %v1070
        %v4113 = vpop.f32.mrf.mxu0
        %v4114 = vadd.f32 %v3921, %v4113
        %v4115 = vpop.f32.mrf.mxu0
        %v4116 = vadd.f32 %v3923, %v4115
        %v4117 = vpop.f32.mrf.mxu0
        %v4118 = vadd.f32 %v3925, %v4117
        %v4119 = vpop.f32.mrf.mxu0
        %v4120 = vadd.f32 %v3927, %v4119
        %4121 = vmatprep.mubr.bf16.mxu0 %v1075
        %4122 = vmatmul.mubr.bf16.gmra.mxu0 %v1074
        %v4123 = vpop.f32.mrf.mxu0
        %v4124 = vadd.f32 %v3931, %v4123
        %v4125 = vpop.f32.mrf.mxu0
        %v4126 = vadd.f32 %v3933, %v4125
        %v4127 = vpop.f32.mrf.mxu0
        %v4128 = vadd.f32 %v3935, %v4127
        %v4129 = vpop.f32.mrf.mxu0
        %v4130 = vadd.f32 %v3937, %v4129
        %4131 = vmatprep.mubr.bf16.mxu0 %v1079
        %4132 = vmatmul.mubr.bf16.gmra.mxu0 %v1078
        %v4133 = vpop.f32.mrf.mxu0
        %v4134 = vadd.f32 %v3941, %v4133
        %v4135 = vpop.f32.mrf.mxu0
        %v4136 = vadd.f32 %v3943, %v4135
        %v4137 = vpop.f32.mrf.mxu0
        %v4138 = vadd.f32 %v3945, %v4137
        %v4139 = vpop.f32.mrf.mxu0
        %v4140 = vadd.f32 %v3947, %v4139
        %4141 = vmatprep.mubr.bf16.mxu0 %v1083
        %4142 = vmatmul.mubr.bf16.gmra.mxu0 %v1082
        %v4143 = vpop.f32.mrf.mxu0
        %v4144 = vadd.f32 %v3951, %v4143
        %v4145 = vpop.f32.mrf.mxu0
        %v4146 = vadd.f32 %v3953, %v4145
        %v4147 = vpop.f32.mrf.mxu0
        %v4148 = vadd.f32 %v3955, %v4147
        %v4149 = vpop.f32.mrf.mxu0
        %v4150 = vadd.f32 %v3957, %v4149
        %4151 = vmatprep.mubr.bf16.mxu0 %v1087
        %4152 = vmatmul.mubr.bf16.gmra.mxu0 %v1086
        %v4153 = vpop.f32.mrf.mxu0
        %v4154 = vadd.f32 %v3961, %v4153
        %v4155 = vpop.f32.mrf.mxu0
        %v4156 = vadd.f32 %v3963, %v4155
        %v4157 = vpop.f32.mrf.mxu0
        %v4158 = vadd.f32 %v3965, %v4157
        %v4159 = vpop.f32.mrf.mxu0
        %v4160 = vadd.f32 %v3967, %v4159
        %4161 = vmatprep.mubr.bf16.mxu0 %v1091
        %4162 = vmatmul.mubr.bf16.gmra.mxu0 %v1090
        %v4163 = vpop.f32.mrf.mxu0
        %v4164 = vadd.f32 %v3971, %v4163
        %v4165 = vpop.f32.mrf.mxu0
        %v4166 = vadd.f32 %v3973, %v4165
        %v4167 = vpop.f32.mrf.mxu0
        %v4168 = vadd.f32 %v3975, %v4167
        %v4169 = vpop.f32.mrf.mxu0
        %v4170 = vadd.f32 %v3977, %v4169
        %4171 = vmatprep.mubr.bf16.mxu0 %v1095
        %4172 = vmatmul.mubr.bf16.gmra.mxu0 %v1094
        %v4173 = vpop.f32.mrf.mxu0
        %v4174 = vadd.f32 %v3981, %v4173
        %v4175 = vpop.f32.mrf.mxu0
        %v4176 = vadd.f32 %v3983, %v4175
        %v4177 = vpop.f32.mrf.mxu0
        %v4178 = vadd.f32 %v3985, %v4177
        %v4179 = vpop.f32.mrf.mxu0
        %v4180 = vadd.f32 %v3987, %v4179
        %4181 = vmatprep.mubr.bf16.mxu0 %v1099
        %4182 = vmatmul.mubr.bf16.gmra.mxu0 %v1098
        %v4183 = vpop.f32.mrf.mxu0
        %v4184 = vadd.f32 %v3991, %v4183
        %v4185 = vpop.f32.mrf.mxu0
        %v4186 = vadd.f32 %v3993, %v4185
        %v4187 = vpop.f32.mrf.mxu0
        %v4188 = vadd.f32 %v3995, %v4187
        %v4189 = vpop.f32.mrf.mxu0
        %v4190 = vadd.f32 %v3997, %v4189
        %4191 = vmatprep.mubr.bf16.mxu0 %v1103
        %4192 = vmatmul.mubr.bf16.gmra.mxu0 %v1102
        %v4193 = vpop.f32.mrf.mxu0
        %v4194 = vadd.f32 %v4001, %v4193
        %v4195 = vpop.f32.mrf.mxu0
        %v4196 = vadd.f32 %v4003, %v4195
        %v4197 = vpop.f32.mrf.mxu0
        %v4198 = vadd.f32 %v4005, %v4197
        %v4199 = vpop.f32.mrf.mxu0
        %v4200 = vadd.f32 %v4007, %v4199
        %4201 = vmatprep.mubr.bf16.mxu0 %v1107
        %4202 = vmatmul.mubr.bf16.gmra.mxu0 %v1106
        %v4203 = vpop.f32.mrf.mxu0
        %v4204 = vadd.f32 %v4011, %v4203
        %v4205 = vpop.f32.mrf.mxu0
        %v4206 = vadd.f32 %v4013, %v4205
        %v4207 = vpop.f32.mrf.mxu0
        %v4208 = vadd.f32 %v4015, %v4207
        %v4209 = vpop.f32.mrf.mxu0
        %v4210 = vadd.f32 %v4017, %v4209
        %4211 = vmatprep.mubr.bf16.mxu0 %v1111
        %4212 = vmatmul.mubr.bf16.gmra.mxu0 %v1110
        %v4213 = vpop.f32.mrf.mxu0
        %v4214 = vadd.f32 %v4021, %v4213
        %v4215 = vpop.f32.mrf.mxu0
        %v4216 = vadd.f32 %v4023, %v4215
        %v4217 = vpop.f32.mrf.mxu0
        %v4218 = vadd.f32 %v4025, %v4217
        %v4219 = vpop.f32.mrf.mxu0
        %v4220 = vadd.f32 %v4027, %v4219
        %4221 = vmatprep.mubr.bf16.mxu0 %v1115
        %4222 = vmatmul.mubr.bf16.gmra.mxu0 %v1114
        %v4223 = vpop.f32.mrf.mxu0
        %v4224 = vadd.f32 %v4031, %v4223
        %v4225 = vpop.f32.mrf.mxu0
        %v4226 = vadd.f32 %v4033, %v4225
        %v4227 = vpop.f32.mrf.mxu0
        %v4228 = vadd.f32 %v4035, %v4227
        %v4229 = vpop.f32.mrf.mxu0
        %v4230 = vadd.f32 %v4037, %v4229
        %4231 = vmatprep.mubr.bf16.mxu0 %v1119
        %4232 = vmatmul.mubr.bf16.gmra.mxu0 %v1118
        %v4233 = vpop.f32.mrf.mxu0
        %v4234 = vadd.f32 %v4041, %v4233
        %v4235 = vpop.f32.mrf.mxu0
        %v4236 = vadd.f32 %v4043, %v4235
        %v4237 = vpop.f32.mrf.mxu0
        %v4238 = vadd.f32 %v4045, %v4237
        %v4239 = vpop.f32.mrf.mxu0
        %v4240 = vadd.f32 %v4047, %v4239
        %4241 = vdwg.mxu0
        %v4242 = vmax.f32 %v2926, 0.0
        %v4243 = vmax.f32 %v2928, 0.0
        %v4244 = vmax.f32 %v3312, 0.0
        %v4245 = vmax.f32 %v3314, 0.0
        %v4246 = vmax.f32 %v3698, 0.0
        %v4247 = vmax.f32 %v3700, 0.0
        %v4248 = vmax.f32 %v4084, 0.0
        %v4249 = vmax.f32 %v4086, 0.0
        %v4250 = vmax.f32 %v2930, 0.0
        %v4251 = vmax.f32 %v2932, 0.0
        %v4252 = vmax.f32 %v3316, 0.0
        %v4253 = vmax.f32 %v3318, 0.0
        %v4254 = vmax.f32 %v3702, 0.0
        %v4255 = vmax.f32 %v3704, 0.0
        %v4256 = vmax.f32 %v4088, 0.0
        %v4257 = vmax.f32 %v4090, 0.0
        %v4258 = vmax.f32 %v2936, 0.0
        %v4259 = vmax.f32 %v2938, 0.0
        %v4260 = vmax.f32 %v3322, 0.0
        %v4261 = vmax.f32 %v3324, 0.0
        %v4262 = vmax.f32 %v3708, 0.0
        %v4263 = vmax.f32 %v3710, 0.0
        %v4264 = vmax.f32 %v4094, 0.0
        %v4265 = vmax.f32 %v4096, 0.0
        %v4266 = vmax.f32 %v2940, 0.0
        %v4267 = vmax.f32 %v2942, 0.0
        %v4268 = vmax.f32 %v3326, 0.0
        %v4269 = vmax.f32 %v3328, 0.0
        %v4270 = vmax.f32 %v3712, 0.0
        %v4271 = vmax.f32 %v3714, 0.0
        %v4272 = vmax.f32 %v4098, 0.0
        %v4273 = vmax.f32 %v4100, 0.0
        %v4274 = vmax.f32 %v2946, 0.0
        %v4275 = vmax.f32 %v2948, 0.0
        %v4276 = vmax.f32 %v3332, 0.0
        %v4277 = vmax.f32 %v3334, 0.0
        %v4278 = vmax.f32 %v3718, 0.0
        %v4279 = vmax.f32 %v3720, 0.0
        %v4280 = vmax.f32 %v4104, 0.0
        %v4281 = vmax.f32 %v4106, 0.0
        %v4282 = vmax.f32 %v2950, 0.0
        %v4283 = vmax.f32 %v2952, 0.0
        %v4284 = vmax.f32 %v3336, 0.0
        %v4285 = vmax.f32 %v3338, 0.0
        %v4286 = vmax.f32 %v3722, 0.0
        %v4287 = vmax.f32 %v3724, 0.0
        %v4288 = vmax.f32 %v4108, 0.0
        %v4289 = vmax.f32 %v4110, 0.0
        %v4290 = vmax.f32 %v2956, 0.0
        %v4291 = vmax.f32 %v2958, 0.0
        %v4292 = vmax.f32 %v3342, 0.0
        %v4293 = vmax.f32 %v3344, 0.0
        %v4294 = vmax.f32 %v3728, 0.0
        %v4295 = vmax.f32 %v3730, 0.0
        %v4296 = vmax.f32 %v4114, 0.0
        %v4297 = vmax.f32 %v4116, 0.0
        %v4298 = vmax.f32 %v2960, 0.0
        %v4299 = vmax.f32 %v2962, 0.0
        %v4300 = vmax.f32 %v3346, 0.0
        %v4301 = vmax.f32 %v3348, 0.0
        %v4302 = vmax.f32 %v3732, 0.0
        %v4303 = vmax.f32 %v3734, 0.0
        %v4304 = vmax.f32 %v4118, 0.0
        %v4305 = vmax.f32 %v4120, 0.0
        %v4306 = vmax.f32 %v2966, 0.0
        %v4307 = vmax.f32 %v2968, 0.0
        %v4308 = vmax.f32 %v3352, 0.0
        %v4309 = vmax.f32 %v3354, 0.0
        %v4310 = vmax.f32 %v3738, 0.0
        %v4311 = vmax.f32 %v3740, 0.0
        %v4312 = vmax.f32 %v4124, 0.0
        %v4313 = vmax.f32 %v4126, 0.0
        %v4314 = vmax.f32 %v2970, 0.0
        %v4315 = vmax.f32 %v2972, 0.0
        %v4316 = vmax.f32 %v3356, 0.0
        %v4317 = vmax.f32 %v3358, 0.0
        %v4318 = vmax.f32 %v3742, 0.0
        %v4319 = vmax.f32 %v3744, 0.0
        %v4320 = vmax.f32 %v4128, 0.0
        %v4321 = vmax.f32 %v4130, 0.0
        %v4322 = vmax.f32 %v2976, 0.0
        %v4323 = vmax.f32 %v2978, 0.0
        %v4324 = vmax.f32 %v3362, 0.0
        %v4325 = vmax.f32 %v3364, 0.0
        %v4326 = vmax.f32 %v3748, 0.0
        %v4327 = vmax.f32 %v3750, 0.0
        %v4328 = vmax.f32 %v4134, 0.0
        %v4329 = vmax.f32 %v4136, 0.0
        %v4330 = vmax.f32 %v2980, 0.0
        %v4331 = vmax.f32 %v2982, 0.0
        %v4332 = vmax.f32 %v3366, 0.0
        %v4333 = vmax.f32 %v3368, 0.0
        %v4334 = vmax.f32 %v3752, 0.0
        %v4335 = vmax.f32 %v3754, 0.0
        %v4336 = vmax.f32 %v4138, 0.0
        %v4337 = vmax.f32 %v4140, 0.0
        %v4338 = vmax.f32 %v2986, 0.0
        %v4339 = vmax.f32 %v2988, 0.0
        %v4340 = vmax.f32 %v3372, 0.0
        %v4341 = vmax.f32 %v3374, 0.0
        %v4342 = vmax.f32 %v3758, 0.0
        %v4343 = vmax.f32 %v3760, 0.0
        %v4344 = vmax.f32 %v4144, 0.0
        %v4345 = vmax.f32 %v4146, 0.0
        %v4346 = vmax.f32 %v2990, 0.0
        %v4347 = vmax.f32 %v2992, 0.0
        %v4348 = vmax.f32 %v3376, 0.0
        %v4349 = vmax.f32 %v3378, 0.0
        %v4350 = vmax.f32 %v3762, 0.0
        %v4351 = vmax.f32 %v3764, 0.0
        %v4352 = vmax.f32 %v4148, 0.0
        %v4353 = vmax.f32 %v4150, 0.0
        %v4354 = vmax.f32 %v2996, 0.0
        %v4355 = vmax.f32 %v2998, 0.0
        %v4356 = vmax.f32 %v3382, 0.0
        %v4357 = vmax.f32 %v3384, 0.0
        %v4358 = vmax.f32 %v3768, 0.0
        %v4359 = vmax.f32 %v3770, 0.0
        %v4360 = vmax.f32 %v4154, 0.0
        %v4361 = vmax.f32 %v4156, 0.0
        %v4362 = vmax.f32 %v3000, 0.0
        %v4363 = vmax.f32 %v3002, 0.0
        %v4364 = vmax.f32 %v3386, 0.0
        %v4365 = vmax.f32 %v3388, 0.0
        %v4366 = vmax.f32 %v3772, 0.0
        %v4367 = vmax.f32 %v3774, 0.0
        %v4368 = vmax.f32 %v4158, 0.0
        %v4369 = vmax.f32 %v4160, 0.0
        %v4370 = vmax.f32 %v3006, 0.0
        %v4371 = vmax.f32 %v3008, 0.0
        %v4372 = vmax.f32 %v3392, 0.0
        %v4373 = vmax.f32 %v3394, 0.0
        %v4374 = vmax.f32 %v3778, 0.0
        %v4375 = vmax.f32 %v3780, 0.0
        %v4376 = vmax.f32 %v4164, 0.0
        %v4377 = vmax.f32 %v4166, 0.0
        %v4378 = vmax.f32 %v3010, 0.0
        %v4379 = vmax.f32 %v3012, 0.0
        %v4380 = vmax.f32 %v3396, 0.0
        %v4381 = vmax.f32 %v3398, 0.0
        %v4382 = vmax.f32 %v3782, 0.0
        %v4383 = vmax.f32 %v3784, 0.0
        %v4384 = vmax.f32 %v4168, 0.0
        %v4385 = vmax.f32 %v4170, 0.0
        %v4386 = vmax.f32 %v3016, 0.0
        %v4387 = vmax.f32 %v3018, 0.0
        %v4388 = vmax.f32 %v3402, 0.0
        %v4389 = vmax.f32 %v3404, 0.0
        %v4390 = vmax.f32 %v3788, 0.0
        %v4391 = vmax.f32 %v3790, 0.0
        %v4392 = vmax.f32 %v4174, 0.0
        %v4393 = vmax.f32 %v4176, 0.0
        %v4394 = vmax.f32 %v3020, 0.0
        %v4395 = vmax.f32 %v3022, 0.0
        %v4396 = vmax.f32 %v3406, 0.0
        %v4397 = vmax.f32 %v3408, 0.0
        %v4398 = vmax.f32 %v3792, 0.0
        %v4399 = vmax.f32 %v3794, 0.0
        %v4400 = vmax.f32 %v4178, 0.0
        %v4401 = vmax.f32 %v4180, 0.0
        %v4402 = vmax.f32 %v3026, 0.0
        %v4403 = vmax.f32 %v3028, 0.0
        %v4404 = vmax.f32 %v3412, 0.0
        %v4405 = vmax.f32 %v3414, 0.0
        %v4406 = vmax.f32 %v3798, 0.0
        %v4407 = vmax.f32 %v3800, 0.0
        %v4408 = vmax.f32 %v4184, 0.0
        %v4409 = vmax.f32 %v4186, 0.0
        %v4410 = vmax.f32 %v3030, 0.0
        %v4411 = vmax.f32 %v3032, 0.0
        %v4412 = vmax.f32 %v3416, 0.0
        %v4413 = vmax.f32 %v3418, 0.0
        %v4414 = vmax.f32 %v3802, 0.0
        %v4415 = vmax.f32 %v3804, 0.0
        %v4416 = vmax.f32 %v4188, 0.0
        %v4417 = vmax.f32 %v4190, 0.0
        %v4418 = vmax.f32 %v3036, 0.0
        %v4419 = vmax.f32 %v3038, 0.0
        %v4420 = vmax.f32 %v3422, 0.0
        %v4421 = vmax.f32 %v3424, 0.0
        %v4422 = vmax.f32 %v3808, 0.0
        %v4423 = vmax.f32 %v3810, 0.0
        %v4424 = vmax.f32 %v4194, 0.0
        %v4425 = vmax.f32 %v4196, 0.0
        %v4426 = vmax.f32 %v3040, 0.0
        %v4427 = vmax.f32 %v3042, 0.0
        %v4428 = vmax.f32 %v3426, 0.0
        %v4429 = vmax.f32 %v3428, 0.0
        %v4430 = vmax.f32 %v3812, 0.0
        %v4431 = vmax.f32 %v3814, 0.0
        %v4432 = vmax.f32 %v4198, 0.0
        %v4433 = vmax.f32 %v4200, 0.0
        %v4434 = vmax.f32 %v3046, 0.0
        %v4435 = vmax.f32 %v3048, 0.0
        %v4436 = vmax.f32 %v3432, 0.0
        %v4437 = vmax.f32 %v3434, 0.0
        %v4438 = vmax.f32 %v3818, 0.0
        %v4439 = vmax.f32 %v3820, 0.0
        %v4440 = vmax.f32 %v4204, 0.0
        %v4441 = vmax.f32 %v4206, 0.0
        %v4442 = vmax.f32 %v3050, 0.0
        %v4443 = vmax.f32 %v3052, 0.0
        %v4444 = vmax.f32 %v3436, 0.0
        %v4445 = vmax.f32 %v3438, 0.0
        %v4446 = vmax.f32 %v3822, 0.0
        %v4447 = vmax.f32 %v3824, 0.0
        %v4448 = vmax.f32 %v4208, 0.0
        %v4449 = vmax.f32 %v4210, 0.0
        %v4450 = vmax.f32 %v3056, 0.0
        %v4451 = vmax.f32 %v3058, 0.0
        %v4452 = vmax.f32 %v3442, 0.0
        %v4453 = vmax.f32 %v3444, 0.0
        %v4454 = vmax.f32 %v3828, 0.0
        %v4455 = vmax.f32 %v3830, 0.0
        %v4456 = vmax.f32 %v4214, 0.0
        %v4457 = vmax.f32 %v4216, 0.0
        %v4458 = vmax.f32 %v3060, 0.0
        %v4459 = vmax.f32 %v3062, 0.0
        %v4460 = vmax.f32 %v3446, 0.0
        %v4461 = vmax.f32 %v3448, 0.0
        %v4462 = vmax.f32 %v3832, 0.0
        %v4463 = vmax.f32 %v3834, 0.0
        %v4464 = vmax.f32 %v4218, 0.0
        %v4465 = vmax.f32 %v4220, 0.0
        %v4466 = vmax.f32 %v3066, 0.0
        %v4467 = vmax.f32 %v3068, 0.0
        %v4468 = vmax.f32 %v3452, 0.0
        %v4469 = vmax.f32 %v3454, 0.0
        %v4470 = vmax.f32 %v3838, 0.0
        %v4471 = vmax.f32 %v3840, 0.0
        %v4472 = vmax.f32 %v4224, 0.0
        %v4473 = vmax.f32 %v4226, 0.0
        %v4474 = vmax.f32 %v3070, 0.0
        %v4475 = vmax.f32 %v3072, 0.0
        %v4476 = vmax.f32 %v3456, 0.0
        %v4477 = vmax.f32 %v3458, 0.0
        %v4478 = vmax.f32 %v3842, 0.0
        %v4479 = vmax.f32 %v3844, 0.0
        %v4480 = vmax.f32 %v4228, 0.0
        %v4481 = vmax.f32 %v4230, 0.0
        %v4482 = vmax.f32 %v3076, 0.0
        %v4483 = vmax.f32 %v3078, 0.0
        %v4484 = vmax.f32 %v3462, 0.0
        %v4485 = vmax.f32 %v3464, 0.0
        %v4486 = vmax.f32 %v3848, 0.0
        %v4487 = vmax.f32 %v3850, 0.0
        %v4488 = vmax.f32 %v4234, 0.0
        %v4489 = vmax.f32 %v4236, 0.0
        %v4490 = vmax.f32 %v3080, 0.0
        %v4491 = vmax.f32 %v3082, 0.0
        %v4492 = vmax.f32 %v3466, 0.0
        %v4493 = vmax.f32 %v3468, 0.0
        %v4494 = vmax.f32 %v3852, 0.0
        %v4495 = vmax.f32 %v3854, 0.0
        %v4496 = vmax.f32 %v4238, 0.0
        %v4497 = vmax.f32 %v4240, 0.0
        %v4498 = vpack.c.bf16 %v4250, %v4242
        %v4499 = vpack.c.bf16 %v4251, %v4243
        %v4500 = vpack.c.bf16 %v4252, %v4244
        %v4501 = vpack.c.bf16 %v4253, %v4245
        %v4502 = vpack.c.bf16 %v4254, %v4246
        %v4503 = vpack.c.bf16 %v4255, %v4247
        %v4504 = vpack.c.bf16 %v4256, %v4248
        %v4505 = vpack.c.bf16 %v4257, %v4249
        %v4506 = vpack.c.bf16 %v4266, %v4258
        %v4507 = vpack.c.bf16 %v4267, %v4259
        %v4508 = vpack.c.bf16 %v4268, %v4260
        %v4509 = vpack.c.bf16 %v4269, %v4261
        %v4510 = vpack.c.bf16 %v4270, %v4262
        %v4511 = vpack.c.bf16 %v4271, %v4263
        %v4512 = vpack.c.bf16 %v4272, %v4264
        %v4513 = vpack.c.bf16 %v4273, %v4265
        %v4514 = vpack.c.bf16 %v4282, %v4274
        %v4515 = vpack.c.bf16 %v4283, %v4275
        %v4516 = vpack.c.bf16 %v4284, %v4276
        %v4517 = vpack.c.bf16 %v4285, %v4277
        %v4518 = vpack.c.bf16 %v4286, %v4278
        %v4519 = vpack.c.bf16 %v4287, %v4279
        %v4520 = vpack.c.bf16 %v4288, %v4280
        %v4521 = vpack.c.bf16 %v4289, %v4281
        %v4522 = vpack.c.bf16 %v4298, %v4290
        %v4523 = vpack.c.bf16 %v4299, %v4291
        %v4524 = vpack.c.bf16 %v4300, %v4292
        %v4525 = vpack.c.bf16 %v4301, %v4293
        %v4526 = vpack.c.bf16 %v4302, %v4294
        %v4527 = vpack.c.bf16 %v4303, %v4295
        %v4528 = vpack.c.bf16 %v4304, %v4296
        %v4529 = vpack.c.bf16 %v4305, %v4297
        %v4530 = vpack.c.bf16 %v4314, %v4306
        %v4531 = vpack.c.bf16 %v4315, %v4307
        %v4532 = vpack.c.bf16 %v4316, %v4308
        %v4533 = vpack.c.bf16 %v4317, %v4309
        %v4534 = vpack.c.bf16 %v4318, %v4310
        %v4535 = vpack.c.bf16 %v4319, %v4311
        %v4536 = vpack.c.bf16 %v4320, %v4312
        %v4537 = vpack.c.bf16 %v4321, %v4313
        %v4538 = vpack.c.bf16 %v4330, %v4322
        %v4539 = vpack.c.bf16 %v4331, %v4323
        %v4540 = vpack.c.bf16 %v4332, %v4324
        %v4541 = vpack.c.bf16 %v4333, %v4325
        %v4542 = vpack.c.bf16 %v4334, %v4326
        %v4543 = vpack.c.bf16 %v4335, %v4327
        %v4544 = vpack.c.bf16 %v4336, %v4328
        %v4545 = vpack.c.bf16 %v4337, %v4329
        %v4546 = vpack.c.bf16 %v4346, %v4338
        %v4547 = vpack.c.bf16 %v4347, %v4339
        %v4548 = vpack.c.bf16 %v4348, %v4340
        %v4549 = vpack.c.bf16 %v4349, %v4341
        %v4550 = vpack.c.bf16 %v4350, %v4342
        %v4551 = vpack.c.bf16 %v4351, %v4343
        %v4552 = vpack.c.bf16 %v4352, %v4344
        %v4553 = vpack.c.bf16 %v4353, %v4345
        %v4554 = vpack.c.bf16 %v4362, %v4354
        %v4555 = vpack.c.bf16 %v4363, %v4355
        %v4556 = vpack.c.bf16 %v4364, %v4356
        %v4557 = vpack.c.bf16 %v4365, %v4357
        %v4558 = vpack.c.bf16 %v4366, %v4358
        %v4559 = vpack.c.bf16 %v4367, %v4359
        %v4560 = vpack.c.bf16 %v4368, %v4360
        %v4561 = vpack.c.bf16 %v4369, %v4361
        %v4562 = vpack.c.bf16 %v4378, %v4370
        %v4563 = vpack.c.bf16 %v4379, %v4371
        %v4564 = vpack.c.bf16 %v4380, %v4372
        %v4565 = vpack.c.bf16 %v4381, %v4373
        %v4566 = vpack.c.bf16 %v4382, %v4374
        %v4567 = vpack.c.bf16 %v4383, %v4375
        %v4568 = vpack.c.bf16 %v4384, %v4376
        %v4569 = vpack.c.bf16 %v4385, %v4377
        %v4570 = vpack.c.bf16 %v4394, %v4386
        %v4571 = vpack.c.bf16 %v4395, %v4387
        %v4572 = vpack.c.bf16 %v4396, %v4388
        %v4573 = vpack.c.bf16 %v4397, %v4389
        %v4574 = vpack.c.bf16 %v4398, %v4390
        %v4575 = vpack.c.bf16 %v4399, %v4391
        %v4576 = vpack.c.bf16 %v4400, %v4392
        %v4577 = vpack.c.bf16 %v4401, %v4393
        %v4578 = vpack.c.bf16 %v4410, %v4402
        %v4579 = vpack.c.bf16 %v4411, %v4403
        %v4580 = vpack.c.bf16 %v4412, %v4404
        %v4581 = vpack.c.bf16 %v4413, %v4405
        %v4582 = vpack.c.bf16 %v4414, %v4406
        %v4583 = vpack.c.bf16 %v4415, %v4407
        %v4584 = vpack.c.bf16 %v4416, %v4408
        %v4585 = vpack.c.bf16 %v4417, %v4409
        %v4586 = vpack.c.bf16 %v4426, %v4418
        %v4587 = vpack.c.bf16 %v4427, %v4419
        %v4588 = vpack.c.bf16 %v4428, %v4420
        %v4589 = vpack.c.bf16 %v4429, %v4421
        %v4590 = vpack.c.bf16 %v4430, %v4422
        %v4591 = vpack.c.bf16 %v4431, %v4423
        %v4592 = vpack.c.bf16 %v4432, %v4424
        %v4593 = vpack.c.bf16 %v4433, %v4425
        %v4594 = vpack.c.bf16 %v4442, %v4434
        %v4595 = vpack.c.bf16 %v4443, %v4435
        %v4596 = vpack.c.bf16 %v4444, %v4436
        %v4597 = vpack.c.bf16 %v4445, %v4437
        %v4598 = vpack.c.bf16 %v4446, %v4438
        %v4599 = vpack.c.bf16 %v4447, %v4439
        %v4600 = vpack.c.bf16 %v4448, %v4440
        %v4601 = vpack.c.bf16 %v4449, %v4441
        %v4602 = vpack.c.bf16 %v4458, %v4450
        %v4603 = vpack.c.bf16 %v4459, %v4451
        %v4604 = vpack.c.bf16 %v4460, %v4452
        %v4605 = vpack.c.bf16 %v4461, %v4453
        %v4606 = vpack.c.bf16 %v4462, %v4454
        %v4607 = vpack.c.bf16 %v4463, %v4455
        %v4608 = vpack.c.bf16 %v4464, %v4456
        %v4609 = vpack.c.bf16 %v4465, %v4457
        %v4610 = vpack.c.bf16 %v4474, %v4466
        %v4611 = vpack.c.bf16 %v4475, %v4467
        %v4612 = vpack.c.bf16 %v4476, %v4468
        %v4613 = vpack.c.bf16 %v4477, %v4469
        %v4614 = vpack.c.bf16 %v4478, %v4470
        %v4615 = vpack.c.bf16 %v4479, %v4471
        %v4616 = vpack.c.bf16 %v4480, %v4472
        %v4617 = vpack.c.bf16 %v4481, %v4473
        %v4618 = vpack.c.bf16 %v4490, %v4482
        %v4619 = vpack.c.bf16 %v4491, %v4483
        %v4620 = vpack.c.bf16 %v4492, %v4484
        %v4621 = vpack.c.bf16 %v4493, %v4485
        %v4622 = vpack.c.bf16 %v4494, %v4486
        %v4623 = vpack.c.bf16 %v4495, %v4487
        %v4624 = vpack.c.bf16 %v4496, %v4488
        %v4625 = vpack.c.bf16 %v4497, %v4489
        %v4626 = vld [vmem:[#allocation5] sm:$0xf]
        %v4627 = vld [vmem:[#allocation5 + $0x4] sm:$0xf]
        %v4628 = vld [vmem:[#allocation5 + $0x8] sm:$0xf]
        %v4629 = vld [vmem:[#allocation5 + $0xc] sm:$0xf]
        %v4630 = vld [vmem:[#allocation5 + $0x10] sm:$0xf]
        %v4631 = vld [vmem:[#allocation5 + $0x14] sm:$0xf]
        %v4632 = vld [vmem:[#allocation5 + $0x18] sm:$0xf]
        %v4633 = vld [vmem:[#allocation5 + $0x1c] sm:$0xf]
        %v4634 = vld [vmem:[#allocation5 + $0x20] sm:$0xf]
        %v4635 = vld [vmem:[#allocation5 + $0x24] sm:$0xf]
        %v4636 = vld [vmem:[#allocation5 + $0x28] sm:$0xf]
        %v4637 = vld [vmem:[#allocation5 + $0x2c] sm:$0xf]
        %v4638 = vld [vmem:[#allocation5 + $0x30] sm:$0xf]
        %v4639 = vld [vmem:[#allocation5 + $0x34] sm:$0xf]
        %v4640 = vld [vmem:[#allocation5 + $0x38] sm:$0xf]
        %v4641 = vld [vmem:[#allocation5 + $0x3c] sm:$0xf]
        %v4642 = vld [vmem:[#allocation5 + $0x40] sm:$0xf]
        %v4643 = vld [vmem:[#allocation5 + $0x44] sm:$0xf]
        %v4644 = vld [vmem:[#allocation5 + $0x48] sm:$0xf]
        %v4645 = vld [vmem:[#allocation5 + $0x4c] sm:$0xf]
        %v4646 = vld [vmem:[#allocation5 + $0x50] sm:$0xf]
        %v4647 = vld [vmem:[#allocation5 + $0x54] sm:$0xf]
        %v4648 = vld [vmem:[#allocation5 + $0x58] sm:$0xf]
        %v4649 = vld [vmem:[#allocation5 + $0x5c] sm:$0xf]
        %v4650 = vld [vmem:[#allocation5 + $0x60] sm:$0xf]
        %v4651 = vld [vmem:[#allocation5 + $0x64] sm:$0xf]
        %v4652 = vld [vmem:[#allocation5 + $0x68] sm:$0xf]
        %v4653 = vld [vmem:[#allocation5 + $0x6c] sm:$0xf]
        %v4654 = vld [vmem:[#allocation5 + $0x70] sm:$0xf]
        %v4655 = vld [vmem:[#allocation5 + $0x74] sm:$0xf]
        %v4656 = vld [vmem:[#allocation5 + $0x78] sm:$0xf]
        %v4657 = vld [vmem:[#allocation5 + $0x7c] sm:$0xf]
        %v4658 = vld [vmem:[#allocation5 + $0x80] sm:$0xf]
        %v4659 = vld [vmem:[#allocation5 + $0x84] sm:$0xf]
        %v4660 = vld [vmem:[#allocation5 + $0x88] sm:$0xf]
        %v4661 = vld [vmem:[#allocation5 + $0x8c] sm:$0xf]
        %v4662 = vld [vmem:[#allocation5 + $0x90] sm:$0xf]
        %v4663 = vld [vmem:[#allocation5 + $0x94] sm:$0xf]
        %v4664 = vld [vmem:[#allocation5 + $0x98] sm:$0xf]
        %v4665 = vld [vmem:[#allocation5 + $0x9c] sm:$0xf]
        %v4666 = vld [vmem:[#allocation5 + $0xa0] sm:$0xf]
        %v4667 = vld [vmem:[#allocation5 + $0xa4] sm:$0xf]
        %v4668 = vld [vmem:[#allocation5 + $0xa8] sm:$0xf]
        %v4669 = vld [vmem:[#allocation5 + $0xac] sm:$0xf]
        %v4670 = vld [vmem:[#allocation5 + $0xb0] sm:$0xf]
        %v4671 = vld [vmem:[#allocation5 + $0xb4] sm:$0xf]
        %v4672 = vld [vmem:[#allocation5 + $0xb8] sm:$0xf]
        %v4673 = vld [vmem:[#allocation5 + $0xbc] sm:$0xf]
        %v4674 = vld [vmem:[#allocation5 + $0xc0] sm:$0xf]
        %v4675 = vld [vmem:[#allocation5 + $0xc4] sm:$0xf]
        %v4676 = vld [vmem:[#allocation5 + $0xc8] sm:$0xf]
        %v4677 = vld [vmem:[#allocation5 + $0xcc] sm:$0xf]
        %v4678 = vld [vmem:[#allocation5 + $0xd0] sm:$0xf]
        %v4679 = vld [vmem:[#allocation5 + $0xd4] sm:$0xf]
        %v4680 = vld [vmem:[#allocation5 + $0xd8] sm:$0xf]
        %v4681 = vld [vmem:[#allocation5 + $0xdc] sm:$0xf]
        %v4682 = vld [vmem:[#allocation5 + $0xe0] sm:$0xf]
        %v4683 = vld [vmem:[#allocation5 + $0xe4] sm:$0xf]
        %v4684 = vld [vmem:[#allocation5 + $0xe8] sm:$0xf]
        %v4685 = vld [vmem:[#allocation5 + $0xec] sm:$0xf]
        %v4686 = vld [vmem:[#allocation5 + $0xf0] sm:$0xf]
        %v4687 = vld [vmem:[#allocation5 + $0xf4] sm:$0xf]
        %v4688 = vld [vmem:[#allocation5 + $0xf8] sm:$0xf]
        %v4689 = vld [vmem:[#allocation5 + $0xfc] sm:$0xf]
        %v4690 = vld [vmem:[#allocation5 + $0x100] sm:$0xf]
        %v4691 = vld [vmem:[#allocation5 + $0x104] sm:$0xf]
        %v4692 = vld [vmem:[#allocation5 + $0x108] sm:$0xf]
        %v4693 = vld [vmem:[#allocation5 + $0x10c] sm:$0xf]
        %v4694 = vld [vmem:[#allocation5 + $0x110] sm:$0xf]
        %v4695 = vld [vmem:[#allocation5 + $0x114] sm:$0xf]
        %v4696 = vld [vmem:[#allocation5 + $0x118] sm:$0xf]
        %v4697 = vld [vmem:[#allocation5 + $0x11c] sm:$0xf]
        %v4698 = vld [vmem:[#allocation5 + $0x120] sm:$0xf]
        %v4699 = vld [vmem:[#allocation5 + $0x124] sm:$0xf]
        %v4700 = vld [vmem:[#allocation5 + $0x128] sm:$0xf]
        %v4701 = vld [vmem:[#allocation5 + $0x12c] sm:$0xf]
        %v4702 = vld [vmem:[#allocation5 + $0x130] sm:$0xf]
        %v4703 = vld [vmem:[#allocation5 + $0x134] sm:$0xf]
        %v4704 = vld [vmem:[#allocation5 + $0x138] sm:$0xf]
        %v4705 = vld [vmem:[#allocation5 + $0x13c] sm:$0xf]
        %v4706 = vld [vmem:[#allocation5 + $0x140] sm:$0xf]
        %v4707 = vld [vmem:[#allocation5 + $0x144] sm:$0xf]
        %v4708 = vld [vmem:[#allocation5 + $0x148] sm:$0xf]
        %v4709 = vld [vmem:[#allocation5 + $0x14c] sm:$0xf]
        %v4710 = vld [vmem:[#allocation5 + $0x150] sm:$0xf]
        %v4711 = vld [vmem:[#allocation5 + $0x154] sm:$0xf]
        %v4712 = vld [vmem:[#allocation5 + $0x158] sm:$0xf]
        %v4713 = vld [vmem:[#allocation5 + $0x15c] sm:$0xf]
        %v4714 = vld [vmem:[#allocation5 + $0x160] sm:$0xf]
        %v4715 = vld [vmem:[#allocation5 + $0x164] sm:$0xf]
        %v4716 = vld [vmem:[#allocation5 + $0x168] sm:$0xf]
        %v4717 = vld [vmem:[#allocation5 + $0x16c] sm:$0xf]
        %v4718 = vld [vmem:[#allocation5 + $0x170] sm:$0xf]
        %v4719 = vld [vmem:[#allocation5 + $0x174] sm:$0xf]
        %v4720 = vld [vmem:[#allocation5 + $0x178] sm:$0xf]
        %v4721 = vld [vmem:[#allocation5 + $0x17c] sm:$0xf]
        %v4722 = vld [vmem:[#allocation5 + $0x180] sm:$0xf]
        %v4723 = vld [vmem:[#allocation5 + $0x184] sm:$0xf]
        %v4724 = vld [vmem:[#allocation5 + $0x188] sm:$0xf]
        %v4725 = vld [vmem:[#allocation5 + $0x18c] sm:$0xf]
        %v4726 = vld [vmem:[#allocation5 + $0x190] sm:$0xf]
        %v4727 = vld [vmem:[#allocation5 + $0x194] sm:$0xf]
        %v4728 = vld [vmem:[#allocation5 + $0x198] sm:$0xf]
        %v4729 = vld [vmem:[#allocation5 + $0x19c] sm:$0xf]
        %v4730 = vld [vmem:[#allocation5 + $0x1a0] sm:$0xf]
        %v4731 = vld [vmem:[#allocation5 + $0x1a4] sm:$0xf]
        %v4732 = vld [vmem:[#allocation5 + $0x1a8] sm:$0xf]
        %v4733 = vld [vmem:[#allocation5 + $0x1ac] sm:$0xf]
        %v4734 = vld [vmem:[#allocation5 + $0x1b0] sm:$0xf]
        %v4735 = vld [vmem:[#allocation5 + $0x1b4] sm:$0xf]
        %v4736 = vld [vmem:[#allocation5 + $0x1b8] sm:$0xf]
        %v4737 = vld [vmem:[#allocation5 + $0x1bc] sm:$0xf]
        %v4738 = vld [vmem:[#allocation5 + $0x1c0] sm:$0xf]
        %v4739 = vld [vmem:[#allocation5 + $0x1c4] sm:$0xf]
        %v4740 = vld [vmem:[#allocation5 + $0x1c8] sm:$0xf]
        %v4741 = vld [vmem:[#allocation5 + $0x1cc] sm:$0xf]
        %v4742 = vld [vmem:[#allocation5 + $0x1d0] sm:$0xf]
        %v4743 = vld [vmem:[#allocation5 + $0x1d4] sm:$0xf]
        %v4744 = vld [vmem:[#allocation5 + $0x1d8] sm:$0xf]
        %v4745 = vld [vmem:[#allocation5 + $0x1dc] sm:$0xf]
        %v4746 = vld [vmem:[#allocation5 + $0x1e0] sm:$0xf]
        %v4747 = vld [vmem:[#allocation5 + $0x1e4] sm:$0xf]
        %v4748 = vld [vmem:[#allocation5 + $0x1e8] sm:$0xf]
        %v4749 = vld [vmem:[#allocation5 + $0x1ec] sm:$0xf]
        %v4750 = vld [vmem:[#allocation5 + $0x1f0] sm:$0xf]
        %v4751 = vld [vmem:[#allocation5 + $0x1f4] sm:$0xf]
        %v4752 = vld [vmem:[#allocation5 + $0x1f8] sm:$0xf]
        %v4753 = vld [vmem:[#allocation5 + $0x1fc] sm:$0xf]
        %v4754 = vld [vmem:[%s6] sm:$0x1]
        %v4756 = vlaneseq
        %v4757 = vshrl.u32 %v4756, 7
        %v4758 = vsub.s32 0, %v4757
        %v4759 = vrot.slane %v4754, %v4758
        %v4889 = vunpack.c.l.b16 %v4626
        %v4890 = vunpack.c.l.b16 %v4627
        %v4891 = vunpack.c.l.b16 %v4628
        %v4892 = vunpack.c.l.b16 %v4629
        %v4893 = vunpack.c.l.b16 %v4630
        %v4894 = vunpack.c.l.b16 %v4631
        %v4895 = vunpack.c.l.b16 %v4632
        %v4896 = vunpack.c.l.b16 %v4633
        %v4897 = vunpack.c.l.b16 %v4634
        %v4898 = vunpack.c.l.b16 %v4635
        %v4899 = vunpack.c.l.b16 %v4636
        %v4900 = vunpack.c.l.b16 %v4637
        %v4901 = vunpack.c.l.b16 %v4638
        %v4902 = vunpack.c.l.b16 %v4639
        %v4903 = vunpack.c.l.b16 %v4640
        %v4904 = vunpack.c.l.b16 %v4641
        %v4905 = vunpack.c.l.b16 %v4642
        %v4906 = vunpack.c.l.b16 %v4643
        %v4907 = vunpack.c.l.b16 %v4644
        %v4908 = vunpack.c.l.b16 %v4645
        %v4909 = vunpack.c.l.b16 %v4646
        %v4910 = vunpack.c.l.b16 %v4647
        %v4911 = vunpack.c.l.b16 %v4648
        %v4912 = vunpack.c.l.b16 %v4649
        %v4913 = vunpack.c.l.b16 %v4650
        %v4914 = vunpack.c.l.b16 %v4651
        %v4915 = vunpack.c.l.b16 %v4652
        %v4916 = vunpack.c.l.b16 %v4653
        %v4917 = vunpack.c.l.b16 %v4654
        %v4918 = vunpack.c.l.b16 %v4655
        %v4919 = vunpack.c.l.b16 %v4656
        %v4920 = vunpack.c.l.b16 %v4657
        %v4921 = vunpack.c.l.b16 %v4658
        %v4922 = vunpack.c.l.b16 %v4659
        %v4923 = vunpack.c.l.b16 %v4660
        %v4924 = vunpack.c.l.b16 %v4661
        %v4925 = vunpack.c.l.b16 %v4662
        %v4926 = vunpack.c.l.b16 %v4663
        %v4927 = vunpack.c.l.b16 %v4664
        %v4928 = vunpack.c.l.b16 %v4665
        %v4929 = vunpack.c.l.b16 %v4666
        %v4930 = vunpack.c.l.b16 %v4667
        %v4931 = vunpack.c.l.b16 %v4668
        %v4932 = vunpack.c.l.b16 %v4669
        %v4933 = vunpack.c.l.b16 %v4670
        %v4934 = vunpack.c.l.b16 %v4671
        %v4935 = vunpack.c.l.b16 %v4672
        %v4936 = vunpack.c.l.b16 %v4673
        %v4937 = vunpack.c.l.b16 %v4674
        %v4938 = vunpack.c.l.b16 %v4675
        %v4939 = vunpack.c.l.b16 %v4676
        %v4940 = vunpack.c.l.b16 %v4677
        %v4941 = vunpack.c.l.b16 %v4678
        %v4942 = vunpack.c.l.b16 %v4679
        %v4943 = vunpack.c.l.b16 %v4680
        %v4944 = vunpack.c.l.b16 %v4681
        %v4945 = vunpack.c.l.b16 %v4682
        %v4946 = vunpack.c.l.b16 %v4683
        %v4947 = vunpack.c.l.b16 %v4684
        %v4948 = vunpack.c.l.b16 %v4685
        %v4949 = vunpack.c.l.b16 %v4686
        %v4950 = vunpack.c.l.b16 %v4687
        %v4951 = vunpack.c.l.b16 %v4688
        %v4952 = vunpack.c.l.b16 %v4689
        %v4953 = vunpack.c.l.b16 %v4690
        %v4954 = vunpack.c.l.b16 %v4691
        %v4955 = vunpack.c.l.b16 %v4692
        %v4956 = vunpack.c.l.b16 %v4693
        %v4957 = vunpack.c.l.b16 %v4694
        %v4958 = vunpack.c.l.b16 %v4695
        %v4959 = vunpack.c.l.b16 %v4696
        %v4960 = vunpack.c.l.b16 %v4697
        %v4961 = vunpack.c.l.b16 %v4698
        %v4962 = vunpack.c.l.b16 %v4699
        %v4963 = vunpack.c.l.b16 %v4700
        %v4964 = vunpack.c.l.b16 %v4701
        %v4965 = vunpack.c.l.b16 %v4702
        %v4966 = vunpack.c.l.b16 %v4703
        %v4967 = vunpack.c.l.b16 %v4704
        %v4968 = vunpack.c.l.b16 %v4705
        %v4969 = vunpack.c.l.b16 %v4706
        %v4970 = vunpack.c.l.b16 %v4707
        %v4971 = vunpack.c.l.b16 %v4708
        %v4972 = vunpack.c.l.b16 %v4709
        %v4973 = vunpack.c.l.b16 %v4710
        %v4974 = vunpack.c.l.b16 %v4711
        %v4975 = vunpack.c.l.b16 %v4712
        %v4976 = vunpack.c.l.b16 %v4713
        %v4977 = vunpack.c.l.b16 %v4714
        %v4978 = vunpack.c.l.b16 %v4715
        %v4979 = vunpack.c.l.b16 %v4716
        %v4980 = vunpack.c.l.b16 %v4717
        %v4981 = vunpack.c.l.b16 %v4718
        %v4982 = vunpack.c.l.b16 %v4719
        %v4983 = vunpack.c.l.b16 %v4720
        %v4984 = vunpack.c.l.b16 %v4721
        %v4985 = vunpack.c.l.b16 %v4722
        %v4986 = vunpack.c.l.b16 %v4723
        %v4987 = vunpack.c.l.b16 %v4724
        %v4988 = vunpack.c.l.b16 %v4725
        %v4989 = vunpack.c.l.b16 %v4726
        %v4990 = vunpack.c.l.b16 %v4727
        %v4991 = vunpack.c.l.b16 %v4728
        %v4992 = vunpack.c.l.b16 %v4729
        %v4993 = vunpack.c.l.b16 %v4730
        %v4994 = vunpack.c.l.b16 %v4731
        %v4995 = vunpack.c.l.b16 %v4732
        %v4996 = vunpack.c.l.b16 %v4733
        %v4997 = vunpack.c.l.b16 %v4734
        %v4998 = vunpack.c.l.b16 %v4735
        %v4999 = vunpack.c.l.b16 %v4736
        %v5000 = vunpack.c.l.b16 %v4737
        %v5001 = vunpack.c.l.b16 %v4738
        %v5002 = vunpack.c.l.b16 %v4739
        %v5003 = vunpack.c.l.b16 %v4740
        %v5004 = vunpack.c.l.b16 %v4741
        %v5005 = vunpack.c.l.b16 %v4742
        %v5006 = vunpack.c.l.b16 %v4743
        %v5007 = vunpack.c.l.b16 %v4744
        %v5008 = vunpack.c.l.b16 %v4745
        %v5009 = vunpack.c.l.b16 %v4746
        %v5010 = vunpack.c.l.b16 %v4747
        %v5011 = vunpack.c.l.b16 %v4748
        %v5012 = vunpack.c.l.b16 %v4749
        %v5013 = vunpack.c.l.b16 %v4750
        %v5014 = vunpack.c.l.b16 %v4751
        %v5015 = vunpack.c.l.b16 %v4752
        %v5016 = vunpack.c.l.b16 %v4753
        %v5017 = vpack.c.b16 %v4890, %v4889
        %v5018 = vpack.c.b16 %v4892, %v4891
        %v5019 = vpack.c.b16 %v4894, %v4893
        %v5020 = vpack.c.b16 %v4896, %v4895
        %v5021 = vpack.c.b16 %v4898, %v4897
        %v5022 = vpack.c.b16 %v4900, %v4899
        %v5023 = vpack.c.b16 %v4902, %v4901
        %v5024 = vpack.c.b16 %v4904, %v4903
        %v5025 = vpack.c.b16 %v4906, %v4905
        %v5026 = vpack.c.b16 %v4908, %v4907
        %v5027 = vpack.c.b16 %v4910, %v4909
        %v5028 = vpack.c.b16 %v4912, %v4911
        %v5029 = vpack.c.b16 %v4914, %v4913
        %v5030 = vpack.c.b16 %v4916, %v4915
        %v5031 = vpack.c.b16 %v4918, %v4917
        %v5032 = vpack.c.b16 %v4920, %v4919
        %v5033 = vpack.c.b16 %v4922, %v4921
        %v5034 = vpack.c.b16 %v4924, %v4923
        %v5035 = vpack.c.b16 %v4926, %v4925
        %v5036 = vpack.c.b16 %v4928, %v4927
        %v5037 = vpack.c.b16 %v4930, %v4929
        %v5038 = vpack.c.b16 %v4932, %v4931
        %v5039 = vpack.c.b16 %v4934, %v4933
        %v5040 = vpack.c.b16 %v4936, %v4935
        %v5041 = vpack.c.b16 %v4938, %v4937
        %v5042 = vpack.c.b16 %v4940, %v4939
        %v5043 = vpack.c.b16 %v4942, %v4941
        %v5044 = vpack.c.b16 %v4944, %v4943
        %v5045 = vpack.c.b16 %v4946, %v4945
        %v5046 = vpack.c.b16 %v4948, %v4947
        %v5047 = vpack.c.b16 %v4950, %v4949
        %v5048 = vpack.c.b16 %v4952, %v4951
        %v5049 = vpack.c.b16 %v4954, %v4953
        %v5050 = vpack.c.b16 %v4956, %v4955
        %v5051 = vpack.c.b16 %v4958, %v4957
        %v5052 = vpack.c.b16 %v4960, %v4959
        %v5053 = vpack.c.b16 %v4962, %v4961
        %v5054 = vpack.c.b16 %v4964, %v4963
        %v5055 = vpack.c.b16 %v4966, %v4965
        %v5056 = vpack.c.b16 %v4968, %v4967
        %v5057 = vpack.c.b16 %v4970, %v4969
        %v5058 = vpack.c.b16 %v4972, %v4971
        %v5059 = vpack.c.b16 %v4974, %v4973
        %v5060 = vpack.c.b16 %v4976, %v4975
        %v5061 = vpack.c.b16 %v4978, %v4977
        %v5062 = vpack.c.b16 %v4980, %v4979
        %v5063 = vpack.c.b16 %v4982, %v4981
        %v5064 = vpack.c.b16 %v4984, %v4983
        %v5065 = vpack.c.b16 %v4986, %v4985
        %v5066 = vpack.c.b16 %v4988, %v4987
        %v5067 = vpack.c.b16 %v4990, %v4989
        %v5068 = vpack.c.b16 %v4992, %v4991
        %v5069 = vpack.c.b16 %v4994, %v4993
        %v5070 = vpack.c.b16 %v4996, %v4995
        %v5071 = vpack.c.b16 %v4998, %v4997
        %v5072 = vpack.c.b16 %v5000, %v4999
        %v5073 = vpack.c.b16 %v5002, %v5001
        %v5074 = vpack.c.b16 %v5004, %v5003
        %v5075 = vpack.c.b16 %v5006, %v5005
        %v5076 = vpack.c.b16 %v5008, %v5007
        %v5077 = vpack.c.b16 %v5010, %v5009
        %v5078 = vpack.c.b16 %v5012, %v5011
        %v5079 = vpack.c.b16 %v5014, %v5013
        %v5080 = vpack.c.b16 %v5016, %v5015
        %5145 = vmatprep.subr.bf16.mxu0 0
        %5146 = vmatpush1.bf16.msra.mxu0 %v5024
        %5147 = vmatprep.subr.bf16.mxu0 0
        %5148 = vmatpush1.bf16.msra.mxu0 %v5023
        %5149 = vmatprep.subr.bf16.mxu0 0
        %5150 = vmatpush1.bf16.msra.mxu0 %v5022
        %5151 = vmatprep.subr.bf16.mxu0 0
        %5152 = vmatpush1.bf16.msra.mxu0 %v5021
        %5153 = vmatprep.subr.bf16.mxu0 0
        %5154 = vmatpush1.bf16.msra.mxu0 %v5020
        %5155 = vmatprep.subr.bf16.mxu0 0
        %5156 = vmatpush1.bf16.msra.mxu0 %v5019
        %5157 = vmatprep.subr.bf16.mxu0 0
        %5158 = vmatpush1.bf16.msra.mxu0 %v5018
        %5159 = vmatprep.subr.bf16.mxu0 0
        %5160 = vmatpush1.bf16.msra.mxu0 %v5017
        %5161 = vmatprep.subr.bf16.mxu0 0
        %5162 = vmatpush2.bf16.msra.mxu0 %v5032
        %5163 = vmatprep.subr.bf16.mxu0 0
        %5164 = vmatpush2.bf16.msra.mxu0 %v5031
        %5165 = vmatprep.subr.bf16.mxu0 0
        %5166 = vmatpush2.bf16.msra.mxu0 %v5030
        %5167 = vmatprep.subr.bf16.mxu0 0
        %5168 = vmatpush2.bf16.msra.mxu0 %v5029
        %5169 = vmatprep.subr.bf16.mxu0 0
        %5170 = vmatpush2.bf16.msra.mxu0 %v5028
        %5171 = vmatprep.subr.bf16.mxu0 0
        %5172 = vmatpush2.bf16.msra.mxu0 %v5027
        %5173 = vmatprep.subr.bf16.mxu0 0
        %5174 = vmatpush2.bf16.msra.mxu0 %v5026
        %5175 = vmatprep.subr.bf16.mxu0 0
        %5176 = vmatpush2.bf16.msra.mxu0 %v5025
        %5177 = vmatprep.mubr.bf16.mxu0 %v4499
        %5178 = vmatmul.mubr.bf16.gmra.mxu0 %v4498
        %v5179 = vpop.f32.mrf.mxu0
        %v5180 = vadd.f32 %v4759, %v5179
        %v5181 = vpop.f32.mrf.mxu0
        %v5182 = vpop.f32.mrf.mxu0
        %v5183 = vadd.f32 %v4759, %v5182
        %v5184 = vpop.f32.mrf.mxu0
        %5185 = vmatprep.mubr.bf16.mxu0 %v4507
        %5186 = vmatmul.mubr.bf16.gmra.mxu0 %v4506
        %v5187 = vpop.f32.mrf.mxu0
        %v5188 = vadd.f32 %v4759, %v5187
        %v5189 = vpop.f32.mrf.mxu0
        %v5190 = vpop.f32.mrf.mxu0
        %v5191 = vadd.f32 %v4759, %v5190
        %v5192 = vpop.f32.mrf.mxu0
        %5193 = vmatprep.mubr.bf16.mxu0 %v4515
        %5194 = vmatmul.mubr.bf16.gmra.mxu0 %v4514
        %v5195 = vpop.f32.mrf.mxu0
        %v5196 = vadd.f32 %v4759, %v5195
        %v5197 = vpop.f32.mrf.mxu0
        %v5198 = vpop.f32.mrf.mxu0
        %v5199 = vadd.f32 %v4759, %v5198
        %v5200 = vpop.f32.mrf.mxu0
        %5201 = vmatprep.mubr.bf16.mxu0 %v4523
        %5202 = vmatmul.mubr.bf16.gmra.mxu0 %v4522
        %v5203 = vpop.f32.mrf.mxu0
        %v5204 = vadd.f32 %v4759, %v5203
        %v5205 = vpop.f32.mrf.mxu0
        %v5206 = vpop.f32.mrf.mxu0
        %v5207 = vadd.f32 %v4759, %v5206
        %v5208 = vpop.f32.mrf.mxu0
        %5209 = vmatprep.mubr.bf16.mxu0 %v4531
        %5210 = vmatmul.mubr.bf16.gmra.mxu0 %v4530
        %v5211 = vpop.f32.mrf.mxu0
        %v5212 = vadd.f32 %v4759, %v5211
        %v5213 = vpop.f32.mrf.mxu0
        %v5214 = vpop.f32.mrf.mxu0
        %v5215 = vadd.f32 %v4759, %v5214
        %v5216 = vpop.f32.mrf.mxu0
        %5217 = vmatprep.mubr.bf16.mxu0 %v4539
        %5218 = vmatmul.mubr.bf16.gmra.mxu0 %v4538
        %v5219 = vpop.f32.mrf.mxu0
        %v5220 = vadd.f32 %v4759, %v5219
        %v5221 = vpop.f32.mrf.mxu0
        %v5222 = vpop.f32.mrf.mxu0
        %v5223 = vadd.f32 %v4759, %v5222
        %v5224 = vpop.f32.mrf.mxu0
        %5225 = vmatprep.mubr.bf16.mxu0 %v4547
        %5226 = vmatmul.mubr.bf16.gmra.mxu0 %v4546
        %v5227 = vpop.f32.mrf.mxu0
        %v5228 = vadd.f32 %v4759, %v5227
        %v5229 = vpop.f32.mrf.mxu0
        %v5230 = vpop.f32.mrf.mxu0
        %v5231 = vadd.f32 %v4759, %v5230
        %v5232 = vpop.f32.mrf.mxu0
        %5233 = vmatprep.mubr.bf16.mxu0 %v4555
        %5234 = vmatmul.mubr.bf16.gmra.mxu0 %v4554
        %v5235 = vpop.f32.mrf.mxu0
        %v5236 = vadd.f32 %v4759, %v5235
        %v5237 = vpop.f32.mrf.mxu0
        %v5238 = vpop.f32.mrf.mxu0
        %v5239 = vadd.f32 %v4759, %v5238
        %v5240 = vpop.f32.mrf.mxu0
        %5241 = vmatprep.mubr.bf16.mxu0 %v4563
        %5242 = vmatmul.mubr.bf16.gmra.mxu0 %v4562
        %v5243 = vpop.f32.mrf.mxu0
        %v5244 = vadd.f32 %v4759, %v5243
        %v5245 = vpop.f32.mrf.mxu0
        %v5246 = vpop.f32.mrf.mxu0
        %v5247 = vadd.f32 %v4759, %v5246
        %v5248 = vpop.f32.mrf.mxu0
        %5249 = vmatprep.mubr.bf16.mxu0 %v4571
        %5250 = vmatmul.mubr.bf16.gmra.mxu0 %v4570
        %v5251 = vpop.f32.mrf.mxu0
        %v5252 = vadd.f32 %v4759, %v5251
        %v5253 = vpop.f32.mrf.mxu0
        %v5254 = vpop.f32.mrf.mxu0
        %v5255 = vadd.f32 %v4759, %v5254
        %v5256 = vpop.f32.mrf.mxu0
        %5257 = vmatprep.mubr.bf16.mxu0 %v4579
        %5258 = vmatmul.mubr.bf16.gmra.mxu0 %v4578
        %v5259 = vpop.f32.mrf.mxu0
        %v5260 = vadd.f32 %v4759, %v5259
        %v5261 = vpop.f32.mrf.mxu0
        %v5262 = vpop.f32.mrf.mxu0
        %v5263 = vadd.f32 %v4759, %v5262
        %v5264 = vpop.f32.mrf.mxu0
        %5265 = vmatprep.mubr.bf16.mxu0 %v4587
        %5266 = vmatmul.mubr.bf16.gmra.mxu0 %v4586
        %v5267 = vpop.f32.mrf.mxu0
        %v5268 = vadd.f32 %v4759, %v5267
        %v5269 = vpop.f32.mrf.mxu0
        %v5270 = vpop.f32.mrf.mxu0
        %v5271 = vadd.f32 %v4759, %v5270
        %v5272 = vpop.f32.mrf.mxu0
        %5273 = vmatprep.mubr.bf16.mxu0 %v4595
        %5274 = vmatmul.mubr.bf16.gmra.mxu0 %v4594
        %v5275 = vpop.f32.mrf.mxu0
        %v5276 = vadd.f32 %v4759, %v5275
        %v5277 = vpop.f32.mrf.mxu0
        %v5278 = vpop.f32.mrf.mxu0
        %v5279 = vadd.f32 %v4759, %v5278
        %v5280 = vpop.f32.mrf.mxu0
        %5281 = vmatprep.mubr.bf16.mxu0 %v4603
        %5282 = vmatmul.mubr.bf16.gmra.mxu0 %v4602
        %v5283 = vpop.f32.mrf.mxu0
        %v5284 = vadd.f32 %v4759, %v5283
        %v5285 = vpop.f32.mrf.mxu0
        %v5286 = vpop.f32.mrf.mxu0
        %v5287 = vadd.f32 %v4759, %v5286
        %v5288 = vpop.f32.mrf.mxu0
        %5289 = vmatprep.mubr.bf16.mxu0 %v4611
        %5290 = vmatmul.mubr.bf16.gmra.mxu0 %v4610
        %v5291 = vpop.f32.mrf.mxu0
        %v5292 = vadd.f32 %v4759, %v5291
        %v5293 = vpop.f32.mrf.mxu0
        %v5294 = vpop.f32.mrf.mxu0
        %v5295 = vadd.f32 %v4759, %v5294
        %v5296 = vpop.f32.mrf.mxu0
        %5297 = vmatprep.mubr.bf16.mxu0 %v4619
        %5298 = vmatmul.mubr.bf16.gmra.mxu0 %v4618
        %v5299 = vpop.f32.mrf.mxu0
        %v5300 = vadd.f32 %v4759, %v5299
        %v5301 = vpop.f32.mrf.mxu0
        %v5302 = vpop.f32.mrf.mxu0
        %v5303 = vadd.f32 %v4759, %v5302
        %v5304 = vpop.f32.mrf.mxu0
        %5305 = vdwg.mxu0
        %5306 = vmatprep.subr.bf16.mxu0 0
        %5307 = vmatpush1.bf16.msra.mxu0 %v5040
        %5308 = vmatprep.subr.bf16.mxu0 0
        %5309 = vmatpush1.bf16.msra.mxu0 %v5039
        %5310 = vmatprep.subr.bf16.mxu0 0
        %5311 = vmatpush1.bf16.msra.mxu0 %v5038
        %5312 = vmatprep.subr.bf16.mxu0 0
        %5313 = vmatpush1.bf16.msra.mxu0 %v5037
        %5314 = vmatprep.subr.bf16.mxu0 0
        %5315 = vmatpush1.bf16.msra.mxu0 %v5036
        %5316 = vmatprep.subr.bf16.mxu0 0
        %5317 = vmatpush1.bf16.msra.mxu0 %v5035
        %5318 = vmatprep.subr.bf16.mxu0 0
        %5319 = vmatpush1.bf16.msra.mxu0 %v5034
        %5320 = vmatprep.subr.bf16.mxu0 0
        %5321 = vmatpush1.bf16.msra.mxu0 %v5033
        %5322 = vmatprep.subr.bf16.mxu0 0
        %5323 = vmatpush2.bf16.msra.mxu0 %v5048
        %5324 = vmatprep.subr.bf16.mxu0 0
        %5325 = vmatpush2.bf16.msra.mxu0 %v5047
        %5326 = vmatprep.subr.bf16.mxu0 0
        %5327 = vmatpush2.bf16.msra.mxu0 %v5046
        %5328 = vmatprep.subr.bf16.mxu0 0
        %5329 = vmatpush2.bf16.msra.mxu0 %v5045
        %5330 = vmatprep.subr.bf16.mxu0 0
        %5331 = vmatpush2.bf16.msra.mxu0 %v5044
        %5332 = vmatprep.subr.bf16.mxu0 0
        %5333 = vmatpush2.bf16.msra.mxu0 %v5043
        %5334 = vmatprep.subr.bf16.mxu0 0
        %5335 = vmatpush2.bf16.msra.mxu0 %v5042
        %5336 = vmatprep.subr.bf16.mxu0 0
        %5337 = vmatpush2.bf16.msra.mxu0 %v5041
        %5338 = vmatprep.mubr.bf16.mxu0 %v4501
        %5339 = vmatmul.mubr.bf16.gmra.mxu0 %v4500
        %v5340 = vpop.f32.mrf.mxu0
        %v5341 = vadd.f32 %v5180, %v5340
        %v5342 = vpop.f32.mrf.mxu0
        %v5343 = vpop.f32.mrf.mxu0
        %v5344 = vadd.f32 %v5183, %v5343
        %v5345 = vpop.f32.mrf.mxu0
        %5346 = vmatprep.mubr.bf16.mxu0 %v4509
        %5347 = vmatmul.mubr.bf16.gmra.mxu0 %v4508
        %v5348 = vpop.f32.mrf.mxu0
        %v5349 = vadd.f32 %v5188, %v5348
        %v5350 = vpop.f32.mrf.mxu0
        %v5351 = vpop.f32.mrf.mxu0
        %v5352 = vadd.f32 %v5191, %v5351
        %v5353 = vpop.f32.mrf.mxu0
        %5354 = vmatprep.mubr.bf16.mxu0 %v4517
        %5355 = vmatmul.mubr.bf16.gmra.mxu0 %v4516
        %v5356 = vpop.f32.mrf.mxu0
        %v5357 = vadd.f32 %v5196, %v5356
        %v5358 = vpop.f32.mrf.mxu0
        %v5359 = vpop.f32.mrf.mxu0
        %v5360 = vadd.f32 %v5199, %v5359
        %v5361 = vpop.f32.mrf.mxu0
        %5362 = vmatprep.mubr.bf16.mxu0 %v4525
        %5363 = vmatmul.mubr.bf16.gmra.mxu0 %v4524
        %v5364 = vpop.f32.mrf.mxu0
        %v5365 = vadd.f32 %v5204, %v5364
        %v5366 = vpop.f32.mrf.mxu0
        %v5367 = vpop.f32.mrf.mxu0
        %v5368 = vadd.f32 %v5207, %v5367
        %v5369 = vpop.f32.mrf.mxu0
        %5370 = vmatprep.mubr.bf16.mxu0 %v4533
        %5371 = vmatmul.mubr.bf16.gmra.mxu0 %v4532
        %v5372 = vpop.f32.mrf.mxu0
        %v5373 = vadd.f32 %v5212, %v5372
        %v5374 = vpop.f32.mrf.mxu0
        %v5375 = vpop.f32.mrf.mxu0
        %v5376 = vadd.f32 %v5215, %v5375
        %v5377 = vpop.f32.mrf.mxu0
        %5378 = vmatprep.mubr.bf16.mxu0 %v4541
        %5379 = vmatmul.mubr.bf16.gmra.mxu0 %v4540
        %v5380 = vpop.f32.mrf.mxu0
        %v5381 = vadd.f32 %v5220, %v5380
        %v5382 = vpop.f32.mrf.mxu0
        %v5383 = vpop.f32.mrf.mxu0
        %v5384 = vadd.f32 %v5223, %v5383
        %v5385 = vpop.f32.mrf.mxu0
        %5386 = vmatprep.mubr.bf16.mxu0 %v4549
        %5387 = vmatmul.mubr.bf16.gmra.mxu0 %v4548
        %v5388 = vpop.f32.mrf.mxu0
        %v5389 = vadd.f32 %v5228, %v5388
        %v5390 = vpop.f32.mrf.mxu0
        %v5391 = vpop.f32.mrf.mxu0
        %v5392 = vadd.f32 %v5231, %v5391
        %v5393 = vpop.f32.mrf.mxu0
        %5394 = vmatprep.mubr.bf16.mxu0 %v4557
        %5395 = vmatmul.mubr.bf16.gmra.mxu0 %v4556
        %v5396 = vpop.f32.mrf.mxu0
        %v5397 = vadd.f32 %v5236, %v5396
        %v5398 = vpop.f32.mrf.mxu0
        %v5399 = vpop.f32.mrf.mxu0
        %v5400 = vadd.f32 %v5239, %v5399
        %v5401 = vpop.f32.mrf.mxu0
        %5402 = vmatprep.mubr.bf16.mxu0 %v4565
        %5403 = vmatmul.mubr.bf16.gmra.mxu0 %v4564
        %v5404 = vpop.f32.mrf.mxu0
        %v5405 = vadd.f32 %v5244, %v5404
        %v5406 = vpop.f32.mrf.mxu0
        %v5407 = vpop.f32.mrf.mxu0
        %v5408 = vadd.f32 %v5247, %v5407
        %v5409 = vpop.f32.mrf.mxu0
        %5410 = vmatprep.mubr.bf16.mxu0 %v4573
        %5411 = vmatmul.mubr.bf16.gmra.mxu0 %v4572
        %v5412 = vpop.f32.mrf.mxu0
        %v5413 = vadd.f32 %v5252, %v5412
        %v5414 = vpop.f32.mrf.mxu0
        %v5415 = vpop.f32.mrf.mxu0
        %v5416 = vadd.f32 %v5255, %v5415
        %v5417 = vpop.f32.mrf.mxu0
        %5418 = vmatprep.mubr.bf16.mxu0 %v4581
        %5419 = vmatmul.mubr.bf16.gmra.mxu0 %v4580
        %v5420 = vpop.f32.mrf.mxu0
        %v5421 = vadd.f32 %v5260, %v5420
        %v5422 = vpop.f32.mrf.mxu0
        %v5423 = vpop.f32.mrf.mxu0
        %v5424 = vadd.f32 %v5263, %v5423
        %v5425 = vpop.f32.mrf.mxu0
        %5426 = vmatprep.mubr.bf16.mxu0 %v4589
        %5427 = vmatmul.mubr.bf16.gmra.mxu0 %v4588
        %v5428 = vpop.f32.mrf.mxu0
        %v5429 = vadd.f32 %v5268, %v5428
        %v5430 = vpop.f32.mrf.mxu0
        %v5431 = vpop.f32.mrf.mxu0
        %v5432 = vadd.f32 %v5271, %v5431
        %v5433 = vpop.f32.mrf.mxu0
        %5434 = vmatprep.mubr.bf16.mxu0 %v4597
        %5435 = vmatmul.mubr.bf16.gmra.mxu0 %v4596
        %v5436 = vpop.f32.mrf.mxu0
        %v5437 = vadd.f32 %v5276, %v5436
        %v5438 = vpop.f32.mrf.mxu0
        %v5439 = vpop.f32.mrf.mxu0
        %v5440 = vadd.f32 %v5279, %v5439
        %v5441 = vpop.f32.mrf.mxu0
        %5442 = vmatprep.mubr.bf16.mxu0 %v4605
        %5443 = vmatmul.mubr.bf16.gmra.mxu0 %v4604
        %v5444 = vpop.f32.mrf.mxu0
        %v5445 = vadd.f32 %v5284, %v5444
        %v5446 = vpop.f32.mrf.mxu0
        %v5447 = vpop.f32.mrf.mxu0
        %v5448 = vadd.f32 %v5287, %v5447
        %v5449 = vpop.f32.mrf.mxu0
        %5450 = vmatprep.mubr.bf16.mxu0 %v4613
        %5451 = vmatmul.mubr.bf16.gmra.mxu0 %v4612
        %v5452 = vpop.f32.mrf.mxu0
        %v5453 = vadd.f32 %v5292, %v5452
        %v5454 = vpop.f32.mrf.mxu0
        %v5455 = vpop.f32.mrf.mxu0
        %v5456 = vadd.f32 %v5295, %v5455
        %v5457 = vpop.f32.mrf.mxu0
        %5458 = vmatprep.mubr.bf16.mxu0 %v4621
        %5459 = vmatmul.mubr.bf16.gmra.mxu0 %v4620
        %v5460 = vpop.f32.mrf.mxu0
        %v5461 = vadd.f32 %v5300, %v5460
        %v5462 = vpop.f32.mrf.mxu0
        %v5463 = vpop.f32.mrf.mxu0
        %v5464 = vadd.f32 %v5303, %v5463
        %v5465 = vpop.f32.mrf.mxu0
        %5466 = vdwg.mxu0
        %5467 = vmatprep.subr.bf16.mxu0 0
        %5468 = vmatpush1.bf16.msra.mxu0 %v5056
        %5469 = vmatprep.subr.bf16.mxu0 0
        %5470 = vmatpush1.bf16.msra.mxu0 %v5055
        %5471 = vmatprep.subr.bf16.mxu0 0
        %5472 = vmatpush1.bf16.msra.mxu0 %v5054
        %5473 = vmatprep.subr.bf16.mxu0 0
        %5474 = vmatpush1.bf16.msra.mxu0 %v5053
        %5475 = vmatprep.subr.bf16.mxu0 0
        %5476 = vmatpush1.bf16.msra.mxu0 %v5052
        %5477 = vmatprep.subr.bf16.mxu0 0
        %5478 = vmatpush1.bf16.msra.mxu0 %v5051
        %5479 = vmatprep.subr.bf16.mxu0 0
        %5480 = vmatpush1.bf16.msra.mxu0 %v5050
        %5481 = vmatprep.subr.bf16.mxu0 0
        %5482 = vmatpush1.bf16.msra.mxu0 %v5049
        %5483 = vmatprep.subr.bf16.mxu0 0
        %5484 = vmatpush2.bf16.msra.mxu0 %v5064
        %5485 = vmatprep.subr.bf16.mxu0 0
        %5486 = vmatpush2.bf16.msra.mxu0 %v5063
        %5487 = vmatprep.subr.bf16.mxu0 0
        %5488 = vmatpush2.bf16.msra.mxu0 %v5062
        %5489 = vmatprep.subr.bf16.mxu0 0
        %5490 = vmatpush2.bf16.msra.mxu0 %v5061
        %5491 = vmatprep.subr.bf16.mxu0 0
        %5492 = vmatpush2.bf16.msra.mxu0 %v5060
        %5493 = vmatprep.subr.bf16.mxu0 0
        %5494 = vmatpush2.bf16.msra.mxu0 %v5059
        %5495 = vmatprep.subr.bf16.mxu0 0
        %5496 = vmatpush2.bf16.msra.mxu0 %v5058
        %5497 = vmatprep.subr.bf16.mxu0 0
        %5498 = vmatpush2.bf16.msra.mxu0 %v5057
        %5499 = vmatprep.mubr.bf16.mxu0 %v4503
        %5500 = vmatmul.mubr.bf16.gmra.mxu0 %v4502
        %v5501 = vpop.f32.mrf.mxu0
        %v5502 = vadd.f32 %v5341, %v5501
        %v5503 = vpop.f32.mrf.mxu0
        %v5504 = vpop.f32.mrf.mxu0
        %v5505 = vadd.f32 %v5344, %v5504
        %v5506 = vpop.f32.mrf.mxu0
        %5507 = vmatprep.mubr.bf16.mxu0 %v4511
        %5508 = vmatmul.mubr.bf16.gmra.mxu0 %v4510
        %v5509 = vpop.f32.mrf.mxu0
        %v5510 = vadd.f32 %v5349, %v5509
        %v5511 = vpop.f32.mrf.mxu0
        %v5512 = vpop.f32.mrf.mxu0
        %v5513 = vadd.f32 %v5352, %v5512
        %v5514 = vpop.f32.mrf.mxu0
        %5515 = vmatprep.mubr.bf16.mxu0 %v4519
        %5516 = vmatmul.mubr.bf16.gmra.mxu0 %v4518
        %v5517 = vpop.f32.mrf.mxu0
        %v5518 = vadd.f32 %v5357, %v5517
        %v5519 = vpop.f32.mrf.mxu0
        %v5520 = vpop.f32.mrf.mxu0
        %v5521 = vadd.f32 %v5360, %v5520
        %v5522 = vpop.f32.mrf.mxu0
        %5523 = vmatprep.mubr.bf16.mxu0 %v4527
        %5524 = vmatmul.mubr.bf16.gmra.mxu0 %v4526
        %v5525 = vpop.f32.mrf.mxu0
        %v5526 = vadd.f32 %v5365, %v5525
        %v5527 = vpop.f32.mrf.mxu0
        %v5528 = vpop.f32.mrf.mxu0
        %v5529 = vadd.f32 %v5368, %v5528
        %v5530 = vpop.f32.mrf.mxu0
        %5531 = vmatprep.mubr.bf16.mxu0 %v4535
        %5532 = vmatmul.mubr.bf16.gmra.mxu0 %v4534
        %v5533 = vpop.f32.mrf.mxu0
        %v5534 = vadd.f32 %v5373, %v5533
        %v5535 = vpop.f32.mrf.mxu0
        %v5536 = vpop.f32.mrf.mxu0
        %v5537 = vadd.f32 %v5376, %v5536
        %v5538 = vpop.f32.mrf.mxu0
        %5539 = vmatprep.mubr.bf16.mxu0 %v4543
        %5540 = vmatmul.mubr.bf16.gmra.mxu0 %v4542
        %v5541 = vpop.f32.mrf.mxu0
        %v5542 = vadd.f32 %v5381, %v5541
        %v5543 = vpop.f32.mrf.mxu0
        %v5544 = vpop.f32.mrf.mxu0
        %v5545 = vadd.f32 %v5384, %v5544
        %v5546 = vpop.f32.mrf.mxu0
        %5547 = vmatprep.mubr.bf16.mxu0 %v4551
        %5548 = vmatmul.mubr.bf16.gmra.mxu0 %v4550
        %v5549 = vpop.f32.mrf.mxu0
        %v5550 = vadd.f32 %v5389, %v5549
        %v5551 = vpop.f32.mrf.mxu0
        %v5552 = vpop.f32.mrf.mxu0
        %v5553 = vadd.f32 %v5392, %v5552
        %v5554 = vpop.f32.mrf.mxu0
        %5555 = vmatprep.mubr.bf16.mxu0 %v4559
        %5556 = vmatmul.mubr.bf16.gmra.mxu0 %v4558
        %v5557 = vpop.f32.mrf.mxu0
        %v5558 = vadd.f32 %v5397, %v5557
        %v5559 = vpop.f32.mrf.mxu0
        %v5560 = vpop.f32.mrf.mxu0
        %v5561 = vadd.f32 %v5400, %v5560
        %v5562 = vpop.f32.mrf.mxu0
        %5563 = vmatprep.mubr.bf16.mxu0 %v4567
        %5564 = vmatmul.mubr.bf16.gmra.mxu0 %v4566
        %v5565 = vpop.f32.mrf.mxu0
        %v5566 = vadd.f32 %v5405, %v5565
        %v5567 = vpop.f32.mrf.mxu0
        %v5568 = vpop.f32.mrf.mxu0
        %v5569 = vadd.f32 %v5408, %v5568
        %v5570 = vpop.f32.mrf.mxu0
        %5571 = vmatprep.mubr.bf16.mxu0 %v4575
        %5572 = vmatmul.mubr.bf16.gmra.mxu0 %v4574
        %v5573 = vpop.f32.mrf.mxu0
        %v5574 = vadd.f32 %v5413, %v5573
        %v5575 = vpop.f32.mrf.mxu0
        %v5576 = vpop.f32.mrf.mxu0
        %v5577 = vadd.f32 %v5416, %v5576
        %v5578 = vpop.f32.mrf.mxu0
        %5579 = vmatprep.mubr.bf16.mxu0 %v4583
        %5580 = vmatmul.mubr.bf16.gmra.mxu0 %v4582
        %v5581 = vpop.f32.mrf.mxu0
        %v5582 = vadd.f32 %v5421, %v5581
        %v5583 = vpop.f32.mrf.mxu0
        %v5584 = vpop.f32.mrf.mxu0
        %v5585 = vadd.f32 %v5424, %v5584
        %v5586 = vpop.f32.mrf.mxu0
        %5587 = vmatprep.mubr.bf16.mxu0 %v4591
        %5588 = vmatmul.mubr.bf16.gmra.mxu0 %v4590
        %v5589 = vpop.f32.mrf.mxu0
        %v5590 = vadd.f32 %v5429, %v5589
        %v5591 = vpop.f32.mrf.mxu0
        %v5592 = vpop.f32.mrf.mxu0
        %v5593 = vadd.f32 %v5432, %v5592
        %v5594 = vpop.f32.mrf.mxu0
        %5595 = vmatprep.mubr.bf16.mxu0 %v4599
        %5596 = vmatmul.mubr.bf16.gmra.mxu0 %v4598
        %v5597 = vpop.f32.mrf.mxu0
        %v5598 = vadd.f32 %v5437, %v5597
        %v5599 = vpop.f32.mrf.mxu0
        %v5600 = vpop.f32.mrf.mxu0
        %v5601 = vadd.f32 %v5440, %v5600
        %v5602 = vpop.f32.mrf.mxu0
        %5603 = vmatprep.mubr.bf16.mxu0 %v4607
        %5604 = vmatmul.mubr.bf16.gmra.mxu0 %v4606
        %v5605 = vpop.f32.mrf.mxu0
        %v5606 = vadd.f32 %v5445, %v5605
        %v5607 = vpop.f32.mrf.mxu0
        %v5608 = vpop.f32.mrf.mxu0
        %v5609 = vadd.f32 %v5448, %v5608
        %v5610 = vpop.f32.mrf.mxu0
        %5611 = vmatprep.mubr.bf16.mxu0 %v4615
        %5612 = vmatmul.mubr.bf16.gmra.mxu0 %v4614
        %v5613 = vpop.f32.mrf.mxu0
        %v5614 = vadd.f32 %v5453, %v5613
        %v5615 = vpop.f32.mrf.mxu0
        %v5616 = vpop.f32.mrf.mxu0
        %v5617 = vadd.f32 %v5456, %v5616
        %v5618 = vpop.f32.mrf.mxu0
        %5619 = vmatprep.mubr.bf16.mxu0 %v4623
        %5620 = vmatmul.mubr.bf16.gmra.mxu0 %v4622
        %v5621 = vpop.f32.mrf.mxu0
        %v5622 = vadd.f32 %v5461, %v5621
        %v5623 = vpop.f32.mrf.mxu0
        %v5624 = vpop.f32.mrf.mxu0
        %v5625 = vadd.f32 %v5464, %v5624
        %v5626 = vpop.f32.mrf.mxu0
        %5627 = vdwg.mxu0
        %5628 = vmatprep.subr.bf16.mxu0 0
        %5629 = vmatpush1.bf16.msra.mxu0 %v5072
        %5630 = vmatprep.subr.bf16.mxu0 0
        %5631 = vmatpush1.bf16.msra.mxu0 %v5071
        %5632 = vmatprep.subr.bf16.mxu0 0
        %5633 = vmatpush1.bf16.msra.mxu0 %v5070
        %5634 = vmatprep.subr.bf16.mxu0 0
        %5635 = vmatpush1.bf16.msra.mxu0 %v5069
        %5636 = vmatprep.subr.bf16.mxu0 0
        %5637 = vmatpush1.bf16.msra.mxu0 %v5068
        %5638 = vmatprep.subr.bf16.mxu0 0
        %5639 = vmatpush1.bf16.msra.mxu0 %v5067
        %5640 = vmatprep.subr.bf16.mxu0 0
        %5641 = vmatpush1.bf16.msra.mxu0 %v5066
        %5642 = vmatprep.subr.bf16.mxu0 0
        %5643 = vmatpush1.bf16.msra.mxu0 %v5065
        %5644 = vmatprep.subr.bf16.mxu0 0
        %5645 = vmatpush2.bf16.msra.mxu0 %v5080
        %5646 = vmatprep.subr.bf16.mxu0 0
        %5647 = vmatpush2.bf16.msra.mxu0 %v5079
        %5648 = vmatprep.subr.bf16.mxu0 0
        %5649 = vmatpush2.bf16.msra.mxu0 %v5078
        %5650 = vmatprep.subr.bf16.mxu0 0
        %5651 = vmatpush2.bf16.msra.mxu0 %v5077
        %5652 = vmatprep.subr.bf16.mxu0 0
        %5653 = vmatpush2.bf16.msra.mxu0 %v5076
        %5654 = vmatprep.subr.bf16.mxu0 0
        %5655 = vmatpush2.bf16.msra.mxu0 %v5075
        %5656 = vmatprep.subr.bf16.mxu0 0
        %5657 = vmatpush2.bf16.msra.mxu0 %v5074
        %5658 = vmatprep.subr.bf16.mxu0 0
        %5659 = vmatpush2.bf16.msra.mxu0 %v5073
        %5660 = vmatprep.mubr.bf16.mxu0 %v4505
        %5661 = vmatmul.mubr.bf16.gmra.mxu0 %v4504
        %v5662 = vpop.f32.mrf.mxu0
        %v5663 = vadd.f32 %v5502, %v5662
        %v5664 = vpop.f32.mrf.mxu0
        %v5665 = vpop.f32.mrf.mxu0
        %v5666 = vadd.f32 %v5505, %v5665
        %v5667 = vpop.f32.mrf.mxu0
        %5668 = vmatprep.mubr.bf16.mxu0 %v4513
        %5669 = vmatmul.mubr.bf16.gmra.mxu0 %v4512
        %v5670 = vpop.f32.mrf.mxu0
        %v5671 = vadd.f32 %v5510, %v5670
        %v5672 = vpop.f32.mrf.mxu0
        %v5673 = vpop.f32.mrf.mxu0
        %v5674 = vadd.f32 %v5513, %v5673
        %v5675 = vpop.f32.mrf.mxu0
        %5676 = vmatprep.mubr.bf16.mxu0 %v4521
        %5677 = vmatmul.mubr.bf16.gmra.mxu0 %v4520
        %v5678 = vpop.f32.mrf.mxu0
        %v5679 = vadd.f32 %v5518, %v5678
        %v5680 = vpop.f32.mrf.mxu0
        %v5681 = vpop.f32.mrf.mxu0
        %v5682 = vadd.f32 %v5521, %v5681
        %v5683 = vpop.f32.mrf.mxu0
        %5684 = vmatprep.mubr.bf16.mxu0 %v4529
        %5685 = vmatmul.mubr.bf16.gmra.mxu0 %v4528
        %v5686 = vpop.f32.mrf.mxu0
        %v5687 = vadd.f32 %v5526, %v5686
        %v5688 = vpop.f32.mrf.mxu0
        %v5689 = vpop.f32.mrf.mxu0
        %v5690 = vadd.f32 %v5529, %v5689
        %v5691 = vpop.f32.mrf.mxu0
        %5692 = vmatprep.mubr.bf16.mxu0 %v4537
        %5693 = vmatmul.mubr.bf16.gmra.mxu0 %v4536
        %v5694 = vpop.f32.mrf.mxu0
        %v5695 = vadd.f32 %v5534, %v5694
        %v5696 = vpop.f32.mrf.mxu0
        %v5697 = vpop.f32.mrf.mxu0
        %v5698 = vadd.f32 %v5537, %v5697
        %v5699 = vpop.f32.mrf.mxu0
        %5700 = vmatprep.mubr.bf16.mxu0 %v4545
        %5701 = vmatmul.mubr.bf16.gmra.mxu0 %v4544
        %v5702 = vpop.f32.mrf.mxu0
        %v5703 = vadd.f32 %v5542, %v5702
        %v5704 = vpop.f32.mrf.mxu0
        %v5705 = vpop.f32.mrf.mxu0
        %v5706 = vadd.f32 %v5545, %v5705
        %v5707 = vpop.f32.mrf.mxu0
        %5708 = vmatprep.mubr.bf16.mxu0 %v4553
        %5709 = vmatmul.mubr.bf16.gmra.mxu0 %v4552
        %v5710 = vpop.f32.mrf.mxu0
        %v5711 = vadd.f32 %v5550, %v5710
        %v5712 = vpop.f32.mrf.mxu0
        %v5713 = vpop.f32.mrf.mxu0
        %v5714 = vadd.f32 %v5553, %v5713
        %v5715 = vpop.f32.mrf.mxu0
        %5716 = vmatprep.mubr.bf16.mxu0 %v4561
        %5717 = vmatmul.mubr.bf16.gmra.mxu0 %v4560
        %v5718 = vpop.f32.mrf.mxu0
        %v5719 = vadd.f32 %v5558, %v5718
        %v5720 = vpop.f32.mrf.mxu0
        %v5721 = vpop.f32.mrf.mxu0
        %v5722 = vadd.f32 %v5561, %v5721
        %v5723 = vpop.f32.mrf.mxu0
        %5724 = vmatprep.mubr.bf16.mxu0 %v4569
        %5725 = vmatmul.mubr.bf16.gmra.mxu0 %v4568
        %v5726 = vpop.f32.mrf.mxu0
        %v5727 = vadd.f32 %v5566, %v5726
        %v5728 = vpop.f32.mrf.mxu0
        %v5729 = vpop.f32.mrf.mxu0
        %v5730 = vadd.f32 %v5569, %v5729
        %v5731 = vpop.f32.mrf.mxu0
        %5732 = vmatprep.mubr.bf16.mxu0 %v4577
        %5733 = vmatmul.mubr.bf16.gmra.mxu0 %v4576
        %v5734 = vpop.f32.mrf.mxu0
        %v5735 = vadd.f32 %v5574, %v5734
        %v5736 = vpop.f32.mrf.mxu0
        %v5737 = vpop.f32.mrf.mxu0
        %v5738 = vadd.f32 %v5577, %v5737
        %v5739 = vpop.f32.mrf.mxu0
        %5740 = vmatprep.mubr.bf16.mxu0 %v4585
        %5741 = vmatmul.mubr.bf16.gmra.mxu0 %v4584
        %v5742 = vpop.f32.mrf.mxu0
        %v5743 = vadd.f32 %v5582, %v5742
        %v5744 = vpop.f32.mrf.mxu0
        %v5745 = vpop.f32.mrf.mxu0
        %v5746 = vadd.f32 %v5585, %v5745
        %v5747 = vpop.f32.mrf.mxu0
        %5748 = vmatprep.mubr.bf16.mxu0 %v4593
        %5749 = vmatmul.mubr.bf16.gmra.mxu0 %v4592
        %v5750 = vpop.f32.mrf.mxu0
        %v5751 = vadd.f32 %v5590, %v5750
        %v5752 = vpop.f32.mrf.mxu0
        %v5753 = vpop.f32.mrf.mxu0
        %v5754 = vadd.f32 %v5593, %v5753
        %v5755 = vpop.f32.mrf.mxu0
        %5756 = vmatprep.mubr.bf16.mxu0 %v4601
        %5757 = vmatmul.mubr.bf16.gmra.mxu0 %v4600
        %v5758 = vpop.f32.mrf.mxu0
        %v5759 = vadd.f32 %v5598, %v5758
        %v5760 = vpop.f32.mrf.mxu0
        %v5761 = vpop.f32.mrf.mxu0
        %v5762 = vadd.f32 %v5601, %v5761
        %v5763 = vpop.f32.mrf.mxu0
        %5764 = vmatprep.mubr.bf16.mxu0 %v4609
        %5765 = vmatmul.mubr.bf16.gmra.mxu0 %v4608
        %v5766 = vpop.f32.mrf.mxu0
        %v5767 = vadd.f32 %v5606, %v5766
        %v5768 = vpop.f32.mrf.mxu0
        %v5769 = vpop.f32.mrf.mxu0
        %v5770 = vadd.f32 %v5609, %v5769
        %v5771 = vpop.f32.mrf.mxu0
        %5772 = vmatprep.mubr.bf16.mxu0 %v4617
        %5773 = vmatmul.mubr.bf16.gmra.mxu0 %v4616
        %v5774 = vpop.f32.mrf.mxu0
        %v5775 = vadd.f32 %v5614, %v5774
        %v5776 = vpop.f32.mrf.mxu0
        %v5777 = vpop.f32.mrf.mxu0
        %v5778 = vadd.f32 %v5617, %v5777
        %v5779 = vpop.f32.mrf.mxu0
        %5780 = vmatprep.mubr.bf16.mxu0 %v4625
        %5781 = vmatmul.mubr.bf16.gmra.mxu0 %v4624
        %v5782 = vpop.f32.mrf.mxu0
        %v5783 = vadd.f32 %v5622, %v5782
        %v5784 = vpop.f32.mrf.mxu0
        %v5785 = vpop.f32.mrf.mxu0
        %v5786 = vadd.f32 %v5625, %v5785
        %v5787 = vpop.f32.mrf.mxu0
        %5788 = vdwg.mxu0
        %5789 = vmax.xlane.f32.xlu0 %v5663
        %v5790 = vpop.xlane.xlu0 %5789
        %5791 = vmax.xlane.f32.xlu0 %v5666
        %v5792 = vpop.xlane.xlu0 %5791
        %5793 = vmax.xlane.f32.xlu0 %v5671
        %v5794 = vpop.xlane.xlu0 %5793
        %5795 = vmax.xlane.f32.xlu0 %v5674
        %v5796 = vpop.xlane.xlu0 %5795
        %5797 = vmax.xlane.f32.xlu0 %v5679
        %v5798 = vpop.xlane.xlu0 %5797
        %5799 = vmax.xlane.f32.xlu0 %v5682
        %v5800 = vpop.xlane.xlu0 %5799
        %5801 = vmax.xlane.f32.xlu0 %v5687
        %v5802 = vpop.xlane.xlu0 %5801
        %5803 = vmax.xlane.f32.xlu0 %v5690
        %v5804 = vpop.xlane.xlu0 %5803
        %5805 = vmax.xlane.f32.xlu0 %v5695
        %v5806 = vpop.xlane.xlu0 %5805
        %5807 = vmax.xlane.f32.xlu0 %v5698
        %v5808 = vpop.xlane.xlu0 %5807
        %5809 = vmax.xlane.f32.xlu0 %v5703
        %v5810 = vpop.xlane.xlu0 %5809
        %5811 = vmax.xlane.f32.xlu0 %v5706
        %v5812 = vpop.xlane.xlu0 %5811
        %5813 = vmax.xlane.f32.xlu0 %v5711
        %v5814 = vpop.xlane.xlu0 %5813
        %5815 = vmax.xlane.f32.xlu0 %v5714
        %v5816 = vpop.xlane.xlu0 %5815
        %5817 = vmax.xlane.f32.xlu0 %v5719
        %v5818 = vpop.xlane.xlu0 %5817
        %5819 = vmax.xlane.f32.xlu0 %v5722
        %v5820 = vpop.xlane.xlu0 %5819
        %5821 = vmax.xlane.f32.xlu0 %v5727
        %v5822 = vpop.xlane.xlu0 %5821
        %5823 = vmax.xlane.f32.xlu0 %v5730
        %v5824 = vpop.xlane.xlu0 %5823
        %5825 = vmax.xlane.f32.xlu0 %v5735
        %v5826 = vpop.xlane.xlu0 %5825
        %5827 = vmax.xlane.f32.xlu0 %v5738
        %v5828 = vpop.xlane.xlu0 %5827
        %5829 = vmax.xlane.f32.xlu0 %v5743
        %v5830 = vpop.xlane.xlu0 %5829
        %5831 = vmax.xlane.f32.xlu0 %v5746
        %v5832 = vpop.xlane.xlu0 %5831
        %5833 = vmax.xlane.f32.xlu0 %v5751
        %v5834 = vpop.xlane.xlu0 %5833
        %5835 = vmax.xlane.f32.xlu0 %v5754
        %v5836 = vpop.xlane.xlu0 %5835
        %5837 = vmax.xlane.f32.xlu0 %v5759
        %v5838 = vpop.xlane.xlu0 %5837
        %5839 = vmax.xlane.f32.xlu0 %v5762
        %v5840 = vpop.xlane.xlu0 %5839
        %5841 = vmax.xlane.f32.xlu0 %v5767
        %v5842 = vpop.xlane.xlu0 %5841
        %5843 = vmax.xlane.f32.xlu0 %v5770
        %v5844 = vpop.xlane.xlu0 %5843
        %5845 = vmax.xlane.f32.xlu0 %v5775
        %v5846 = vpop.xlane.xlu0 %5845
        %5847 = vmax.xlane.f32.xlu0 %v5778
        %v5848 = vpop.xlane.xlu0 %5847
        %5849 = vmax.xlane.f32.xlu0 %v5783
        %v5850 = vpop.xlane.xlu0 %5849
        %5851 = vmax.xlane.f32.xlu0 %v5786
        %v5852 = vpop.xlane.xlu0 %5851
        %v5853 = vsub.f32 %v5663, %v5790
        %v5854 = vsub.f32 %v5666, %v5792
        %v5855 = vsub.f32 %v5671, %v5794
        %v5856 = vsub.f32 %v5674, %v5796
        %v5857 = vsub.f32 %v5679, %v5798
        %v5858 = vsub.f32 %v5682, %v5800
        %v5859 = vsub.f32 %v5687, %v5802
        %v5860 = vsub.f32 %v5690, %v5804
        %v5861 = vsub.f32 %v5695, %v5806
        %v5862 = vsub.f32 %v5698, %v5808
        %v5863 = vsub.f32 %v5703, %v5810
        %v5864 = vsub.f32 %v5706, %v5812
        %v5865 = vsub.f32 %v5711, %v5814
        %v5866 = vsub.f32 %v5714, %v5816
        %v5867 = vsub.f32 %v5719, %v5818
        %v5868 = vsub.f32 %v5722, %v5820
        %v5869 = vsub.f32 %v5727, %v5822
        %v5870 = vsub.f32 %v5730, %v5824
        %v5871 = vsub.f32 %v5735, %v5826
        %v5872 = vsub.f32 %v5738, %v5828
        %v5873 = vsub.f32 %v5743, %v5830
        %v5874 = vsub.f32 %v5746, %v5832
        %v5875 = vsub.f32 %v5751, %v5834
        %v5876 = vsub.f32 %v5754, %v5836
        %v5877 = vsub.f32 %v5759, %v5838
        %v5878 = vsub.f32 %v5762, %v5840
        %v5879 = vsub.f32 %v5767, %v5842
        %v5880 = vsub.f32 %v5770, %v5844
        %v5881 = vsub.f32 %v5775, %v5846
        %v5882 = vsub.f32 %v5778, %v5848
        %v5883 = vsub.f32 %v5783, %v5850
        %v5884 = vsub.f32 %v5786, %v5852
        %v5885 = vmul.f32 %v5853, 1.442695
        %v5886 = vpow.pop %v5885
        %v5887 = vmul.f32 %v5854, 1.442695
        %v5888 = vpow.pop %v5887
        %v5889 = vmul.f32 %v5855, 1.442695
        %v5890 = vpow.pop %v5889
        %v5891 = vmul.f32 %v5856, 1.442695
        %v5892 = vpow.pop %v5891
        %v5893 = vmul.f32 %v5857, 1.442695
        %v5894 = vpow.pop %v5893
        %v5895 = vmul.f32 %v5858, 1.442695
        %v5896 = vpow.pop %v5895
        %v5897 = vmul.f32 %v5859, 1.442695
        %v5898 = vpow.pop %v5897
        %v5899 = vmul.f32 %v5860, 1.442695
        %v5900 = vpow.pop %v5899
        %v5901 = vmul.f32 %v5861, 1.442695
        %v5902 = vpow.pop %v5901
        %v5903 = vmul.f32 %v5862, 1.442695
        %v5904 = vpow.pop %v5903
        %v5905 = vmul.f32 %v5863, 1.442695
        %v5906 = vpow.pop %v5905
        %v5907 = vmul.f32 %v5864, 1.442695
        %v5908 = vpow.pop %v5907
        %v5909 = vmul.f32 %v5865, 1.442695
        %v5910 = vpow.pop %v5909
        %v5911 = vmul.f32 %v5866, 1.442695
        %v5912 = vpow.pop %v5911
        %v5913 = vmul.f32 %v5867, 1.442695
        %v5914 = vpow.pop %v5913
        %v5915 = vmul.f32 %v5868, 1.442695
        %v5916 = vpow.pop %v5915
        %v5917 = vmul.f32 %v5869, 1.442695
        %v5918 = vpow.pop %v5917
        %v5919 = vmul.f32 %v5870, 1.442695
        %v5920 = vpow.pop %v5919
        %v5921 = vmul.f32 %v5871, 1.442695
        %v5922 = vpow.pop %v5921
        %v5923 = vmul.f32 %v5872, 1.442695
        %v5924 = vpow.pop %v5923
        %v5925 = vmul.f32 %v5873, 1.442695
        %v5926 = vpow.pop %v5925
        %v5927 = vmul.f32 %v5874, 1.442695
        %v5928 = vpow.pop %v5927
        %v5929 = vmul.f32 %v5875, 1.442695
        %v5930 = vpow.pop %v5929
        %v5931 = vmul.f32 %v5876, 1.442695
        %v5932 = vpow.pop %v5931
        %v5933 = vmul.f32 %v5877, 1.442695
        %v5934 = vpow.pop %v5933
        %v5935 = vmul.f32 %v5878, 1.442695
        %v5936 = vpow.pop %v5935
        %v5937 = vmul.f32 %v5879, 1.442695
        %v5938 = vpow.pop %v5937
        %v5939 = vmul.f32 %v5880, 1.442695
        %v5940 = vpow.pop %v5939
        %v5941 = vmul.f32 %v5881, 1.442695
        %v5942 = vpow.pop %v5941
        %v5943 = vmul.f32 %v5882, 1.442695
        %v5944 = vpow.pop %v5943
        %v5945 = vmul.f32 %v5883, 1.442695
        %v5946 = vpow.pop %v5945
        %v5947 = vmul.f32 %v5884, 1.442695
        %v5948 = vpow.pop %v5947
        %5949 = vadd.xlane.f32.xlu0 %v5886
        %v5950 = vpop.xlane.xlu0 %5949
        %5951 = vadd.xlane.f32.xlu0 %v5888
        %v5952 = vpop.xlane.xlu0 %5951
        %5953 = vadd.xlane.f32.xlu0 %v5890
        %v5954 = vpop.xlane.xlu0 %5953
        %5955 = vadd.xlane.f32.xlu0 %v5892
        %v5956 = vpop.xlane.xlu0 %5955
        %5957 = vadd.xlane.f32.xlu0 %v5894
        %v5958 = vpop.xlane.xlu0 %5957
        %5959 = vadd.xlane.f32.xlu0 %v5896
        %v5960 = vpop.xlane.xlu0 %5959
        %5961 = vadd.xlane.f32.xlu0 %v5898
        %v5962 = vpop.xlane.xlu0 %5961
        %5963 = vadd.xlane.f32.xlu0 %v5900
        %v5964 = vpop.xlane.xlu0 %5963
        %5965 = vadd.xlane.f32.xlu0 %v5902
        %v5966 = vpop.xlane.xlu0 %5965
        %5967 = vadd.xlane.f32.xlu0 %v5904
        %v5968 = vpop.xlane.xlu0 %5967
        %5969 = vadd.xlane.f32.xlu0 %v5906
        %v5970 = vpop.xlane.xlu0 %5969
        %5971 = vadd.xlane.f32.xlu0 %v5908
        %v5972 = vpop.xlane.xlu0 %5971
        %5973 = vadd.xlane.f32.xlu0 %v5910
        %v5974 = vpop.xlane.xlu0 %5973
        %5975 = vadd.xlane.f32.xlu0 %v5912
        %v5976 = vpop.xlane.xlu0 %5975
        %5977 = vadd.xlane.f32.xlu0 %v5914
        %v5978 = vpop.xlane.xlu0 %5977
        %5979 = vadd.xlane.f32.xlu0 %v5916
        %v5980 = vpop.xlane.xlu0 %5979
        %5981 = vadd.xlane.f32.xlu0 %v5918
        %v5982 = vpop.xlane.xlu0 %5981
        %5983 = vadd.xlane.f32.xlu0 %v5920
        %v5984 = vpop.xlane.xlu0 %5983
        %5985 = vadd.xlane.f32.xlu0 %v5922
        %v5986 = vpop.xlane.xlu0 %5985
        %5987 = vadd.xlane.f32.xlu0 %v5924
        %v5988 = vpop.xlane.xlu0 %5987
        %5989 = vadd.xlane.f32.xlu0 %v5926
        %v5990 = vpop.xlane.xlu0 %5989
        %5991 = vadd.xlane.f32.xlu0 %v5928
        %v5992 = vpop.xlane.xlu0 %5991
        %5993 = vadd.xlane.f32.xlu0 %v5930
        %v5994 = vpop.xlane.xlu0 %5993
        %5995 = vadd.xlane.f32.xlu0 %v5932
        %v5996 = vpop.xlane.xlu0 %5995
        %5997 = vadd.xlane.f32.xlu0 %v5934
        %v5998 = vpop.xlane.xlu0 %5997
        %5999 = vadd.xlane.f32.xlu0 %v5936
        %v6000 = vpop.xlane.xlu0 %5999
        %6001 = vadd.xlane.f32.xlu0 %v5938
        %v6002 = vpop.xlane.xlu0 %6001
        %6003 = vadd.xlane.f32.xlu0 %v5940
        %v6004 = vpop.xlane.xlu0 %6003
        %6005 = vadd.xlane.f32.xlu0 %v5942
        %v6006 = vpop.xlane.xlu0 %6005
        %6007 = vadd.xlane.f32.xlu0 %v5944
        %v6008 = vpop.xlane.xlu0 %6007
        %6009 = vadd.xlane.f32.xlu0 %v5946
        %v6010 = vpop.xlane.xlu0 %6009
        %6011 = vadd.xlane.f32.xlu0 %v5948
        %v6012 = vpop.xlane.xlu0 %6011
        %v6013 = vrcp.pop %v5950
        %v6014 = vmul.f32 %v5886, %v6013
        %v6015 = vrcp.pop %v5952
        %v6016 = vmul.f32 %v5888, %v6015
        %v6017 = vrcp.pop %v5954
        %v6018 = vmul.f32 %v5890, %v6017
        %v6019 = vrcp.pop %v5956
        %v6020 = vmul.f32 %v5892, %v6019
        %v6021 = vrcp.pop %v5958
        %v6022 = vmul.f32 %v5894, %v6021
        %v6023 = vrcp.pop %v5960
        %v6024 = vmul.f32 %v5896, %v6023
        %v6025 = vrcp.pop %v5962
        %v6026 = vmul.f32 %v5898, %v6025
        %v6027 = vrcp.pop %v5964
        %v6028 = vmul.f32 %v5900, %v6027
        %v6029 = vrcp.pop %v5966
        %v6030 = vmul.f32 %v5902, %v6029
        %v6031 = vrcp.pop %v5968
        %v6032 = vmul.f32 %v5904, %v6031
        %v6033 = vrcp.pop %v5970
        %v6034 = vmul.f32 %v5906, %v6033
        %v6035 = vrcp.pop %v5972
        %v6036 = vmul.f32 %v5908, %v6035
        %v6037 = vrcp.pop %v5974
        %v6038 = vmul.f32 %v5910, %v6037
        %v6039 = vrcp.pop %v5976
        %v6040 = vmul.f32 %v5912, %v6039
        %v6041 = vrcp.pop %v5978
        %v6042 = vmul.f32 %v5914, %v6041
        %v6043 = vrcp.pop %v5980
        %v6044 = vmul.f32 %v5916, %v6043
        %v6045 = vrcp.pop %v5982
        %v6046 = vmul.f32 %v5918, %v6045
        %v6047 = vrcp.pop %v5984
        %v6048 = vmul.f32 %v5920, %v6047
        %v6049 = vrcp.pop %v5986
        %v6050 = vmul.f32 %v5922, %v6049
        %v6051 = vrcp.pop %v5988
        %v6052 = vmul.f32 %v5924, %v6051
        %v6053 = vrcp.pop %v5990
        %v6054 = vmul.f32 %v5926, %v6053
        %v6055 = vrcp.pop %v5992
        %v6056 = vmul.f32 %v5928, %v6055
        %v6057 = vrcp.pop %v5994
        %v6058 = vmul.f32 %v5930, %v6057
        %v6059 = vrcp.pop %v5996
        %v6060 = vmul.f32 %v5932, %v6059
        %v6061 = vrcp.pop %v5998
        %v6062 = vmul.f32 %v5934, %v6061
        %v6063 = vrcp.pop %v6000
        %v6064 = vmul.f32 %v5936, %v6063
        %v6065 = vrcp.pop %v6002
        %v6066 = vmul.f32 %v5938, %v6065
        %v6067 = vrcp.pop %v6004
        %v6068 = vmul.f32 %v5940, %v6067
        %v6069 = vrcp.pop %v6006
        %v6070 = vmul.f32 %v5942, %v6069
        %v6071 = vrcp.pop %v6008
        %v6072 = vmul.f32 %v5944, %v6071
        %v6073 = vrcp.pop %v6010
        %v6074 = vmul.f32 %v5946, %v6073
        %v6075 = vrcp.pop %v6012
        %v6076 = vmul.f32 %v5948, %v6075
        %6077 = vst [vmem:[%s302] sm:$0xff] %v6014
        %6078 = vst [vmem:[%s302 + $0x8] sm:$0xff] %v6016
        %6079 = vst [vmem:[%s302 + $0x10] sm:$0xff] %v6018
        %6080 = vst [vmem:[%s302 + $0x18] sm:$0xff] %v6020
        %6081 = vst [vmem:[%s302 + $0x20] sm:$0xff] %v6022
        %6082 = vst [vmem:[%s302 + $0x28] sm:$0xff] %v6024
        %6083 = vst [vmem:[%s302 + $0x30] sm:$0xff] %v6026
        %6084 = vst [vmem:[%s302 + $0x38] sm:$0xff] %v6028
        %6085 = vst [vmem:[%s302 + $0x40] sm:$0xff] %v6030
        %6086 = vst [vmem:[%s302 + $0x48] sm:$0xff] %v6032
        %6087 = vst [vmem:[%s302 + $0x50] sm:$0xff] %v6034
        %6088 = vst [vmem:[%s302 + $0x58] sm:$0xff] %v6036
        %6089 = vst [vmem:[%s302 + $0x60] sm:$0xff] %v6038
        %6090 = vst [vmem:[%s302 + $0x68] sm:$0xff] %v6040
        %6091 = vst [vmem:[%s302 + $0x70] sm:$0xff] %v6042
        %6092 = vst [vmem:[%s302 + $0x78] sm:$0xff] %v6044
        %6093 = vst [vmem:[%s302 + $0x80] sm:$0xff] %v6046
        %6094 = vst [vmem:[%s302 + $0x88] sm:$0xff] %v6048
        %6095 = vst [vmem:[%s302 + $0x90] sm:$0xff] %v6050
        %6096 = vst [vmem:[%s302 + $0x98] sm:$0xff] %v6052
        %6097 = vst [vmem:[%s302 + $0xa0] sm:$0xff] %v6054
        %6098 = vst [vmem:[%s302 + $0xa8] sm:$0xff] %v6056
        %6099 = vst [vmem:[%s302 + $0xb0] sm:$0xff] %v6058
        %6100 = vst [vmem:[%s302 + $0xb8] sm:$0xff] %v6060
        %6101 = vst [vmem:[%s302 + $0xc0] sm:$0xff] %v6062
        %6102 = vst [vmem:[%s302 + $0xc8] sm:$0xff] %v6064
        %6103 = vst [vmem:[%s302 + $0xd0] sm:$0xff] %v6066
        %6104 = vst [vmem:[%s302 + $0xd8] sm:$0xff] %v6068
        %6105 = vst [vmem:[%s302 + $0xe0] sm:$0xff] %v6070
        %6106 = vst [vmem:[%s302 + $0xe8] sm:$0xff] %v6072
        %6107 = vst [vmem:[%s302 + $0xf0] sm:$0xff] %v6074
        %6108 = vst [vmem:[%s302 + $0xf8] sm:$0xff] %v6076
        %s6109 = sand.u32 %s183, 1
        %s6110 = scalar_lea.sflag [#allocation4], %s6109
        %s6111 = sand.u32 %s183, 1
        %s6112 = smul.addr %s6111, 256
        %s6113 = scalar_lea.vmem [#allocation7], %s6112
        // Predicated region
        $region57: #{tpu_custom_call.1} parent=47 // pred_check
          %p6114 = pneg %p193
        $region58: #{tpu_custom_call.1} parent=47 // pred_check_branch
          %6116 = sbr.rel (%p6114) target = $region60
        $region59: #{tpu_custom_call.1} parent=47 // pred_region
          %s6117 = smul.u32 32, %s23
          %s6119 = ssub.s32 4096, 4096
          %6120 = vsyncadd %s6110, %s6119
          %s6121 = smul.addr %s6117, 128
          %s6122 = scalar_lea.hbm %s7, %s6121
          %s6123 = sshll.u32 %s6113, 4
          %s6124 = int_to_ptr.vmem [resolvable:$true] %s6123
          %6129 = dma.vmem_to_hbm [thread:$0]  %s6124, 4096, %s6122, %s6110, 128, 128, 8
        $region60: #{tpu_custom_call.1} parent=47 // pred_fallthru
          _
      $region48: #{tpu_custom_call.1} parent=5 // pred_fallthru
        _
      %p6130 = scmp.le.s32.totalorder 2, %s18
      // Predicated region
      $region61: #{tpu_custom_call.1} parent=5 // pred_check
        %p6131 = pneg %p6130
      $region62: #{tpu_custom_call.1} parent=5 // pred_check_branch
        %6133 = sbr.rel (%p6131) target = $region64
      $region63: #{tpu_custom_call.1} parent=5 // pred_region
        %s6134 = ssub.s32 %s18, 2
        // Predicated region
        $region65: #{tpu_custom_call.1} parent=63 // pred_check
          %p6135 = pneg %p199
        $region66: #{tpu_custom_call.1} parent=63 // pred_check_branch
          %6137 = sbr.rel (%p6135) target = $region68
        $region67: #{tpu_custom_call.1} parent=63 // pred_region
          %s6138 = sand.u32 %s184, 1
          %s6139 = scalar_lea.sflag [#allocation4], %s6138
          %s6140 = sand.u32 %s184, 1
          %s6141 = smul.addr %s6140, 256
          %s6142 = scalar_lea.vmem [#allocation7], %s6141
          %6143 = dma.done %s6139, 4096
        $region68: #{tpu_custom_call.1} parent=63 // pred_fallthru
          _
      $region64: #{tpu_custom_call.1} parent=5 // pred_fallthru
        _
    $region6: #{tpu_custom_call.1} parent=1 // loop_footer
      %s22 = sadd.s32 1, %s18
    $region7: #{tpu_custom_call.1} parent=1 // loop_footer_branch
      %17 = sbr.rel target = $region3
    $region8: #{tpu_custom_call.1} parent=1 // loop_exit
      _
    %6144 = vsyncpa [#allocation3], 1
    %s6145 = scalar_lea.sflag [#allocation3], 1
    %6146 = vsyncpa %s6145, 1
    %6147 = vsyncpa [#allocation6], 1
    %6148 = vsyncpa [#allocation4], 1
    %s6149 = scalar_lea.sflag [#allocation4], 1
    %6150 = vsyncpa %s6149, 1

</llo_original>
